<compile_context>
chip_gen: v5e
topology: v5e:2x2
jax: 0.10.0
libtpu: 0.0.40
codegen_flags: <defaults>
</compile_context>

<pallas_src>
import math
import jax
import jax.numpy as jnp
from jax.experimental import pallas as pl
from jax.experimental.pallas import tpu as pltpu

INPUT_SZ = 1
NEURON   = 128
SYNAPSE  = NEURON * NEURON      # 16384
GLIA     = 64
OUT_SZ   = 3
GAMA     = 0.2
TAU      = 0.02

_CP = pltpu.CompilerParams(
    dimension_semantics=("arbitrary",),        # time recurrence is sequential
    vmem_limit_bytes=32 * 1024 * 1024,         # ~17 MiB actually used; legal on v5e/v6e/v7x
)


def _mynet_kernel(hs_ref, x0_ref, w0_ref, z0_ref,
                  win1_ref, win2_ref, c2d_ref, d_ref, f_ref, h_ref,
                  fcw_ref, fcb_ref,
                  out_ref, x_ref, w_ref, z_ref):
    """One fused time step; grid axis 0 is time.  States live in the revisited output
    blocks (x_ref, w_ref, z_ref); all weights stay VMEM-resident across the grid."""
    t = pl.program_id(0)

    @pl.when(t == 0)
    def _init():
        x_ref[...] = x0_ref[...]
        w_ref[...] = w0_ref[...]
        z_ref[...] = z0_ref[...]

    inp = hs_ref[0]                      # (1, INPUT_SZ) == (1, 1) scalar input of this step
    x = x_ref[...]                       # (1, N)
    w2d = w_ref[...]                     # (N, N)  == torch w_t reshaped row-major
    z = z_ref[...]                       # (1, G)

    # ---- neuron update:  x <- (1-g) x + g (sigmoid(x) @ W + inputs @ W_in1)
    s_old = jax.nn.sigmoid(x)
    recur = jnp.dot(s_old, w2d, preferred_element_type=jnp.float32)
    # INPUT_SZ == 1  =>  inputs @ W_in1 == inputs[0, 0] * W_in1 (plain broadcast multiply)
    x_new = (1.0 - GAMA) * x + GAMA * (recur + inp * win1_ref[...])
    x_ref[...] = x_new

    # ---- readout head (Linear(128, 3)) on the new x
    out_ref[0] = (jnp.dot(x_new, fcw_ref[...], preferred_element_type=jnp.float32)
                  + fcb_ref[...])

    # ---- sigmoid outer product, kept in (N, N) layout.
    # s_col[i, j] = s_i via a canonical full-tile (128, 128) transpose (XLU path).
    s = jax.nn.sigmoid(x_new)                                    # (1, N)
    s_col = jnp.transpose(jnp.broadcast_to(s, (NEURON, NEURON)))  # (N, N): [i, j] = s_i
    outer2d = s_col * s                                           # (N, N): [i, j] = s_i * s_j

    # ---- synapse update (elementwise work stays in the dense (N, N) layout)
    tz = jnp.tanh(z)                                                        # (1, G)
    td = jnp.dot(tz, d_ref[...], preferred_element_type=jnp.float32)        # (1, S)
    td2d = td.reshape(NEURON, NEURON)        # row-major relayout == torch reshape
    w_ref[...] = (1.0 - GAMA) * w2d + GAMA * (outer2d * c2d_ref[...] + td2d)

    # ---- glia update
    of_flat = outer2d.reshape(1, SYNAPSE)    # row-major flatten == torch reshape(., (1, -1))
    tf = jnp.dot(tz, f_ref[...], preferred_element_type=jnp.float32)        # (1, G)
    oh = jnp.dot(of_flat, h_ref[...], preferred_element_type=jnp.float32)   # (1, G)
    gt = GAMA * TAU
    z_ref[...] = (1.0 - gt) * z + gt * (tf + oh + inp * win2_ref[...])


def mynet_rollout(params, hs, hidden):
    """Run T fused steps inside a single pallas_call.
    hs: (T, 1, INPUT_SZ). hidden: (x (1,N), w (N,N), z (1,G)).
    Returns (out_seq (T, 1, OUT_SZ), new_hidden)."""
    T = hs.shape[0]
    x0, w0, z0 = hidden
    c2d = params["C"].reshape(NEURON, NEURON)   # one-time layout prep outside the kernel

    cost = pl.CostEstimate(
        flops=int(T * 4.4e6),
        transcendentals=int(T * 320),
        bytes_accessed=int(8.6e6 + T * 96),
    )
    out_seq, x_t, w_t, z_t = pl.pallas_call(
        _mynet_kernel,
        grid=(T,),
        in_specs=[
            pl.BlockSpec((1, 1, INPUT_SZ), lambda t: (t, 0, 0)),   # hs (per-step slab)
            pl.BlockSpec((1, NEURON), lambda t: (0, 0)),           # x0
            pl.BlockSpec((NEURON, NEURON), lambda t: (0, 0)),      # w0
            pl.BlockSpec((1, GLIA), lambda t: (0, 0)),             # z0
            pl.BlockSpec((INPUT_SZ, NEURON), lambda t: (0, 0)),    # W_in1
            pl.BlockSpec((INPUT_SZ, GLIA), lambda t: (0, 0)),      # W_in2
            pl.BlockSpec((NEURON, NEURON), lambda t: (0, 0)),      # C as (N, N)
            pl.BlockSpec((GLIA, SYNAPSE), lambda t: (0, 0)),       # D (resident, 4 MiB)
            pl.BlockSpec((GLIA, GLIA), lambda t: (0, 0)),          # F
            pl.BlockSpec((SYNAPSE, GLIA), lambda t: (0, 0)),       # H (resident, 4 MiB)
            pl.BlockSpec((NEURON, OUT_SZ), lambda t: (0, 0)),      # fc_w
            pl.BlockSpec((1, OUT_SZ), lambda t: (0, 0)),           # fc_b
        ],
        out_specs=[
            pl.BlockSpec((1, 1, OUT_SZ), lambda t: (t, 0, 0)),     # per-step fc output
            pl.BlockSpec((1, NEURON), lambda t: (0, 0)),           # x carry / final
            pl.BlockSpec((NEURON, NEURON), lambda t: (0, 0)),      # w carry / final
            pl.BlockSpec((1, GLIA), lambda t: (0, 0)),             # z carry / final
        ],
        out_shape=[
            jax.ShapeDtypeStruct((T, 1, OUT_SZ), jnp.float32),
            jax.ShapeDtypeStruct((1, NEURON), jnp.float32),
            jax.ShapeDtypeStruct((NEURON, NEURON), jnp.float32),
            jax.ShapeDtypeStruct((1, GLIA), jnp.float32),
        ],
        compiler_params=_CP,
        cost_estimate=cost,
    )(hs, x0, w0, z0, params["W_in1"], params["W_in2"], c2d,
      params["D"], params["F"], params["H"], params["fc_w"], params["fc_b"])
    return out_seq, (x_t, w_t, z_t)


_rollout_jit = jax.jit(mynet_rollout)


def mynet_forward(params, h, hidden=None):
    """Equivalent of MyNet.forward(h, hidden) -> (out (1, 3), (x_t, w_t, z_t))."""
    if hidden is None:
        hidden = zero_hidden()
    out_seq, new_hidden = _rollout_jit(params, h[None], hidden)
    return out_seq[0], new_hidden


def init_params(key):
    """Deterministic synthetic init, matching the torch init distributions."""
    ks = jax.random.split(key, 8)
    p = {
        "W_in1": jax.random.normal(ks[0], (INPUT_SZ, NEURON), jnp.float32),
        "W_in2": jax.random.normal(ks[1], (INPUT_SZ, GLIA), jnp.float32),
        "C": jax.random.normal(ks[2], (1, SYNAPSE), jnp.float32) / math.sqrt(SYNAPSE),
        "D": jax.random.normal(ks[3], (GLIA, SYNAPSE), jnp.float32) / math.sqrt(SYNAPSE),
        "F": jax.random.normal(ks[4], (GLIA, GLIA), jnp.float32) / math.sqrt(GLIA),
        "H": jax.random.normal(ks[5], (SYNAPSE, GLIA), jnp.float32) / math.sqrt(GLIA),
    }
    bound = 1.0 / math.sqrt(NEURON)
    p["fc_w"] = jax.random.uniform(ks[6], (NEURON, OUT_SZ), jnp.float32, -bound, bound)
    p["fc_b"] = jax.random.uniform(ks[7], (1, OUT_SZ), jnp.float32, -bound, bound)
    return p


def zero_hidden():
    return (jnp.zeros((1, NEURON), jnp.float32),
            jnp.zeros((NEURON, NEURON), jnp.float32),
            jnp.zeros((1, GLIA), jnp.float32))


def _reference_forward(params, h, hidden_flat):
    """Plain-JAX reference in the exact torch layout (w_t kept flat (1, S))."""
    hp = "highest"
    x, wf, z = hidden_flat
    x = (1.0 - GAMA) * x + GAMA * (
        jnp.dot(jax.nn.sigmoid(x), wf.reshape(NEURON, NEURON), precision=hp)
        + jnp.dot(h, params["W_in1"], precision=hp))
    s = jax.nn.sigmoid(x)
    outer = jnp.dot(s.reshape(-1, 1), s, precision=hp).reshape(1, -1)
    tz = jnp.tanh(z)
    wf_new = (1.0 - GAMA) * wf + GAMA * (outer * params["C"]
                                         + jnp.dot(tz, params["D"], precision=hp))
    gt = GAMA * TAU
    z_new = (1.0 - gt) * z + gt * (jnp.dot(tz, params["F"], precision=hp)
                                   + jnp.dot(outer, params["H"], precision=hp)
                                   + jnp.dot(h, params["W_in2"], precision=hp))
    out = jnp.dot(x, params["fc_w"], precision=hp) + params["fc_b"]
    return out, (x, wf_new, z_new)


if __name__ == "__main__":
    key = jax.random.PRNGKey(0)
    pkey, hkey = jax.random.split(key)
    params = init_params(pkey)

    T = 4
    hs = jax.random.normal(hkey, (T, 1, INPUT_SZ), jnp.float32)

    # ---- fused multi-step rollout: one pallas_call, weights stay VMEM-resident
    outs, hidT = _rollout_jit(params, hs, zero_hidden())
    jax.block_until_ready((outs, hidT))

    # ---- module-equivalent single steps (hidden=None path first), chained over the same inputs
    hid = None
    step_outs = []
    for t in range(T):
        o, hid = mynet_forward(params, hs[t], hid)
        step_outs.append(o)
    step_outs = jnp.stack(step_outs)
    jax.block_until_ready((step_outs, hid))

    # fused rollout vs step-by-step (same kernel) must agree tightly
    step_err = max(
        float(jnp.max(jnp.abs(outs - step_outs))),
        float(jnp.max(jnp.abs(hidT[0] - hid[0]))),
        float(jnp.max(jnp.abs(hidT[1] - hid[1]))),
        float(jnp.max(jnp.abs(hidT[2] - hid[2]))),
    )
    assert step_err < 1e-4, f"fused vs step-by-step mismatch: {step_err}"

    # ---- numerics check against a plain-JAX reference in the exact torch layout
    ref_hid = (jnp.zeros((1, NEURON), jnp.float32),
               jnp.zeros((1, SYNAPSE), jnp.float32),
               jnp.zeros((1, GLIA), jnp.float32))
    ref_outs = []
    for t in range(T):
        ro, ref_hid = _reference_forward(params, hs[t], ref_hid)
        ref_outs.append(ro)
    ref_outs = jnp.stack(ref_outs)

    err = max(
        float(jnp.max(jnp.abs(outs - ref_outs))),
        float(jnp.max(jnp.abs(hidT[0] - ref_hid[0]))),
        float(jnp.max(jnp.abs(hidT[1].reshape(1, SYNAPSE) - ref_hid[1]))),
        float(jnp.max(jnp.abs(hidT[2] - ref_hid[2]))),
    )
    assert err < 5e-2, f"kernel vs reference mismatch: {err}"
    print("KERNEL_OK")
</pallas_src>

<mosaic_0001>
module attributes {stable_mosaic.version = 11 : i64} {
  func.func @_mynet_kernel(%arg0: i32, %arg1: memref<1x1x1xf32, #tpu.memory_space<vmem>>, %arg2: memref<1x128xf32, #tpu.memory_space<vmem>>, %arg3: memref<128x128xf32, #tpu.memory_space<vmem>>, %arg4: memref<1x64xf32, #tpu.memory_space<vmem>>, %arg5: memref<1x128xf32, #tpu.memory_space<vmem>>, %arg6: memref<1x64xf32, #tpu.memory_space<vmem>>, %arg7: memref<128x128xf32, #tpu.memory_space<vmem>>, %arg8: memref<64x16384xf32, #tpu.memory_space<vmem>>, %arg9: memref<64x64xf32, #tpu.memory_space<vmem>>, %arg10: memref<16384x64xf32, #tpu.memory_space<vmem>>, %arg11: memref<128x3xf32, #tpu.memory_space<vmem>>, %arg12: memref<1x3xf32, #tpu.memory_space<vmem>>, %arg13: memref<1x1x3xf32, #tpu.memory_space<vmem>>, %arg14: memref<1x128xf32, #tpu.memory_space<vmem>>, %arg15: memref<128x128xf32, #tpu.memory_space<vmem>>, %arg16: memref<1x64xf32, #tpu.memory_space<vmem>>) attributes {dimension_semantics = [#tpu.dimension_semantics<arbitrary>], iteration_bounds = array<i64: 4>, scalar_prefetch = 0 : i64, scratch_operands = 0 : i64, tpu.core_type = #tpu.core_type<tc>, window_params = [{transform_indices = @transform_0, window_bounds = array<i64: 1, 1, 1>}, {pipeline_mode = #tpu.pipeline_mode<synchronous>, transform_indices = @transform_1, window_bounds = array<i64: 1, 128>}, {pipeline_mode = #tpu.pipeline_mode<synchronous>, transform_indices = @transform_2, window_bounds = array<i64: 128, 128>}, {pipeline_mode = #tpu.pipeline_mode<synchronous>, transform_indices = @transform_3, window_bounds = array<i64: 1, 64>}, {pipeline_mode = #tpu.pipeline_mode<synchronous>, transform_indices = @transform_4, window_bounds = array<i64: 1, 128>}, {pipeline_mode = #tpu.pipeline_mode<synchronous>, transform_indices = @transform_5, window_bounds = array<i64: 1, 64>}, {pipeline_mode = #tpu.pipeline_mode<synchronous>, transform_indices = @transform_6, window_bounds = array<i64: 128, 128>}, {pipeline_mode = #tpu.pipeline_mode<synchronous>, transform_indices = @transform_7, window_bounds = array<i64: 64, 16384>}, {pipeline_mode = #tpu.pipeline_mode<synchronous>, transform_indices = @transform_8, window_bounds = array<i64: 64, 64>}, {pipeline_mode = #tpu.pipeline_mode<synchronous>, transform_indices = @transform_9, window_bounds = array<i64: 16384, 64>}, {pipeline_mode = #tpu.pipeline_mode<synchronous>, transform_indices = @transform_10, window_bounds = array<i64: 128, 3>}, {pipeline_mode = #tpu.pipeline_mode<synchronous>, transform_indices = @transform_11, window_bounds = array<i64: 1, 3>}, {transform_indices = @transform_12, window_bounds = array<i64: 1, 1, 3>}, {pipeline_mode = #tpu.pipeline_mode<synchronous>, transform_indices = @transform_13, window_bounds = array<i64: 1, 128>}, {pipeline_mode = #tpu.pipeline_mode<synchronous>, transform_indices = @transform_14, window_bounds = array<i64: 128, 128>}, {pipeline_mode = #tpu.pipeline_mode<synchronous>, transform_indices = @transform_15, window_bounds = array<i64: 1, 64>}]} {
    %c0_i32 = arith.constant 0 : i32
    %0 = arith.cmpi eq, %arg0, %c0_i32 : i32
    %1 = arith.extui %0 : i1 to i32
    %c0_i32_0 = arith.constant 0 : i32
    %2 = arith.cmpi ne, %1, %c0_i32_0 : i32
    scf.if %2 {
      %c0_46 = arith.constant 0 : index
      %c0_47 = arith.constant 0 : index
      %70 = vector.load %arg2[%c0_46, %c0_47] : memref<1x128xf32, #tpu.memory_space<vmem>>, vector<1x128xf32>
      %c0_48 = arith.constant 0 : index
      %c0_49 = arith.constant 0 : index
      %71 = vector.load %arg14[%c0_48, %c0_49] : memref<1x128xf32, #tpu.memory_space<vmem>>, vector<1x128xf32>
      tpu.vector_store %arg14[%c0_48, %c0_49], %70 {strides = array<i32>} : memref<1x128xf32, #tpu.memory_space<vmem>>, vector<1x128xf32>,
      %c0_50 = arith.constant 0 : index
      %c0_51 = arith.constant 0 : index
      %72 = vector.load %arg3[%c0_50, %c0_51] : memref<128x128xf32, #tpu.memory_space<vmem>>, vector<128x128xf32>
      %c0_52 = arith.constant 0 : index
      %c0_53 = arith.constant 0 : index
      %73 = vector.load %arg15[%c0_52, %c0_53] : memref<128x128xf32, #tpu.memory_space<vmem>>, vector<128x128xf32>
      tpu.vector_store %arg15[%c0_52, %c0_53], %72 {strides = array<i32>} : memref<128x128xf32, #tpu.memory_space<vmem>>, vector<128x128xf32>,
      %c0_54 = arith.constant 0 : index
      %c0_55 = arith.constant 0 : index
      %74 = vector.load %arg4[%c0_54, %c0_55] : memref<1x64xf32, #tpu.memory_space<vmem>>, vector<1x64xf32>
      %c0_56 = arith.constant 0 : index
      %c0_57 = arith.constant 0 : index
      %75 = vector.load %arg16[%c0_56, %c0_57] : memref<1x64xf32, #tpu.memory_space<vmem>>, vector<1x64xf32>
      tpu.vector_store %arg16[%c0_56, %c0_57], %74 {strides = array<i32>} : memref<1x64xf32, #tpu.memory_space<vmem>>, vector<1x64xf32>,
    } else {
    }
    %c0 = arith.constant 0 : index
    %c0_1 = arith.constant 0 : index
    %c0_2 = arith.constant 0 : index
    %3 = vector.load %arg1[%c0, %c0_1, %c0_2] : memref<1x1x1xf32, #tpu.memory_space<vmem>>, vector<1x1x1xf32>
    %4 = vector.shape_cast %3 : vector<1x1x1xf32> to vector<1x1xf32>
    %c0_3 = arith.constant 0 : index
    %c0_4 = arith.constant 0 : index
    %5 = vector.load %arg14[%c0_3, %c0_4] : memref<1x128xf32, #tpu.memory_space<vmem>>, vector<1x128xf32>
    %c0_5 = arith.constant 0 : index
    %c0_6 = arith.constant 0 : index
    %6 = vector.load %arg15[%c0_5, %c0_6] : memref<128x128xf32, #tpu.memory_space<vmem>>, vector<128x128xf32>
    %c0_7 = arith.constant 0 : index
    %c0_8 = arith.constant 0 : index
    %7 = vector.load %arg16[%c0_7, %c0_8] : memref<1x64xf32, #tpu.memory_space<vmem>>, vector<1x64xf32>
    %8 = arith.negf %5 : vector<1x128xf32>
    %9 = math.exp %8 : vector<1x128xf32>
    %cst = arith.constant 1.000000e+00 : f32
    %10 = vector.broadcast %cst : f32 to vector<1x128xf32>
    %11 = arith.addf %10, %9 : vector<1x128xf32>
    %12 = arith.divf %10, %11 : vector<1x128xf32>
    %cst_9 = arith.constant dense<0.000000e+00> : vector<1x128xf32>
    %13 = tpu.matmul %12, %6, %cst_9 {dimension_numbers = #tpu.dot_dimension_numbers<[1], [0], [0], [1], [0, 0, 1, 1], [], []>} : vector<1x128xf32>, vector<128x128xf32>, vector<1x128xf32> -> vector<1x128xf32>
    %cst_10 = arith.constant 8.000000e-01 : f32
    %14 = vector.broadcast %cst_10 : f32 to vector<1x128xf32>
    %15 = arith.mulf %14, %5 : vector<1x128xf32>
    %c0_11 = arith.constant 0 : index
    %c0_12 = arith.constant 0 : index
    %16 = vector.load %arg5[%c0_11, %c0_12] : memref<1x128xf32, #tpu.memory_space<vmem>>, vector<1x128xf32>
    %17 = vector.broadcast %4 : vector<1x1xf32> to vector<1x128xf32>
    %18 = arith.mulf %17, %16 : vector<1x128xf32>
    %19 = arith.addf %13, %18 : vector<1x128xf32>
    %cst_13 = arith.constant 2.000000e-01 : f32
    %20 = vector.broadcast %cst_13 : f32 to vector<1x128xf32>
    %21 = arith.mulf %20, %19 : vector<1x128xf32>
    %22 = arith.addf %15, %21 : vector<1x128xf32>
    %c0_14 = arith.constant 0 : index
    %c0_15 = arith.constant 0 : index
    %23 = vector.load %arg14[%c0_14, %c0_15] : memref<1x128xf32, #tpu.memory_space<vmem>>, vector<1x128xf32>
    tpu.vector_store %arg14[%c0_14, %c0_15], %22 {strides = array<i32>} : memref<1x128xf32, #tpu.memory_space<vmem>>, vector<1x128xf32>,
    %c0_16 = arith.constant 0 : index
    %c0_17 = arith.constant 0 : index
    %24 = vector.load %arg11[%c0_16, %c0_17] : memref<128x3xf32, #tpu.memory_space<vmem>>, vector<128x3xf32>
    %cst_18 = arith.constant dense<0.000000e+00> : vector<1x3xf32>
    %25 = tpu.matmul %22, %24, %cst_18 {dimension_numbers = #tpu.dot_dimension_numbers<[1], [0], [0], [1], [0, 0, 1, 1], [], []>} : vector<1x128xf32>, vector<128x3xf32>, vector<1x3xf32> -> vector<1x3xf32>
    %c0_19 = arith.constant 0 : index
    %c0_20 = arith.constant 0 : index
    %26 = vector.load %arg12[%c0_19, %c0_20] : memref<1x3xf32, #tpu.memory_space<vmem>>, vector<1x3xf32>
    %27 = arith.addf %25, %26 : vector<1x3xf32>
    %c0_21 = arith.constant 0 : index
    %c0_22 = arith.constant 0 : index
    %c0_23 = arith.constant 0 : index
    %28 = vector.load %arg13[%c0_21, %c0_22, %c0_23] : memref<1x1x3xf32, #tpu.memory_space<vmem>>, vector<1x1x3xf32>
    %29 = vector.shape_cast %28 : vector<1x1x3xf32> to vector<1x3xf32>
    %30 = vector.shape_cast %27 : vector<1x3xf32> to vector<1x1x3xf32>
    tpu.vector_store %arg13[%c0_21, %c0_22, %c0_23], %30 {strides = array<i32>} : memref<1x1x3xf32, #tpu.memory_space<vmem>>, vector<1x1x3xf32>,
    %31 = arith.negf %22 : vector<1x128xf32>
    %32 = math.exp %31 : vector<1x128xf32>
    %cst_24 = arith.constant 1.000000e+00 : f32
    %33 = vector.broadcast %cst_24 : f32 to vector<1x128xf32>
    %34 = arith.addf %33, %32 : vector<1x128xf32>
    %35 = arith.divf %33, %34 : vector<1x128xf32>
    %36 = vector.shape_cast %35 : vector<1x128xf32> to vector<1x128xf32>
    %37 = vector.broadcast %36 : vector<1x128xf32> to vector<128x128xf32>
    %38 = tpu.transpose %37, [1, 0] : vector<128x128xf32> -> vector<128x128xf32>
    %39 = vector.broadcast %35 : vector<1x128xf32> to vector<128x128xf32>
    %40 = arith.mulf %38, %39 : vector<128x128xf32>
    %41 = math.tanh %7 : vector<1x64xf32>
    %c0_25 = arith.constant 0 : index
    %c0_26 = arith.constant 0 : index
    %42 = vector.load %arg8[%c0_25, %c0_26] : memref<64x16384xf32, #tpu.memory_space<vmem>>, vector<64x16384xf32>
    %cst_27 = arith.constant dense<0.000000e+00> : vector<1x16384xf32>
    %43 = tpu.matmul %41, %42, %cst_27 {dimension_numbers = #tpu.dot_dimension_numbers<[1], [0], [0], [1], [0, 0, 1, 1], [], []>} : vector<1x64xf32>, vector<64x16384xf32>, vector<1x16384xf32> -> vector<1x16384xf32>
    %44 = vector.shape_cast %43 : vector<1x16384xf32> to vector<128x128xf32>
    %cst_28 = arith.constant 8.000000e-01 : f32
    %45 = vector.broadcast %cst_28 : f32 to vector<128x128xf32>
    %46 = arith.mulf %45, %6 : vector<128x128xf32>
    %c0_29 = arith.constant 0 : index
    %c0_30 = arith.constant 0 : index
    %47 = vector.load %arg7[%c0_29, %c0_30] : memref<128x128xf32, #tpu.memory_space<vmem>>, vector<128x128xf32>
    %48 = arith.mulf %40, %47 : vector<128x128xf32>
    %49 = arith.addf %48, %44 : vector<128x128xf32>
    %cst_31 = arith.constant 2.000000e-01 : f32
    %50 = vector.broadcast %cst_31 : f32 to vector<128x128xf32>
    %51 = arith.mulf %50, %49 : vector<128x128xf32>
    %52 = arith.addf %46, %51 : vector<128x128xf32>
    %c0_32 = arith.constant 0 : index
    %c0_33 = arith.constant 0 : index
    %53 = vector.load %arg15[%c0_32, %c0_33] : memref<128x128xf32, #tpu.memory_space<vmem>>, vector<128x128xf32>
    tpu.vector_store %arg15[%c0_32, %c0_33], %52 {strides = array<i32>} : memref<128x128xf32, #tpu.memory_space<vmem>>, vector<128x128xf32>,
    %54 = vector.shape_cast %40 : vector<128x128xf32> to vector<1x16384xf32>
    %c0_34 = arith.constant 0 : index
    %c0_35 = arith.constant 0 : index
    %55 = vector.load %arg9[%c0_34, %c0_35] : memref<64x64xf32, #tpu.memory_space<vmem>>, vector<64x64xf32>
    %cst_36 = arith.constant dense<0.000000e+00> : vector<1x64xf32>
    %56 = tpu.matmul %41, %55, %cst_36 {dimension_numbers = #tpu.dot_dimension_numbers<[1], [0], [0], [1], [0, 0, 1, 1], [], []>} : vector<1x64xf32>, vector<64x64xf32>, vector<1x64xf32> -> vector<1x64xf32>
    %c0_37 = arith.constant 0 : index
    %c0_38 = arith.constant 0 : index
    %57 = vector.load %arg10[%c0_37, %c0_38] : memref<16384x64xf32, #tpu.memory_space<vmem>>, vector<16384x64xf32>
    %cst_39 = arith.constant dense<0.000000e+00> : vector<1x64xf32>
    %58 = tpu.matmul %54, %57, %cst_39 {dimension_numbers = #tpu.dot_dimension_numbers<[1], [0], [0], [1], [0, 0, 1, 1], [], []>} : vector<1x16384xf32>, vector<16384x64xf32>, vector<1x64xf32> -> vector<1x64xf32>
    %cst_40 = arith.constant 0.995999991 : f32
    %59 = vector.broadcast %cst_40 : f32 to vector<1x64xf32>
    %60 = arith.mulf %59, %7 : vector<1x64xf32>
    %61 = arith.addf %56, %58 : vector<1x64xf32>
    %c0_41 = arith.constant 0 : index
    %c0_42 = arith.constant 0 : index
    %62 = vector.load %arg6[%c0_41, %c0_42] : memref<1x64xf32, #tpu.memory_space<vmem>>, vector<1x64xf32>
    %63 = vector.broadcast %4 : vector<1x1xf32> to vector<1x64xf32>
    %64 = arith.mulf %63, %62 : vector<1x64xf32>
    %65 = arith.addf %61, %64 : vector<1x64xf32>
    %cst_43 = arith.constant 4.000000e-03 : f32
    %66 = vector.broadcast %cst_43 : f32 to vector<1x64xf32>
    %67 = arith.mulf %66, %65 : vector<1x64xf32>
    %68 = arith.addf %60, %67 : vector<1x64xf32>
    %c0_44 = arith.constant 0 : index
    %c0_45 = arith.constant 0 : index
    %69 = vector.load %arg16[%c0_44, %c0_45] : memref<1x64xf32, #tpu.memory_space<vmem>>, vector<1x64xf32>
    tpu.vector_store %arg16[%c0_44, %c0_45], %68 {strides = array<i32>} : memref<1x64xf32, #tpu.memory_space<vmem>>, vector<1x64xf32>,
    return
  }
  func.func @transform_0(%arg0: i32) -> (i32, i32, i32) {
    %c0_i32 = arith.constant 0 : i32
    %c0_i32_0 = arith.constant 0 : i32
    %c0_i32_1 = arith.constant 0 : i32
    return %arg0, %c0_i32, %c0_i32_0 : i32, i32, i32
  }
  func.func @transform_1(%arg0: i32) -> (i32, i32) {
    %c0_i32 = arith.constant 0 : i32
    %c0_i32_0 = arith.constant 0 : i32
    %c0_i32_1 = arith.constant 0 : i32
    return %c0_i32, %c0_i32_0 : i32, i32
  }
  func.func @transform_2(%arg0: i32) -> (i32, i32) {
    %c0_i32 = arith.constant 0 : i32
    %c0_i32_0 = arith.constant 0 : i32
    %c0_i32_1 = arith.constant 0 : i32
    return %c0_i32, %c0_i32_0 : i32, i32
  }
  func.func @transform_3(%arg0: i32) -> (i32, i32) {
    %c0_i32 = arith.constant 0 : i32
    %c0_i32_0 = arith.constant 0 : i32
    %c0_i32_1 = arith.constant 0 : i32
    return %c0_i32, %c0_i32_0 : i32, i32
  }
  func.func @transform_4(%arg0: i32) -> (i32, i32) {
    %c0_i32 = arith.constant 0 : i32
    %c0_i32_0 = arith.constant 0 : i32
    %c0_i32_1 = arith.constant 0 : i32
    return %c0_i32, %c0_i32_0 : i32, i32
  }
  func.func @transform_5(%arg0: i32) -> (i32, i32) {
    %c0_i32 = arith.constant 0 : i32
    %c0_i32_0 = arith.constant 0 : i32
    %c0_i32_1 = arith.constant 0 : i32
    return %c0_i32, %c0_i32_0 : i32, i32
  }
  func.func @transform_6(%arg0: i32) -> (i32, i32) {
    %c0_i32 = arith.constant 0 : i32
    %c0_i32_0 = arith.constant 0 : i32
    %c0_i32_1 = arith.constant 0 : i32
    return %c0_i32, %c0_i32_0 : i32, i32
  }
  func.func @transform_7(%arg0: i32) -> (i32, i32) {
    %c0_i32 = arith.constant 0 : i32
    %c0_i32_0 = arith.constant 0 : i32
    %c0_i32_1 = arith.constant 0 : i32
    return %c0_i32, %c0_i32_0 : i32, i32
  }
  func.func @transform_8(%arg0: i32) -> (i32, i32) {
    %c0_i32 = arith.constant 0 : i32
    %c0_i32_0 = arith.constant 0 : i32
    %c0_i32_1 = arith.constant 0 : i32
    return %c0_i32, %c0_i32_0 : i32, i32
  }
  func.func @transform_9(%arg0: i32) -> (i32, i32) {
    %c0_i32 = arith.constant 0 : i32
    %c0_i32_0 = arith.constant 0 : i32
    %c0_i32_1 = arith.constant 0 : i32
    return %c0_i32, %c0_i32_0 : i32, i32
  }
  func.func @transform_10(%arg0: i32) -> (i32, i32) {
    %c0_i32 = arith.constant 0 : i32
    %c0_i32_0 = arith.constant 0 : i32
    %c0_i32_1 = arith.constant 0 : i32
    return %c0_i32, %c0_i32_0 : i32, i32
  }
  func.func @transform_11(%arg0: i32) -> (i32, i32) {
    %c0_i32 = arith.constant 0 : i32
    %c0_i32_0 = arith.constant 0 : i32
    %c0_i32_1 = arith.constant 0 : i32
    return %c0_i32, %c0_i32_0 : i32, i32
  }
  func.func @transform_12(%arg0: i32) -> (i32, i32, i32) {
    %c0_i32 = arith.constant 0 : i32
    %c0_i32_0 = arith.constant 0 : i32
    %c0_i32_1 = arith.constant 0 : i32
    return %arg0, %c0_i32, %c0_i32_0 : i32, i32, i32
  }
  func.func @transform_13(%arg0: i32) -> (i32, i32) {
    %c0_i32 = arith.constant 0 : i32
    %c0_i32_0 = arith.constant 0 : i32
    %c0_i32_1 = arith.constant 0 : i32
    return %c0_i32, %c0_i32_0 : i32, i32
  }
  func.func @transform_14(%arg0: i32) -> (i32, i32) {
    %c0_i32 = arith.constant 0 : i32
    %c0_i32_0 = arith.constant 0 : i32
    %c0_i32_1 = arith.constant 0 : i32
    return %c0_i32, %c0_i32_0 : i32, i32
  }
  func.func @transform_15(%arg0: i32) -> (i32, i32) {
    %c0_i32 = arith.constant 0 : i32
    %c0_i32_0 = arith.constant 0 : i32
    %c0_i32_1 = arith.constant 0 : i32
    return %c0_i32, %c0_i32_0 : i32, i32
  }
}

</mosaic_0001>

<llo_original>
// kernel: mynet_rollout.1
$region0: #{mynet_rollout.1}
  #allocation0 [shape = 'u32[]', space=smem, size = 0x4, offset = 0x4, fixed_abs, tag = 'smem constant byte address 0x4 - core index']
  #allocation1 [shape = 'u32[72,128]{1,0:T(1,128)}', space=vmem, size = 0x9000, scoped, tag = 'internal scratch']
  %s0 = inlined_call_operand.vmem [shape: f32[4,1,1], index: 0, kind: input, shape index: {}]
  %s1 = inlined_call_operand.vmem [shape: f32[1,128], index: 1, kind: input, shape index: {}]
  %s2 = inlined_call_operand.vmem [shape: f32[128,128], index: 2, kind: input, shape index: {}]
  %s3 = inlined_call_operand.vmem [shape: f32[1,64], index: 3, kind: input, shape index: {}]
  %s4 = inlined_call_operand.vmem [shape: f32[1,128], index: 4, kind: input, shape index: {}]
  %s5 = inlined_call_operand.vmem [shape: f32[1,64], index: 5, kind: input, shape index: {}]
  %s6 = inlined_call_operand.vmem [shape: f32[128,128], index: 6, kind: input, shape index: {}]
  %s7 = inlined_call_operand.vmem [shape: f32[64,16384], index: 7, kind: input, shape index: {}]
  %s8 = inlined_call_operand.vmem [shape: f32[64,64], index: 8, kind: input, shape index: {}]
  %s9 = inlined_call_operand.vmem [shape: f32[16384,64], index: 9, kind: input, shape index: {}]
  %s10 = inlined_call_operand.vmem [shape: f32[128,3], index: 10, kind: input, shape index: {}]
  %s11 = inlined_call_operand.vmem [shape: f32[1,3], index: 11, kind: input, shape index: {}]
  %s12 = inlined_call_operand.vmem [shape: f32[4,1,3], index: 12, kind: output, shape index: {0}]
  %s13 = inlined_call_operand.hbm [shape: f32[1,128], index: 13, kind: output, shape index: {1}]
  %s14 = inlined_call_operand.hbm [shape: f32[128,128], index: 14, kind: output, shape index: {2}]
  %s15 = inlined_call_operand.hbm [shape: f32[1,64], index: 15, kind: output, shape index: {3}]
  %16 = xla_tuple %s12, %s13, %s14, %s15
  %s17 = sld [smem:[#allocation0]]
  $region109: #{mynet_rollout.1} parent=0
    _
  %s19 = ssub.s32 1, %s17
  %s20 = scalar_select 0, %s19, %s17
  $region1: #{mynet_rollout.1} parent=0
    #allocation2 [shape = 'u8[512]{0}', space=vmem, size = 0x400, scoped, tag = 'output window, operand 1, single buffered']
    #allocation3 [shape = 's32[2]{0}', space=sflag, size = 0x8, scoped, tag = 'scoped memory for mynet_rollout.1']
    #allocation4 [shape = 'u8[65536]{0}', space=vmem, size = 0x10000, scoped, tag = 'output window, operand 2, single buffered']
    #allocation5 [shape = 's32[1]{0}', space=sflag, size = 0x4, scoped, tag = 'scoped memory for mynet_rollout.1']
    #allocation6 [shape = 'u8[512]{0}', space=vmem, size = 0x400, scoped, tag = 'output window, operand 3, single buffered']
    %21 = vsyncpa [#allocation3], 0
    %22 = vsyncpa [#allocation5], 0
    loop: start=0, step=1, limit=6
    $region2: #{mynet_rollout.1} parent=1 // loop_pre_header
      _
    $region3: #{mynet_rollout.1} parent=1 // loop_header
      %s24 = sphi 0, %s28
      %p25 = scmp.ge.s32.totalorder %s24, 6
      %s34 = sphi 0, %s36
      %s37 = sphi 0, %s34
      %s38 = sphi 0, %s37
      %s54 = sphi 0, %s38
      %s58 = sphi 0, %s58
      %s60 = sphi 0, %s58
      %s61 = sphi 0, %s60
      %s75 = sphi 0, %s61
      %s79 = sphi 0, %s79
      %s81 = sphi 0, %s79
      %s82 = sphi 0, %s81
      %s96 = sphi 0, %s82
      %s100 = sphi 0, %s100
      %s102 = sphi 0, %s100
      %s103 = sphi 0, %s102
      %s117 = sphi 0, %s103
      %s121 = sphi 0, %s121
      %s123 = sphi 0, %s121
      %s124 = sphi 0, %s123
      %s138 = sphi 0, %s124
      %s142 = sphi 0, %s142
      %s144 = sphi 0, %s142
      %s145 = sphi 0, %s144
      %s159 = sphi 0, %s145
      %s163 = sphi 0, %s163
      %s165 = sphi 0, %s163
      %s166 = sphi 0, %s165
      %s180 = sphi 0, %s166
      %s184 = sphi 0, %s184
      %s186 = sphi 0, %s184
      %s187 = sphi 0, %s186
      %s201 = sphi 0, %s187
      %s205 = sphi 0, %s205
      %s207 = sphi 0, %s205
      %s208 = sphi 0, %s207
      %s222 = sphi 0, %s208
      %s226 = sphi 0, %s226
      %s228 = sphi 0, %s226
      %s229 = sphi 0, %s228
      %s243 = sphi 0, %s229
      %s247 = sphi 0, %s247
      %s249 = sphi 0, %s247
      %s250 = sphi 0, %s249
      %s264 = sphi 0, %s250
      %s268 = sphi 0, %s268
      %s270 = sphi 0, %s268
      %s271 = sphi 0, %s270
      %s285 = sphi 0, %s271
      %s291 = sphi 0, %s293
      %s294 = sphi 0, %s291
      %s295 = sphi 0, %s294
      %s311 = sphi 0, %s295
      %s315 = sphi 0, %s315
      %s317 = sphi 0, %s315
      %s318 = sphi 0, %s317
      %s332 = sphi 0, %s318
      %s336 = sphi 0, %s336
      %s338 = sphi 0, %s336
      %s339 = sphi 0, %s338
      %s353 = sphi 0, %s339
      %s357 = sphi 0, %s357
      %s359 = sphi 0, %s357
      %s360 = sphi 0, %s359
      %s374 = sphi 0, %s360
    $region4: #{mynet_rollout.1} parent=1 // loop_header_branch
      %27 = sbr.rel (%p25) target = $region8
    $region5: #{mynet_rollout.1} parent=1 // loop_body
      %s29 = ssub.s32 %s24, 1
      %s30 = ssub.s32 %s24, 2
      %s31 = sadd.s32 %s24, 1
      %s32 = ssub.s32 %s24, %s31
      %p33 = scmp.eq.s32.totalorder %s32, 0
      %s35 = sadd.s32 %s34, 1
      %s36 = scalar_select %p33, %s34, %s35
      %p39 = pneg %p33
      %p40 = scmp.eq.s32.totalorder %s24, 3
      %p41 = por %p39, %p40
      %p42 = scmp.ne.s32.totalorder %s34, %s37
      %p43 = scmp.eq.s32.totalorder %s24, 0
      %p44 = por %p42, %p43
      %p45 = scmp.ne.s32.totalorder %s34, %s37
      %p46 = scmp.eq.s32.totalorder %s29, 3
      %p47 = por %p45, %p46
      %p48 = scmp.ne.s32.totalorder %s37, %s38
      %p49 = scmp.eq.s32.totalorder %s29, 0
      %p50 = por %p48, %p49
      %p51 = scmp.ne.s32.totalorder %s37, %s38
      %p52 = scmp.eq.s32.totalorder %s30, 3
      %p53 = por %p51, %p52
      %p55 = scmp.ne.s32.totalorder %s38, %s54
      %p56 = scmp.eq.s32.totalorder %s30, 0
      %p57 = por %p55, %p56
      %s59 = sadd.s32 %s58, 1
      %p62 = scmp.eq.s32.totalorder %s24, 3
      %p63 = scmp.ne.s32.totalorder %s58, %s60
      %p64 = scmp.eq.s32.totalorder %s24, 0
      %p65 = por %p63, %p64
      %p66 = scmp.ne.s32.totalorder %s58, %s60
      %p67 = scmp.eq.s32.totalorder %s29, 3
      %p68 = por %p66, %p67
      %p69 = scmp.ne.s32.totalorder %s60, %s61
      %p70 = scmp.eq.s32.totalorder %s29, 0
      %p71 = por %p69, %p70
      %p72 = scmp.ne.s32.totalorder %s60, %s61
      %p73 = scmp.eq.s32.totalorder %s30, 3
      %p74 = por %p72, %p73
      %p76 = scmp.ne.s32.totalorder %s61, %s75
      %p77 = scmp.eq.s32.totalorder %s30, 0
      %p78 = por %p76, %p77
      %s80 = sadd.s32 %s79, 1
      %p83 = scmp.eq.s32.totalorder %s24, 3
      %p84 = scmp.ne.s32.totalorder %s79, %s81
      %p85 = scmp.eq.s32.totalorder %s24, 0
      %p86 = por %p84, %p85
      %p87 = scmp.ne.s32.totalorder %s79, %s81
      %p88 = scmp.eq.s32.totalorder %s29, 3
      %p89 = por %p87, %p88
      %p90 = scmp.ne.s32.totalorder %s81, %s82
      %p91 = scmp.eq.s32.totalorder %s29, 0
      %p92 = por %p90, %p91
      %p93 = scmp.ne.s32.totalorder %s81, %s82
      %p94 = scmp.eq.s32.totalorder %s30, 3
      %p95 = por %p93, %p94
      %p97 = scmp.ne.s32.totalorder %s82, %s96
      %p98 = scmp.eq.s32.totalorder %s30, 0
      %p99 = por %p97, %p98
      %s101 = sadd.s32 %s100, 1
      %p104 = scmp.eq.s32.totalorder %s24, 3
      %p105 = scmp.ne.s32.totalorder %s100, %s102
      %p106 = scmp.eq.s32.totalorder %s24, 0
      %p107 = por %p105, %p106
      %p108 = scmp.ne.s32.totalorder %s100, %s102
      %p109 = scmp.eq.s32.totalorder %s29, 3
      %p110 = por %p108, %p109
      %p111 = scmp.ne.s32.totalorder %s102, %s103
      %p112 = scmp.eq.s32.totalorder %s29, 0
      %p113 = por %p111, %p112
      %p114 = scmp.ne.s32.totalorder %s102, %s103
      %p115 = scmp.eq.s32.totalorder %s30, 3
      %p116 = por %p114, %p115
      %p118 = scmp.ne.s32.totalorder %s103, %s117
      %p119 = scmp.eq.s32.totalorder %s30, 0
      %p120 = por %p118, %p119
      %s122 = sadd.s32 %s121, 1
      %p125 = scmp.eq.s32.totalorder %s24, 3
      %p126 = scmp.ne.s32.totalorder %s121, %s123
      %p127 = scmp.eq.s32.totalorder %s24, 0
      %p128 = por %p126, %p127
      %p129 = scmp.ne.s32.totalorder %s121, %s123
      %p130 = scmp.eq.s32.totalorder %s29, 3
      %p131 = por %p129, %p130
      %p132 = scmp.ne.s32.totalorder %s123, %s124
      %p133 = scmp.eq.s32.totalorder %s29, 0
      %p134 = por %p132, %p133
      %p135 = scmp.ne.s32.totalorder %s123, %s124
      %p136 = scmp.eq.s32.totalorder %s30, 3
      %p137 = por %p135, %p136
      %p139 = scmp.ne.s32.totalorder %s124, %s138
      %p140 = scmp.eq.s32.totalorder %s30, 0
      %p141 = por %p139, %p140
      %s143 = sadd.s32 %s142, 1
      %p146 = scmp.eq.s32.totalorder %s24, 3
      %p147 = scmp.ne.s32.totalorder %s142, %s144
      %p148 = scmp.eq.s32.totalorder %s24, 0
      %p149 = por %p147, %p148
      %p150 = scmp.ne.s32.totalorder %s142, %s144
      %p151 = scmp.eq.s32.totalorder %s29, 3
      %p152 = por %p150, %p151
      %p153 = scmp.ne.s32.totalorder %s144, %s145
      %p154 = scmp.eq.s32.totalorder %s29, 0
      %p155 = por %p153, %p154
      %p156 = scmp.ne.s32.totalorder %s144, %s145
      %p157 = scmp.eq.s32.totalorder %s30, 3
      %p158 = por %p156, %p157
      %p160 = scmp.ne.s32.totalorder %s145, %s159
      %p161 = scmp.eq.s32.totalorder %s30, 0
      %p162 = por %p160, %p161
      %s164 = sadd.s32 %s163, 1
      %p167 = scmp.eq.s32.totalorder %s24, 3
      %p168 = scmp.ne.s32.totalorder %s163, %s165
      %p169 = scmp.eq.s32.totalorder %s24, 0
      %p170 = por %p168, %p169
      %p171 = scmp.ne.s32.totalorder %s163, %s165
      %p172 = scmp.eq.s32.totalorder %s29, 3
      %p173 = por %p171, %p172
      %p174 = scmp.ne.s32.totalorder %s165, %s166
      %p175 = scmp.eq.s32.totalorder %s29, 0
      %p176 = por %p174, %p175
      %p177 = scmp.ne.s32.totalorder %s165, %s166
      %p178 = scmp.eq.s32.totalorder %s30, 3
      %p179 = por %p177, %p178
      %p181 = scmp.ne.s32.totalorder %s166, %s180
      %p182 = scmp.eq.s32.totalorder %s30, 0
      %p183 = por %p181, %p182
      %s185 = sadd.s32 %s184, 1
      %p188 = scmp.eq.s32.totalorder %s24, 3
      %p189 = scmp.ne.s32.totalorder %s184, %s186
      %p190 = scmp.eq.s32.totalorder %s24, 0
      %p191 = por %p189, %p190
      %p192 = scmp.ne.s32.totalorder %s184, %s186
      %p193 = scmp.eq.s32.totalorder %s29, 3
      %p194 = por %p192, %p193
      %p195 = scmp.ne.s32.totalorder %s186, %s187
      %p196 = scmp.eq.s32.totalorder %s29, 0
      %p197 = por %p195, %p196
      %p198 = scmp.ne.s32.totalorder %s186, %s187
      %p199 = scmp.eq.s32.totalorder %s30, 3
      %p200 = por %p198, %p199
      %p202 = scmp.ne.s32.totalorder %s187, %s201
      %p203 = scmp.eq.s32.totalorder %s30, 0
      %p204 = por %p202, %p203
      %s206 = sadd.s32 %s205, 1
      %p209 = scmp.eq.s32.totalorder %s24, 3
      %p210 = scmp.ne.s32.totalorder %s205, %s207
      %p211 = scmp.eq.s32.totalorder %s24, 0
      %p212 = por %p210, %p211
      %p213 = scmp.ne.s32.totalorder %s205, %s207
      %p214 = scmp.eq.s32.totalorder %s29, 3
      %p215 = por %p213, %p214
      %p216 = scmp.ne.s32.totalorder %s207, %s208
      %p217 = scmp.eq.s32.totalorder %s29, 0
      %p218 = por %p216, %p217
      %p219 = scmp.ne.s32.totalorder %s207, %s208
      %p220 = scmp.eq.s32.totalorder %s30, 3
      %p221 = por %p219, %p220
      %p223 = scmp.ne.s32.totalorder %s208, %s222
      %p224 = scmp.eq.s32.totalorder %s30, 0
      %p225 = por %p223, %p224
      %s227 = sadd.s32 %s226, 1
      %p230 = scmp.eq.s32.totalorder %s24, 3
      %p231 = scmp.ne.s32.totalorder %s226, %s228
      %p232 = scmp.eq.s32.totalorder %s24, 0
      %p233 = por %p231, %p232
      %p234 = scmp.ne.s32.totalorder %s226, %s228
      %p235 = scmp.eq.s32.totalorder %s29, 3
      %p236 = por %p234, %p235
      %p237 = scmp.ne.s32.totalorder %s228, %s229
      %p238 = scmp.eq.s32.totalorder %s29, 0
      %p239 = por %p237, %p238
      %p240 = scmp.ne.s32.totalorder %s228, %s229
      %p241 = scmp.eq.s32.totalorder %s30, 3
      %p242 = por %p240, %p241
      %p244 = scmp.ne.s32.totalorder %s229, %s243
      %p245 = scmp.eq.s32.totalorder %s30, 0
      %p246 = por %p244, %p245
      %s248 = sadd.s32 %s247, 1
      %p251 = scmp.eq.s32.totalorder %s24, 3
      %p252 = scmp.ne.s32.totalorder %s247, %s249
      %p253 = scmp.eq.s32.totalorder %s24, 0
      %p254 = por %p252, %p253
      %p255 = scmp.ne.s32.totalorder %s247, %s249
      %p256 = scmp.eq.s32.totalorder %s29, 3
      %p257 = por %p255, %p256
      %p258 = scmp.ne.s32.totalorder %s249, %s250
      %p259 = scmp.eq.s32.totalorder %s29, 0
      %p260 = por %p258, %p259
      %p261 = scmp.ne.s32.totalorder %s249, %s250
      %p262 = scmp.eq.s32.totalorder %s30, 3
      %p263 = por %p261, %p262
      %p265 = scmp.ne.s32.totalorder %s250, %s264
      %p266 = scmp.eq.s32.totalorder %s30, 0
      %p267 = por %p265, %p266
      %s269 = sadd.s32 %s268, 1
      %p272 = scmp.eq.s32.totalorder %s24, 3
      %p273 = scmp.ne.s32.totalorder %s268, %s270
      %p274 = scmp.eq.s32.totalorder %s24, 0
      %p275 = por %p273, %p274
      %p276 = scmp.ne.s32.totalorder %s268, %s270
      %p277 = scmp.eq.s32.totalorder %s29, 3
      %p278 = por %p276, %p277
      %p279 = scmp.ne.s32.totalorder %s270, %s271
      %p280 = scmp.eq.s32.totalorder %s29, 0
      %p281 = por %p279, %p280
      %p282 = scmp.ne.s32.totalorder %s270, %s271
      %p283 = scmp.eq.s32.totalorder %s30, 3
      %p284 = por %p282, %p283
      %p286 = scmp.ne.s32.totalorder %s271, %s285
      %p287 = scmp.eq.s32.totalorder %s30, 0
      %p288 = por %p286, %p287
      %s289 = ssub.s32 %s24, %s31
      %p290 = scmp.eq.s32.totalorder %s289, 0
      %s292 = sadd.s32 %s291, 1
      %s293 = scalar_select %p290, %s291, %s292
      %p296 = pneg %p290
      %p297 = scmp.eq.s32.totalorder %s24, 3
      %p298 = por %p296, %p297
      %p299 = scmp.ne.s32.totalorder %s291, %s294
      %p300 = scmp.eq.s32.totalorder %s24, 0
      %p301 = por %p299, %p300
      %p302 = scmp.ne.s32.totalorder %s291, %s294
      %p303 = scmp.eq.s32.totalorder %s29, 3
      %p304 = por %p302, %p303
      %p305 = scmp.ne.s32.totalorder %s294, %s295
      %p306 = scmp.eq.s32.totalorder %s29, 0
      %p307 = por %p305, %p306
      %p308 = scmp.ne.s32.totalorder %s294, %s295
      %p309 = scmp.eq.s32.totalorder %s30, 3
      %p310 = por %p308, %p309
      %p312 = scmp.ne.s32.totalorder %s295, %s311
      %p313 = scmp.eq.s32.totalorder %s30, 0
      %p314 = por %p312, %p313
      %s316 = sadd.s32 %s315, 1
      %p319 = scmp.eq.s32.totalorder %s24, 3
      %p320 = scmp.ne.s32.totalorder %s315, %s317
      %p321 = scmp.eq.s32.totalorder %s24, 0
      %p322 = por %p320, %p321
      %p323 = scmp.ne.s32.totalorder %s315, %s317
      %p324 = scmp.eq.s32.totalorder %s29, 3
      %p325 = por %p323, %p324
      %p326 = scmp.ne.s32.totalorder %s317, %s318
      %p327 = scmp.eq.s32.totalorder %s29, 0
      %p328 = por %p326, %p327
      %p329 = scmp.ne.s32.totalorder %s317, %s318
      %p330 = scmp.eq.s32.totalorder %s30, 3
      %p331 = por %p329, %p330
      %p333 = scmp.ne.s32.totalorder %s318, %s332
      %p334 = scmp.eq.s32.totalorder %s30, 0
      %p335 = por %p333, %p334
      %s337 = sadd.s32 %s336, 1
      %p340 = scmp.eq.s32.totalorder %s24, 3
      %p341 = scmp.ne.s32.totalorder %s336, %s338
      %p342 = scmp.eq.s32.totalorder %s24, 0
      %p343 = por %p341, %p342
      %p344 = scmp.ne.s32.totalorder %s336, %s338
      %p345 = scmp.eq.s32.totalorder %s29, 3
      %p346 = por %p344, %p345
      %p347 = scmp.ne.s32.totalorder %s338, %s339
      %p348 = scmp.eq.s32.totalorder %s29, 0
      %p349 = por %p347, %p348
      %p350 = scmp.ne.s32.totalorder %s338, %s339
      %p351 = scmp.eq.s32.totalorder %s30, 3
      %p352 = por %p350, %p351
      %p354 = scmp.ne.s32.totalorder %s339, %s353
      %p355 = scmp.eq.s32.totalorder %s30, 0
      %p356 = por %p354, %p355
      %s358 = sadd.s32 %s357, 1
      %p361 = scmp.eq.s32.totalorder %s24, 3
      %p362 = scmp.ne.s32.totalorder %s357, %s359
      %p363 = scmp.eq.s32.totalorder %s24, 0
      %p364 = por %p362, %p363
      %p365 = scmp.ne.s32.totalorder %s357, %s359
      %p366 = scmp.eq.s32.totalorder %s29, 3
      %p367 = por %p365, %p366
      %p368 = scmp.ne.s32.totalorder %s359, %s360
      %p369 = scmp.eq.s32.totalorder %s29, 0
      %p370 = por %p368, %p369
      %p371 = scmp.ne.s32.totalorder %s359, %s360
      %p372 = scmp.eq.s32.totalorder %s30, 3
      %p373 = por %p371, %p372
      %p375 = scmp.ne.s32.totalorder %s360, %s374
      %p376 = scmp.eq.s32.totalorder %s30, 0
      %p377 = por %p375, %p376
      %p378 = scmp.le.s32.totalorder 1, %s24
      %p379 = scmp.lt.s32.totalorder %s24, 5
      %p380 = pnand %p378, %p379
      %p381 = pneg %p380
      // Predicated region
      $region9: #{mynet_rollout.1} parent=5 // pred_check
        _
      $region10: #{mynet_rollout.1} parent=5 // pred_check_branch
        %383 = sbr.rel (%p380) target = $region12
      $region11: #{mynet_rollout.1} parent=5 // pred_region
        %s384 = ssub.s32 %s24, 1
        // Predicated region
        $region13: #{mynet_rollout.1} parent=11 // pred_check
          %p385 = pneg %p71
        $region14: #{mynet_rollout.1} parent=11 // pred_check_branch
          %387 = sbr.rel (%p385) target = $region16
        $region15: #{mynet_rollout.1} parent=11 // pred_region
          _
        $region16: #{mynet_rollout.1} parent=11 // pred_fallthru
          _
        // Predicated region
        $region17: #{mynet_rollout.1} parent=11 // pred_check
          %p388 = pneg %p92
        $region18: #{mynet_rollout.1} parent=11 // pred_check_branch
          %390 = sbr.rel (%p388) target = $region20
        $region19: #{mynet_rollout.1} parent=11 // pred_region
          _
        $region20: #{mynet_rollout.1} parent=11 // pred_fallthru
          _
        // Predicated region
        $region21: #{mynet_rollout.1} parent=11 // pred_check
          %p391 = pneg %p113
        $region22: #{mynet_rollout.1} parent=11 // pred_check_branch
          %393 = sbr.rel (%p391) target = $region24
        $region23: #{mynet_rollout.1} parent=11 // pred_region
          _
        $region24: #{mynet_rollout.1} parent=11 // pred_fallthru
          _
        // Predicated region
        $region25: #{mynet_rollout.1} parent=11 // pred_check
          %p394 = pneg %p134
        $region26: #{mynet_rollout.1} parent=11 // pred_check_branch
          %396 = sbr.rel (%p394) target = $region28
        $region27: #{mynet_rollout.1} parent=11 // pred_region
          _
        $region28: #{mynet_rollout.1} parent=11 // pred_fallthru
          _
        // Predicated region
        $region29: #{mynet_rollout.1} parent=11 // pred_check
          %p397 = pneg %p155
        $region30: #{mynet_rollout.1} parent=11 // pred_check_branch
          %399 = sbr.rel (%p397) target = $region32
        $region31: #{mynet_rollout.1} parent=11 // pred_region
          _
        $region32: #{mynet_rollout.1} parent=11 // pred_fallthru
          _
        // Predicated region
        $region33: #{mynet_rollout.1} parent=11 // pred_check
          %p400 = pneg %p176
        $region34: #{mynet_rollout.1} parent=11 // pred_check_branch
          %402 = sbr.rel (%p400) target = $region36
        $region35: #{mynet_rollout.1} parent=11 // pred_region
          _
        $region36: #{mynet_rollout.1} parent=11 // pred_fallthru
          _
        // Predicated region
        $region37: #{mynet_rollout.1} parent=11 // pred_check
          %p403 = pneg %p197
        $region38: #{mynet_rollout.1} parent=11 // pred_check_branch
          %405 = sbr.rel (%p403) target = $region40
        $region39: #{mynet_rollout.1} parent=11 // pred_region
          _
        $region40: #{mynet_rollout.1} parent=11 // pred_fallthru
          _
        // Predicated region
        $region41: #{mynet_rollout.1} parent=11 // pred_check
          %p406 = pneg %p218
        $region42: #{mynet_rollout.1} parent=11 // pred_check_branch
          %408 = sbr.rel (%p406) target = $region44
        $region43: #{mynet_rollout.1} parent=11 // pred_region
          _
        $region44: #{mynet_rollout.1} parent=11 // pred_fallthru
          _
        // Predicated region
        $region45: #{mynet_rollout.1} parent=11 // pred_check
          %p409 = pneg %p239
        $region46: #{mynet_rollout.1} parent=11 // pred_check_branch
          %411 = sbr.rel (%p409) target = $region48
        $region47: #{mynet_rollout.1} parent=11 // pred_region
          _
        $region48: #{mynet_rollout.1} parent=11 // pred_fallthru
          _
        // Predicated region
        $region49: #{mynet_rollout.1} parent=11 // pred_check
          %p412 = pneg %p260
        $region50: #{mynet_rollout.1} parent=11 // pred_check_branch
          %414 = sbr.rel (%p412) target = $region52
        $region51: #{mynet_rollout.1} parent=11 // pred_region
          _
        $region52: #{mynet_rollout.1} parent=11 // pred_fallthru
          _
        // Predicated region
        $region53: #{mynet_rollout.1} parent=11 // pred_check
          %p415 = pneg %p281
        $region54: #{mynet_rollout.1} parent=11 // pred_check_branch
          %417 = sbr.rel (%p415) target = $region56
        $region55: #{mynet_rollout.1} parent=11 // pred_region
          _
        $region56: #{mynet_rollout.1} parent=11 // pred_fallthru
          _
      $region12: #{mynet_rollout.1} parent=5 // pred_fallthru
        _
      %p418 = scmp.lt.s32.totalorder %s24, 4
      // Predicated region
      $region57: #{mynet_rollout.1} parent=5 // pred_check
        %p419 = pneg %p418
      $region58: #{mynet_rollout.1} parent=5 // pred_check_branch
        %421 = sbr.rel (%p419) target = $region60
      $region59: #{mynet_rollout.1} parent=5 // pred_region
        // Predicated region
        $region61: #{mynet_rollout.1} parent=59 // pred_check
          %p422 = pneg %p44
        $region62: #{mynet_rollout.1} parent=59 // pred_check_branch
          %424 = sbr.rel (%p422) target = $region64
        $region63: #{mynet_rollout.1} parent=59 // pred_region
          %p425 = scmp.lt.s32.totalorder %s24, 3
          %s426 = scalar_select %p425, %s24, 3
          %s427 = scalar_lea.vmem %s0, %s426
        $region64: #{mynet_rollout.1} parent=59 // pred_fallthru
          _
      $region60: #{mynet_rollout.1} parent=5 // pred_fallthru
        _
      %p428 = scmp.le.s32.totalorder 1, %s24
      %p429 = scmp.lt.s32.totalorder %s24, 5
      %p430 = pnand %p428, %p429
      %p431 = pneg %p430
      // Predicated region
      $region65: #{mynet_rollout.1} parent=5 // pred_check
        _
      $region66: #{mynet_rollout.1} parent=5 // pred_check_branch
        %433 = sbr.rel (%p430) target = $region68
      $region67: #{mynet_rollout.1} parent=5 // pred_region
        %s434 = ssub.s32 %s24, 1
        %p435 = scmp.lt.s32.totalorder %s29, 3
        %s436 = scalar_select %p435, %s29, 3
        %s437 = scalar_lea.vmem %s0, %s436
        %p438 = pneg %p50
        %p439 = pneg %p47
        %p440 = pneg %p71
        %p441 = pneg %p68
        %p442 = pneg %p92
        %p443 = pneg %p89
        %p444 = pneg %p113
        %p445 = pneg %p110
        %p446 = pneg %p134
        %p447 = pneg %p131
        %p448 = pneg %p155
        %p449 = pneg %p152
        %p450 = pneg %p176
        %p451 = pneg %p173
        %p452 = pneg %p197
        %p453 = pneg %p194
        %p454 = pneg %p218
        %p455 = pneg %p215
        %p456 = pneg %p239
        %p457 = pneg %p236
        %p458 = pneg %p260
        %p459 = pneg %p257
        %p460 = pneg %p281
        %p461 = pneg %p278
        %p462 = pneg %p307
        %p463 = pneg %p304
        %p464 = scmp.lt.s32.totalorder %s29, 3
        %s465 = scalar_select %p464, %s29, 3
        %s466 = scalar_lea.vmem %s12, %s465
        %p467 = pneg %p328
        %p468 = pneg %p325
        %p469 = pneg %p349
        %p470 = pneg %p346
        %p471 = pneg %p370
        %p472 = pneg %p367
        %p473 = scmp.lt.s32.totalorder %s29, 3
        %s474 = scalar_select %p473, %s29, 3
        %s475 = scalar_lea.vmem %s0, %s474
        %p476 = scmp.lt.s32.totalorder %s29, 3
        %s477 = scalar_select %p476, %s29, 3
        %s478 = scalar_lea.vmem %s12, %s477
        %p479 = scmp.eq.s32.totalorder %s29, 0
        // Predicated region
        $region69: #{mynet_rollout.1} parent=67 // pred_check
          %p480 = pneg %p479
        $region70: #{mynet_rollout.1} parent=67 // pred_check_branch
          %482 = sbr.rel (%p480) target = $region72
        $region71: #{mynet_rollout.1} parent=67 // pred_region
          %v483 = vld [vmem:[%s1] sm:$0x1]
          %484 = vst [vmem:[#allocation2] sm:$0x1] %v483
          %v485 = vld [vmem:[%s2] sm:$0xff]
          %v486 = vld [vmem:[%s2 + $0x8] sm:$0xff]
          %v487 = vld [vmem:[%s2 + $0x10] sm:$0xff]
          %v488 = vld [vmem:[%s2 + $0x18] sm:$0xff]
          %v489 = vld [vmem:[%s2 + $0x20] sm:$0xff]
          %v490 = vld [vmem:[%s2 + $0x28] sm:$0xff]
          %v491 = vld [vmem:[%s2 + $0x30] sm:$0xff]
          %v492 = vld [vmem:[%s2 + $0x38] sm:$0xff]
          %v493 = vld [vmem:[%s2 + $0x40] sm:$0xff]
          %v494 = vld [vmem:[%s2 + $0x48] sm:$0xff]
          %v495 = vld [vmem:[%s2 + $0x50] sm:$0xff]
          %v496 = vld [vmem:[%s2 + $0x58] sm:$0xff]
          %v497 = vld [vmem:[%s2 + $0x60] sm:$0xff]
          %v498 = vld [vmem:[%s2 + $0x68] sm:$0xff]
          %v499 = vld [vmem:[%s2 + $0x70] sm:$0xff]
          %v500 = vld [vmem:[%s2 + $0x78] sm:$0xff]
          %501 = vst [vmem:[#allocation4] sm:$0xff] %v485
          %502 = vst [vmem:[#allocation4 + $0x8] sm:$0xff] %v486
          %503 = vst [vmem:[#allocation4 + $0x10] sm:$0xff] %v487
          %504 = vst [vmem:[#allocation4 + $0x18] sm:$0xff] %v488
          %505 = vst [vmem:[#allocation4 + $0x20] sm:$0xff] %v489
          %506 = vst [vmem:[#allocation4 + $0x28] sm:$0xff] %v490
          %507 = vst [vmem:[#allocation4 + $0x30] sm:$0xff] %v491
          %508 = vst [vmem:[#allocation4 + $0x38] sm:$0xff] %v492
          %509 = vst [vmem:[#allocation4 + $0x40] sm:$0xff] %v493
          %510 = vst [vmem:[#allocation4 + $0x48] sm:$0xff] %v494
          %511 = vst [vmem:[#allocation4 + $0x50] sm:$0xff] %v495
          %512 = vst [vmem:[#allocation4 + $0x58] sm:$0xff] %v496
          %513 = vst [vmem:[#allocation4 + $0x60] sm:$0xff] %v497
          %514 = vst [vmem:[#allocation4 + $0x68] sm:$0xff] %v498
          %515 = vst [vmem:[#allocation4 + $0x70] sm:$0xff] %v499
          %516 = vst [vmem:[#allocation4 + $0x78] sm:$0xff] %v500
          %v517 = vld [vmem:[%s3] sm:$0x1]
          %vm518 = vcmask 516096
          %519 = vst.msk [vmem:[#allocation6] sm:$0x1] %vm518, %v517
        $region72: #{mynet_rollout.1} parent=67 // pred_fallthru
          _
        %v520 = vld [vmem:[%s475] sm:$0x1]
        %v521 = vld [vmem:[#allocation2] sm:$0x1]
        %v522 = vld [vmem:[#allocation4] sm:$0xff]
        %v523 = vld [vmem:[#allocation4 + $0x8] sm:$0xff]
        %v524 = vld [vmem:[#allocation4 + $0x10] sm:$0xff]
        %v525 = vld [vmem:[#allocation4 + $0x18] sm:$0xff]
        %v526 = vld [vmem:[#allocation4 + $0x20] sm:$0xff]
        %v527 = vld [vmem:[#allocation4 + $0x28] sm:$0xff]
        %v528 = vld [vmem:[#allocation4 + $0x30] sm:$0xff]
        %v529 = vld [vmem:[#allocation4 + $0x38] sm:$0xff]
        %v530 = vld [vmem:[#allocation4 + $0x40] sm:$0xff]
        %v531 = vld [vmem:[#allocation4 + $0x48] sm:$0xff]
        %v532 = vld [vmem:[#allocation4 + $0x50] sm:$0xff]
        %v533 = vld [vmem:[#allocation4 + $0x58] sm:$0xff]
        %v534 = vld [vmem:[#allocation4 + $0x60] sm:$0xff]
        %v535 = vld [vmem:[#allocation4 + $0x68] sm:$0xff]
        %v536 = vld [vmem:[#allocation4 + $0x70] sm:$0xff]
        %v537 = vld [vmem:[#allocation4 + $0x78] sm:$0xff]
        %v538 = vld [vmem:[#allocation6] sm:$0x1]
        %v539 = vxor.u32 %v521, 2147483648
        %v540 = vmul.f32 %v539, 1.442695
        %v541 = vpow.pop %v540
        %v542 = vadd.f32 %v541, 1.0
        %v543 = vrcp.pop %v542
        %v544 = vmul.f32 %v542, %v543
        %v545 = vsub.f32 1.0, %v544
        %v546 = vmul.f32 %v543, %v545
        %v547 = vadd.f32 %v543, %v546
        %vm548 = vweird.f32 %v542
        %vm549 = vweird.f32 %v543
        %vm550 = vmor %vm548, %vm549
        %v551 = vsel %vm550, %v543, %v547
        %v552 = vand.u32 2147483647, %v542
        %vm553 = vcmp.eq.f32.partialorder %v552, 8.507059e+37
        %v554 = vand.u32 %v542, 2147483648
        %v555 = vor.u32 1.1754944e-38, %v554
        %v556 = vsel %vm553, %v555, %v551
        %v557 = vmul.f32 1.0, %v556
        %v558 = vmul.f32 %v521, 0.8
        %v559 = vld [vmem:[%s4] sm:$0x1]
        %561 = vset.pattern.permute.xlu0 0
        %562 = vperm.xlu0 %561, %v520
        %v563 = vpop.permute.xlu0 %562
        %v565 = vperm.slane %v563, 0
        %v566 = vmul.f32 %v565, %v559
        %567 = vmatpush.msra.mxu0 %v537
        %568 = vmatpush.msra.mxu0 %v536
        %569 = vmatpush.msra.mxu0 %v535
        %570 = vmatpush.msra.mxu0 %v534
        %571 = vmatpush.msra.mxu0 %v533
        %572 = vmatpush.msra.mxu0 %v532
        %573 = vmatpush.msra.mxu0 %v531
        %574 = vmatpush.msra.mxu0 %v530
        %575 = vmatpush.msra.mxu0 %v529
        %576 = vmatpush.msra.mxu0 %v528
        %577 = vmatpush.msra.mxu0 %v527
        %578 = vmatpush.msra.mxu0 %v526
        %579 = vmatpush.msra.mxu0 %v525
        %580 = vmatpush.msra.mxu0 %v524
        %581 = vmatpush.msra.mxu0 %v523
        %582 = vmatpush.msra.mxu0 %v522
        %583 = vmatmul.f32.gmra.mxu0 %v557
        %v584 = vpop.f32.mrf.mxu0
        %v585 = vadd.f32 %v566, %v584
        %586 = vdwg.mxu0
        %v587 = vmul.f32 %v585, 0.2
        %v588 = vadd.f32 %v558, %v587
        %589 = vst [vmem:[#allocation2] sm:$0x1] %v588
        %v590 = vld [vmem:[%s10] sm:$0xff]
        %v591 = vld [vmem:[%s10 + $0x8] sm:$0xff]
        %v592 = vld [vmem:[%s10 + $0x10] sm:$0xff]
        %v593 = vld [vmem:[%s10 + $0x18] sm:$0xff]
        %v594 = vld [vmem:[%s10 + $0x20] sm:$0xff]
        %v595 = vld [vmem:[%s10 + $0x28] sm:$0xff]
        %v596 = vld [vmem:[%s10 + $0x30] sm:$0xff]
        %v597 = vld [vmem:[%s10 + $0x38] sm:$0xff]
        %v598 = vld [vmem:[%s10 + $0x40] sm:$0xff]
        %v599 = vld [vmem:[%s10 + $0x48] sm:$0xff]
        %v600 = vld [vmem:[%s10 + $0x50] sm:$0xff]
        %v601 = vld [vmem:[%s10 + $0x58] sm:$0xff]
        %v602 = vld [vmem:[%s10 + $0x60] sm:$0xff]
        %v603 = vld [vmem:[%s10 + $0x68] sm:$0xff]
        %v604 = vld [vmem:[%s10 + $0x70] sm:$0xff]
        %v605 = vld [vmem:[%s10 + $0x78] sm:$0xff]
        %v606 = vld [vmem:[%s11] sm:$0x1]
        %607 = vmatpush.msra.mxu0 %v605
        %608 = vmatpush.msra.mxu0 %v604
        %609 = vmatpush.msra.mxu0 %v603
        %610 = vmatpush.msra.mxu0 %v602
        %611 = vmatpush.msra.mxu0 %v601
        %612 = vmatpush.msra.mxu0 %v600
        %613 = vmatpush.msra.mxu0 %v599
        %614 = vmatpush.msra.mxu0 %v598
        %615 = vmatpush.msra.mxu0 %v597
        %616 = vmatpush.msra.mxu0 %v596
        %617 = vmatpush.msra.mxu0 %v595
        %618 = vmatpush.msra.mxu0 %v594
        %619 = vmatpush.msra.mxu0 %v593
        %620 = vmatpush.msra.mxu0 %v592
        %621 = vmatpush.msra.mxu0 %v591
        %622 = vmatpush.msra.mxu0 %v590
        %623 = vmatmul.f32.gmra.mxu0 %v588
        %v624 = vpop.f32.mrf.mxu0
        %v625 = vadd.f32 %v606, %v624
        %626 = vdwg.mxu0
        %vm627 = vcmask 16384
        %628 = vst.msk [vmem:[%s478] sm:$0x1] %vm627, %v625
        %v629 = vxor.u32 %v588, 2147483648
        %v630 = vmul.f32 %v629, 1.442695
        %v631 = vpow.pop %v630
        %v632 = vadd.f32 %v631, 1.0
        %v633 = vrcp.pop %v632
        %v634 = vmul.f32 %v632, %v633
        %v635 = vsub.f32 1.0, %v634
        %v636 = vmul.f32 %v633, %v635
        %v637 = vadd.f32 %v633, %v636
        %vm638 = vweird.f32 %v632
        %vm639 = vweird.f32 %v633
        %vm640 = vmor %vm638, %vm639
        %v641 = vsel %vm640, %v633, %v637
        %v642 = vand.u32 2147483647, %v632
        %vm643 = vcmp.eq.f32.partialorder %v642, 8.507059e+37
        %v644 = vand.u32 %v632, 2147483648
        %v645 = vor.u32 1.1754944e-38, %v644
        %v646 = vsel %vm643, %v645, %v641
        %v647 = vmul.f32 1.0, %v646
        %v649 = vperm.slane %v647, 0
        %651 = vxpose.xlu0.b32.start [1/16] %v649, 128
        %652 = vxpose.xlu0.b32.cont [2/16] %v649, 128
        %653 = vxpose.xlu0.b32.cont [3/16] %v649, 128
        %654 = vxpose.xlu0.b32.cont [4/16] %v649, 128
        %655 = vxpose.xlu0.b32.cont [5/16] %v649, 128
        %656 = vxpose.xlu0.b32.cont [6/16] %v649, 128
        %657 = vxpose.xlu0.b32.cont [7/16] %v649, 128
        %658 = vxpose.xlu0.b32.cont [8/16] %v649, 128
        %659 = vxpose.xlu0.b32.cont [9/16] %v649, 128
        %660 = vxpose.xlu0.b32.cont [10/16] %v649, 128
        %661 = vxpose.xlu0.b32.cont [11/16] %v649, 128
        %662 = vxpose.xlu0.b32.cont [12/16] %v649, 128
        %663 = vxpose.xlu0.b32.cont [13/16] %v649, 128
        %664 = vxpose.xlu0.b32.cont [14/16] %v649, 128
        %665 = vxpose.xlu0.b32.cont [15/16] %v649, 128
        %666 = vxpose.xlu0.b32.end [16/16] %v649, 128
        %v667 = vpop.trf.xlu0
        %v668 = vpop.trf.xlu0
        %v669 = vpop.trf.xlu0
        %v670 = vpop.trf.xlu0
        %v671 = vpop.trf.xlu0
        %v672 = vpop.trf.xlu0
        %v673 = vpop.trf.xlu0
        %v674 = vpop.trf.xlu0
        %v675 = vpop.trf.xlu0
        %v676 = vpop.trf.xlu0
        %v677 = vpop.trf.xlu0
        %v678 = vpop.trf.xlu0
        %v679 = vpop.trf.xlu0
        %v680 = vpop.trf.xlu0
        %v681 = vpop.trf.xlu0
        %v682 = vpop.trf.xlu0
        %v683 = vmul.f32 %v667, %v649
        %v684 = vmul.f32 %v668, %v649
        %v685 = vmul.f32 %v669, %v649
        %v686 = vmul.f32 %v670, %v649
        %v687 = vmul.f32 %v671, %v649
        %v688 = vmul.f32 %v672, %v649
        %v689 = vmul.f32 %v673, %v649
        %v690 = vmul.f32 %v674, %v649
        %v691 = vmul.f32 %v675, %v649
        %v692 = vmul.f32 %v676, %v649
        %v693 = vmul.f32 %v677, %v649
        %v694 = vmul.f32 %v678, %v649
        %v695 = vmul.f32 %v679, %v649
        %v696 = vmul.f32 %v680, %v649
        %v697 = vmul.f32 %v681, %v649
        %v698 = vmul.f32 %v682, %v649
        %v699 = vtanh.pop %v538
        %v700 = vld [vmem:[%s7] sm:$0xff]
        %v701 = vld [vmem:[%s7 + $0x8] sm:$0xff]
        %v702 = vld [vmem:[%s7 + $0x10] sm:$0xff]
        %v703 = vld [vmem:[%s7 + $0x18] sm:$0xff]
        %v704 = vld [vmem:[%s7 + $0x20] sm:$0xff]
        %v705 = vld [vmem:[%s7 + $0x28] sm:$0xff]
        %v706 = vld [vmem:[%s7 + $0x30] sm:$0xff]
        %v707 = vld [vmem:[%s7 + $0x38] sm:$0xff]
        %v708 = vld [vmem:[%s7 + $0x40] sm:$0xff]
        %v709 = vld [vmem:[%s7 + $0x48] sm:$0xff]
        %v710 = vld [vmem:[%s7 + $0x50] sm:$0xff]
        %v711 = vld [vmem:[%s7 + $0x58] sm:$0xff]
        %v712 = vld [vmem:[%s7 + $0x60] sm:$0xff]
        %v713 = vld [vmem:[%s7 + $0x68] sm:$0xff]
        %v714 = vld [vmem:[%s7 + $0x70] sm:$0xff]
        %v715 = vld [vmem:[%s7 + $0x78] sm:$0xff]
        %v716 = vld [vmem:[%s7 + $0x80] sm:$0xff]
        %v717 = vld [vmem:[%s7 + $0x88] sm:$0xff]
        %v718 = vld [vmem:[%s7 + $0x90] sm:$0xff]
        %v719 = vld [vmem:[%s7 + $0x98] sm:$0xff]
        %v720 = vld [vmem:[%s7 + $0xa0] sm:$0xff]
        %v721 = vld [vmem:[%s7 + $0xa8] sm:$0xff]
        %v722 = vld [vmem:[%s7 + $0xb0] sm:$0xff]
        %v723 = vld [vmem:[%s7 + $0xb8] sm:$0xff]
        %v724 = vld [vmem:[%s7 + $0xc0] sm:$0xff]
        %v725 = vld [vmem:[%s7 + $0xc8] sm:$0xff]
        %v726 = vld [vmem:[%s7 + $0xd0] sm:$0xff]
        %v727 = vld [vmem:[%s7 + $0xd8] sm:$0xff]
        %v728 = vld [vmem:[%s7 + $0xe0] sm:$0xff]
        %v729 = vld [vmem:[%s7 + $0xe8] sm:$0xff]
        %v730 = vld [vmem:[%s7 + $0xf0] sm:$0xff]
        %v731 = vld [vmem:[%s7 + $0xf8] sm:$0xff]
        %v732 = vld [vmem:[%s7 + $0x100] sm:$0xff]
        %v733 = vld [vmem:[%s7 + $0x108] sm:$0xff]
        %v734 = vld [vmem:[%s7 + $0x110] sm:$0xff]
        %v735 = vld [vmem:[%s7 + $0x118] sm:$0xff]
        %v736 = vld [vmem:[%s7 + $0x120] sm:$0xff]
        %v737 = vld [vmem:[%s7 + $0x128] sm:$0xff]
        %v738 = vld [vmem:[%s7 + $0x130] sm:$0xff]
        %v739 = vld [vmem:[%s7 + $0x138] sm:$0xff]
        %v740 = vld [vmem:[%s7 + $0x140] sm:$0xff]
        %v741 = vld [vmem:[%s7 + $0x148] sm:$0xff]
        %v742 = vld [vmem:[%s7 + $0x150] sm:$0xff]
        %v743 = vld [vmem:[%s7 + $0x158] sm:$0xff]
        %v744 = vld [vmem:[%s7 + $0x160] sm:$0xff]
        %v745 = vld [vmem:[%s7 + $0x168] sm:$0xff]
        %v746 = vld [vmem:[%s7 + $0x170] sm:$0xff]
        %v747 = vld [vmem:[%s7 + $0x178] sm:$0xff]
        %v748 = vld [vmem:[%s7 + $0x180] sm:$0xff]
        %v749 = vld [vmem:[%s7 + $0x188] sm:$0xff]
        %v750 = vld [vmem:[%s7 + $0x190] sm:$0xff]
        %v751 = vld [vmem:[%s7 + $0x198] sm:$0xff]
        %v752 = vld [vmem:[%s7 + $0x1a0] sm:$0xff]
        %v753 = vld [vmem:[%s7 + $0x1a8] sm:$0xff]
        %v754 = vld [vmem:[%s7 + $0x1b0] sm:$0xff]
        %v755 = vld [vmem:[%s7 + $0x1b8] sm:$0xff]
        %v756 = vld [vmem:[%s7 + $0x1c0] sm:$0xff]
        %v757 = vld [vmem:[%s7 + $0x1c8] sm:$0xff]
        %v758 = vld [vmem:[%s7 + $0x1d0] sm:$0xff]
        %v759 = vld [vmem:[%s7 + $0x1d8] sm:$0xff]
        %v760 = vld [vmem:[%s7 + $0x1e0] sm:$0xff]
        %v761 = vld [vmem:[%s7 + $0x1e8] sm:$0xff]
        %v762 = vld [vmem:[%s7 + $0x1f0] sm:$0xff]
        %v763 = vld [vmem:[%s7 + $0x1f8] sm:$0xff]
        %v764 = vld [vmem:[%s7 + $0x200] sm:$0xff]
        %v765 = vld [vmem:[%s7 + $0x208] sm:$0xff]
        %v766 = vld [vmem:[%s7 + $0x210] sm:$0xff]
        %v767 = vld [vmem:[%s7 + $0x218] sm:$0xff]
        %v768 = vld [vmem:[%s7 + $0x220] sm:$0xff]
        %v769 = vld [vmem:[%s7 + $0x228] sm:$0xff]
        %v770 = vld [vmem:[%s7 + $0x230] sm:$0xff]
        %v771 = vld [vmem:[%s7 + $0x238] sm:$0xff]
        %v772 = vld [vmem:[%s7 + $0x240] sm:$0xff]
        %v773 = vld [vmem:[%s7 + $0x248] sm:$0xff]
        %v774 = vld [vmem:[%s7 + $0x250] sm:$0xff]
        %v775 = vld [vmem:[%s7 + $0x258] sm:$0xff]
        %v776 = vld [vmem:[%s7 + $0x260] sm:$0xff]
        %v777 = vld [vmem:[%s7 + $0x268] sm:$0xff]
        %v778 = vld [vmem:[%s7 + $0x270] sm:$0xff]
        %v779 = vld [vmem:[%s7 + $0x278] sm:$0xff]
        %v780 = vld [vmem:[%s7 + $0x280] sm:$0xff]
        %v781 = vld [vmem:[%s7 + $0x288] sm:$0xff]
        %v782 = vld [vmem:[%s7 + $0x290] sm:$0xff]
        %v783 = vld [vmem:[%s7 + $0x298] sm:$0xff]
        %v784 = vld [vmem:[%s7 + $0x2a0] sm:$0xff]
        %v785 = vld [vmem:[%s7 + $0x2a8] sm:$0xff]
        %v786 = vld [vmem:[%s7 + $0x2b0] sm:$0xff]
        %v787 = vld [vmem:[%s7 + $0x2b8] sm:$0xff]
        %v788 = vld [vmem:[%s7 + $0x2c0] sm:$0xff]
        %v789 = vld [vmem:[%s7 + $0x2c8] sm:$0xff]
        %v790 = vld [vmem:[%s7 + $0x2d0] sm:$0xff]
        %v791 = vld [vmem:[%s7 + $0x2d8] sm:$0xff]
        %v792 = vld [vmem:[%s7 + $0x2e0] sm:$0xff]
        %v793 = vld [vmem:[%s7 + $0x2e8] sm:$0xff]
        %v794 = vld [vmem:[%s7 + $0x2f0] sm:$0xff]
        %v795 = vld [vmem:[%s7 + $0x2f8] sm:$0xff]
        %v796 = vld [vmem:[%s7 + $0x300] sm:$0xff]
        %v797 = vld [vmem:[%s7 + $0x308] sm:$0xff]
        %v798 = vld [vmem:[%s7 + $0x310] sm:$0xff]
        %v799 = vld [vmem:[%s7 + $0x318] sm:$0xff]
        %v800 = vld [vmem:[%s7 + $0x320] sm:$0xff]
        %v801 = vld [vmem:[%s7 + $0x328] sm:$0xff]
        %v802 = vld [vmem:[%s7 + $0x330] sm:$0xff]
        %v803 = vld [vmem:[%s7 + $0x338] sm:$0xff]
        %v804 = vld [vmem:[%s7 + $0x340] sm:$0xff]
        %v805 = vld [vmem:[%s7 + $0x348] sm:$0xff]
        %v806 = vld [vmem:[%s7 + $0x350] sm:$0xff]
        %v807 = vld [vmem:[%s7 + $0x358] sm:$0xff]
        %v808 = vld [vmem:[%s7 + $0x360] sm:$0xff]
        %v809 = vld [vmem:[%s7 + $0x368] sm:$0xff]
        %v810 = vld [vmem:[%s7 + $0x370] sm:$0xff]
        %v811 = vld [vmem:[%s7 + $0x378] sm:$0xff]
        %v812 = vld [vmem:[%s7 + $0x380] sm:$0xff]
        %v813 = vld [vmem:[%s7 + $0x388] sm:$0xff]
        %v814 = vld [vmem:[%s7 + $0x390] sm:$0xff]
        %v815 = vld [vmem:[%s7 + $0x398] sm:$0xff]
        %v816 = vld [vmem:[%s7 + $0x3a0] sm:$0xff]
        %v817 = vld [vmem:[%s7 + $0x3a8] sm:$0xff]
        %v818 = vld [vmem:[%s7 + $0x3b0] sm:$0xff]
        %v819 = vld [vmem:[%s7 + $0x3b8] sm:$0xff]
        %v820 = vld [vmem:[%s7 + $0x3c0] sm:$0xff]
        %v821 = vld [vmem:[%s7 + $0x3c8] sm:$0xff]
        %v822 = vld [vmem:[%s7 + $0x3d0] sm:$0xff]
        %v823 = vld [vmem:[%s7 + $0x3d8] sm:$0xff]
        %v824 = vld [vmem:[%s7 + $0x3e0] sm:$0xff]
        %v825 = vld [vmem:[%s7 + $0x3e8] sm:$0xff]
        %v826 = vld [vmem:[%s7 + $0x3f0] sm:$0xff]
        %v827 = vld [vmem:[%s7 + $0x3f8] sm:$0xff]
        %v828 = vld [vmem:[%s7 + $0x400] sm:$0xff]
        %v829 = vld [vmem:[%s7 + $0x408] sm:$0xff]
        %v830 = vld [vmem:[%s7 + $0x410] sm:$0xff]
        %v831 = vld [vmem:[%s7 + $0x418] sm:$0xff]
        %v832 = vld [vmem:[%s7 + $0x420] sm:$0xff]
        %v833 = vld [vmem:[%s7 + $0x428] sm:$0xff]
        %v834 = vld [vmem:[%s7 + $0x430] sm:$0xff]
        %v835 = vld [vmem:[%s7 + $0x438] sm:$0xff]
        %v836 = vld [vmem:[%s7 + $0x440] sm:$0xff]
        %v837 = vld [vmem:[%s7 + $0x448] sm:$0xff]
        %v838 = vld [vmem:[%s7 + $0x450] sm:$0xff]
        %v839 = vld [vmem:[%s7 + $0x458] sm:$0xff]
        %v840 = vld [vmem:[%s7 + $0x460] sm:$0xff]
        %v841 = vld [vmem:[%s7 + $0x468] sm:$0xff]
        %v842 = vld [vmem:[%s7 + $0x470] sm:$0xff]
        %v843 = vld [vmem:[%s7 + $0x478] sm:$0xff]
        %v844 = vld [vmem:[%s7 + $0x480] sm:$0xff]
        %v845 = vld [vmem:[%s7 + $0x488] sm:$0xff]
        %v846 = vld [vmem:[%s7 + $0x490] sm:$0xff]
        %v847 = vld [vmem:[%s7 + $0x498] sm:$0xff]
        %v848 = vld [vmem:[%s7 + $0x4a0] sm:$0xff]
        %v849 = vld [vmem:[%s7 + $0x4a8] sm:$0xff]
        %v850 = vld [vmem:[%s7 + $0x4b0] sm:$0xff]
        %v851 = vld [vmem:[%s7 + $0x4b8] sm:$0xff]
        %v852 = vld [vmem:[%s7 + $0x4c0] sm:$0xff]
        %v853 = vld [vmem:[%s7 + $0x4c8] sm:$0xff]
        %v854 = vld [vmem:[%s7 + $0x4d0] sm:$0xff]
        %v855 = vld [vmem:[%s7 + $0x4d8] sm:$0xff]
        %v856 = vld [vmem:[%s7 + $0x4e0] sm:$0xff]
        %v857 = vld [vmem:[%s7 + $0x4e8] sm:$0xff]
        %v858 = vld [vmem:[%s7 + $0x4f0] sm:$0xff]
        %v859 = vld [vmem:[%s7 + $0x4f8] sm:$0xff]
        %v860 = vld [vmem:[%s7 + $0x500] sm:$0xff]
        %v861 = vld [vmem:[%s7 + $0x508] sm:$0xff]
        %v862 = vld [vmem:[%s7 + $0x510] sm:$0xff]
        %v863 = vld [vmem:[%s7 + $0x518] sm:$0xff]
        %v864 = vld [vmem:[%s7 + $0x520] sm:$0xff]
        %v865 = vld [vmem:[%s7 + $0x528] sm:$0xff]
        %v866 = vld [vmem:[%s7 + $0x530] sm:$0xff]
        %v867 = vld [vmem:[%s7 + $0x538] sm:$0xff]
        %v868 = vld [vmem:[%s7 + $0x540] sm:$0xff]
        %v869 = vld [vmem:[%s7 + $0x548] sm:$0xff]
        %v870 = vld [vmem:[%s7 + $0x550] sm:$0xff]
        %v871 = vld [vmem:[%s7 + $0x558] sm:$0xff]
        %v872 = vld [vmem:[%s7 + $0x560] sm:$0xff]
        %v873 = vld [vmem:[%s7 + $0x568] sm:$0xff]
        %v874 = vld [vmem:[%s7 + $0x570] sm:$0xff]
        %v875 = vld [vmem:[%s7 + $0x578] sm:$0xff]
        %v876 = vld [vmem:[%s7 + $0x580] sm:$0xff]
        %v877 = vld [vmem:[%s7 + $0x588] sm:$0xff]
        %v878 = vld [vmem:[%s7 + $0x590] sm:$0xff]
        %v879 = vld [vmem:[%s7 + $0x598] sm:$0xff]
        %v880 = vld [vmem:[%s7 + $0x5a0] sm:$0xff]
        %v881 = vld [vmem:[%s7 + $0x5a8] sm:$0xff]
        %v882 = vld [vmem:[%s7 + $0x5b0] sm:$0xff]
        %v883 = vld [vmem:[%s7 + $0x5b8] sm:$0xff]
        %v884 = vld [vmem:[%s7 + $0x5c0] sm:$0xff]
        %v885 = vld [vmem:[%s7 + $0x5c8] sm:$0xff]
        %v886 = vld [vmem:[%s7 + $0x5d0] sm:$0xff]
        %v887 = vld [vmem:[%s7 + $0x5d8] sm:$0xff]
        %v888 = vld [vmem:[%s7 + $0x5e0] sm:$0xff]
        %v889 = vld [vmem:[%s7 + $0x5e8] sm:$0xff]
        %v890 = vld [vmem:[%s7 + $0x5f0] sm:$0xff]
        %v891 = vld [vmem:[%s7 + $0x5f8] sm:$0xff]
        %v892 = vld [vmem:[%s7 + $0x600] sm:$0xff]
        %v893 = vld [vmem:[%s7 + $0x608] sm:$0xff]
        %v894 = vld [vmem:[%s7 + $0x610] sm:$0xff]
        %v895 = vld [vmem:[%s7 + $0x618] sm:$0xff]
        %v896 = vld [vmem:[%s7 + $0x620] sm:$0xff]
        %v897 = vld [vmem:[%s7 + $0x628] sm:$0xff]
        %v898 = vld [vmem:[%s7 + $0x630] sm:$0xff]
        %v899 = vld [vmem:[%s7 + $0x638] sm:$0xff]
        %v900 = vld [vmem:[%s7 + $0x640] sm:$0xff]
        %v901 = vld [vmem:[%s7 + $0x648] sm:$0xff]
        %v902 = vld [vmem:[%s7 + $0x650] sm:$0xff]
        %v903 = vld [vmem:[%s7 + $0x658] sm:$0xff]
        %v904 = vld [vmem:[%s7 + $0x660] sm:$0xff]
        %v905 = vld [vmem:[%s7 + $0x668] sm:$0xff]
        %v906 = vld [vmem:[%s7 + $0x670] sm:$0xff]
        %v907 = vld [vmem:[%s7 + $0x678] sm:$0xff]
        %v908 = vld [vmem:[%s7 + $0x680] sm:$0xff]
        %v909 = vld [vmem:[%s7 + $0x688] sm:$0xff]
        %v910 = vld [vmem:[%s7 + $0x690] sm:$0xff]
        %v911 = vld [vmem:[%s7 + $0x698] sm:$0xff]
        %v912 = vld [vmem:[%s7 + $0x6a0] sm:$0xff]
        %v913 = vld [vmem:[%s7 + $0x6a8] sm:$0xff]
        %v914 = vld [vmem:[%s7 + $0x6b0] sm:$0xff]
        %v915 = vld [vmem:[%s7 + $0x6b8] sm:$0xff]
        %v916 = vld [vmem:[%s7 + $0x6c0] sm:$0xff]
        %v917 = vld [vmem:[%s7 + $0x6c8] sm:$0xff]
        %v918 = vld [vmem:[%s7 + $0x6d0] sm:$0xff]
        %v919 = vld [vmem:[%s7 + $0x6d8] sm:$0xff]
        %v920 = vld [vmem:[%s7 + $0x6e0] sm:$0xff]
        %v921 = vld [vmem:[%s7 + $0x6e8] sm:$0xff]
        %v922 = vld [vmem:[%s7 + $0x6f0] sm:$0xff]
        %v923 = vld [vmem:[%s7 + $0x6f8] sm:$0xff]
        %v924 = vld [vmem:[%s7 + $0x700] sm:$0xff]
        %v925 = vld [vmem:[%s7 + $0x708] sm:$0xff]
        %v926 = vld [vmem:[%s7 + $0x710] sm:$0xff]
        %v927 = vld [vmem:[%s7 + $0x718] sm:$0xff]
        %v928 = vld [vmem:[%s7 + $0x720] sm:$0xff]
        %v929 = vld [vmem:[%s7 + $0x728] sm:$0xff]
        %v930 = vld [vmem:[%s7 + $0x730] sm:$0xff]
        %v931 = vld [vmem:[%s7 + $0x738] sm:$0xff]
        %v932 = vld [vmem:[%s7 + $0x740] sm:$0xff]
        %v933 = vld [vmem:[%s7 + $0x748] sm:$0xff]
        %v934 = vld [vmem:[%s7 + $0x750] sm:$0xff]
        %v935 = vld [vmem:[%s7 + $0x758] sm:$0xff]
        %v936 = vld [vmem:[%s7 + $0x760] sm:$0xff]
        %v937 = vld [vmem:[%s7 + $0x768] sm:$0xff]
        %v938 = vld [vmem:[%s7 + $0x770] sm:$0xff]
        %v939 = vld [vmem:[%s7 + $0x778] sm:$0xff]
        %v940 = vld [vmem:[%s7 + $0x780] sm:$0xff]
        %v941 = vld [vmem:[%s7 + $0x788] sm:$0xff]
        %v942 = vld [vmem:[%s7 + $0x790] sm:$0xff]
        %v943 = vld [vmem:[%s7 + $0x798] sm:$0xff]
        %v944 = vld [vmem:[%s7 + $0x7a0] sm:$0xff]
        %v945 = vld [vmem:[%s7 + $0x7a8] sm:$0xff]
        %v946 = vld [vmem:[%s7 + $0x7b0] sm:$0xff]
        %v947 = vld [vmem:[%s7 + $0x7b8] sm:$0xff]
        %v948 = vld [vmem:[%s7 + $0x7c0] sm:$0xff]
        %v949 = vld [vmem:[%s7 + $0x7c8] sm:$0xff]
        %v950 = vld [vmem:[%s7 + $0x7d0] sm:$0xff]
        %v951 = vld [vmem:[%s7 + $0x7d8] sm:$0xff]
        %v952 = vld [vmem:[%s7 + $0x7e0] sm:$0xff]
        %v953 = vld [vmem:[%s7 + $0x7e8] sm:$0xff]
        %v954 = vld [vmem:[%s7 + $0x7f0] sm:$0xff]
        %v955 = vld [vmem:[%s7 + $0x7f8] sm:$0xff]
        %v956 = vld [vmem:[%s7 + $0x800] sm:$0xff]
        %v957 = vld [vmem:[%s7 + $0x808] sm:$0xff]
        %v958 = vld [vmem:[%s7 + $0x810] sm:$0xff]
        %v959 = vld [vmem:[%s7 + $0x818] sm:$0xff]
        %v960 = vld [vmem:[%s7 + $0x820] sm:$0xff]
        %v961 = vld [vmem:[%s7 + $0x828] sm:$0xff]
        %v962 = vld [vmem:[%s7 + $0x830] sm:$0xff]
        %v963 = vld [vmem:[%s7 + $0x838] sm:$0xff]
        %v964 = vld [vmem:[%s7 + $0x840] sm:$0xff]
        %v965 = vld [vmem:[%s7 + $0x848] sm:$0xff]
        %v966 = vld [vmem:[%s7 + $0x850] sm:$0xff]
        %v967 = vld [vmem:[%s7 + $0x858] sm:$0xff]
        %v968 = vld [vmem:[%s7 + $0x860] sm:$0xff]
        %v969 = vld [vmem:[%s7 + $0x868] sm:$0xff]
        %v970 = vld [vmem:[%s7 + $0x870] sm:$0xff]
        %v971 = vld [vmem:[%s7 + $0x878] sm:$0xff]
        %v972 = vld [vmem:[%s7 + $0x880] sm:$0xff]
        %v973 = vld [vmem:[%s7 + $0x888] sm:$0xff]
        %v974 = vld [vmem:[%s7 + $0x890] sm:$0xff]
        %v975 = vld [vmem:[%s7 + $0x898] sm:$0xff]
        %v976 = vld [vmem:[%s7 + $0x8a0] sm:$0xff]
        %v977 = vld [vmem:[%s7 + $0x8a8] sm:$0xff]
        %v978 = vld [vmem:[%s7 + $0x8b0] sm:$0xff]
        %v979 = vld [vmem:[%s7 + $0x8b8] sm:$0xff]
        %v980 = vld [vmem:[%s7 + $0x8c0] sm:$0xff]
        %v981 = vld [vmem:[%s7 + $0x8c8] sm:$0xff]
        %v982 = vld [vmem:[%s7 + $0x8d0] sm:$0xff]
        %v983 = vld [vmem:[%s7 + $0x8d8] sm:$0xff]
        %v984 = vld [vmem:[%s7 + $0x8e0] sm:$0xff]
        %v985 = vld [vmem:[%s7 + $0x8e8] sm:$0xff]
        %v986 = vld [vmem:[%s7 + $0x8f0] sm:$0xff]
        %v987 = vld [vmem:[%s7 + $0x8f8] sm:$0xff]
        %v988 = vld [vmem:[%s7 + $0x900] sm:$0xff]
        %v989 = vld [vmem:[%s7 + $0x908] sm:$0xff]
        %v990 = vld [vmem:[%s7 + $0x910] sm:$0xff]
        %v991 = vld [vmem:[%s7 + $0x918] sm:$0xff]
        %v992 = vld [vmem:[%s7 + $0x920] sm:$0xff]
        %v993 = vld [vmem:[%s7 + $0x928] sm:$0xff]
        %v994 = vld [vmem:[%s7 + $0x930] sm:$0xff]
        %v995 = vld [vmem:[%s7 + $0x938] sm:$0xff]
        %v996 = vld [vmem:[%s7 + $0x940] sm:$0xff]
        %v997 = vld [vmem:[%s7 + $0x948] sm:$0xff]
        %v998 = vld [vmem:[%s7 + $0x950] sm:$0xff]
        %v999 = vld [vmem:[%s7 + $0x958] sm:$0xff]
        %v1000 = vld [vmem:[%s7 + $0x960] sm:$0xff]
        %v1001 = vld [vmem:[%s7 + $0x968] sm:$0xff]
        %v1002 = vld [vmem:[%s7 + $0x970] sm:$0xff]
        %v1003 = vld [vmem:[%s7 + $0x978] sm:$0xff]
        %v1004 = vld [vmem:[%s7 + $0x980] sm:$0xff]
        %v1005 = vld [vmem:[%s7 + $0x988] sm:$0xff]
        %v1006 = vld [vmem:[%s7 + $0x990] sm:$0xff]
        %v1007 = vld [vmem:[%s7 + $0x998] sm:$0xff]
        %v1008 = vld [vmem:[%s7 + $0x9a0] sm:$0xff]
        %v1009 = vld [vmem:[%s7 + $0x9a8] sm:$0xff]
        %v1010 = vld [vmem:[%s7 + $0x9b0] sm:$0xff]
        %v1011 = vld [vmem:[%s7 + $0x9b8] sm:$0xff]
        %v1012 = vld [vmem:[%s7 + $0x9c0] sm:$0xff]
        %v1013 = vld [vmem:[%s7 + $0x9c8] sm:$0xff]
        %v1014 = vld [vmem:[%s7 + $0x9d0] sm:$0xff]
        %v1015 = vld [vmem:[%s7 + $0x9d8] sm:$0xff]
        %v1016 = vld [vmem:[%s7 + $0x9e0] sm:$0xff]
        %v1017 = vld [vmem:[%s7 + $0x9e8] sm:$0xff]
        %v1018 = vld [vmem:[%s7 + $0x9f0] sm:$0xff]
        %v1019 = vld [vmem:[%s7 + $0x9f8] sm:$0xff]
        %v1020 = vld [vmem:[%s7 + $0xa00] sm:$0xff]
        %v1021 = vld [vmem:[%s7 + $0xa08] sm:$0xff]
        %v1022 = vld [vmem:[%s7 + $0xa10] sm:$0xff]
        %v1023 = vld [vmem:[%s7 + $0xa18] sm:$0xff]
        %v1024 = vld [vmem:[%s7 + $0xa20] sm:$0xff]
        %v1025 = vld [vmem:[%s7 + $0xa28] sm:$0xff]
        %v1026 = vld [vmem:[%s7 + $0xa30] sm:$0xff]
        %v1027 = vld [vmem:[%s7 + $0xa38] sm:$0xff]
        %v1028 = vld [vmem:[%s7 + $0xa40] sm:$0xff]
        %v1029 = vld [vmem:[%s7 + $0xa48] sm:$0xff]
        %v1030 = vld [vmem:[%s7 + $0xa50] sm:$0xff]
        %v1031 = vld [vmem:[%s7 + $0xa58] sm:$0xff]
        %v1032 = vld [vmem:[%s7 + $0xa60] sm:$0xff]
        %v1033 = vld [vmem:[%s7 + $0xa68] sm:$0xff]
        %v1034 = vld [vmem:[%s7 + $0xa70] sm:$0xff]
        %v1035 = vld [vmem:[%s7 + $0xa78] sm:$0xff]
        %v1036 = vld [vmem:[%s7 + $0xa80] sm:$0xff]
        %v1037 = vld [vmem:[%s7 + $0xa88] sm:$0xff]
        %v1038 = vld [vmem:[%s7 + $0xa90] sm:$0xff]
        %v1039 = vld [vmem:[%s7 + $0xa98] sm:$0xff]
        %v1040 = vld [vmem:[%s7 + $0xaa0] sm:$0xff]
        %v1041 = vld [vmem:[%s7 + $0xaa8] sm:$0xff]
        %v1042 = vld [vmem:[%s7 + $0xab0] sm:$0xff]
        %v1043 = vld [vmem:[%s7 + $0xab8] sm:$0xff]
        %v1044 = vld [vmem:[%s7 + $0xac0] sm:$0xff]
        %v1045 = vld [vmem:[%s7 + $0xac8] sm:$0xff]
        %v1046 = vld [vmem:[%s7 + $0xad0] sm:$0xff]
        %v1047 = vld [vmem:[%s7 + $0xad8] sm:$0xff]
        %v1048 = vld [vmem:[%s7 + $0xae0] sm:$0xff]
        %v1049 = vld [vmem:[%s7 + $0xae8] sm:$0xff]
        %v1050 = vld [vmem:[%s7 + $0xaf0] sm:$0xff]
        %v1051 = vld [vmem:[%s7 + $0xaf8] sm:$0xff]
        %v1052 = vld [vmem:[%s7 + $0xb00] sm:$0xff]
        %v1053 = vld [vmem:[%s7 + $0xb08] sm:$0xff]
        %v1054 = vld [vmem:[%s7 + $0xb10] sm:$0xff]
        %v1055 = vld [vmem:[%s7 + $0xb18] sm:$0xff]
        %v1056 = vld [vmem:[%s7 + $0xb20] sm:$0xff]
        %v1057 = vld [vmem:[%s7 + $0xb28] sm:$0xff]
        %v1058 = vld [vmem:[%s7 + $0xb30] sm:$0xff]
        %v1059 = vld [vmem:[%s7 + $0xb38] sm:$0xff]
        %v1060 = vld [vmem:[%s7 + $0xb40] sm:$0xff]
        %v1061 = vld [vmem:[%s7 + $0xb48] sm:$0xff]
        %v1062 = vld [vmem:[%s7 + $0xb50] sm:$0xff]
        %v1063 = vld [vmem:[%s7 + $0xb58] sm:$0xff]
        %v1064 = vld [vmem:[%s7 + $0xb60] sm:$0xff]
        %v1065 = vld [vmem:[%s7 + $0xb68] sm:$0xff]
        %v1066 = vld [vmem:[%s7 + $0xb70] sm:$0xff]
        %v1067 = vld [vmem:[%s7 + $0xb78] sm:$0xff]
        %v1068 = vld [vmem:[%s7 + $0xb80] sm:$0xff]
        %v1069 = vld [vmem:[%s7 + $0xb88] sm:$0xff]
        %v1070 = vld [vmem:[%s7 + $0xb90] sm:$0xff]
        %v1071 = vld [vmem:[%s7 + $0xb98] sm:$0xff]
        %v1072 = vld [vmem:[%s7 + $0xba0] sm:$0xff]
        %v1073 = vld [vmem:[%s7 + $0xba8] sm:$0xff]
        %v1074 = vld [vmem:[%s7 + $0xbb0] sm:$0xff]
        %v1075 = vld [vmem:[%s7 + $0xbb8] sm:$0xff]
        %v1076 = vld [vmem:[%s7 + $0xbc0] sm:$0xff]
        %v1077 = vld [vmem:[%s7 + $0xbc8] sm:$0xff]
        %v1078 = vld [vmem:[%s7 + $0xbd0] sm:$0xff]
        %v1079 = vld [vmem:[%s7 + $0xbd8] sm:$0xff]
        %v1080 = vld [vmem:[%s7 + $0xbe0] sm:$0xff]
        %v1081 = vld [vmem:[%s7 + $0xbe8] sm:$0xff]
        %v1082 = vld [vmem:[%s7 + $0xbf0] sm:$0xff]
        %v1083 = vld [vmem:[%s7 + $0xbf8] sm:$0xff]
        %v1084 = vld [vmem:[%s7 + $0xc00] sm:$0xff]
        %v1085 = vld [vmem:[%s7 + $0xc08] sm:$0xff]
        %v1086 = vld [vmem:[%s7 + $0xc10] sm:$0xff]
        %v1087 = vld [vmem:[%s7 + $0xc18] sm:$0xff]
        %v1088 = vld [vmem:[%s7 + $0xc20] sm:$0xff]
        %v1089 = vld [vmem:[%s7 + $0xc28] sm:$0xff]
        %v1090 = vld [vmem:[%s7 + $0xc30] sm:$0xff]
        %v1091 = vld [vmem:[%s7 + $0xc38] sm:$0xff]
        %v1092 = vld [vmem:[%s7 + $0xc40] sm:$0xff]
        %v1093 = vld [vmem:[%s7 + $0xc48] sm:$0xff]
        %v1094 = vld [vmem:[%s7 + $0xc50] sm:$0xff]
        %v1095 = vld [vmem:[%s7 + $0xc58] sm:$0xff]
        %v1096 = vld [vmem:[%s7 + $0xc60] sm:$0xff]
        %v1097 = vld [vmem:[%s7 + $0xc68] sm:$0xff]
        %v1098 = vld [vmem:[%s7 + $0xc70] sm:$0xff]
        %v1099 = vld [vmem:[%s7 + $0xc78] sm:$0xff]
        %v1100 = vld [vmem:[%s7 + $0xc80] sm:$0xff]
        %v1101 = vld [vmem:[%s7 + $0xc88] sm:$0xff]
        %v1102 = vld [vmem:[%s7 + $0xc90] sm:$0xff]
        %v1103 = vld [vmem:[%s7 + $0xc98] sm:$0xff]
        %v1104 = vld [vmem:[%s7 + $0xca0] sm:$0xff]
        %v1105 = vld [vmem:[%s7 + $0xca8] sm:$0xff]
        %v1106 = vld [vmem:[%s7 + $0xcb0] sm:$0xff]
        %v1107 = vld [vmem:[%s7 + $0xcb8] sm:$0xff]
        %v1108 = vld [vmem:[%s7 + $0xcc0] sm:$0xff]
        %v1109 = vld [vmem:[%s7 + $0xcc8] sm:$0xff]
        %v1110 = vld [vmem:[%s7 + $0xcd0] sm:$0xff]
        %v1111 = vld [vmem:[%s7 + $0xcd8] sm:$0xff]
        %v1112 = vld [vmem:[%s7 + $0xce0] sm:$0xff]
        %v1113 = vld [vmem:[%s7 + $0xce8] sm:$0xff]
        %v1114 = vld [vmem:[%s7 + $0xcf0] sm:$0xff]
        %v1115 = vld [vmem:[%s7 + $0xcf8] sm:$0xff]
        %v1116 = vld [vmem:[%s7 + $0xd00] sm:$0xff]
        %v1117 = vld [vmem:[%s7 + $0xd08] sm:$0xff]
        %v1118 = vld [vmem:[%s7 + $0xd10] sm:$0xff]
        %v1119 = vld [vmem:[%s7 + $0xd18] sm:$0xff]
        %v1120 = vld [vmem:[%s7 + $0xd20] sm:$0xff]
        %v1121 = vld [vmem:[%s7 + $0xd28] sm:$0xff]
        %v1122 = vld [vmem:[%s7 + $0xd30] sm:$0xff]
        %v1123 = vld [vmem:[%s7 + $0xd38] sm:$0xff]
        %v1124 = vld [vmem:[%s7 + $0xd40] sm:$0xff]
        %v1125 = vld [vmem:[%s7 + $0xd48] sm:$0xff]
        %v1126 = vld [vmem:[%s7 + $0xd50] sm:$0xff]
        %v1127 = vld [vmem:[%s7 + $0xd58] sm:$0xff]
        %v1128 = vld [vmem:[%s7 + $0xd60] sm:$0xff]
        %v1129 = vld [vmem:[%s7 + $0xd68] sm:$0xff]
        %v1130 = vld [vmem:[%s7 + $0xd70] sm:$0xff]
        %v1131 = vld [vmem:[%s7 + $0xd78] sm:$0xff]
        %v1132 = vld [vmem:[%s7 + $0xd80] sm:$0xff]
        %v1133 = vld [vmem:[%s7 + $0xd88] sm:$0xff]
        %v1134 = vld [vmem:[%s7 + $0xd90] sm:$0xff]
        %v1135 = vld [vmem:[%s7 + $0xd98] sm:$0xff]
        %v1136 = vld [vmem:[%s7 + $0xda0] sm:$0xff]
        %v1137 = vld [vmem:[%s7 + $0xda8] sm:$0xff]
        %v1138 = vld [vmem:[%s7 + $0xdb0] sm:$0xff]
        %v1139 = vld [vmem:[%s7 + $0xdb8] sm:$0xff]
        %v1140 = vld [vmem:[%s7 + $0xdc0] sm:$0xff]
        %v1141 = vld [vmem:[%s7 + $0xdc8] sm:$0xff]
        %v1142 = vld [vmem:[%s7 + $0xdd0] sm:$0xff]
        %v1143 = vld [vmem:[%s7 + $0xdd8] sm:$0xff]
        %v1144 = vld [vmem:[%s7 + $0xde0] sm:$0xff]
        %v1145 = vld [vmem:[%s7 + $0xde8] sm:$0xff]
        %v1146 = vld [vmem:[%s7 + $0xdf0] sm:$0xff]
        %v1147 = vld [vmem:[%s7 + $0xdf8] sm:$0xff]
        %v1148 = vld [vmem:[%s7 + $0xe00] sm:$0xff]
        %v1149 = vld [vmem:[%s7 + $0xe08] sm:$0xff]
        %v1150 = vld [vmem:[%s7 + $0xe10] sm:$0xff]
        %v1151 = vld [vmem:[%s7 + $0xe18] sm:$0xff]
        %v1152 = vld [vmem:[%s7 + $0xe20] sm:$0xff]
        %v1153 = vld [vmem:[%s7 + $0xe28] sm:$0xff]
        %v1154 = vld [vmem:[%s7 + $0xe30] sm:$0xff]
        %v1155 = vld [vmem:[%s7 + $0xe38] sm:$0xff]
        %v1156 = vld [vmem:[%s7 + $0xe40] sm:$0xff]
        %v1157 = vld [vmem:[%s7 + $0xe48] sm:$0xff]
        %v1158 = vld [vmem:[%s7 + $0xe50] sm:$0xff]
        %v1159 = vld [vmem:[%s7 + $0xe58] sm:$0xff]
        %v1160 = vld [vmem:[%s7 + $0xe60] sm:$0xff]
        %v1161 = vld [vmem:[%s7 + $0xe68] sm:$0xff]
        %v1162 = vld [vmem:[%s7 + $0xe70] sm:$0xff]
        %v1163 = vld [vmem:[%s7 + $0xe78] sm:$0xff]
        %v1164 = vld [vmem:[%s7 + $0xe80] sm:$0xff]
        %v1165 = vld [vmem:[%s7 + $0xe88] sm:$0xff]
        %v1166 = vld [vmem:[%s7 + $0xe90] sm:$0xff]
        %v1167 = vld [vmem:[%s7 + $0xe98] sm:$0xff]
        %v1168 = vld [vmem:[%s7 + $0xea0] sm:$0xff]
        %v1169 = vld [vmem:[%s7 + $0xea8] sm:$0xff]
        %v1170 = vld [vmem:[%s7 + $0xeb0] sm:$0xff]
        %v1171 = vld [vmem:[%s7 + $0xeb8] sm:$0xff]
        %v1172 = vld [vmem:[%s7 + $0xec0] sm:$0xff]
        %v1173 = vld [vmem:[%s7 + $0xec8] sm:$0xff]
        %v1174 = vld [vmem:[%s7 + $0xed0] sm:$0xff]
        %v1175 = vld [vmem:[%s7 + $0xed8] sm:$0xff]
        %v1176 = vld [vmem:[%s7 + $0xee0] sm:$0xff]
        %v1177 = vld [vmem:[%s7 + $0xee8] sm:$0xff]
        %v1178 = vld [vmem:[%s7 + $0xef0] sm:$0xff]
        %v1179 = vld [vmem:[%s7 + $0xef8] sm:$0xff]
        %v1180 = vld [vmem:[%s7 + $0xf00] sm:$0xff]
        %v1181 = vld [vmem:[%s7 + $0xf08] sm:$0xff]
        %v1182 = vld [vmem:[%s7 + $0xf10] sm:$0xff]
        %v1183 = vld [vmem:[%s7 + $0xf18] sm:$0xff]
        %v1184 = vld [vmem:[%s7 + $0xf20] sm:$0xff]
        %v1185 = vld [vmem:[%s7 + $0xf28] sm:$0xff]
        %v1186 = vld [vmem:[%s7 + $0xf30] sm:$0xff]
        %v1187 = vld [vmem:[%s7 + $0xf38] sm:$0xff]
        %v1188 = vld [vmem:[%s7 + $0xf40] sm:$0xff]
        %v1189 = vld [vmem:[%s7 + $0xf48] sm:$0xff]
        %v1190 = vld [vmem:[%s7 + $0xf50] sm:$0xff]
        %v1191 = vld [vmem:[%s7 + $0xf58] sm:$0xff]
        %v1192 = vld [vmem:[%s7 + $0xf60] sm:$0xff]
        %v1193 = vld [vmem:[%s7 + $0xf68] sm:$0xff]
        %v1194 = vld [vmem:[%s7 + $0xf70] sm:$0xff]
        %v1195 = vld [vmem:[%s7 + $0xf78] sm:$0xff]
        %v1196 = vld [vmem:[%s7 + $0xf80] sm:$0xff]
        %v1197 = vld [vmem:[%s7 + $0xf88] sm:$0xff]
        %v1198 = vld [vmem:[%s7 + $0xf90] sm:$0xff]
        %v1199 = vld [vmem:[%s7 + $0xf98] sm:$0xff]
        %v1200 = vld [vmem:[%s7 + $0xfa0] sm:$0xff]
        %v1201 = vld [vmem:[%s7 + $0xfa8] sm:$0xff]
        %v1202 = vld [vmem:[%s7 + $0xfb0] sm:$0xff]
        %v1203 = vld [vmem:[%s7 + $0xfb8] sm:$0xff]
        %v1204 = vld [vmem:[%s7 + $0xfc0] sm:$0xff]
        %v1205 = vld [vmem:[%s7 + $0xfc8] sm:$0xff]
        %v1206 = vld [vmem:[%s7 + $0xfd0] sm:$0xff]
        %v1207 = vld [vmem:[%s7 + $0xfd8] sm:$0xff]
        %v1208 = vld [vmem:[%s7 + $0xfe0] sm:$0xff]
        %v1209 = vld [vmem:[%s7 + $0xfe8] sm:$0xff]
        %v1210 = vld [vmem:[%s7 + $0xff0] sm:$0xff]
        %v1211 = vld [vmem:[%s7 + $0xff8] sm:$0xff]
        %v1212 = vld [vmem:[%s7 + $0x1000] sm:$0xff]
        %v1213 = vld [vmem:[%s7 + $0x1008] sm:$0xff]
        %v1214 = vld [vmem:[%s7 + $0x1010] sm:$0xff]
        %v1215 = vld [vmem:[%s7 + $0x1018] sm:$0xff]
        %v1216 = vld [vmem:[%s7 + $0x1020] sm:$0xff]
        %v1217 = vld [vmem:[%s7 + $0x1028] sm:$0xff]
        %v1218 = vld [vmem:[%s7 + $0x1030] sm:$0xff]
        %v1219 = vld [vmem:[%s7 + $0x1038] sm:$0xff]
        %v1220 = vld [vmem:[%s7 + $0x1040] sm:$0xff]
        %v1221 = vld [vmem:[%s7 + $0x1048] sm:$0xff]
        %v1222 = vld [vmem:[%s7 + $0x1050] sm:$0xff]
        %v1223 = vld [vmem:[%s7 + $0x1058] sm:$0xff]
        %v1224 = vld [vmem:[%s7 + $0x1060] sm:$0xff]
        %v1225 = vld [vmem:[%s7 + $0x1068] sm:$0xff]
        %v1226 = vld [vmem:[%s7 + $0x1070] sm:$0xff]
        %v1227 = vld [vmem:[%s7 + $0x1078] sm:$0xff]
        %v1228 = vld [vmem:[%s7 + $0x1080] sm:$0xff]
        %v1229 = vld [vmem:[%s7 + $0x1088] sm:$0xff]
        %v1230 = vld [vmem:[%s7 + $0x1090] sm:$0xff]
        %v1231 = vld [vmem:[%s7 + $0x1098] sm:$0xff]
        %v1232 = vld [vmem:[%s7 + $0x10a0] sm:$0xff]
        %v1233 = vld [vmem:[%s7 + $0x10a8] sm:$0xff]
        %v1234 = vld [vmem:[%s7 + $0x10b0] sm:$0xff]
        %v1235 = vld [vmem:[%s7 + $0x10b8] sm:$0xff]
        %v1236 = vld [vmem:[%s7 + $0x10c0] sm:$0xff]
        %v1237 = vld [vmem:[%s7 + $0x10c8] sm:$0xff]
        %v1238 = vld [vmem:[%s7 + $0x10d0] sm:$0xff]
        %v1239 = vld [vmem:[%s7 + $0x10d8] sm:$0xff]
        %v1240 = vld [vmem:[%s7 + $0x10e0] sm:$0xff]
        %v1241 = vld [vmem:[%s7 + $0x10e8] sm:$0xff]
        %v1242 = vld [vmem:[%s7 + $0x10f0] sm:$0xff]
        %v1243 = vld [vmem:[%s7 + $0x10f8] sm:$0xff]
        %v1244 = vld [vmem:[%s7 + $0x1100] sm:$0xff]
        %v1245 = vld [vmem:[%s7 + $0x1108] sm:$0xff]
        %v1246 = vld [vmem:[%s7 + $0x1110] sm:$0xff]
        %v1247 = vld [vmem:[%s7 + $0x1118] sm:$0xff]
        %v1248 = vld [vmem:[%s7 + $0x1120] sm:$0xff]
        %v1249 = vld [vmem:[%s7 + $0x1128] sm:$0xff]
        %v1250 = vld [vmem:[%s7 + $0x1130] sm:$0xff]
        %v1251 = vld [vmem:[%s7 + $0x1138] sm:$0xff]
        %v1252 = vld [vmem:[%s7 + $0x1140] sm:$0xff]
        %v1253 = vld [vmem:[%s7 + $0x1148] sm:$0xff]
        %v1254 = vld [vmem:[%s7 + $0x1150] sm:$0xff]
        %v1255 = vld [vmem:[%s7 + $0x1158] sm:$0xff]
        %v1256 = vld [vmem:[%s7 + $0x1160] sm:$0xff]
        %v1257 = vld [vmem:[%s7 + $0x1168] sm:$0xff]
        %v1258 = vld [vmem:[%s7 + $0x1170] sm:$0xff]
        %v1259 = vld [vmem:[%s7 + $0x1178] sm:$0xff]
        %v1260 = vld [vmem:[%s7 + $0x1180] sm:$0xff]
        %v1261 = vld [vmem:[%s7 + $0x1188] sm:$0xff]
        %v1262 = vld [vmem:[%s7 + $0x1190] sm:$0xff]
        %v1263 = vld [vmem:[%s7 + $0x1198] sm:$0xff]
        %v1264 = vld [vmem:[%s7 + $0x11a0] sm:$0xff]
        %v1265 = vld [vmem:[%s7 + $0x11a8] sm:$0xff]
        %v1266 = vld [vmem:[%s7 + $0x11b0] sm:$0xff]
        %v1267 = vld [vmem:[%s7 + $0x11b8] sm:$0xff]
        %v1268 = vld [vmem:[%s7 + $0x11c0] sm:$0xff]
        %v1269 = vld [vmem:[%s7 + $0x11c8] sm:$0xff]
        %v1270 = vld [vmem:[%s7 + $0x11d0] sm:$0xff]
        %v1271 = vld [vmem:[%s7 + $0x11d8] sm:$0xff]
        %v1272 = vld [vmem:[%s7 + $0x11e0] sm:$0xff]
        %v1273 = vld [vmem:[%s7 + $0x11e8] sm:$0xff]
        %v1274 = vld [vmem:[%s7 + $0x11f0] sm:$0xff]
        %v1275 = vld [vmem:[%s7 + $0x11f8] sm:$0xff]
        %v1276 = vld [vmem:[%s7 + $0x1200] sm:$0xff]
        %v1277 = vld [vmem:[%s7 + $0x1208] sm:$0xff]
        %v1278 = vld [vmem:[%s7 + $0x1210] sm:$0xff]
        %v1279 = vld [vmem:[%s7 + $0x1218] sm:$0xff]
        %v1280 = vld [vmem:[%s7 + $0x1220] sm:$0xff]
        %v1281 = vld [vmem:[%s7 + $0x1228] sm:$0xff]
        %v1282 = vld [vmem:[%s7 + $0x1230] sm:$0xff]
        %v1283 = vld [vmem:[%s7 + $0x1238] sm:$0xff]
        %v1284 = vld [vmem:[%s7 + $0x1240] sm:$0xff]
        %v1285 = vld [vmem:[%s7 + $0x1248] sm:$0xff]
        %v1286 = vld [vmem:[%s7 + $0x1250] sm:$0xff]
        %v1287 = vld [vmem:[%s7 + $0x1258] sm:$0xff]
        %v1288 = vld [vmem:[%s7 + $0x1260] sm:$0xff]
        %v1289 = vld [vmem:[%s7 + $0x1268] sm:$0xff]
        %v1290 = vld [vmem:[%s7 + $0x1270] sm:$0xff]
        %v1291 = vld [vmem:[%s7 + $0x1278] sm:$0xff]
        %v1292 = vld [vmem:[%s7 + $0x1280] sm:$0xff]
        %v1293 = vld [vmem:[%s7 + $0x1288] sm:$0xff]
        %v1294 = vld [vmem:[%s7 + $0x1290] sm:$0xff]
        %v1295 = vld [vmem:[%s7 + $0x1298] sm:$0xff]
        %v1296 = vld [vmem:[%s7 + $0x12a0] sm:$0xff]
        %v1297 = vld [vmem:[%s7 + $0x12a8] sm:$0xff]
        %v1298 = vld [vmem:[%s7 + $0x12b0] sm:$0xff]
        %v1299 = vld [vmem:[%s7 + $0x12b8] sm:$0xff]
        %v1300 = vld [vmem:[%s7 + $0x12c0] sm:$0xff]
        %v1301 = vld [vmem:[%s7 + $0x12c8] sm:$0xff]
        %v1302 = vld [vmem:[%s7 + $0x12d0] sm:$0xff]
        %v1303 = vld [vmem:[%s7 + $0x12d8] sm:$0xff]
        %v1304 = vld [vmem:[%s7 + $0x12e0] sm:$0xff]
        %v1305 = vld [vmem:[%s7 + $0x12e8] sm:$0xff]
        %v1306 = vld [vmem:[%s7 + $0x12f0] sm:$0xff]
        %v1307 = vld [vmem:[%s7 + $0x12f8] sm:$0xff]
        %v1308 = vld [vmem:[%s7 + $0x1300] sm:$0xff]
        %v1309 = vld [vmem:[%s7 + $0x1308] sm:$0xff]
        %v1310 = vld [vmem:[%s7 + $0x1310] sm:$0xff]
        %v1311 = vld [vmem:[%s7 + $0x1318] sm:$0xff]
        %v1312 = vld [vmem:[%s7 + $0x1320] sm:$0xff]
        %v1313 = vld [vmem:[%s7 + $0x1328] sm:$0xff]
        %v1314 = vld [vmem:[%s7 + $0x1330] sm:$0xff]
        %v1315 = vld [vmem:[%s7 + $0x1338] sm:$0xff]
        %v1316 = vld [vmem:[%s7 + $0x1340] sm:$0xff]
        %v1317 = vld [vmem:[%s7 + $0x1348] sm:$0xff]
        %v1318 = vld [vmem:[%s7 + $0x1350] sm:$0xff]
        %v1319 = vld [vmem:[%s7 + $0x1358] sm:$0xff]
        %v1320 = vld [vmem:[%s7 + $0x1360] sm:$0xff]
        %v1321 = vld [vmem:[%s7 + $0x1368] sm:$0xff]
        %v1322 = vld [vmem:[%s7 + $0x1370] sm:$0xff]
        %v1323 = vld [vmem:[%s7 + $0x1378] sm:$0xff]
        %v1324 = vld [vmem:[%s7 + $0x1380] sm:$0xff]
        %v1325 = vld [vmem:[%s7 + $0x1388] sm:$0xff]
        %v1326 = vld [vmem:[%s7 + $0x1390] sm:$0xff]
        %v1327 = vld [vmem:[%s7 + $0x1398] sm:$0xff]
        %v1328 = vld [vmem:[%s7 + $0x13a0] sm:$0xff]
        %v1329 = vld [vmem:[%s7 + $0x13a8] sm:$0xff]
        %v1330 = vld [vmem:[%s7 + $0x13b0] sm:$0xff]
        %v1331 = vld [vmem:[%s7 + $0x13b8] sm:$0xff]
        %v1332 = vld [vmem:[%s7 + $0x13c0] sm:$0xff]
        %v1333 = vld [vmem:[%s7 + $0x13c8] sm:$0xff]
        %v1334 = vld [vmem:[%s7 + $0x13d0] sm:$0xff]
        %v1335 = vld [vmem:[%s7 + $0x13d8] sm:$0xff]
        %v1336 = vld [vmem:[%s7 + $0x13e0] sm:$0xff]
        %v1337 = vld [vmem:[%s7 + $0x13e8] sm:$0xff]
        %v1338 = vld [vmem:[%s7 + $0x13f0] sm:$0xff]
        %v1339 = vld [vmem:[%s7 + $0x13f8] sm:$0xff]
        %v1340 = vld [vmem:[%s7 + $0x1400] sm:$0xff]
        %v1341 = vld [vmem:[%s7 + $0x1408] sm:$0xff]
        %v1342 = vld [vmem:[%s7 + $0x1410] sm:$0xff]
        %v1343 = vld [vmem:[%s7 + $0x1418] sm:$0xff]
        %v1344 = vld [vmem:[%s7 + $0x1420] sm:$0xff]
        %v1345 = vld [vmem:[%s7 + $0x1428] sm:$0xff]
        %v1346 = vld [vmem:[%s7 + $0x1430] sm:$0xff]
        %v1347 = vld [vmem:[%s7 + $0x1438] sm:$0xff]
        %v1348 = vld [vmem:[%s7 + $0x1440] sm:$0xff]
        %v1349 = vld [vmem:[%s7 + $0x1448] sm:$0xff]
        %v1350 = vld [vmem:[%s7 + $0x1450] sm:$0xff]
        %v1351 = vld [vmem:[%s7 + $0x1458] sm:$0xff]
        %v1352 = vld [vmem:[%s7 + $0x1460] sm:$0xff]
        %v1353 = vld [vmem:[%s7 + $0x1468] sm:$0xff]
        %v1354 = vld [vmem:[%s7 + $0x1470] sm:$0xff]
        %v1355 = vld [vmem:[%s7 + $0x1478] sm:$0xff]
        %v1356 = vld [vmem:[%s7 + $0x1480] sm:$0xff]
        %v1357 = vld [vmem:[%s7 + $0x1488] sm:$0xff]
        %v1358 = vld [vmem:[%s7 + $0x1490] sm:$0xff]
        %v1359 = vld [vmem:[%s7 + $0x1498] sm:$0xff]
        %v1360 = vld [vmem:[%s7 + $0x14a0] sm:$0xff]
        %v1361 = vld [vmem:[%s7 + $0x14a8] sm:$0xff]
        %v1362 = vld [vmem:[%s7 + $0x14b0] sm:$0xff]
        %v1363 = vld [vmem:[%s7 + $0x14b8] sm:$0xff]
        %v1364 = vld [vmem:[%s7 + $0x14c0] sm:$0xff]
        %v1365 = vld [vmem:[%s7 + $0x14c8] sm:$0xff]
        %v1366 = vld [vmem:[%s7 + $0x14d0] sm:$0xff]
        %v1367 = vld [vmem:[%s7 + $0x14d8] sm:$0xff]
        %v1368 = vld [vmem:[%s7 + $0x14e0] sm:$0xff]
        %v1369 = vld [vmem:[%s7 + $0x14e8] sm:$0xff]
        %v1370 = vld [vmem:[%s7 + $0x14f0] sm:$0xff]
        %v1371 = vld [vmem:[%s7 + $0x14f8] sm:$0xff]
        %v1372 = vld [vmem:[%s7 + $0x1500] sm:$0xff]
        %v1373 = vld [vmem:[%s7 + $0x1508] sm:$0xff]
        %v1374 = vld [vmem:[%s7 + $0x1510] sm:$0xff]
        %v1375 = vld [vmem:[%s7 + $0x1518] sm:$0xff]
        %v1376 = vld [vmem:[%s7 + $0x1520] sm:$0xff]
        %v1377 = vld [vmem:[%s7 + $0x1528] sm:$0xff]
        %v1378 = vld [vmem:[%s7 + $0x1530] sm:$0xff]
        %v1379 = vld [vmem:[%s7 + $0x1538] sm:$0xff]
        %v1380 = vld [vmem:[%s7 + $0x1540] sm:$0xff]
        %v1381 = vld [vmem:[%s7 + $0x1548] sm:$0xff]
        %v1382 = vld [vmem:[%s7 + $0x1550] sm:$0xff]
        %v1383 = vld [vmem:[%s7 + $0x1558] sm:$0xff]
        %v1384 = vld [vmem:[%s7 + $0x1560] sm:$0xff]
        %v1385 = vld [vmem:[%s7 + $0x1568] sm:$0xff]
        %v1386 = vld [vmem:[%s7 + $0x1570] sm:$0xff]
        %v1387 = vld [vmem:[%s7 + $0x1578] sm:$0xff]
        %v1388 = vld [vmem:[%s7 + $0x1580] sm:$0xff]
        %v1389 = vld [vmem:[%s7 + $0x1588] sm:$0xff]
        %v1390 = vld [vmem:[%s7 + $0x1590] sm:$0xff]
        %v1391 = vld [vmem:[%s7 + $0x1598] sm:$0xff]
        %v1392 = vld [vmem:[%s7 + $0x15a0] sm:$0xff]
        %v1393 = vld [vmem:[%s7 + $0x15a8] sm:$0xff]
        %v1394 = vld [vmem:[%s7 + $0x15b0] sm:$0xff]
        %v1395 = vld [vmem:[%s7 + $0x15b8] sm:$0xff]
        %v1396 = vld [vmem:[%s7 + $0x15c0] sm:$0xff]
        %v1397 = vld [vmem:[%s7 + $0x15c8] sm:$0xff]
        %v1398 = vld [vmem:[%s7 + $0x15d0] sm:$0xff]
        %v1399 = vld [vmem:[%s7 + $0x15d8] sm:$0xff]
        %v1400 = vld [vmem:[%s7 + $0x15e0] sm:$0xff]
        %v1401 = vld [vmem:[%s7 + $0x15e8] sm:$0xff]
        %v1402 = vld [vmem:[%s7 + $0x15f0] sm:$0xff]
        %v1403 = vld [vmem:[%s7 + $0x15f8] sm:$0xff]
        %v1404 = vld [vmem:[%s7 + $0x1600] sm:$0xff]
        %v1405 = vld [vmem:[%s7 + $0x1608] sm:$0xff]
        %v1406 = vld [vmem:[%s7 + $0x1610] sm:$0xff]
        %v1407 = vld [vmem:[%s7 + $0x1618] sm:$0xff]
        %v1408 = vld [vmem:[%s7 + $0x1620] sm:$0xff]
        %v1409 = vld [vmem:[%s7 + $0x1628] sm:$0xff]
        %v1410 = vld [vmem:[%s7 + $0x1630] sm:$0xff]
        %v1411 = vld [vmem:[%s7 + $0x1638] sm:$0xff]
        %v1412 = vld [vmem:[%s7 + $0x1640] sm:$0xff]
        %v1413 = vld [vmem:[%s7 + $0x1648] sm:$0xff]
        %v1414 = vld [vmem:[%s7 + $0x1650] sm:$0xff]
        %v1415 = vld [vmem:[%s7 + $0x1658] sm:$0xff]
        %v1416 = vld [vmem:[%s7 + $0x1660] sm:$0xff]
        %v1417 = vld [vmem:[%s7 + $0x1668] sm:$0xff]
        %v1418 = vld [vmem:[%s7 + $0x1670] sm:$0xff]
        %v1419 = vld [vmem:[%s7 + $0x1678] sm:$0xff]
        %v1420 = vld [vmem:[%s7 + $0x1680] sm:$0xff]
        %v1421 = vld [vmem:[%s7 + $0x1688] sm:$0xff]
        %v1422 = vld [vmem:[%s7 + $0x1690] sm:$0xff]
        %v1423 = vld [vmem:[%s7 + $0x1698] sm:$0xff]
        %v1424 = vld [vmem:[%s7 + $0x16a0] sm:$0xff]
        %v1425 = vld [vmem:[%s7 + $0x16a8] sm:$0xff]
        %v1426 = vld [vmem:[%s7 + $0x16b0] sm:$0xff]
        %v1427 = vld [vmem:[%s7 + $0x16b8] sm:$0xff]
        %v1428 = vld [vmem:[%s7 + $0x16c0] sm:$0xff]
        %v1429 = vld [vmem:[%s7 + $0x16c8] sm:$0xff]
        %v1430 = vld [vmem:[%s7 + $0x16d0] sm:$0xff]
        %v1431 = vld [vmem:[%s7 + $0x16d8] sm:$0xff]
        %v1432 = vld [vmem:[%s7 + $0x16e0] sm:$0xff]
        %v1433 = vld [vmem:[%s7 + $0x16e8] sm:$0xff]
        %v1434 = vld [vmem:[%s7 + $0x16f0] sm:$0xff]
        %v1435 = vld [vmem:[%s7 + $0x16f8] sm:$0xff]
        %v1436 = vld [vmem:[%s7 + $0x1700] sm:$0xff]
        %v1437 = vld [vmem:[%s7 + $0x1708] sm:$0xff]
        %v1438 = vld [vmem:[%s7 + $0x1710] sm:$0xff]
        %v1439 = vld [vmem:[%s7 + $0x1718] sm:$0xff]
        %v1440 = vld [vmem:[%s7 + $0x1720] sm:$0xff]
        %v1441 = vld [vmem:[%s7 + $0x1728] sm:$0xff]
        %v1442 = vld [vmem:[%s7 + $0x1730] sm:$0xff]
        %v1443 = vld [vmem:[%s7 + $0x1738] sm:$0xff]
        %v1444 = vld [vmem:[%s7 + $0x1740] sm:$0xff]
        %v1445 = vld [vmem:[%s7 + $0x1748] sm:$0xff]
        %v1446 = vld [vmem:[%s7 + $0x1750] sm:$0xff]
        %v1447 = vld [vmem:[%s7 + $0x1758] sm:$0xff]
        %v1448 = vld [vmem:[%s7 + $0x1760] sm:$0xff]
        %v1449 = vld [vmem:[%s7 + $0x1768] sm:$0xff]
        %v1450 = vld [vmem:[%s7 + $0x1770] sm:$0xff]
        %v1451 = vld [vmem:[%s7 + $0x1778] sm:$0xff]
        %v1452 = vld [vmem:[%s7 + $0x1780] sm:$0xff]
        %v1453 = vld [vmem:[%s7 + $0x1788] sm:$0xff]
        %v1454 = vld [vmem:[%s7 + $0x1790] sm:$0xff]
        %v1455 = vld [vmem:[%s7 + $0x1798] sm:$0xff]
        %v1456 = vld [vmem:[%s7 + $0x17a0] sm:$0xff]
        %v1457 = vld [vmem:[%s7 + $0x17a8] sm:$0xff]
        %v1458 = vld [vmem:[%s7 + $0x17b0] sm:$0xff]
        %v1459 = vld [vmem:[%s7 + $0x17b8] sm:$0xff]
        %v1460 = vld [vmem:[%s7 + $0x17c0] sm:$0xff]
        %v1461 = vld [vmem:[%s7 + $0x17c8] sm:$0xff]
        %v1462 = vld [vmem:[%s7 + $0x17d0] sm:$0xff]
        %v1463 = vld [vmem:[%s7 + $0x17d8] sm:$0xff]
        %v1464 = vld [vmem:[%s7 + $0x17e0] sm:$0xff]
        %v1465 = vld [vmem:[%s7 + $0x17e8] sm:$0xff]
        %v1466 = vld [vmem:[%s7 + $0x17f0] sm:$0xff]
        %v1467 = vld [vmem:[%s7 + $0x17f8] sm:$0xff]
        %v1468 = vld [vmem:[%s7 + $0x1800] sm:$0xff]
        %v1469 = vld [vmem:[%s7 + $0x1808] sm:$0xff]
        %v1470 = vld [vmem:[%s7 + $0x1810] sm:$0xff]
        %v1471 = vld [vmem:[%s7 + $0x1818] sm:$0xff]
        %v1472 = vld [vmem:[%s7 + $0x1820] sm:$0xff]
        %v1473 = vld [vmem:[%s7 + $0x1828] sm:$0xff]
        %v1474 = vld [vmem:[%s7 + $0x1830] sm:$0xff]
        %v1475 = vld [vmem:[%s7 + $0x1838] sm:$0xff]
        %v1476 = vld [vmem:[%s7 + $0x1840] sm:$0xff]
        %v1477 = vld [vmem:[%s7 + $0x1848] sm:$0xff]
        %v1478 = vld [vmem:[%s7 + $0x1850] sm:$0xff]
        %v1479 = vld [vmem:[%s7 + $0x1858] sm:$0xff]
        %v1480 = vld [vmem:[%s7 + $0x1860] sm:$0xff]
        %v1481 = vld [vmem:[%s7 + $0x1868] sm:$0xff]
        %v1482 = vld [vmem:[%s7 + $0x1870] sm:$0xff]
        %v1483 = vld [vmem:[%s7 + $0x1878] sm:$0xff]
        %v1484 = vld [vmem:[%s7 + $0x1880] sm:$0xff]
        %v1485 = vld [vmem:[%s7 + $0x1888] sm:$0xff]
        %v1486 = vld [vmem:[%s7 + $0x1890] sm:$0xff]
        %v1487 = vld [vmem:[%s7 + $0x1898] sm:$0xff]
        %v1488 = vld [vmem:[%s7 + $0x18a0] sm:$0xff]
        %v1489 = vld [vmem:[%s7 + $0x18a8] sm:$0xff]
        %v1490 = vld [vmem:[%s7 + $0x18b0] sm:$0xff]
        %v1491 = vld [vmem:[%s7 + $0x18b8] sm:$0xff]
        %v1492 = vld [vmem:[%s7 + $0x18c0] sm:$0xff]
        %v1493 = vld [vmem:[%s7 + $0x18c8] sm:$0xff]
        %v1494 = vld [vmem:[%s7 + $0x18d0] sm:$0xff]
        %v1495 = vld [vmem:[%s7 + $0x18d8] sm:$0xff]
        %v1496 = vld [vmem:[%s7 + $0x18e0] sm:$0xff]
        %v1497 = vld [vmem:[%s7 + $0x18e8] sm:$0xff]
        %v1498 = vld [vmem:[%s7 + $0x18f0] sm:$0xff]
        %v1499 = vld [vmem:[%s7 + $0x18f8] sm:$0xff]
        %v1500 = vld [vmem:[%s7 + $0x1900] sm:$0xff]
        %v1501 = vld [vmem:[%s7 + $0x1908] sm:$0xff]
        %v1502 = vld [vmem:[%s7 + $0x1910] sm:$0xff]
        %v1503 = vld [vmem:[%s7 + $0x1918] sm:$0xff]
        %v1504 = vld [vmem:[%s7 + $0x1920] sm:$0xff]
        %v1505 = vld [vmem:[%s7 + $0x1928] sm:$0xff]
        %v1506 = vld [vmem:[%s7 + $0x1930] sm:$0xff]
        %v1507 = vld [vmem:[%s7 + $0x1938] sm:$0xff]
        %v1508 = vld [vmem:[%s7 + $0x1940] sm:$0xff]
        %v1509 = vld [vmem:[%s7 + $0x1948] sm:$0xff]
        %v1510 = vld [vmem:[%s7 + $0x1950] sm:$0xff]
        %v1511 = vld [vmem:[%s7 + $0x1958] sm:$0xff]
        %v1512 = vld [vmem:[%s7 + $0x1960] sm:$0xff]
        %v1513 = vld [vmem:[%s7 + $0x1968] sm:$0xff]
        %v1514 = vld [vmem:[%s7 + $0x1970] sm:$0xff]
        %v1515 = vld [vmem:[%s7 + $0x1978] sm:$0xff]
        %v1516 = vld [vmem:[%s7 + $0x1980] sm:$0xff]
        %v1517 = vld [vmem:[%s7 + $0x1988] sm:$0xff]
        %v1518 = vld [vmem:[%s7 + $0x1990] sm:$0xff]
        %v1519 = vld [vmem:[%s7 + $0x1998] sm:$0xff]
        %v1520 = vld [vmem:[%s7 + $0x19a0] sm:$0xff]
        %v1521 = vld [vmem:[%s7 + $0x19a8] sm:$0xff]
        %v1522 = vld [vmem:[%s7 + $0x19b0] sm:$0xff]
        %v1523 = vld [vmem:[%s7 + $0x19b8] sm:$0xff]
        %v1524 = vld [vmem:[%s7 + $0x19c0] sm:$0xff]
        %v1525 = vld [vmem:[%s7 + $0x19c8] sm:$0xff]
        %v1526 = vld [vmem:[%s7 + $0x19d0] sm:$0xff]
        %v1527 = vld [vmem:[%s7 + $0x19d8] sm:$0xff]
        %v1528 = vld [vmem:[%s7 + $0x19e0] sm:$0xff]
        %v1529 = vld [vmem:[%s7 + $0x19e8] sm:$0xff]
        %v1530 = vld [vmem:[%s7 + $0x19f0] sm:$0xff]
        %v1531 = vld [vmem:[%s7 + $0x19f8] sm:$0xff]
        %v1532 = vld [vmem:[%s7 + $0x1a00] sm:$0xff]
        %v1533 = vld [vmem:[%s7 + $0x1a08] sm:$0xff]
        %v1534 = vld [vmem:[%s7 + $0x1a10] sm:$0xff]
        %v1535 = vld [vmem:[%s7 + $0x1a18] sm:$0xff]
        %v1536 = vld [vmem:[%s7 + $0x1a20] sm:$0xff]
        %v1537 = vld [vmem:[%s7 + $0x1a28] sm:$0xff]
        %v1538 = vld [vmem:[%s7 + $0x1a30] sm:$0xff]
        %v1539 = vld [vmem:[%s7 + $0x1a38] sm:$0xff]
        %v1540 = vld [vmem:[%s7 + $0x1a40] sm:$0xff]
        %v1541 = vld [vmem:[%s7 + $0x1a48] sm:$0xff]
        %v1542 = vld [vmem:[%s7 + $0x1a50] sm:$0xff]
        %v1543 = vld [vmem:[%s7 + $0x1a58] sm:$0xff]
        %v1544 = vld [vmem:[%s7 + $0x1a60] sm:$0xff]
        %v1545 = vld [vmem:[%s7 + $0x1a68] sm:$0xff]
        %v1546 = vld [vmem:[%s7 + $0x1a70] sm:$0xff]
        %v1547 = vld [vmem:[%s7 + $0x1a78] sm:$0xff]
        %v1548 = vld [vmem:[%s7 + $0x1a80] sm:$0xff]
        %v1549 = vld [vmem:[%s7 + $0x1a88] sm:$0xff]
        %v1550 = vld [vmem:[%s7 + $0x1a90] sm:$0xff]
        %v1551 = vld [vmem:[%s7 + $0x1a98] sm:$0xff]
        %v1552 = vld [vmem:[%s7 + $0x1aa0] sm:$0xff]
        %v1553 = vld [vmem:[%s7 + $0x1aa8] sm:$0xff]
        %v1554 = vld [vmem:[%s7 + $0x1ab0] sm:$0xff]
        %v1555 = vld [vmem:[%s7 + $0x1ab8] sm:$0xff]
        %v1556 = vld [vmem:[%s7 + $0x1ac0] sm:$0xff]
        %v1557 = vld [vmem:[%s7 + $0x1ac8] sm:$0xff]
        %v1558 = vld [vmem:[%s7 + $0x1ad0] sm:$0xff]
        %v1559 = vld [vmem:[%s7 + $0x1ad8] sm:$0xff]
        %v1560 = vld [vmem:[%s7 + $0x1ae0] sm:$0xff]
        %v1561 = vld [vmem:[%s7 + $0x1ae8] sm:$0xff]
        %v1562 = vld [vmem:[%s7 + $0x1af0] sm:$0xff]
        %v1563 = vld [vmem:[%s7 + $0x1af8] sm:$0xff]
        %v1564 = vld [vmem:[%s7 + $0x1b00] sm:$0xff]
        %v1565 = vld [vmem:[%s7 + $0x1b08] sm:$0xff]
        %v1566 = vld [vmem:[%s7 + $0x1b10] sm:$0xff]
        %v1567 = vld [vmem:[%s7 + $0x1b18] sm:$0xff]
        %v1568 = vld [vmem:[%s7 + $0x1b20] sm:$0xff]
        %v1569 = vld [vmem:[%s7 + $0x1b28] sm:$0xff]
        %v1570 = vld [vmem:[%s7 + $0x1b30] sm:$0xff]
        %v1571 = vld [vmem:[%s7 + $0x1b38] sm:$0xff]
        %v1572 = vld [vmem:[%s7 + $0x1b40] sm:$0xff]
        %v1573 = vld [vmem:[%s7 + $0x1b48] sm:$0xff]
        %v1574 = vld [vmem:[%s7 + $0x1b50] sm:$0xff]
        %v1575 = vld [vmem:[%s7 + $0x1b58] sm:$0xff]
        %v1576 = vld [vmem:[%s7 + $0x1b60] sm:$0xff]
        %v1577 = vld [vmem:[%s7 + $0x1b68] sm:$0xff]
        %v1578 = vld [vmem:[%s7 + $0x1b70] sm:$0xff]
        %v1579 = vld [vmem:[%s7 + $0x1b78] sm:$0xff]
        %v1580 = vld [vmem:[%s7 + $0x1b80] sm:$0xff]
        %v1581 = vld [vmem:[%s7 + $0x1b88] sm:$0xff]
        %v1582 = vld [vmem:[%s7 + $0x1b90] sm:$0xff]
        %v1583 = vld [vmem:[%s7 + $0x1b98] sm:$0xff]
        %v1584 = vld [vmem:[%s7 + $0x1ba0] sm:$0xff]
        %v1585 = vld [vmem:[%s7 + $0x1ba8] sm:$0xff]
        %v1586 = vld [vmem:[%s7 + $0x1bb0] sm:$0xff]
        %v1587 = vld [vmem:[%s7 + $0x1bb8] sm:$0xff]
        %v1588 = vld [vmem:[%s7 + $0x1bc0] sm:$0xff]
        %v1589 = vld [vmem:[%s7 + $0x1bc8] sm:$0xff]
        %v1590 = vld [vmem:[%s7 + $0x1bd0] sm:$0xff]
        %v1591 = vld [vmem:[%s7 + $0x1bd8] sm:$0xff]
        %v1592 = vld [vmem:[%s7 + $0x1be0] sm:$0xff]
        %v1593 = vld [vmem:[%s7 + $0x1be8] sm:$0xff]
        %v1594 = vld [vmem:[%s7 + $0x1bf0] sm:$0xff]
        %v1595 = vld [vmem:[%s7 + $0x1bf8] sm:$0xff]
        %v1596 = vld [vmem:[%s7 + $0x1c00] sm:$0xff]
        %v1597 = vld [vmem:[%s7 + $0x1c08] sm:$0xff]
        %v1598 = vld [vmem:[%s7 + $0x1c10] sm:$0xff]
        %v1599 = vld [vmem:[%s7 + $0x1c18] sm:$0xff]
        %v1600 = vld [vmem:[%s7 + $0x1c20] sm:$0xff]
        %v1601 = vld [vmem:[%s7 + $0x1c28] sm:$0xff]
        %v1602 = vld [vmem:[%s7 + $0x1c30] sm:$0xff]
        %v1603 = vld [vmem:[%s7 + $0x1c38] sm:$0xff]
        %v1604 = vld [vmem:[%s7 + $0x1c40] sm:$0xff]
        %v1605 = vld [vmem:[%s7 + $0x1c48] sm:$0xff]
        %v1606 = vld [vmem:[%s7 + $0x1c50] sm:$0xff]
        %v1607 = vld [vmem:[%s7 + $0x1c58] sm:$0xff]
        %v1608 = vld [vmem:[%s7 + $0x1c60] sm:$0xff]
        %v1609 = vld [vmem:[%s7 + $0x1c68] sm:$0xff]
        %v1610 = vld [vmem:[%s7 + $0x1c70] sm:$0xff]
        %v1611 = vld [vmem:[%s7 + $0x1c78] sm:$0xff]
        %v1612 = vld [vmem:[%s7 + $0x1c80] sm:$0xff]
        %v1613 = vld [vmem:[%s7 + $0x1c88] sm:$0xff]
        %v1614 = vld [vmem:[%s7 + $0x1c90] sm:$0xff]
        %v1615 = vld [vmem:[%s7 + $0x1c98] sm:$0xff]
        %v1616 = vld [vmem:[%s7 + $0x1ca0] sm:$0xff]
        %v1617 = vld [vmem:[%s7 + $0x1ca8] sm:$0xff]
        %v1618 = vld [vmem:[%s7 + $0x1cb0] sm:$0xff]
        %v1619 = vld [vmem:[%s7 + $0x1cb8] sm:$0xff]
        %v1620 = vld [vmem:[%s7 + $0x1cc0] sm:$0xff]
        %v1621 = vld [vmem:[%s7 + $0x1cc8] sm:$0xff]
        %v1622 = vld [vmem:[%s7 + $0x1cd0] sm:$0xff]
        %v1623 = vld [vmem:[%s7 + $0x1cd8] sm:$0xff]
        %v1624 = vld [vmem:[%s7 + $0x1ce0] sm:$0xff]
        %v1625 = vld [vmem:[%s7 + $0x1ce8] sm:$0xff]
        %v1626 = vld [vmem:[%s7 + $0x1cf0] sm:$0xff]
        %v1627 = vld [vmem:[%s7 + $0x1cf8] sm:$0xff]
        %v1628 = vld [vmem:[%s7 + $0x1d00] sm:$0xff]
        %v1629 = vld [vmem:[%s7 + $0x1d08] sm:$0xff]
        %v1630 = vld [vmem:[%s7 + $0x1d10] sm:$0xff]
        %v1631 = vld [vmem:[%s7 + $0x1d18] sm:$0xff]
        %v1632 = vld [vmem:[%s7 + $0x1d20] sm:$0xff]
        %v1633 = vld [vmem:[%s7 + $0x1d28] sm:$0xff]
        %v1634 = vld [vmem:[%s7 + $0x1d30] sm:$0xff]
        %v1635 = vld [vmem:[%s7 + $0x1d38] sm:$0xff]
        %v1636 = vld [vmem:[%s7 + $0x1d40] sm:$0xff]
        %v1637 = vld [vmem:[%s7 + $0x1d48] sm:$0xff]
        %v1638 = vld [vmem:[%s7 + $0x1d50] sm:$0xff]
        %v1639 = vld [vmem:[%s7 + $0x1d58] sm:$0xff]
        %v1640 = vld [vmem:[%s7 + $0x1d60] sm:$0xff]
        %v1641 = vld [vmem:[%s7 + $0x1d68] sm:$0xff]
        %v1642 = vld [vmem:[%s7 + $0x1d70] sm:$0xff]
        %v1643 = vld [vmem:[%s7 + $0x1d78] sm:$0xff]
        %v1644 = vld [vmem:[%s7 + $0x1d80] sm:$0xff]
        %v1645 = vld [vmem:[%s7 + $0x1d88] sm:$0xff]
        %v1646 = vld [vmem:[%s7 + $0x1d90] sm:$0xff]
        %v1647 = vld [vmem:[%s7 + $0x1d98] sm:$0xff]
        %v1648 = vld [vmem:[%s7 + $0x1da0] sm:$0xff]
        %v1649 = vld [vmem:[%s7 + $0x1da8] sm:$0xff]
        %v1650 = vld [vmem:[%s7 + $0x1db0] sm:$0xff]
        %v1651 = vld [vmem:[%s7 + $0x1db8] sm:$0xff]
        %v1652 = vld [vmem:[%s7 + $0x1dc0] sm:$0xff]
        %v1653 = vld [vmem:[%s7 + $0x1dc8] sm:$0xff]
        %v1654 = vld [vmem:[%s7 + $0x1dd0] sm:$0xff]
        %v1655 = vld [vmem:[%s7 + $0x1dd8] sm:$0xff]
        %v1656 = vld [vmem:[%s7 + $0x1de0] sm:$0xff]
        %v1657 = vld [vmem:[%s7 + $0x1de8] sm:$0xff]
        %v1658 = vld [vmem:[%s7 + $0x1df0] sm:$0xff]
        %v1659 = vld [vmem:[%s7 + $0x1df8] sm:$0xff]
        %v1660 = vld [vmem:[%s7 + $0x1e00] sm:$0xff]
        %v1661 = vld [vmem:[%s7 + $0x1e08] sm:$0xff]
        %v1662 = vld [vmem:[%s7 + $0x1e10] sm:$0xff]
        %v1663 = vld [vmem:[%s7 + $0x1e18] sm:$0xff]
        %v1664 = vld [vmem:[%s7 + $0x1e20] sm:$0xff]
        %v1665 = vld [vmem:[%s7 + $0x1e28] sm:$0xff]
        %v1666 = vld [vmem:[%s7 + $0x1e30] sm:$0xff]
        %v1667 = vld [vmem:[%s7 + $0x1e38] sm:$0xff]
        %v1668 = vld [vmem:[%s7 + $0x1e40] sm:$0xff]
        %v1669 = vld [vmem:[%s7 + $0x1e48] sm:$0xff]
        %v1670 = vld [vmem:[%s7 + $0x1e50] sm:$0xff]
        %v1671 = vld [vmem:[%s7 + $0x1e58] sm:$0xff]
        %v1672 = vld [vmem:[%s7 + $0x1e60] sm:$0xff]
        %v1673 = vld [vmem:[%s7 + $0x1e68] sm:$0xff]
        %v1674 = vld [vmem:[%s7 + $0x1e70] sm:$0xff]
        %v1675 = vld [vmem:[%s7 + $0x1e78] sm:$0xff]
        %v1676 = vld [vmem:[%s7 + $0x1e80] sm:$0xff]
        %v1677 = vld [vmem:[%s7 + $0x1e88] sm:$0xff]
        %v1678 = vld [vmem:[%s7 + $0x1e90] sm:$0xff]
        %v1679 = vld [vmem:[%s7 + $0x1e98] sm:$0xff]
        %v1680 = vld [vmem:[%s7 + $0x1ea0] sm:$0xff]
        %v1681 = vld [vmem:[%s7 + $0x1ea8] sm:$0xff]
        %v1682 = vld [vmem:[%s7 + $0x1eb0] sm:$0xff]
        %v1683 = vld [vmem:[%s7 + $0x1eb8] sm:$0xff]
        %v1684 = vld [vmem:[%s7 + $0x1ec0] sm:$0xff]
        %v1685 = vld [vmem:[%s7 + $0x1ec8] sm:$0xff]
        %v1686 = vld [vmem:[%s7 + $0x1ed0] sm:$0xff]
        %v1687 = vld [vmem:[%s7 + $0x1ed8] sm:$0xff]
        %v1688 = vld [vmem:[%s7 + $0x1ee0] sm:$0xff]
        %v1689 = vld [vmem:[%s7 + $0x1ee8] sm:$0xff]
        %v1690 = vld [vmem:[%s7 + $0x1ef0] sm:$0xff]
        %v1691 = vld [vmem:[%s7 + $0x1ef8] sm:$0xff]
        %v1692 = vld [vmem:[%s7 + $0x1f00] sm:$0xff]
        %v1693 = vld [vmem:[%s7 + $0x1f08] sm:$0xff]
        %v1694 = vld [vmem:[%s7 + $0x1f10] sm:$0xff]
        %v1695 = vld [vmem:[%s7 + $0x1f18] sm:$0xff]
        %v1696 = vld [vmem:[%s7 + $0x1f20] sm:$0xff]
        %v1697 = vld [vmem:[%s7 + $0x1f28] sm:$0xff]
        %v1698 = vld [vmem:[%s7 + $0x1f30] sm:$0xff]
        %v1699 = vld [vmem:[%s7 + $0x1f38] sm:$0xff]
        %v1700 = vld [vmem:[%s7 + $0x1f40] sm:$0xff]
        %v1701 = vld [vmem:[%s7 + $0x1f48] sm:$0xff]
        %v1702 = vld [vmem:[%s7 + $0x1f50] sm:$0xff]
        %v1703 = vld [vmem:[%s7 + $0x1f58] sm:$0xff]
        %v1704 = vld [vmem:[%s7 + $0x1f60] sm:$0xff]
        %v1705 = vld [vmem:[%s7 + $0x1f68] sm:$0xff]
        %v1706 = vld [vmem:[%s7 + $0x1f70] sm:$0xff]
        %v1707 = vld [vmem:[%s7 + $0x1f78] sm:$0xff]
        %v1708 = vld [vmem:[%s7 + $0x1f80] sm:$0xff]
        %v1709 = vld [vmem:[%s7 + $0x1f88] sm:$0xff]
        %v1710 = vld [vmem:[%s7 + $0x1f90] sm:$0xff]
        %v1711 = vld [vmem:[%s7 + $0x1f98] sm:$0xff]
        %v1712 = vld [vmem:[%s7 + $0x1fa0] sm:$0xff]
        %v1713 = vld [vmem:[%s7 + $0x1fa8] sm:$0xff]
        %v1714 = vld [vmem:[%s7 + $0x1fb0] sm:$0xff]
        %v1715 = vld [vmem:[%s7 + $0x1fb8] sm:$0xff]
        %v1716 = vld [vmem:[%s7 + $0x1fc0] sm:$0xff]
        %v1717 = vld [vmem:[%s7 + $0x1fc8] sm:$0xff]
        %v1718 = vld [vmem:[%s7 + $0x1fd0] sm:$0xff]
        %v1719 = vld [vmem:[%s7 + $0x1fd8] sm:$0xff]
        %v1720 = vld [vmem:[%s7 + $0x1fe0] sm:$0xff]
        %v1721 = vld [vmem:[%s7 + $0x1fe8] sm:$0xff]
        %v1722 = vld [vmem:[%s7 + $0x1ff0] sm:$0xff]
        %v1723 = vld [vmem:[%s7 + $0x1ff8] sm:$0xff]
        %vm1724 = vcmask 523264
        %v1726 = vsel %vm1724, %v699, 0
        %1728 = vmatpush.msra.mxu0 0.0
        %1729 = vmatpush.msra.mxu0 0.0
        %1730 = vmatpush.msra.mxu0 0.0
        %1731 = vmatpush.msra.mxu0 0.0
        %1732 = vmatpush.msra.mxu0 0.0
        %1733 = vmatpush.msra.mxu0 0.0
        %1734 = vmatpush.msra.mxu0 0.0
        %1735 = vmatpush.msra.mxu0 0.0
        %1736 = vmatpush.msra.mxu0 %v1596
        %1737 = vmatpush.msra.mxu0 %v1468
        %1738 = vmatpush.msra.mxu0 %v1340
        %1739 = vmatpush.msra.mxu0 %v1212
        %1740 = vmatpush.msra.mxu0 %v1084
        %1741 = vmatpush.msra.mxu0 %v956
        %1742 = vmatpush.msra.mxu0 %v828
        %1743 = vmatpush.msra.mxu0 %v700
        %1744 = vmatmul.f32.gmra.mxu0 %v1726
        %v1745 = vpop.f32.mrf.mxu0
        %v1746 = vadd.f32 0.0, %v1745
        %1747 = vdwg.mxu0
        %1748 = vmatpush.msra.mxu0 0.0
        %1749 = vmatpush.msra.mxu0 0.0
        %1750 = vmatpush.msra.mxu0 0.0
        %1751 = vmatpush.msra.mxu0 0.0
        %1752 = vmatpush.msra.mxu0 0.0
        %1753 = vmatpush.msra.mxu0 0.0
        %1754 = vmatpush.msra.mxu0 0.0
        %1755 = vmatpush.msra.mxu0 0.0
        %1756 = vmatpush.msra.mxu0 %v1597
        %1757 = vmatpush.msra.mxu0 %v1469
        %1758 = vmatpush.msra.mxu0 %v1341
        %1759 = vmatpush.msra.mxu0 %v1213
        %1760 = vmatpush.msra.mxu0 %v1085
        %1761 = vmatpush.msra.mxu0 %v957
        %1762 = vmatpush.msra.mxu0 %v829
        %1763 = vmatpush.msra.mxu0 %v701
        %1764 = vmatmul.f32.gmra.mxu0 %v1726
        %v1765 = vpop.f32.mrf.mxu0
        %v1766 = vadd.f32 0.0, %v1765
        %1767 = vdwg.mxu0
        %1768 = vmatpush.msra.mxu0 0.0
        %1769 = vmatpush.msra.mxu0 0.0
        %1770 = vmatpush.msra.mxu0 0.0
        %1771 = vmatpush.msra.mxu0 0.0
        %1772 = vmatpush.msra.mxu0 0.0
        %1773 = vmatpush.msra.mxu0 0.0
        %1774 = vmatpush.msra.mxu0 0.0
        %1775 = vmatpush.msra.mxu0 0.0
        %1776 = vmatpush.msra.mxu0 %v1598
        %1777 = vmatpush.msra.mxu0 %v1470
        %1778 = vmatpush.msra.mxu0 %v1342
        %1779 = vmatpush.msra.mxu0 %v1214
        %1780 = vmatpush.msra.mxu0 %v1086
        %1781 = vmatpush.msra.mxu0 %v958
        %1782 = vmatpush.msra.mxu0 %v830
        %1783 = vmatpush.msra.mxu0 %v702
        %1784 = vmatmul.f32.gmra.mxu0 %v1726
        %v1785 = vpop.f32.mrf.mxu0
        %v1786 = vadd.f32 0.0, %v1785
        %1787 = vdwg.mxu0
        %1788 = vmatpush.msra.mxu0 0.0
        %1789 = vmatpush.msra.mxu0 0.0
        %1790 = vmatpush.msra.mxu0 0.0
        %1791 = vmatpush.msra.mxu0 0.0
        %1792 = vmatpush.msra.mxu0 0.0
        %1793 = vmatpush.msra.mxu0 0.0
        %1794 = vmatpush.msra.mxu0 0.0
        %1795 = vmatpush.msra.mxu0 0.0
        %1796 = vmatpush.msra.mxu0 %v1599
        %1797 = vmatpush.msra.mxu0 %v1471
        %1798 = vmatpush.msra.mxu0 %v1343
        %1799 = vmatpush.msra.mxu0 %v1215
        %1800 = vmatpush.msra.mxu0 %v1087
        %1801 = vmatpush.msra.mxu0 %v959
        %1802 = vmatpush.msra.mxu0 %v831
        %1803 = vmatpush.msra.mxu0 %v703
        %1804 = vmatmul.f32.gmra.mxu0 %v1726
        %v1805 = vpop.f32.mrf.mxu0
        %v1806 = vadd.f32 0.0, %v1805
        %1807 = vdwg.mxu0
        %1808 = vmatpush.msra.mxu0 0.0
        %1809 = vmatpush.msra.mxu0 0.0
        %1810 = vmatpush.msra.mxu0 0.0
        %1811 = vmatpush.msra.mxu0 0.0
        %1812 = vmatpush.msra.mxu0 0.0
        %1813 = vmatpush.msra.mxu0 0.0
        %1814 = vmatpush.msra.mxu0 0.0
        %1815 = vmatpush.msra.mxu0 0.0
        %1816 = vmatpush.msra.mxu0 %v1600
        %1817 = vmatpush.msra.mxu0 %v1472
        %1818 = vmatpush.msra.mxu0 %v1344
        %1819 = vmatpush.msra.mxu0 %v1216
        %1820 = vmatpush.msra.mxu0 %v1088
        %1821 = vmatpush.msra.mxu0 %v960
        %1822 = vmatpush.msra.mxu0 %v832
        %1823 = vmatpush.msra.mxu0 %v704
        %1824 = vmatmul.f32.gmra.mxu0 %v1726
        %v1825 = vpop.f32.mrf.mxu0
        %v1826 = vadd.f32 0.0, %v1825
        %1827 = vdwg.mxu0
        %1828 = vmatpush.msra.mxu0 0.0
        %1829 = vmatpush.msra.mxu0 0.0
        %1830 = vmatpush.msra.mxu0 0.0
        %1831 = vmatpush.msra.mxu0 0.0
        %1832 = vmatpush.msra.mxu0 0.0
        %1833 = vmatpush.msra.mxu0 0.0
        %1834 = vmatpush.msra.mxu0 0.0
        %1835 = vmatpush.msra.mxu0 0.0
        %1836 = vmatpush.msra.mxu0 %v1601
        %1837 = vmatpush.msra.mxu0 %v1473
        %1838 = vmatpush.msra.mxu0 %v1345
        %1839 = vmatpush.msra.mxu0 %v1217
        %1840 = vmatpush.msra.mxu0 %v1089
        %1841 = vmatpush.msra.mxu0 %v961
        %1842 = vmatpush.msra.mxu0 %v833
        %1843 = vmatpush.msra.mxu0 %v705
        %1844 = vmatmul.f32.gmra.mxu0 %v1726
        %v1845 = vpop.f32.mrf.mxu0
        %v1846 = vadd.f32 0.0, %v1845
        %1847 = vdwg.mxu0
        %1848 = vmatpush.msra.mxu0 0.0
        %1849 = vmatpush.msra.mxu0 0.0
        %1850 = vmatpush.msra.mxu0 0.0
        %1851 = vmatpush.msra.mxu0 0.0
        %1852 = vmatpush.msra.mxu0 0.0
        %1853 = vmatpush.msra.mxu0 0.0
        %1854 = vmatpush.msra.mxu0 0.0
        %1855 = vmatpush.msra.mxu0 0.0
        %1856 = vmatpush.msra.mxu0 %v1602
        %1857 = vmatpush.msra.mxu0 %v1474
        %1858 = vmatpush.msra.mxu0 %v1346
        %1859 = vmatpush.msra.mxu0 %v1218
        %1860 = vmatpush.msra.mxu0 %v1090
        %1861 = vmatpush.msra.mxu0 %v962
        %1862 = vmatpush.msra.mxu0 %v834
        %1863 = vmatpush.msra.mxu0 %v706
        %1864 = vmatmul.f32.gmra.mxu0 %v1726
        %v1865 = vpop.f32.mrf.mxu0
        %v1866 = vadd.f32 0.0, %v1865
        %1867 = vdwg.mxu0
        %1868 = vmatpush.msra.mxu0 0.0
        %1869 = vmatpush.msra.mxu0 0.0
        %1870 = vmatpush.msra.mxu0 0.0
        %1871 = vmatpush.msra.mxu0 0.0
        %1872 = vmatpush.msra.mxu0 0.0
        %1873 = vmatpush.msra.mxu0 0.0
        %1874 = vmatpush.msra.mxu0 0.0
        %1875 = vmatpush.msra.mxu0 0.0
        %1876 = vmatpush.msra.mxu0 %v1603
        %1877 = vmatpush.msra.mxu0 %v1475
        %1878 = vmatpush.msra.mxu0 %v1347
        %1879 = vmatpush.msra.mxu0 %v1219
        %1880 = vmatpush.msra.mxu0 %v1091
        %1881 = vmatpush.msra.mxu0 %v963
        %1882 = vmatpush.msra.mxu0 %v835
        %1883 = vmatpush.msra.mxu0 %v707
        %1884 = vmatmul.f32.gmra.mxu0 %v1726
        %v1885 = vpop.f32.mrf.mxu0
        %v1886 = vadd.f32 0.0, %v1885
        %1887 = vdwg.mxu0
        %1888 = vmatpush.msra.mxu0 0.0
        %1889 = vmatpush.msra.mxu0 0.0
        %1890 = vmatpush.msra.mxu0 0.0
        %1891 = vmatpush.msra.mxu0 0.0
        %1892 = vmatpush.msra.mxu0 0.0
        %1893 = vmatpush.msra.mxu0 0.0
        %1894 = vmatpush.msra.mxu0 0.0
        %1895 = vmatpush.msra.mxu0 0.0
        %1896 = vmatpush.msra.mxu0 %v1604
        %1897 = vmatpush.msra.mxu0 %v1476
        %1898 = vmatpush.msra.mxu0 %v1348
        %1899 = vmatpush.msra.mxu0 %v1220
        %1900 = vmatpush.msra.mxu0 %v1092
        %1901 = vmatpush.msra.mxu0 %v964
        %1902 = vmatpush.msra.mxu0 %v836
        %1903 = vmatpush.msra.mxu0 %v708
        %1904 = vmatmul.f32.gmra.mxu0 %v1726
        %v1905 = vpop.f32.mrf.mxu0
        %v1906 = vadd.f32 0.0, %v1905
        %1907 = vdwg.mxu0
        %1908 = vmatpush.msra.mxu0 0.0
        %1909 = vmatpush.msra.mxu0 0.0
        %1910 = vmatpush.msra.mxu0 0.0
        %1911 = vmatpush.msra.mxu0 0.0
        %1912 = vmatpush.msra.mxu0 0.0
        %1913 = vmatpush.msra.mxu0 0.0
        %1914 = vmatpush.msra.mxu0 0.0
        %1915 = vmatpush.msra.mxu0 0.0
        %1916 = vmatpush.msra.mxu0 %v1605
        %1917 = vmatpush.msra.mxu0 %v1477
        %1918 = vmatpush.msra.mxu0 %v1349
        %1919 = vmatpush.msra.mxu0 %v1221
        %1920 = vmatpush.msra.mxu0 %v1093
        %1921 = vmatpush.msra.mxu0 %v965
        %1922 = vmatpush.msra.mxu0 %v837
        %1923 = vmatpush.msra.mxu0 %v709
        %1924 = vmatmul.f32.gmra.mxu0 %v1726
        %v1925 = vpop.f32.mrf.mxu0
        %v1926 = vadd.f32 0.0, %v1925
        %1927 = vdwg.mxu0
        %1928 = vmatpush.msra.mxu0 0.0
        %1929 = vmatpush.msra.mxu0 0.0
        %1930 = vmatpush.msra.mxu0 0.0
        %1931 = vmatpush.msra.mxu0 0.0
        %1932 = vmatpush.msra.mxu0 0.0
        %1933 = vmatpush.msra.mxu0 0.0
        %1934 = vmatpush.msra.mxu0 0.0
        %1935 = vmatpush.msra.mxu0 0.0
        %1936 = vmatpush.msra.mxu0 %v1606
        %1937 = vmatpush.msra.mxu0 %v1478
        %1938 = vmatpush.msra.mxu0 %v1350
        %1939 = vmatpush.msra.mxu0 %v1222
        %1940 = vmatpush.msra.mxu0 %v1094
        %1941 = vmatpush.msra.mxu0 %v966
        %1942 = vmatpush.msra.mxu0 %v838
        %1943 = vmatpush.msra.mxu0 %v710
        %1944 = vmatmul.f32.gmra.mxu0 %v1726
        %v1945 = vpop.f32.mrf.mxu0
        %v1946 = vadd.f32 0.0, %v1945
        %1947 = vdwg.mxu0
        %1948 = vmatpush.msra.mxu0 0.0
        %1949 = vmatpush.msra.mxu0 0.0
        %1950 = vmatpush.msra.mxu0 0.0
        %1951 = vmatpush.msra.mxu0 0.0
        %1952 = vmatpush.msra.mxu0 0.0
        %1953 = vmatpush.msra.mxu0 0.0
        %1954 = vmatpush.msra.mxu0 0.0
        %1955 = vmatpush.msra.mxu0 0.0
        %1956 = vmatpush.msra.mxu0 %v1607
        %1957 = vmatpush.msra.mxu0 %v1479
        %1958 = vmatpush.msra.mxu0 %v1351
        %1959 = vmatpush.msra.mxu0 %v1223
        %1960 = vmatpush.msra.mxu0 %v1095
        %1961 = vmatpush.msra.mxu0 %v967
        %1962 = vmatpush.msra.mxu0 %v839
        %1963 = vmatpush.msra.mxu0 %v711
        %1964 = vmatmul.f32.gmra.mxu0 %v1726
        %v1965 = vpop.f32.mrf.mxu0
        %v1966 = vadd.f32 0.0, %v1965
        %1967 = vdwg.mxu0
        %1968 = vmatpush.msra.mxu0 0.0
        %1969 = vmatpush.msra.mxu0 0.0
        %1970 = vmatpush.msra.mxu0 0.0
        %1971 = vmatpush.msra.mxu0 0.0
        %1972 = vmatpush.msra.mxu0 0.0
        %1973 = vmatpush.msra.mxu0 0.0
        %1974 = vmatpush.msra.mxu0 0.0
        %1975 = vmatpush.msra.mxu0 0.0
        %1976 = vmatpush.msra.mxu0 %v1608
        %1977 = vmatpush.msra.mxu0 %v1480
        %1978 = vmatpush.msra.mxu0 %v1352
        %1979 = vmatpush.msra.mxu0 %v1224
        %1980 = vmatpush.msra.mxu0 %v1096
        %1981 = vmatpush.msra.mxu0 %v968
        %1982 = vmatpush.msra.mxu0 %v840
        %1983 = vmatpush.msra.mxu0 %v712
        %1984 = vmatmul.f32.gmra.mxu0 %v1726
        %v1985 = vpop.f32.mrf.mxu0
        %v1986 = vadd.f32 0.0, %v1985
        %1987 = vdwg.mxu0
        %1988 = vmatpush.msra.mxu0 0.0
        %1989 = vmatpush.msra.mxu0 0.0
        %1990 = vmatpush.msra.mxu0 0.0
        %1991 = vmatpush.msra.mxu0 0.0
        %1992 = vmatpush.msra.mxu0 0.0
        %1993 = vmatpush.msra.mxu0 0.0
        %1994 = vmatpush.msra.mxu0 0.0
        %1995 = vmatpush.msra.mxu0 0.0
        %1996 = vmatpush.msra.mxu0 %v1609
        %1997 = vmatpush.msra.mxu0 %v1481
        %1998 = vmatpush.msra.mxu0 %v1353
        %1999 = vmatpush.msra.mxu0 %v1225
        %2000 = vmatpush.msra.mxu0 %v1097
        %2001 = vmatpush.msra.mxu0 %v969
        %2002 = vmatpush.msra.mxu0 %v841
        %2003 = vmatpush.msra.mxu0 %v713
        %2004 = vmatmul.f32.gmra.mxu0 %v1726
        %v2005 = vpop.f32.mrf.mxu0
        %v2006 = vadd.f32 0.0, %v2005
        %2007 = vdwg.mxu0
        %2008 = vmatpush.msra.mxu0 0.0
        %2009 = vmatpush.msra.mxu0 0.0
        %2010 = vmatpush.msra.mxu0 0.0
        %2011 = vmatpush.msra.mxu0 0.0
        %2012 = vmatpush.msra.mxu0 0.0
        %2013 = vmatpush.msra.mxu0 0.0
        %2014 = vmatpush.msra.mxu0 0.0
        %2015 = vmatpush.msra.mxu0 0.0
        %2016 = vmatpush.msra.mxu0 %v1610
        %2017 = vmatpush.msra.mxu0 %v1482
        %2018 = vmatpush.msra.mxu0 %v1354
        %2019 = vmatpush.msra.mxu0 %v1226
        %2020 = vmatpush.msra.mxu0 %v1098
        %2021 = vmatpush.msra.mxu0 %v970
        %2022 = vmatpush.msra.mxu0 %v842
        %2023 = vmatpush.msra.mxu0 %v714
        %2024 = vmatmul.f32.gmra.mxu0 %v1726
        %v2025 = vpop.f32.mrf.mxu0
        %v2026 = vadd.f32 0.0, %v2025
        %2027 = vdwg.mxu0
        %2028 = vmatpush.msra.mxu0 0.0
        %2029 = vmatpush.msra.mxu0 0.0
        %2030 = vmatpush.msra.mxu0 0.0
        %2031 = vmatpush.msra.mxu0 0.0
        %2032 = vmatpush.msra.mxu0 0.0
        %2033 = vmatpush.msra.mxu0 0.0
        %2034 = vmatpush.msra.mxu0 0.0
        %2035 = vmatpush.msra.mxu0 0.0
        %2036 = vmatpush.msra.mxu0 %v1611
        %2037 = vmatpush.msra.mxu0 %v1483
        %2038 = vmatpush.msra.mxu0 %v1355
        %2039 = vmatpush.msra.mxu0 %v1227
        %2040 = vmatpush.msra.mxu0 %v1099
        %2041 = vmatpush.msra.mxu0 %v971
        %2042 = vmatpush.msra.mxu0 %v843
        %2043 = vmatpush.msra.mxu0 %v715
        %2044 = vmatmul.f32.gmra.mxu0 %v1726
        %v2045 = vpop.f32.mrf.mxu0
        %v2046 = vadd.f32 0.0, %v2045
        %2047 = vdwg.mxu0
        %2048 = vmatpush.msra.mxu0 0.0
        %2049 = vmatpush.msra.mxu0 0.0
        %2050 = vmatpush.msra.mxu0 0.0
        %2051 = vmatpush.msra.mxu0 0.0
        %2052 = vmatpush.msra.mxu0 0.0
        %2053 = vmatpush.msra.mxu0 0.0
        %2054 = vmatpush.msra.mxu0 0.0
        %2055 = vmatpush.msra.mxu0 0.0
        %2056 = vmatpush.msra.mxu0 %v1612
        %2057 = vmatpush.msra.mxu0 %v1484
        %2058 = vmatpush.msra.mxu0 %v1356
        %2059 = vmatpush.msra.mxu0 %v1228
        %2060 = vmatpush.msra.mxu0 %v1100
        %2061 = vmatpush.msra.mxu0 %v972
        %2062 = vmatpush.msra.mxu0 %v844
        %2063 = vmatpush.msra.mxu0 %v716
        %2064 = vmatmul.f32.gmra.mxu0 %v1726
        %v2065 = vpop.f32.mrf.mxu0
        %v2066 = vadd.f32 0.0, %v2065
        %2067 = vdwg.mxu0
        %2068 = vmatpush.msra.mxu0 0.0
        %2069 = vmatpush.msra.mxu0 0.0
        %2070 = vmatpush.msra.mxu0 0.0
        %2071 = vmatpush.msra.mxu0 0.0
        %2072 = vmatpush.msra.mxu0 0.0
        %2073 = vmatpush.msra.mxu0 0.0
        %2074 = vmatpush.msra.mxu0 0.0
        %2075 = vmatpush.msra.mxu0 0.0
        %2076 = vmatpush.msra.mxu0 %v1613
        %2077 = vmatpush.msra.mxu0 %v1485
        %2078 = vmatpush.msra.mxu0 %v1357
        %2079 = vmatpush.msra.mxu0 %v1229
        %2080 = vmatpush.msra.mxu0 %v1101
        %2081 = vmatpush.msra.mxu0 %v973
        %2082 = vmatpush.msra.mxu0 %v845
        %2083 = vmatpush.msra.mxu0 %v717
        %2084 = vmatmul.f32.gmra.mxu0 %v1726
        %v2085 = vpop.f32.mrf.mxu0
        %v2086 = vadd.f32 0.0, %v2085
        %2087 = vdwg.mxu0
        %2088 = vmatpush.msra.mxu0 0.0
        %2089 = vmatpush.msra.mxu0 0.0
        %2090 = vmatpush.msra.mxu0 0.0
        %2091 = vmatpush.msra.mxu0 0.0
        %2092 = vmatpush.msra.mxu0 0.0
        %2093 = vmatpush.msra.mxu0 0.0
        %2094 = vmatpush.msra.mxu0 0.0
        %2095 = vmatpush.msra.mxu0 0.0
        %2096 = vmatpush.msra.mxu0 %v1614
        %2097 = vmatpush.msra.mxu0 %v1486
        %2098 = vmatpush.msra.mxu0 %v1358
        %2099 = vmatpush.msra.mxu0 %v1230
        %2100 = vmatpush.msra.mxu0 %v1102
        %2101 = vmatpush.msra.mxu0 %v974
        %2102 = vmatpush.msra.mxu0 %v846
        %2103 = vmatpush.msra.mxu0 %v718
        %2104 = vmatmul.f32.gmra.mxu0 %v1726
        %v2105 = vpop.f32.mrf.mxu0
        %v2106 = vadd.f32 0.0, %v2105
        %2107 = vdwg.mxu0
        %2108 = vmatpush.msra.mxu0 0.0
        %2109 = vmatpush.msra.mxu0 0.0
        %2110 = vmatpush.msra.mxu0 0.0
        %2111 = vmatpush.msra.mxu0 0.0
        %2112 = vmatpush.msra.mxu0 0.0
        %2113 = vmatpush.msra.mxu0 0.0
        %2114 = vmatpush.msra.mxu0 0.0
        %2115 = vmatpush.msra.mxu0 0.0
        %2116 = vmatpush.msra.mxu0 %v1615
        %2117 = vmatpush.msra.mxu0 %v1487
        %2118 = vmatpush.msra.mxu0 %v1359
        %2119 = vmatpush.msra.mxu0 %v1231
        %2120 = vmatpush.msra.mxu0 %v1103
        %2121 = vmatpush.msra.mxu0 %v975
        %2122 = vmatpush.msra.mxu0 %v847
        %2123 = vmatpush.msra.mxu0 %v719
        %2124 = vmatmul.f32.gmra.mxu0 %v1726
        %v2125 = vpop.f32.mrf.mxu0
        %v2126 = vadd.f32 0.0, %v2125
        %2127 = vdwg.mxu0
        %2128 = vmatpush.msra.mxu0 0.0
        %2129 = vmatpush.msra.mxu0 0.0
        %2130 = vmatpush.msra.mxu0 0.0
        %2131 = vmatpush.msra.mxu0 0.0
        %2132 = vmatpush.msra.mxu0 0.0
        %2133 = vmatpush.msra.mxu0 0.0
        %2134 = vmatpush.msra.mxu0 0.0
        %2135 = vmatpush.msra.mxu0 0.0
        %2136 = vmatpush.msra.mxu0 %v1616
        %2137 = vmatpush.msra.mxu0 %v1488
        %2138 = vmatpush.msra.mxu0 %v1360
        %2139 = vmatpush.msra.mxu0 %v1232
        %2140 = vmatpush.msra.mxu0 %v1104
        %2141 = vmatpush.msra.mxu0 %v976
        %2142 = vmatpush.msra.mxu0 %v848
        %2143 = vmatpush.msra.mxu0 %v720
        %2144 = vmatmul.f32.gmra.mxu0 %v1726
        %v2145 = vpop.f32.mrf.mxu0
        %v2146 = vadd.f32 0.0, %v2145
        %2147 = vdwg.mxu0
        %2148 = vmatpush.msra.mxu0 0.0
        %2149 = vmatpush.msra.mxu0 0.0
        %2150 = vmatpush.msra.mxu0 0.0
        %2151 = vmatpush.msra.mxu0 0.0
        %2152 = vmatpush.msra.mxu0 0.0
        %2153 = vmatpush.msra.mxu0 0.0
        %2154 = vmatpush.msra.mxu0 0.0
        %2155 = vmatpush.msra.mxu0 0.0
        %2156 = vmatpush.msra.mxu0 %v1617
        %2157 = vmatpush.msra.mxu0 %v1489
        %2158 = vmatpush.msra.mxu0 %v1361
        %2159 = vmatpush.msra.mxu0 %v1233
        %2160 = vmatpush.msra.mxu0 %v1105
        %2161 = vmatpush.msra.mxu0 %v977
        %2162 = vmatpush.msra.mxu0 %v849
        %2163 = vmatpush.msra.mxu0 %v721
        %2164 = vmatmul.f32.gmra.mxu0 %v1726
        %v2165 = vpop.f32.mrf.mxu0
        %v2166 = vadd.f32 0.0, %v2165
        %2167 = vdwg.mxu0
        %2168 = vmatpush.msra.mxu0 0.0
        %2169 = vmatpush.msra.mxu0 0.0
        %2170 = vmatpush.msra.mxu0 0.0
        %2171 = vmatpush.msra.mxu0 0.0
        %2172 = vmatpush.msra.mxu0 0.0
        %2173 = vmatpush.msra.mxu0 0.0
        %2174 = vmatpush.msra.mxu0 0.0
        %2175 = vmatpush.msra.mxu0 0.0
        %2176 = vmatpush.msra.mxu0 %v1618
        %2177 = vmatpush.msra.mxu0 %v1490
        %2178 = vmatpush.msra.mxu0 %v1362
        %2179 = vmatpush.msra.mxu0 %v1234
        %2180 = vmatpush.msra.mxu0 %v1106
        %2181 = vmatpush.msra.mxu0 %v978
        %2182 = vmatpush.msra.mxu0 %v850
        %2183 = vmatpush.msra.mxu0 %v722
        %2184 = vmatmul.f32.gmra.mxu0 %v1726
        %v2185 = vpop.f32.mrf.mxu0
        %v2186 = vadd.f32 0.0, %v2185
        %2187 = vdwg.mxu0
        %2188 = vmatpush.msra.mxu0 0.0
        %2189 = vmatpush.msra.mxu0 0.0
        %2190 = vmatpush.msra.mxu0 0.0
        %2191 = vmatpush.msra.mxu0 0.0
        %2192 = vmatpush.msra.mxu0 0.0
        %2193 = vmatpush.msra.mxu0 0.0
        %2194 = vmatpush.msra.mxu0 0.0
        %2195 = vmatpush.msra.mxu0 0.0
        %2196 = vmatpush.msra.mxu0 %v1619
        %2197 = vmatpush.msra.mxu0 %v1491
        %2198 = vmatpush.msra.mxu0 %v1363
        %2199 = vmatpush.msra.mxu0 %v1235
        %2200 = vmatpush.msra.mxu0 %v1107
        %2201 = vmatpush.msra.mxu0 %v979
        %2202 = vmatpush.msra.mxu0 %v851
        %2203 = vmatpush.msra.mxu0 %v723
        %2204 = vmatmul.f32.gmra.mxu0 %v1726
        %v2205 = vpop.f32.mrf.mxu0
        %v2206 = vadd.f32 0.0, %v2205
        %2207 = vdwg.mxu0
        %2208 = vmatpush.msra.mxu0 0.0
        %2209 = vmatpush.msra.mxu0 0.0
        %2210 = vmatpush.msra.mxu0 0.0
        %2211 = vmatpush.msra.mxu0 0.0
        %2212 = vmatpush.msra.mxu0 0.0
        %2213 = vmatpush.msra.mxu0 0.0
        %2214 = vmatpush.msra.mxu0 0.0
        %2215 = vmatpush.msra.mxu0 0.0
        %2216 = vmatpush.msra.mxu0 %v1620
        %2217 = vmatpush.msra.mxu0 %v1492
        %2218 = vmatpush.msra.mxu0 %v1364
        %2219 = vmatpush.msra.mxu0 %v1236
        %2220 = vmatpush.msra.mxu0 %v1108
        %2221 = vmatpush.msra.mxu0 %v980
        %2222 = vmatpush.msra.mxu0 %v852
        %2223 = vmatpush.msra.mxu0 %v724
        %2224 = vmatmul.f32.gmra.mxu0 %v1726
        %v2225 = vpop.f32.mrf.mxu0
        %v2226 = vadd.f32 0.0, %v2225
        %2227 = vdwg.mxu0
        %2228 = vmatpush.msra.mxu0 0.0
        %2229 = vmatpush.msra.mxu0 0.0
        %2230 = vmatpush.msra.mxu0 0.0
        %2231 = vmatpush.msra.mxu0 0.0
        %2232 = vmatpush.msra.mxu0 0.0
        %2233 = vmatpush.msra.mxu0 0.0
        %2234 = vmatpush.msra.mxu0 0.0
        %2235 = vmatpush.msra.mxu0 0.0
        %2236 = vmatpush.msra.mxu0 %v1621
        %2237 = vmatpush.msra.mxu0 %v1493
        %2238 = vmatpush.msra.mxu0 %v1365
        %2239 = vmatpush.msra.mxu0 %v1237
        %2240 = vmatpush.msra.mxu0 %v1109
        %2241 = vmatpush.msra.mxu0 %v981
        %2242 = vmatpush.msra.mxu0 %v853
        %2243 = vmatpush.msra.mxu0 %v725
        %2244 = vmatmul.f32.gmra.mxu0 %v1726
        %v2245 = vpop.f32.mrf.mxu0
        %v2246 = vadd.f32 0.0, %v2245
        %2247 = vdwg.mxu0
        %2248 = vmatpush.msra.mxu0 0.0
        %2249 = vmatpush.msra.mxu0 0.0
        %2250 = vmatpush.msra.mxu0 0.0
        %2251 = vmatpush.msra.mxu0 0.0
        %2252 = vmatpush.msra.mxu0 0.0
        %2253 = vmatpush.msra.mxu0 0.0
        %2254 = vmatpush.msra.mxu0 0.0
        %2255 = vmatpush.msra.mxu0 0.0
        %2256 = vmatpush.msra.mxu0 %v1622
        %2257 = vmatpush.msra.mxu0 %v1494
        %2258 = vmatpush.msra.mxu0 %v1366
        %2259 = vmatpush.msra.mxu0 %v1238
        %2260 = vmatpush.msra.mxu0 %v1110
        %2261 = vmatpush.msra.mxu0 %v982
        %2262 = vmatpush.msra.mxu0 %v854
        %2263 = vmatpush.msra.mxu0 %v726
        %2264 = vmatmul.f32.gmra.mxu0 %v1726
        %v2265 = vpop.f32.mrf.mxu0
        %v2266 = vadd.f32 0.0, %v2265
        %2267 = vdwg.mxu0
        %2268 = vmatpush.msra.mxu0 0.0
        %2269 = vmatpush.msra.mxu0 0.0
        %2270 = vmatpush.msra.mxu0 0.0
        %2271 = vmatpush.msra.mxu0 0.0
        %2272 = vmatpush.msra.mxu0 0.0
        %2273 = vmatpush.msra.mxu0 0.0
        %2274 = vmatpush.msra.mxu0 0.0
        %2275 = vmatpush.msra.mxu0 0.0
        %2276 = vmatpush.msra.mxu0 %v1623
        %2277 = vmatpush.msra.mxu0 %v1495
        %2278 = vmatpush.msra.mxu0 %v1367
        %2279 = vmatpush.msra.mxu0 %v1239
        %2280 = vmatpush.msra.mxu0 %v1111
        %2281 = vmatpush.msra.mxu0 %v983
        %2282 = vmatpush.msra.mxu0 %v855
        %2283 = vmatpush.msra.mxu0 %v727
        %2284 = vmatmul.f32.gmra.mxu0 %v1726
        %v2285 = vpop.f32.mrf.mxu0
        %v2286 = vadd.f32 0.0, %v2285
        %2287 = vdwg.mxu0
        %2288 = vmatpush.msra.mxu0 0.0
        %2289 = vmatpush.msra.mxu0 0.0
        %2290 = vmatpush.msra.mxu0 0.0
        %2291 = vmatpush.msra.mxu0 0.0
        %2292 = vmatpush.msra.mxu0 0.0
        %2293 = vmatpush.msra.mxu0 0.0
        %2294 = vmatpush.msra.mxu0 0.0
        %2295 = vmatpush.msra.mxu0 0.0
        %2296 = vmatpush.msra.mxu0 %v1624
        %2297 = vmatpush.msra.mxu0 %v1496
        %2298 = vmatpush.msra.mxu0 %v1368
        %2299 = vmatpush.msra.mxu0 %v1240
        %2300 = vmatpush.msra.mxu0 %v1112
        %2301 = vmatpush.msra.mxu0 %v984
        %2302 = vmatpush.msra.mxu0 %v856
        %2303 = vmatpush.msra.mxu0 %v728
        %2304 = vmatmul.f32.gmra.mxu0 %v1726
        %v2305 = vpop.f32.mrf.mxu0
        %v2306 = vadd.f32 0.0, %v2305
        %2307 = vdwg.mxu0
        %2308 = vmatpush.msra.mxu0 0.0
        %2309 = vmatpush.msra.mxu0 0.0
        %2310 = vmatpush.msra.mxu0 0.0
        %2311 = vmatpush.msra.mxu0 0.0
        %2312 = vmatpush.msra.mxu0 0.0
        %2313 = vmatpush.msra.mxu0 0.0
        %2314 = vmatpush.msra.mxu0 0.0
        %2315 = vmatpush.msra.mxu0 0.0
        %2316 = vmatpush.msra.mxu0 %v1625
        %2317 = vmatpush.msra.mxu0 %v1497
        %2318 = vmatpush.msra.mxu0 %v1369
        %2319 = vmatpush.msra.mxu0 %v1241
        %2320 = vmatpush.msra.mxu0 %v1113
        %2321 = vmatpush.msra.mxu0 %v985
        %2322 = vmatpush.msra.mxu0 %v857
        %2323 = vmatpush.msra.mxu0 %v729
        %2324 = vmatmul.f32.gmra.mxu0 %v1726
        %v2325 = vpop.f32.mrf.mxu0
        %v2326 = vadd.f32 0.0, %v2325
        %2327 = vdwg.mxu0
        %2328 = vmatpush.msra.mxu0 0.0
        %2329 = vmatpush.msra.mxu0 0.0
        %2330 = vmatpush.msra.mxu0 0.0
        %2331 = vmatpush.msra.mxu0 0.0
        %2332 = vmatpush.msra.mxu0 0.0
        %2333 = vmatpush.msra.mxu0 0.0
        %2334 = vmatpush.msra.mxu0 0.0
        %2335 = vmatpush.msra.mxu0 0.0
        %2336 = vmatpush.msra.mxu0 %v1626
        %2337 = vmatpush.msra.mxu0 %v1498
        %2338 = vmatpush.msra.mxu0 %v1370
        %2339 = vmatpush.msra.mxu0 %v1242
        %2340 = vmatpush.msra.mxu0 %v1114
        %2341 = vmatpush.msra.mxu0 %v986
        %2342 = vmatpush.msra.mxu0 %v858
        %2343 = vmatpush.msra.mxu0 %v730
        %2344 = vmatmul.f32.gmra.mxu0 %v1726
        %v2345 = vpop.f32.mrf.mxu0
        %v2346 = vadd.f32 0.0, %v2345
        %2347 = vdwg.mxu0
        %2348 = vmatpush.msra.mxu0 0.0
        %2349 = vmatpush.msra.mxu0 0.0
        %2350 = vmatpush.msra.mxu0 0.0
        %2351 = vmatpush.msra.mxu0 0.0
        %2352 = vmatpush.msra.mxu0 0.0
        %2353 = vmatpush.msra.mxu0 0.0
        %2354 = vmatpush.msra.mxu0 0.0
        %2355 = vmatpush.msra.mxu0 0.0
        %2356 = vmatpush.msra.mxu0 %v1627
        %2357 = vmatpush.msra.mxu0 %v1499
        %2358 = vmatpush.msra.mxu0 %v1371
        %2359 = vmatpush.msra.mxu0 %v1243
        %2360 = vmatpush.msra.mxu0 %v1115
        %2361 = vmatpush.msra.mxu0 %v987
        %2362 = vmatpush.msra.mxu0 %v859
        %2363 = vmatpush.msra.mxu0 %v731
        %2364 = vmatmul.f32.gmra.mxu0 %v1726
        %v2365 = vpop.f32.mrf.mxu0
        %v2366 = vadd.f32 0.0, %v2365
        %2367 = vdwg.mxu0
        %2368 = vmatpush.msra.mxu0 0.0
        %2369 = vmatpush.msra.mxu0 0.0
        %2370 = vmatpush.msra.mxu0 0.0
        %2371 = vmatpush.msra.mxu0 0.0
        %2372 = vmatpush.msra.mxu0 0.0
        %2373 = vmatpush.msra.mxu0 0.0
        %2374 = vmatpush.msra.mxu0 0.0
        %2375 = vmatpush.msra.mxu0 0.0
        %2376 = vmatpush.msra.mxu0 %v1628
        %2377 = vmatpush.msra.mxu0 %v1500
        %2378 = vmatpush.msra.mxu0 %v1372
        %2379 = vmatpush.msra.mxu0 %v1244
        %2380 = vmatpush.msra.mxu0 %v1116
        %2381 = vmatpush.msra.mxu0 %v988
        %2382 = vmatpush.msra.mxu0 %v860
        %2383 = vmatpush.msra.mxu0 %v732
        %2384 = vmatmul.f32.gmra.mxu0 %v1726
        %v2385 = vpop.f32.mrf.mxu0
        %v2386 = vadd.f32 0.0, %v2385
        %2387 = vdwg.mxu0
        %2388 = vmatpush.msra.mxu0 0.0
        %2389 = vmatpush.msra.mxu0 0.0
        %2390 = vmatpush.msra.mxu0 0.0
        %2391 = vmatpush.msra.mxu0 0.0
        %2392 = vmatpush.msra.mxu0 0.0
        %2393 = vmatpush.msra.mxu0 0.0
        %2394 = vmatpush.msra.mxu0 0.0
        %2395 = vmatpush.msra.mxu0 0.0
        %2396 = vmatpush.msra.mxu0 %v1629
        %2397 = vmatpush.msra.mxu0 %v1501
        %2398 = vmatpush.msra.mxu0 %v1373
        %2399 = vmatpush.msra.mxu0 %v1245
        %2400 = vmatpush.msra.mxu0 %v1117
        %2401 = vmatpush.msra.mxu0 %v989
        %2402 = vmatpush.msra.mxu0 %v861
        %2403 = vmatpush.msra.mxu0 %v733
        %2404 = vmatmul.f32.gmra.mxu0 %v1726
        %v2405 = vpop.f32.mrf.mxu0
        %v2406 = vadd.f32 0.0, %v2405
        %2407 = vdwg.mxu0
        %2408 = vmatpush.msra.mxu0 0.0
        %2409 = vmatpush.msra.mxu0 0.0
        %2410 = vmatpush.msra.mxu0 0.0
        %2411 = vmatpush.msra.mxu0 0.0
        %2412 = vmatpush.msra.mxu0 0.0
        %2413 = vmatpush.msra.mxu0 0.0
        %2414 = vmatpush.msra.mxu0 0.0
        %2415 = vmatpush.msra.mxu0 0.0
        %2416 = vmatpush.msra.mxu0 %v1630
        %2417 = vmatpush.msra.mxu0 %v1502
        %2418 = vmatpush.msra.mxu0 %v1374
        %2419 = vmatpush.msra.mxu0 %v1246
        %2420 = vmatpush.msra.mxu0 %v1118
        %2421 = vmatpush.msra.mxu0 %v990
        %2422 = vmatpush.msra.mxu0 %v862
        %2423 = vmatpush.msra.mxu0 %v734
        %2424 = vmatmul.f32.gmra.mxu0 %v1726
        %v2425 = vpop.f32.mrf.mxu0
        %v2426 = vadd.f32 0.0, %v2425
        %2427 = vdwg.mxu0
        %2428 = vmatpush.msra.mxu0 0.0
        %2429 = vmatpush.msra.mxu0 0.0
        %2430 = vmatpush.msra.mxu0 0.0
        %2431 = vmatpush.msra.mxu0 0.0
        %2432 = vmatpush.msra.mxu0 0.0
        %2433 = vmatpush.msra.mxu0 0.0
        %2434 = vmatpush.msra.mxu0 0.0
        %2435 = vmatpush.msra.mxu0 0.0
        %2436 = vmatpush.msra.mxu0 %v1631
        %2437 = vmatpush.msra.mxu0 %v1503
        %2438 = vmatpush.msra.mxu0 %v1375
        %2439 = vmatpush.msra.mxu0 %v1247
        %2440 = vmatpush.msra.mxu0 %v1119
        %2441 = vmatpush.msra.mxu0 %v991
        %2442 = vmatpush.msra.mxu0 %v863
        %2443 = vmatpush.msra.mxu0 %v735
        %2444 = vmatmul.f32.gmra.mxu0 %v1726
        %v2445 = vpop.f32.mrf.mxu0
        %v2446 = vadd.f32 0.0, %v2445
        %2447 = vdwg.mxu0
        %2448 = vmatpush.msra.mxu0 0.0
        %2449 = vmatpush.msra.mxu0 0.0
        %2450 = vmatpush.msra.mxu0 0.0
        %2451 = vmatpush.msra.mxu0 0.0
        %2452 = vmatpush.msra.mxu0 0.0
        %2453 = vmatpush.msra.mxu0 0.0
        %2454 = vmatpush.msra.mxu0 0.0
        %2455 = vmatpush.msra.mxu0 0.0
        %2456 = vmatpush.msra.mxu0 %v1632
        %2457 = vmatpush.msra.mxu0 %v1504
        %2458 = vmatpush.msra.mxu0 %v1376
        %2459 = vmatpush.msra.mxu0 %v1248
        %2460 = vmatpush.msra.mxu0 %v1120
        %2461 = vmatpush.msra.mxu0 %v992
        %2462 = vmatpush.msra.mxu0 %v864
        %2463 = vmatpush.msra.mxu0 %v736
        %2464 = vmatmul.f32.gmra.mxu0 %v1726
        %v2465 = vpop.f32.mrf.mxu0
        %v2466 = vadd.f32 0.0, %v2465
        %2467 = vdwg.mxu0
        %2468 = vmatpush.msra.mxu0 0.0
        %2469 = vmatpush.msra.mxu0 0.0
        %2470 = vmatpush.msra.mxu0 0.0
        %2471 = vmatpush.msra.mxu0 0.0
        %2472 = vmatpush.msra.mxu0 0.0
        %2473 = vmatpush.msra.mxu0 0.0
        %2474 = vmatpush.msra.mxu0 0.0
        %2475 = vmatpush.msra.mxu0 0.0
        %2476 = vmatpush.msra.mxu0 %v1633
        %2477 = vmatpush.msra.mxu0 %v1505
        %2478 = vmatpush.msra.mxu0 %v1377
        %2479 = vmatpush.msra.mxu0 %v1249
        %2480 = vmatpush.msra.mxu0 %v1121
        %2481 = vmatpush.msra.mxu0 %v993
        %2482 = vmatpush.msra.mxu0 %v865
        %2483 = vmatpush.msra.mxu0 %v737
        %2484 = vmatmul.f32.gmra.mxu0 %v1726
        %v2485 = vpop.f32.mrf.mxu0
        %v2486 = vadd.f32 0.0, %v2485
        %2487 = vdwg.mxu0
        %2488 = vmatpush.msra.mxu0 0.0
        %2489 = vmatpush.msra.mxu0 0.0
        %2490 = vmatpush.msra.mxu0 0.0
        %2491 = vmatpush.msra.mxu0 0.0
        %2492 = vmatpush.msra.mxu0 0.0
        %2493 = vmatpush.msra.mxu0 0.0
        %2494 = vmatpush.msra.mxu0 0.0
        %2495 = vmatpush.msra.mxu0 0.0
        %2496 = vmatpush.msra.mxu0 %v1634
        %2497 = vmatpush.msra.mxu0 %v1506
        %2498 = vmatpush.msra.mxu0 %v1378
        %2499 = vmatpush.msra.mxu0 %v1250
        %2500 = vmatpush.msra.mxu0 %v1122
        %2501 = vmatpush.msra.mxu0 %v994
        %2502 = vmatpush.msra.mxu0 %v866
        %2503 = vmatpush.msra.mxu0 %v738
        %2504 = vmatmul.f32.gmra.mxu0 %v1726
        %v2505 = vpop.f32.mrf.mxu0
        %v2506 = vadd.f32 0.0, %v2505
        %2507 = vdwg.mxu0
        %2508 = vmatpush.msra.mxu0 0.0
        %2509 = vmatpush.msra.mxu0 0.0
        %2510 = vmatpush.msra.mxu0 0.0
        %2511 = vmatpush.msra.mxu0 0.0
        %2512 = vmatpush.msra.mxu0 0.0
        %2513 = vmatpush.msra.mxu0 0.0
        %2514 = vmatpush.msra.mxu0 0.0
        %2515 = vmatpush.msra.mxu0 0.0
        %2516 = vmatpush.msra.mxu0 %v1635
        %2517 = vmatpush.msra.mxu0 %v1507
        %2518 = vmatpush.msra.mxu0 %v1379
        %2519 = vmatpush.msra.mxu0 %v1251
        %2520 = vmatpush.msra.mxu0 %v1123
        %2521 = vmatpush.msra.mxu0 %v995
        %2522 = vmatpush.msra.mxu0 %v867
        %2523 = vmatpush.msra.mxu0 %v739
        %2524 = vmatmul.f32.gmra.mxu0 %v1726
        %v2525 = vpop.f32.mrf.mxu0
        %v2526 = vadd.f32 0.0, %v2525
        %2527 = vdwg.mxu0
        %2528 = vmatpush.msra.mxu0 0.0
        %2529 = vmatpush.msra.mxu0 0.0
        %2530 = vmatpush.msra.mxu0 0.0
        %2531 = vmatpush.msra.mxu0 0.0
        %2532 = vmatpush.msra.mxu0 0.0
        %2533 = vmatpush.msra.mxu0 0.0
        %2534 = vmatpush.msra.mxu0 0.0
        %2535 = vmatpush.msra.mxu0 0.0
        %2536 = vmatpush.msra.mxu0 %v1636
        %2537 = vmatpush.msra.mxu0 %v1508
        %2538 = vmatpush.msra.mxu0 %v1380
        %2539 = vmatpush.msra.mxu0 %v1252
        %2540 = vmatpush.msra.mxu0 %v1124
        %2541 = vmatpush.msra.mxu0 %v996
        %2542 = vmatpush.msra.mxu0 %v868
        %2543 = vmatpush.msra.mxu0 %v740
        %2544 = vmatmul.f32.gmra.mxu0 %v1726
        %v2545 = vpop.f32.mrf.mxu0
        %v2546 = vadd.f32 0.0, %v2545
        %2547 = vdwg.mxu0
        %2548 = vmatpush.msra.mxu0 0.0
        %2549 = vmatpush.msra.mxu0 0.0
        %2550 = vmatpush.msra.mxu0 0.0
        %2551 = vmatpush.msra.mxu0 0.0
        %2552 = vmatpush.msra.mxu0 0.0
        %2553 = vmatpush.msra.mxu0 0.0
        %2554 = vmatpush.msra.mxu0 0.0
        %2555 = vmatpush.msra.mxu0 0.0
        %2556 = vmatpush.msra.mxu0 %v1637
        %2557 = vmatpush.msra.mxu0 %v1509
        %2558 = vmatpush.msra.mxu0 %v1381
        %2559 = vmatpush.msra.mxu0 %v1253
        %2560 = vmatpush.msra.mxu0 %v1125
        %2561 = vmatpush.msra.mxu0 %v997
        %2562 = vmatpush.msra.mxu0 %v869
        %2563 = vmatpush.msra.mxu0 %v741
        %2564 = vmatmul.f32.gmra.mxu0 %v1726
        %v2565 = vpop.f32.mrf.mxu0
        %v2566 = vadd.f32 0.0, %v2565
        %2567 = vdwg.mxu0
        %2568 = vmatpush.msra.mxu0 0.0
        %2569 = vmatpush.msra.mxu0 0.0
        %2570 = vmatpush.msra.mxu0 0.0
        %2571 = vmatpush.msra.mxu0 0.0
        %2572 = vmatpush.msra.mxu0 0.0
        %2573 = vmatpush.msra.mxu0 0.0
        %2574 = vmatpush.msra.mxu0 0.0
        %2575 = vmatpush.msra.mxu0 0.0
        %2576 = vmatpush.msra.mxu0 %v1638
        %2577 = vmatpush.msra.mxu0 %v1510
        %2578 = vmatpush.msra.mxu0 %v1382
        %2579 = vmatpush.msra.mxu0 %v1254
        %2580 = vmatpush.msra.mxu0 %v1126
        %2581 = vmatpush.msra.mxu0 %v998
        %2582 = vmatpush.msra.mxu0 %v870
        %2583 = vmatpush.msra.mxu0 %v742
        %2584 = vmatmul.f32.gmra.mxu0 %v1726
        %v2585 = vpop.f32.mrf.mxu0
        %v2586 = vadd.f32 0.0, %v2585
        %2587 = vdwg.mxu0
        %2588 = vmatpush.msra.mxu0 0.0
        %2589 = vmatpush.msra.mxu0 0.0
        %2590 = vmatpush.msra.mxu0 0.0
        %2591 = vmatpush.msra.mxu0 0.0
        %2592 = vmatpush.msra.mxu0 0.0
        %2593 = vmatpush.msra.mxu0 0.0
        %2594 = vmatpush.msra.mxu0 0.0
        %2595 = vmatpush.msra.mxu0 0.0
        %2596 = vmatpush.msra.mxu0 %v1639
        %2597 = vmatpush.msra.mxu0 %v1511
        %2598 = vmatpush.msra.mxu0 %v1383
        %2599 = vmatpush.msra.mxu0 %v1255
        %2600 = vmatpush.msra.mxu0 %v1127
        %2601 = vmatpush.msra.mxu0 %v999
        %2602 = vmatpush.msra.mxu0 %v871
        %2603 = vmatpush.msra.mxu0 %v743
        %2604 = vmatmul.f32.gmra.mxu0 %v1726
        %v2605 = vpop.f32.mrf.mxu0
        %v2606 = vadd.f32 0.0, %v2605
        %2607 = vdwg.mxu0
        %2608 = vmatpush.msra.mxu0 0.0
        %2609 = vmatpush.msra.mxu0 0.0
        %2610 = vmatpush.msra.mxu0 0.0
        %2611 = vmatpush.msra.mxu0 0.0
        %2612 = vmatpush.msra.mxu0 0.0
        %2613 = vmatpush.msra.mxu0 0.0
        %2614 = vmatpush.msra.mxu0 0.0
        %2615 = vmatpush.msra.mxu0 0.0
        %2616 = vmatpush.msra.mxu0 %v1640
        %2617 = vmatpush.msra.mxu0 %v1512
        %2618 = vmatpush.msra.mxu0 %v1384
        %2619 = vmatpush.msra.mxu0 %v1256
        %2620 = vmatpush.msra.mxu0 %v1128
        %2621 = vmatpush.msra.mxu0 %v1000
        %2622 = vmatpush.msra.mxu0 %v872
        %2623 = vmatpush.msra.mxu0 %v744
        %2624 = vmatmul.f32.gmra.mxu0 %v1726
        %v2625 = vpop.f32.mrf.mxu0
        %v2626 = vadd.f32 0.0, %v2625
        %2627 = vdwg.mxu0
        %2628 = vmatpush.msra.mxu0 0.0
        %2629 = vmatpush.msra.mxu0 0.0
        %2630 = vmatpush.msra.mxu0 0.0
        %2631 = vmatpush.msra.mxu0 0.0
        %2632 = vmatpush.msra.mxu0 0.0
        %2633 = vmatpush.msra.mxu0 0.0
        %2634 = vmatpush.msra.mxu0 0.0
        %2635 = vmatpush.msra.mxu0 0.0
        %2636 = vmatpush.msra.mxu0 %v1641
        %2637 = vmatpush.msra.mxu0 %v1513
        %2638 = vmatpush.msra.mxu0 %v1385
        %2639 = vmatpush.msra.mxu0 %v1257
        %2640 = vmatpush.msra.mxu0 %v1129
        %2641 = vmatpush.msra.mxu0 %v1001
        %2642 = vmatpush.msra.mxu0 %v873
        %2643 = vmatpush.msra.mxu0 %v745
        %2644 = vmatmul.f32.gmra.mxu0 %v1726
        %v2645 = vpop.f32.mrf.mxu0
        %v2646 = vadd.f32 0.0, %v2645
        %2647 = vdwg.mxu0
        %2648 = vmatpush.msra.mxu0 0.0
        %2649 = vmatpush.msra.mxu0 0.0
        %2650 = vmatpush.msra.mxu0 0.0
        %2651 = vmatpush.msra.mxu0 0.0
        %2652 = vmatpush.msra.mxu0 0.0
        %2653 = vmatpush.msra.mxu0 0.0
        %2654 = vmatpush.msra.mxu0 0.0
        %2655 = vmatpush.msra.mxu0 0.0
        %2656 = vmatpush.msra.mxu0 %v1642
        %2657 = vmatpush.msra.mxu0 %v1514
        %2658 = vmatpush.msra.mxu0 %v1386
        %2659 = vmatpush.msra.mxu0 %v1258
        %2660 = vmatpush.msra.mxu0 %v1130
        %2661 = vmatpush.msra.mxu0 %v1002
        %2662 = vmatpush.msra.mxu0 %v874
        %2663 = vmatpush.msra.mxu0 %v746
        %2664 = vmatmul.f32.gmra.mxu0 %v1726
        %v2665 = vpop.f32.mrf.mxu0
        %v2666 = vadd.f32 0.0, %v2665
        %2667 = vdwg.mxu0
        %2668 = vmatpush.msra.mxu0 0.0
        %2669 = vmatpush.msra.mxu0 0.0
        %2670 = vmatpush.msra.mxu0 0.0
        %2671 = vmatpush.msra.mxu0 0.0
        %2672 = vmatpush.msra.mxu0 0.0
        %2673 = vmatpush.msra.mxu0 0.0
        %2674 = vmatpush.msra.mxu0 0.0
        %2675 = vmatpush.msra.mxu0 0.0
        %2676 = vmatpush.msra.mxu0 %v1643
        %2677 = vmatpush.msra.mxu0 %v1515
        %2678 = vmatpush.msra.mxu0 %v1387
        %2679 = vmatpush.msra.mxu0 %v1259
        %2680 = vmatpush.msra.mxu0 %v1131
        %2681 = vmatpush.msra.mxu0 %v1003
        %2682 = vmatpush.msra.mxu0 %v875
        %2683 = vmatpush.msra.mxu0 %v747
        %2684 = vmatmul.f32.gmra.mxu0 %v1726
        %v2685 = vpop.f32.mrf.mxu0
        %v2686 = vadd.f32 0.0, %v2685
        %2687 = vdwg.mxu0
        %2688 = vmatpush.msra.mxu0 0.0
        %2689 = vmatpush.msra.mxu0 0.0
        %2690 = vmatpush.msra.mxu0 0.0
        %2691 = vmatpush.msra.mxu0 0.0
        %2692 = vmatpush.msra.mxu0 0.0
        %2693 = vmatpush.msra.mxu0 0.0
        %2694 = vmatpush.msra.mxu0 0.0
        %2695 = vmatpush.msra.mxu0 0.0
        %2696 = vmatpush.msra.mxu0 %v1644
        %2697 = vmatpush.msra.mxu0 %v1516
        %2698 = vmatpush.msra.mxu0 %v1388
        %2699 = vmatpush.msra.mxu0 %v1260
        %2700 = vmatpush.msra.mxu0 %v1132
        %2701 = vmatpush.msra.mxu0 %v1004
        %2702 = vmatpush.msra.mxu0 %v876
        %2703 = vmatpush.msra.mxu0 %v748
        %2704 = vmatmul.f32.gmra.mxu0 %v1726
        %v2705 = vpop.f32.mrf.mxu0
        %v2706 = vadd.f32 0.0, %v2705
        %2707 = vdwg.mxu0
        %2708 = vmatpush.msra.mxu0 0.0
        %2709 = vmatpush.msra.mxu0 0.0
        %2710 = vmatpush.msra.mxu0 0.0
        %2711 = vmatpush.msra.mxu0 0.0
        %2712 = vmatpush.msra.mxu0 0.0
        %2713 = vmatpush.msra.mxu0 0.0
        %2714 = vmatpush.msra.mxu0 0.0
        %2715 = vmatpush.msra.mxu0 0.0
        %2716 = vmatpush.msra.mxu0 %v1645
        %2717 = vmatpush.msra.mxu0 %v1517
        %2718 = vmatpush.msra.mxu0 %v1389
        %2719 = vmatpush.msra.mxu0 %v1261
        %2720 = vmatpush.msra.mxu0 %v1133
        %2721 = vmatpush.msra.mxu0 %v1005
        %2722 = vmatpush.msra.mxu0 %v877
        %2723 = vmatpush.msra.mxu0 %v749
        %2724 = vmatmul.f32.gmra.mxu0 %v1726
        %v2725 = vpop.f32.mrf.mxu0
        %v2726 = vadd.f32 0.0, %v2725
        %2727 = vdwg.mxu0
        %2728 = vmatpush.msra.mxu0 0.0
        %2729 = vmatpush.msra.mxu0 0.0
        %2730 = vmatpush.msra.mxu0 0.0
        %2731 = vmatpush.msra.mxu0 0.0
        %2732 = vmatpush.msra.mxu0 0.0
        %2733 = vmatpush.msra.mxu0 0.0
        %2734 = vmatpush.msra.mxu0 0.0
        %2735 = vmatpush.msra.mxu0 0.0
        %2736 = vmatpush.msra.mxu0 %v1646
        %2737 = vmatpush.msra.mxu0 %v1518
        %2738 = vmatpush.msra.mxu0 %v1390
        %2739 = vmatpush.msra.mxu0 %v1262
        %2740 = vmatpush.msra.mxu0 %v1134
        %2741 = vmatpush.msra.mxu0 %v1006
        %2742 = vmatpush.msra.mxu0 %v878
        %2743 = vmatpush.msra.mxu0 %v750
        %2744 = vmatmul.f32.gmra.mxu0 %v1726
        %v2745 = vpop.f32.mrf.mxu0
        %v2746 = vadd.f32 0.0, %v2745
        %2747 = vdwg.mxu0
        %2748 = vmatpush.msra.mxu0 0.0
        %2749 = vmatpush.msra.mxu0 0.0
        %2750 = vmatpush.msra.mxu0 0.0
        %2751 = vmatpush.msra.mxu0 0.0
        %2752 = vmatpush.msra.mxu0 0.0
        %2753 = vmatpush.msra.mxu0 0.0
        %2754 = vmatpush.msra.mxu0 0.0
        %2755 = vmatpush.msra.mxu0 0.0
        %2756 = vmatpush.msra.mxu0 %v1647
        %2757 = vmatpush.msra.mxu0 %v1519
        %2758 = vmatpush.msra.mxu0 %v1391
        %2759 = vmatpush.msra.mxu0 %v1263
        %2760 = vmatpush.msra.mxu0 %v1135
        %2761 = vmatpush.msra.mxu0 %v1007
        %2762 = vmatpush.msra.mxu0 %v879
        %2763 = vmatpush.msra.mxu0 %v751
        %2764 = vmatmul.f32.gmra.mxu0 %v1726
        %v2765 = vpop.f32.mrf.mxu0
        %v2766 = vadd.f32 0.0, %v2765
        %2767 = vdwg.mxu0
        %2768 = vmatpush.msra.mxu0 0.0
        %2769 = vmatpush.msra.mxu0 0.0
        %2770 = vmatpush.msra.mxu0 0.0
        %2771 = vmatpush.msra.mxu0 0.0
        %2772 = vmatpush.msra.mxu0 0.0
        %2773 = vmatpush.msra.mxu0 0.0
        %2774 = vmatpush.msra.mxu0 0.0
        %2775 = vmatpush.msra.mxu0 0.0
        %2776 = vmatpush.msra.mxu0 %v1648
        %2777 = vmatpush.msra.mxu0 %v1520
        %2778 = vmatpush.msra.mxu0 %v1392
        %2779 = vmatpush.msra.mxu0 %v1264
        %2780 = vmatpush.msra.mxu0 %v1136
        %2781 = vmatpush.msra.mxu0 %v1008
        %2782 = vmatpush.msra.mxu0 %v880
        %2783 = vmatpush.msra.mxu0 %v752
        %2784 = vmatmul.f32.gmra.mxu0 %v1726
        %v2785 = vpop.f32.mrf.mxu0
        %v2786 = vadd.f32 0.0, %v2785
        %2787 = vdwg.mxu0
        %2788 = vmatpush.msra.mxu0 0.0
        %2789 = vmatpush.msra.mxu0 0.0
        %2790 = vmatpush.msra.mxu0 0.0
        %2791 = vmatpush.msra.mxu0 0.0
        %2792 = vmatpush.msra.mxu0 0.0
        %2793 = vmatpush.msra.mxu0 0.0
        %2794 = vmatpush.msra.mxu0 0.0
        %2795 = vmatpush.msra.mxu0 0.0
        %2796 = vmatpush.msra.mxu0 %v1649
        %2797 = vmatpush.msra.mxu0 %v1521
        %2798 = vmatpush.msra.mxu0 %v1393
        %2799 = vmatpush.msra.mxu0 %v1265
        %2800 = vmatpush.msra.mxu0 %v1137
        %2801 = vmatpush.msra.mxu0 %v1009
        %2802 = vmatpush.msra.mxu0 %v881
        %2803 = vmatpush.msra.mxu0 %v753
        %2804 = vmatmul.f32.gmra.mxu0 %v1726
        %v2805 = vpop.f32.mrf.mxu0
        %v2806 = vadd.f32 0.0, %v2805
        %2807 = vdwg.mxu0
        %2808 = vmatpush.msra.mxu0 0.0
        %2809 = vmatpush.msra.mxu0 0.0
        %2810 = vmatpush.msra.mxu0 0.0
        %2811 = vmatpush.msra.mxu0 0.0
        %2812 = vmatpush.msra.mxu0 0.0
        %2813 = vmatpush.msra.mxu0 0.0
        %2814 = vmatpush.msra.mxu0 0.0
        %2815 = vmatpush.msra.mxu0 0.0
        %2816 = vmatpush.msra.mxu0 %v1650
        %2817 = vmatpush.msra.mxu0 %v1522
        %2818 = vmatpush.msra.mxu0 %v1394
        %2819 = vmatpush.msra.mxu0 %v1266
        %2820 = vmatpush.msra.mxu0 %v1138
        %2821 = vmatpush.msra.mxu0 %v1010
        %2822 = vmatpush.msra.mxu0 %v882
        %2823 = vmatpush.msra.mxu0 %v754
        %2824 = vmatmul.f32.gmra.mxu0 %v1726
        %v2825 = vpop.f32.mrf.mxu0
        %v2826 = vadd.f32 0.0, %v2825
        %2827 = vdwg.mxu0
        %2828 = vmatpush.msra.mxu0 0.0
        %2829 = vmatpush.msra.mxu0 0.0
        %2830 = vmatpush.msra.mxu0 0.0
        %2831 = vmatpush.msra.mxu0 0.0
        %2832 = vmatpush.msra.mxu0 0.0
        %2833 = vmatpush.msra.mxu0 0.0
        %2834 = vmatpush.msra.mxu0 0.0
        %2835 = vmatpush.msra.mxu0 0.0
        %2836 = vmatpush.msra.mxu0 %v1651
        %2837 = vmatpush.msra.mxu0 %v1523
        %2838 = vmatpush.msra.mxu0 %v1395
        %2839 = vmatpush.msra.mxu0 %v1267
        %2840 = vmatpush.msra.mxu0 %v1139
        %2841 = vmatpush.msra.mxu0 %v1011
        %2842 = vmatpush.msra.mxu0 %v883
        %2843 = vmatpush.msra.mxu0 %v755
        %2844 = vmatmul.f32.gmra.mxu0 %v1726
        %v2845 = vpop.f32.mrf.mxu0
        %v2846 = vadd.f32 0.0, %v2845
        %2847 = vdwg.mxu0
        %2848 = vmatpush.msra.mxu0 0.0
        %2849 = vmatpush.msra.mxu0 0.0
        %2850 = vmatpush.msra.mxu0 0.0
        %2851 = vmatpush.msra.mxu0 0.0
        %2852 = vmatpush.msra.mxu0 0.0
        %2853 = vmatpush.msra.mxu0 0.0
        %2854 = vmatpush.msra.mxu0 0.0
        %2855 = vmatpush.msra.mxu0 0.0
        %2856 = vmatpush.msra.mxu0 %v1652
        %2857 = vmatpush.msra.mxu0 %v1524
        %2858 = vmatpush.msra.mxu0 %v1396
        %2859 = vmatpush.msra.mxu0 %v1268
        %2860 = vmatpush.msra.mxu0 %v1140
        %2861 = vmatpush.msra.mxu0 %v1012
        %2862 = vmatpush.msra.mxu0 %v884
        %2863 = vmatpush.msra.mxu0 %v756
        %2864 = vmatmul.f32.gmra.mxu0 %v1726
        %v2865 = vpop.f32.mrf.mxu0
        %v2866 = vadd.f32 0.0, %v2865
        %2867 = vdwg.mxu0
        %2868 = vmatpush.msra.mxu0 0.0
        %2869 = vmatpush.msra.mxu0 0.0
        %2870 = vmatpush.msra.mxu0 0.0
        %2871 = vmatpush.msra.mxu0 0.0
        %2872 = vmatpush.msra.mxu0 0.0
        %2873 = vmatpush.msra.mxu0 0.0
        %2874 = vmatpush.msra.mxu0 0.0
        %2875 = vmatpush.msra.mxu0 0.0
        %2876 = vmatpush.msra.mxu0 %v1653
        %2877 = vmatpush.msra.mxu0 %v1525
        %2878 = vmatpush.msra.mxu0 %v1397
        %2879 = vmatpush.msra.mxu0 %v1269
        %2880 = vmatpush.msra.mxu0 %v1141
        %2881 = vmatpush.msra.mxu0 %v1013
        %2882 = vmatpush.msra.mxu0 %v885
        %2883 = vmatpush.msra.mxu0 %v757
        %2884 = vmatmul.f32.gmra.mxu0 %v1726
        %v2885 = vpop.f32.mrf.mxu0
        %v2886 = vadd.f32 0.0, %v2885
        %2887 = vdwg.mxu0
        %2888 = vmatpush.msra.mxu0 0.0
        %2889 = vmatpush.msra.mxu0 0.0
        %2890 = vmatpush.msra.mxu0 0.0
        %2891 = vmatpush.msra.mxu0 0.0
        %2892 = vmatpush.msra.mxu0 0.0
        %2893 = vmatpush.msra.mxu0 0.0
        %2894 = vmatpush.msra.mxu0 0.0
        %2895 = vmatpush.msra.mxu0 0.0
        %2896 = vmatpush.msra.mxu0 %v1654
        %2897 = vmatpush.msra.mxu0 %v1526
        %2898 = vmatpush.msra.mxu0 %v1398
        %2899 = vmatpush.msra.mxu0 %v1270
        %2900 = vmatpush.msra.mxu0 %v1142
        %2901 = vmatpush.msra.mxu0 %v1014
        %2902 = vmatpush.msra.mxu0 %v886
        %2903 = vmatpush.msra.mxu0 %v758
        %2904 = vmatmul.f32.gmra.mxu0 %v1726
        %v2905 = vpop.f32.mrf.mxu0
        %v2906 = vadd.f32 0.0, %v2905
        %2907 = vdwg.mxu0
        %2908 = vmatpush.msra.mxu0 0.0
        %2909 = vmatpush.msra.mxu0 0.0
        %2910 = vmatpush.msra.mxu0 0.0
        %2911 = vmatpush.msra.mxu0 0.0
        %2912 = vmatpush.msra.mxu0 0.0
        %2913 = vmatpush.msra.mxu0 0.0
        %2914 = vmatpush.msra.mxu0 0.0
        %2915 = vmatpush.msra.mxu0 0.0
        %2916 = vmatpush.msra.mxu0 %v1655
        %2917 = vmatpush.msra.mxu0 %v1527
        %2918 = vmatpush.msra.mxu0 %v1399
        %2919 = vmatpush.msra.mxu0 %v1271
        %2920 = vmatpush.msra.mxu0 %v1143
        %2921 = vmatpush.msra.mxu0 %v1015
        %2922 = vmatpush.msra.mxu0 %v887
        %2923 = vmatpush.msra.mxu0 %v759
        %2924 = vmatmul.f32.gmra.mxu0 %v1726
        %v2925 = vpop.f32.mrf.mxu0
        %v2926 = vadd.f32 0.0, %v2925
        %2927 = vdwg.mxu0
        %2928 = vmatpush.msra.mxu0 0.0
        %2929 = vmatpush.msra.mxu0 0.0
        %2930 = vmatpush.msra.mxu0 0.0
        %2931 = vmatpush.msra.mxu0 0.0
        %2932 = vmatpush.msra.mxu0 0.0
        %2933 = vmatpush.msra.mxu0 0.0
        %2934 = vmatpush.msra.mxu0 0.0
        %2935 = vmatpush.msra.mxu0 0.0
        %2936 = vmatpush.msra.mxu0 %v1656
        %2937 = vmatpush.msra.mxu0 %v1528
        %2938 = vmatpush.msra.mxu0 %v1400
        %2939 = vmatpush.msra.mxu0 %v1272
        %2940 = vmatpush.msra.mxu0 %v1144
        %2941 = vmatpush.msra.mxu0 %v1016
        %2942 = vmatpush.msra.mxu0 %v888
        %2943 = vmatpush.msra.mxu0 %v760
        %2944 = vmatmul.f32.gmra.mxu0 %v1726
        %v2945 = vpop.f32.mrf.mxu0
        %v2946 = vadd.f32 0.0, %v2945
        %2947 = vdwg.mxu0
        %2948 = vmatpush.msra.mxu0 0.0
        %2949 = vmatpush.msra.mxu0 0.0
        %2950 = vmatpush.msra.mxu0 0.0
        %2951 = vmatpush.msra.mxu0 0.0
        %2952 = vmatpush.msra.mxu0 0.0
        %2953 = vmatpush.msra.mxu0 0.0
        %2954 = vmatpush.msra.mxu0 0.0
        %2955 = vmatpush.msra.mxu0 0.0
        %2956 = vmatpush.msra.mxu0 %v1657
        %2957 = vmatpush.msra.mxu0 %v1529
        %2958 = vmatpush.msra.mxu0 %v1401
        %2959 = vmatpush.msra.mxu0 %v1273
        %2960 = vmatpush.msra.mxu0 %v1145
        %2961 = vmatpush.msra.mxu0 %v1017
        %2962 = vmatpush.msra.mxu0 %v889
        %2963 = vmatpush.msra.mxu0 %v761
        %2964 = vmatmul.f32.gmra.mxu0 %v1726
        %v2965 = vpop.f32.mrf.mxu0
        %v2966 = vadd.f32 0.0, %v2965
        %2967 = vdwg.mxu0
        %2968 = vmatpush.msra.mxu0 0.0
        %2969 = vmatpush.msra.mxu0 0.0
        %2970 = vmatpush.msra.mxu0 0.0
        %2971 = vmatpush.msra.mxu0 0.0
        %2972 = vmatpush.msra.mxu0 0.0
        %2973 = vmatpush.msra.mxu0 0.0
        %2974 = vmatpush.msra.mxu0 0.0
        %2975 = vmatpush.msra.mxu0 0.0
        %2976 = vmatpush.msra.mxu0 %v1658
        %2977 = vmatpush.msra.mxu0 %v1530
        %2978 = vmatpush.msra.mxu0 %v1402
        %2979 = vmatpush.msra.mxu0 %v1274
        %2980 = vmatpush.msra.mxu0 %v1146
        %2981 = vmatpush.msra.mxu0 %v1018
        %2982 = vmatpush.msra.mxu0 %v890
        %2983 = vmatpush.msra.mxu0 %v762
        %2984 = vmatmul.f32.gmra.mxu0 %v1726
        %v2985 = vpop.f32.mrf.mxu0
        %v2986 = vadd.f32 0.0, %v2985
        %2987 = vdwg.mxu0
        %2988 = vmatpush.msra.mxu0 0.0
        %2989 = vmatpush.msra.mxu0 0.0
        %2990 = vmatpush.msra.mxu0 0.0
        %2991 = vmatpush.msra.mxu0 0.0
        %2992 = vmatpush.msra.mxu0 0.0
        %2993 = vmatpush.msra.mxu0 0.0
        %2994 = vmatpush.msra.mxu0 0.0
        %2995 = vmatpush.msra.mxu0 0.0
        %2996 = vmatpush.msra.mxu0 %v1659
        %2997 = vmatpush.msra.mxu0 %v1531
        %2998 = vmatpush.msra.mxu0 %v1403
        %2999 = vmatpush.msra.mxu0 %v1275
        %3000 = vmatpush.msra.mxu0 %v1147
        %3001 = vmatpush.msra.mxu0 %v1019
        %3002 = vmatpush.msra.mxu0 %v891
        %3003 = vmatpush.msra.mxu0 %v763
        %3004 = vmatmul.f32.gmra.mxu0 %v1726
        %v3005 = vpop.f32.mrf.mxu0
        %v3006 = vadd.f32 0.0, %v3005
        %3007 = vdwg.mxu0
        %3008 = vmatpush.msra.mxu0 0.0
        %3009 = vmatpush.msra.mxu0 0.0
        %3010 = vmatpush.msra.mxu0 0.0
        %3011 = vmatpush.msra.mxu0 0.0
        %3012 = vmatpush.msra.mxu0 0.0
        %3013 = vmatpush.msra.mxu0 0.0
        %3014 = vmatpush.msra.mxu0 0.0
        %3015 = vmatpush.msra.mxu0 0.0
        %3016 = vmatpush.msra.mxu0 %v1660
        %3017 = vmatpush.msra.mxu0 %v1532
        %3018 = vmatpush.msra.mxu0 %v1404
        %3019 = vmatpush.msra.mxu0 %v1276
        %3020 = vmatpush.msra.mxu0 %v1148
        %3021 = vmatpush.msra.mxu0 %v1020
        %3022 = vmatpush.msra.mxu0 %v892
        %3023 = vmatpush.msra.mxu0 %v764
        %3024 = vmatmul.f32.gmra.mxu0 %v1726
        %v3025 = vpop.f32.mrf.mxu0
        %v3026 = vadd.f32 0.0, %v3025
        %3027 = vdwg.mxu0
        %3028 = vmatpush.msra.mxu0 0.0
        %3029 = vmatpush.msra.mxu0 0.0
        %3030 = vmatpush.msra.mxu0 0.0
        %3031 = vmatpush.msra.mxu0 0.0
        %3032 = vmatpush.msra.mxu0 0.0
        %3033 = vmatpush.msra.mxu0 0.0
        %3034 = vmatpush.msra.mxu0 0.0
        %3035 = vmatpush.msra.mxu0 0.0
        %3036 = vmatpush.msra.mxu0 %v1661
        %3037 = vmatpush.msra.mxu0 %v1533
        %3038 = vmatpush.msra.mxu0 %v1405
        %3039 = vmatpush.msra.mxu0 %v1277
        %3040 = vmatpush.msra.mxu0 %v1149
        %3041 = vmatpush.msra.mxu0 %v1021
        %3042 = vmatpush.msra.mxu0 %v893
        %3043 = vmatpush.msra.mxu0 %v765
        %3044 = vmatmul.f32.gmra.mxu0 %v1726
        %v3045 = vpop.f32.mrf.mxu0
        %v3046 = vadd.f32 0.0, %v3045
        %3047 = vdwg.mxu0
        %3048 = vmatpush.msra.mxu0 0.0
        %3049 = vmatpush.msra.mxu0 0.0
        %3050 = vmatpush.msra.mxu0 0.0
        %3051 = vmatpush.msra.mxu0 0.0
        %3052 = vmatpush.msra.mxu0 0.0
        %3053 = vmatpush.msra.mxu0 0.0
        %3054 = vmatpush.msra.mxu0 0.0
        %3055 = vmatpush.msra.mxu0 0.0
        %3056 = vmatpush.msra.mxu0 %v1662
        %3057 = vmatpush.msra.mxu0 %v1534
        %3058 = vmatpush.msra.mxu0 %v1406
        %3059 = vmatpush.msra.mxu0 %v1278
        %3060 = vmatpush.msra.mxu0 %v1150
        %3061 = vmatpush.msra.mxu0 %v1022
        %3062 = vmatpush.msra.mxu0 %v894
        %3063 = vmatpush.msra.mxu0 %v766
        %3064 = vmatmul.f32.gmra.mxu0 %v1726
        %v3065 = vpop.f32.mrf.mxu0
        %v3066 = vadd.f32 0.0, %v3065
        %3067 = vdwg.mxu0
        %3068 = vmatpush.msra.mxu0 0.0
        %3069 = vmatpush.msra.mxu0 0.0
        %3070 = vmatpush.msra.mxu0 0.0
        %3071 = vmatpush.msra.mxu0 0.0
        %3072 = vmatpush.msra.mxu0 0.0
        %3073 = vmatpush.msra.mxu0 0.0
        %3074 = vmatpush.msra.mxu0 0.0
        %3075 = vmatpush.msra.mxu0 0.0
        %3076 = vmatpush.msra.mxu0 %v1663
        %3077 = vmatpush.msra.mxu0 %v1535
        %3078 = vmatpush.msra.mxu0 %v1407
        %3079 = vmatpush.msra.mxu0 %v1279
        %3080 = vmatpush.msra.mxu0 %v1151
        %3081 = vmatpush.msra.mxu0 %v1023
        %3082 = vmatpush.msra.mxu0 %v895
        %3083 = vmatpush.msra.mxu0 %v767
        %3084 = vmatmul.f32.gmra.mxu0 %v1726
        %v3085 = vpop.f32.mrf.mxu0
        %v3086 = vadd.f32 0.0, %v3085
        %3087 = vdwg.mxu0
        %3088 = vmatpush.msra.mxu0 0.0
        %3089 = vmatpush.msra.mxu0 0.0
        %3090 = vmatpush.msra.mxu0 0.0
        %3091 = vmatpush.msra.mxu0 0.0
        %3092 = vmatpush.msra.mxu0 0.0
        %3093 = vmatpush.msra.mxu0 0.0
        %3094 = vmatpush.msra.mxu0 0.0
        %3095 = vmatpush.msra.mxu0 0.0
        %3096 = vmatpush.msra.mxu0 %v1664
        %3097 = vmatpush.msra.mxu0 %v1536
        %3098 = vmatpush.msra.mxu0 %v1408
        %3099 = vmatpush.msra.mxu0 %v1280
        %3100 = vmatpush.msra.mxu0 %v1152
        %3101 = vmatpush.msra.mxu0 %v1024
        %3102 = vmatpush.msra.mxu0 %v896
        %3103 = vmatpush.msra.mxu0 %v768
        %3104 = vmatmul.f32.gmra.mxu0 %v1726
        %v3105 = vpop.f32.mrf.mxu0
        %v3106 = vadd.f32 0.0, %v3105
        %3107 = vdwg.mxu0
        %3108 = vmatpush.msra.mxu0 0.0
        %3109 = vmatpush.msra.mxu0 0.0
        %3110 = vmatpush.msra.mxu0 0.0
        %3111 = vmatpush.msra.mxu0 0.0
        %3112 = vmatpush.msra.mxu0 0.0
        %3113 = vmatpush.msra.mxu0 0.0
        %3114 = vmatpush.msra.mxu0 0.0
        %3115 = vmatpush.msra.mxu0 0.0
        %3116 = vmatpush.msra.mxu0 %v1665
        %3117 = vmatpush.msra.mxu0 %v1537
        %3118 = vmatpush.msra.mxu0 %v1409
        %3119 = vmatpush.msra.mxu0 %v1281
        %3120 = vmatpush.msra.mxu0 %v1153
        %3121 = vmatpush.msra.mxu0 %v1025
        %3122 = vmatpush.msra.mxu0 %v897
        %3123 = vmatpush.msra.mxu0 %v769
        %3124 = vmatmul.f32.gmra.mxu0 %v1726
        %v3125 = vpop.f32.mrf.mxu0
        %v3126 = vadd.f32 0.0, %v3125
        %3127 = vdwg.mxu0
        %3128 = vmatpush.msra.mxu0 0.0
        %3129 = vmatpush.msra.mxu0 0.0
        %3130 = vmatpush.msra.mxu0 0.0
        %3131 = vmatpush.msra.mxu0 0.0
        %3132 = vmatpush.msra.mxu0 0.0
        %3133 = vmatpush.msra.mxu0 0.0
        %3134 = vmatpush.msra.mxu0 0.0
        %3135 = vmatpush.msra.mxu0 0.0
        %3136 = vmatpush.msra.mxu0 %v1666
        %3137 = vmatpush.msra.mxu0 %v1538
        %3138 = vmatpush.msra.mxu0 %v1410
        %3139 = vmatpush.msra.mxu0 %v1282
        %3140 = vmatpush.msra.mxu0 %v1154
        %3141 = vmatpush.msra.mxu0 %v1026
        %3142 = vmatpush.msra.mxu0 %v898
        %3143 = vmatpush.msra.mxu0 %v770
        %3144 = vmatmul.f32.gmra.mxu0 %v1726
        %v3145 = vpop.f32.mrf.mxu0
        %v3146 = vadd.f32 0.0, %v3145
        %3147 = vdwg.mxu0
        %3148 = vmatpush.msra.mxu0 0.0
        %3149 = vmatpush.msra.mxu0 0.0
        %3150 = vmatpush.msra.mxu0 0.0
        %3151 = vmatpush.msra.mxu0 0.0
        %3152 = vmatpush.msra.mxu0 0.0
        %3153 = vmatpush.msra.mxu0 0.0
        %3154 = vmatpush.msra.mxu0 0.0
        %3155 = vmatpush.msra.mxu0 0.0
        %3156 = vmatpush.msra.mxu0 %v1667
        %3157 = vmatpush.msra.mxu0 %v1539
        %3158 = vmatpush.msra.mxu0 %v1411
        %3159 = vmatpush.msra.mxu0 %v1283
        %3160 = vmatpush.msra.mxu0 %v1155
        %3161 = vmatpush.msra.mxu0 %v1027
        %3162 = vmatpush.msra.mxu0 %v899
        %3163 = vmatpush.msra.mxu0 %v771
        %3164 = vmatmul.f32.gmra.mxu0 %v1726
        %v3165 = vpop.f32.mrf.mxu0
        %v3166 = vadd.f32 0.0, %v3165
        %3167 = vdwg.mxu0
        %3168 = vmatpush.msra.mxu0 0.0
        %3169 = vmatpush.msra.mxu0 0.0
        %3170 = vmatpush.msra.mxu0 0.0
        %3171 = vmatpush.msra.mxu0 0.0
        %3172 = vmatpush.msra.mxu0 0.0
        %3173 = vmatpush.msra.mxu0 0.0
        %3174 = vmatpush.msra.mxu0 0.0
        %3175 = vmatpush.msra.mxu0 0.0
        %3176 = vmatpush.msra.mxu0 %v1668
        %3177 = vmatpush.msra.mxu0 %v1540
        %3178 = vmatpush.msra.mxu0 %v1412
        %3179 = vmatpush.msra.mxu0 %v1284
        %3180 = vmatpush.msra.mxu0 %v1156
        %3181 = vmatpush.msra.mxu0 %v1028
        %3182 = vmatpush.msra.mxu0 %v900
        %3183 = vmatpush.msra.mxu0 %v772
        %3184 = vmatmul.f32.gmra.mxu0 %v1726
        %v3185 = vpop.f32.mrf.mxu0
        %v3186 = vadd.f32 0.0, %v3185
        %3187 = vdwg.mxu0
        %3188 = vmatpush.msra.mxu0 0.0
        %3189 = vmatpush.msra.mxu0 0.0
        %3190 = vmatpush.msra.mxu0 0.0
        %3191 = vmatpush.msra.mxu0 0.0
        %3192 = vmatpush.msra.mxu0 0.0
        %3193 = vmatpush.msra.mxu0 0.0
        %3194 = vmatpush.msra.mxu0 0.0
        %3195 = vmatpush.msra.mxu0 0.0
        %3196 = vmatpush.msra.mxu0 %v1669
        %3197 = vmatpush.msra.mxu0 %v1541
        %3198 = vmatpush.msra.mxu0 %v1413
        %3199 = vmatpush.msra.mxu0 %v1285
        %3200 = vmatpush.msra.mxu0 %v1157
        %3201 = vmatpush.msra.mxu0 %v1029
        %3202 = vmatpush.msra.mxu0 %v901
        %3203 = vmatpush.msra.mxu0 %v773
        %3204 = vmatmul.f32.gmra.mxu0 %v1726
        %v3205 = vpop.f32.mrf.mxu0
        %v3206 = vadd.f32 0.0, %v3205
        %3207 = vdwg.mxu0
        %3208 = vmatpush.msra.mxu0 0.0
        %3209 = vmatpush.msra.mxu0 0.0
        %3210 = vmatpush.msra.mxu0 0.0
        %3211 = vmatpush.msra.mxu0 0.0
        %3212 = vmatpush.msra.mxu0 0.0
        %3213 = vmatpush.msra.mxu0 0.0
        %3214 = vmatpush.msra.mxu0 0.0
        %3215 = vmatpush.msra.mxu0 0.0
        %3216 = vmatpush.msra.mxu0 %v1670
        %3217 = vmatpush.msra.mxu0 %v1542
        %3218 = vmatpush.msra.mxu0 %v1414
        %3219 = vmatpush.msra.mxu0 %v1286
        %3220 = vmatpush.msra.mxu0 %v1158
        %3221 = vmatpush.msra.mxu0 %v1030
        %3222 = vmatpush.msra.mxu0 %v902
        %3223 = vmatpush.msra.mxu0 %v774
        %3224 = vmatmul.f32.gmra.mxu0 %v1726
        %v3225 = vpop.f32.mrf.mxu0
        %v3226 = vadd.f32 0.0, %v3225
        %3227 = vdwg.mxu0
        %3228 = vmatpush.msra.mxu0 0.0
        %3229 = vmatpush.msra.mxu0 0.0
        %3230 = vmatpush.msra.mxu0 0.0
        %3231 = vmatpush.msra.mxu0 0.0
        %3232 = vmatpush.msra.mxu0 0.0
        %3233 = vmatpush.msra.mxu0 0.0
        %3234 = vmatpush.msra.mxu0 0.0
        %3235 = vmatpush.msra.mxu0 0.0
        %3236 = vmatpush.msra.mxu0 %v1671
        %3237 = vmatpush.msra.mxu0 %v1543
        %3238 = vmatpush.msra.mxu0 %v1415
        %3239 = vmatpush.msra.mxu0 %v1287
        %3240 = vmatpush.msra.mxu0 %v1159
        %3241 = vmatpush.msra.mxu0 %v1031
        %3242 = vmatpush.msra.mxu0 %v903
        %3243 = vmatpush.msra.mxu0 %v775
        %3244 = vmatmul.f32.gmra.mxu0 %v1726
        %v3245 = vpop.f32.mrf.mxu0
        %v3246 = vadd.f32 0.0, %v3245
        %3247 = vdwg.mxu0
        %3248 = vmatpush.msra.mxu0 0.0
        %3249 = vmatpush.msra.mxu0 0.0
        %3250 = vmatpush.msra.mxu0 0.0
        %3251 = vmatpush.msra.mxu0 0.0
        %3252 = vmatpush.msra.mxu0 0.0
        %3253 = vmatpush.msra.mxu0 0.0
        %3254 = vmatpush.msra.mxu0 0.0
        %3255 = vmatpush.msra.mxu0 0.0
        %3256 = vmatpush.msra.mxu0 %v1672
        %3257 = vmatpush.msra.mxu0 %v1544
        %3258 = vmatpush.msra.mxu0 %v1416
        %3259 = vmatpush.msra.mxu0 %v1288
        %3260 = vmatpush.msra.mxu0 %v1160
        %3261 = vmatpush.msra.mxu0 %v1032
        %3262 = vmatpush.msra.mxu0 %v904
        %3263 = vmatpush.msra.mxu0 %v776
        %3264 = vmatmul.f32.gmra.mxu0 %v1726
        %v3265 = vpop.f32.mrf.mxu0
        %v3266 = vadd.f32 0.0, %v3265
        %3267 = vdwg.mxu0
        %3268 = vmatpush.msra.mxu0 0.0
        %3269 = vmatpush.msra.mxu0 0.0
        %3270 = vmatpush.msra.mxu0 0.0
        %3271 = vmatpush.msra.mxu0 0.0
        %3272 = vmatpush.msra.mxu0 0.0
        %3273 = vmatpush.msra.mxu0 0.0
        %3274 = vmatpush.msra.mxu0 0.0
        %3275 = vmatpush.msra.mxu0 0.0
        %3276 = vmatpush.msra.mxu0 %v1673
        %3277 = vmatpush.msra.mxu0 %v1545
        %3278 = vmatpush.msra.mxu0 %v1417
        %3279 = vmatpush.msra.mxu0 %v1289
        %3280 = vmatpush.msra.mxu0 %v1161
        %3281 = vmatpush.msra.mxu0 %v1033
        %3282 = vmatpush.msra.mxu0 %v905
        %3283 = vmatpush.msra.mxu0 %v777
        %3284 = vmatmul.f32.gmra.mxu0 %v1726
        %v3285 = vpop.f32.mrf.mxu0
        %v3286 = vadd.f32 0.0, %v3285
        %3287 = vdwg.mxu0
        %3288 = vmatpush.msra.mxu0 0.0
        %3289 = vmatpush.msra.mxu0 0.0
        %3290 = vmatpush.msra.mxu0 0.0
        %3291 = vmatpush.msra.mxu0 0.0
        %3292 = vmatpush.msra.mxu0 0.0
        %3293 = vmatpush.msra.mxu0 0.0
        %3294 = vmatpush.msra.mxu0 0.0
        %3295 = vmatpush.msra.mxu0 0.0
        %3296 = vmatpush.msra.mxu0 %v1674
        %3297 = vmatpush.msra.mxu0 %v1546
        %3298 = vmatpush.msra.mxu0 %v1418
        %3299 = vmatpush.msra.mxu0 %v1290
        %3300 = vmatpush.msra.mxu0 %v1162
        %3301 = vmatpush.msra.mxu0 %v1034
        %3302 = vmatpush.msra.mxu0 %v906
        %3303 = vmatpush.msra.mxu0 %v778
        %3304 = vmatmul.f32.gmra.mxu0 %v1726
        %v3305 = vpop.f32.mrf.mxu0
        %v3306 = vadd.f32 0.0, %v3305
        %3307 = vdwg.mxu0
        %3308 = vmatpush.msra.mxu0 0.0
        %3309 = vmatpush.msra.mxu0 0.0
        %3310 = vmatpush.msra.mxu0 0.0
        %3311 = vmatpush.msra.mxu0 0.0
        %3312 = vmatpush.msra.mxu0 0.0
        %3313 = vmatpush.msra.mxu0 0.0
        %3314 = vmatpush.msra.mxu0 0.0
        %3315 = vmatpush.msra.mxu0 0.0
        %3316 = vmatpush.msra.mxu0 %v1675
        %3317 = vmatpush.msra.mxu0 %v1547
        %3318 = vmatpush.msra.mxu0 %v1419
        %3319 = vmatpush.msra.mxu0 %v1291
        %3320 = vmatpush.msra.mxu0 %v1163
        %3321 = vmatpush.msra.mxu0 %v1035
        %3322 = vmatpush.msra.mxu0 %v907
        %3323 = vmatpush.msra.mxu0 %v779
        %3324 = vmatmul.f32.gmra.mxu0 %v1726
        %v3325 = vpop.f32.mrf.mxu0
        %v3326 = vadd.f32 0.0, %v3325
        %3327 = vdwg.mxu0
        %3328 = vmatpush.msra.mxu0 0.0
        %3329 = vmatpush.msra.mxu0 0.0
        %3330 = vmatpush.msra.mxu0 0.0
        %3331 = vmatpush.msra.mxu0 0.0
        %3332 = vmatpush.msra.mxu0 0.0
        %3333 = vmatpush.msra.mxu0 0.0
        %3334 = vmatpush.msra.mxu0 0.0
        %3335 = vmatpush.msra.mxu0 0.0
        %3336 = vmatpush.msra.mxu0 %v1676
        %3337 = vmatpush.msra.mxu0 %v1548
        %3338 = vmatpush.msra.mxu0 %v1420
        %3339 = vmatpush.msra.mxu0 %v1292
        %3340 = vmatpush.msra.mxu0 %v1164
        %3341 = vmatpush.msra.mxu0 %v1036
        %3342 = vmatpush.msra.mxu0 %v908
        %3343 = vmatpush.msra.mxu0 %v780
        %3344 = vmatmul.f32.gmra.mxu0 %v1726
        %v3345 = vpop.f32.mrf.mxu0
        %v3346 = vadd.f32 0.0, %v3345
        %3347 = vdwg.mxu0
        %3348 = vmatpush.msra.mxu0 0.0
        %3349 = vmatpush.msra.mxu0 0.0
        %3350 = vmatpush.msra.mxu0 0.0
        %3351 = vmatpush.msra.mxu0 0.0
        %3352 = vmatpush.msra.mxu0 0.0
        %3353 = vmatpush.msra.mxu0 0.0
        %3354 = vmatpush.msra.mxu0 0.0
        %3355 = vmatpush.msra.mxu0 0.0
        %3356 = vmatpush.msra.mxu0 %v1677
        %3357 = vmatpush.msra.mxu0 %v1549
        %3358 = vmatpush.msra.mxu0 %v1421
        %3359 = vmatpush.msra.mxu0 %v1293
        %3360 = vmatpush.msra.mxu0 %v1165
        %3361 = vmatpush.msra.mxu0 %v1037
        %3362 = vmatpush.msra.mxu0 %v909
        %3363 = vmatpush.msra.mxu0 %v781
        %3364 = vmatmul.f32.gmra.mxu0 %v1726
        %v3365 = vpop.f32.mrf.mxu0
        %v3366 = vadd.f32 0.0, %v3365
        %3367 = vdwg.mxu0
        %3368 = vmatpush.msra.mxu0 0.0
        %3369 = vmatpush.msra.mxu0 0.0
        %3370 = vmatpush.msra.mxu0 0.0
        %3371 = vmatpush.msra.mxu0 0.0
        %3372 = vmatpush.msra.mxu0 0.0
        %3373 = vmatpush.msra.mxu0 0.0
        %3374 = vmatpush.msra.mxu0 0.0
        %3375 = vmatpush.msra.mxu0 0.0
        %3376 = vmatpush.msra.mxu0 %v1678
        %3377 = vmatpush.msra.mxu0 %v1550
        %3378 = vmatpush.msra.mxu0 %v1422
        %3379 = vmatpush.msra.mxu0 %v1294
        %3380 = vmatpush.msra.mxu0 %v1166
        %3381 = vmatpush.msra.mxu0 %v1038
        %3382 = vmatpush.msra.mxu0 %v910
        %3383 = vmatpush.msra.mxu0 %v782
        %3384 = vmatmul.f32.gmra.mxu0 %v1726
        %v3385 = vpop.f32.mrf.mxu0
        %v3386 = vadd.f32 0.0, %v3385
        %3387 = vdwg.mxu0
        %3388 = vmatpush.msra.mxu0 0.0
        %3389 = vmatpush.msra.mxu0 0.0
        %3390 = vmatpush.msra.mxu0 0.0
        %3391 = vmatpush.msra.mxu0 0.0
        %3392 = vmatpush.msra.mxu0 0.0
        %3393 = vmatpush.msra.mxu0 0.0
        %3394 = vmatpush.msra.mxu0 0.0
        %3395 = vmatpush.msra.mxu0 0.0
        %3396 = vmatpush.msra.mxu0 %v1679
        %3397 = vmatpush.msra.mxu0 %v1551
        %3398 = vmatpush.msra.mxu0 %v1423
        %3399 = vmatpush.msra.mxu0 %v1295
        %3400 = vmatpush.msra.mxu0 %v1167
        %3401 = vmatpush.msra.mxu0 %v1039
        %3402 = vmatpush.msra.mxu0 %v911
        %3403 = vmatpush.msra.mxu0 %v783
        %3404 = vmatmul.f32.gmra.mxu0 %v1726
        %v3405 = vpop.f32.mrf.mxu0
        %v3406 = vadd.f32 0.0, %v3405
        %3407 = vdwg.mxu0
        %3408 = vmatpush.msra.mxu0 0.0
        %3409 = vmatpush.msra.mxu0 0.0
        %3410 = vmatpush.msra.mxu0 0.0
        %3411 = vmatpush.msra.mxu0 0.0
        %3412 = vmatpush.msra.mxu0 0.0
        %3413 = vmatpush.msra.mxu0 0.0
        %3414 = vmatpush.msra.mxu0 0.0
        %3415 = vmatpush.msra.mxu0 0.0
        %3416 = vmatpush.msra.mxu0 %v1680
        %3417 = vmatpush.msra.mxu0 %v1552
        %3418 = vmatpush.msra.mxu0 %v1424
        %3419 = vmatpush.msra.mxu0 %v1296
        %3420 = vmatpush.msra.mxu0 %v1168
        %3421 = vmatpush.msra.mxu0 %v1040
        %3422 = vmatpush.msra.mxu0 %v912
        %3423 = vmatpush.msra.mxu0 %v784
        %3424 = vmatmul.f32.gmra.mxu0 %v1726
        %v3425 = vpop.f32.mrf.mxu0
        %v3426 = vadd.f32 0.0, %v3425
        %3427 = vdwg.mxu0
        %3428 = vmatpush.msra.mxu0 0.0
        %3429 = vmatpush.msra.mxu0 0.0
        %3430 = vmatpush.msra.mxu0 0.0
        %3431 = vmatpush.msra.mxu0 0.0
        %3432 = vmatpush.msra.mxu0 0.0
        %3433 = vmatpush.msra.mxu0 0.0
        %3434 = vmatpush.msra.mxu0 0.0
        %3435 = vmatpush.msra.mxu0 0.0
        %3436 = vmatpush.msra.mxu0 %v1681
        %3437 = vmatpush.msra.mxu0 %v1553
        %3438 = vmatpush.msra.mxu0 %v1425
        %3439 = vmatpush.msra.mxu0 %v1297
        %3440 = vmatpush.msra.mxu0 %v1169
        %3441 = vmatpush.msra.mxu0 %v1041
        %3442 = vmatpush.msra.mxu0 %v913
        %3443 = vmatpush.msra.mxu0 %v785
        %3444 = vmatmul.f32.gmra.mxu0 %v1726
        %v3445 = vpop.f32.mrf.mxu0
        %v3446 = vadd.f32 0.0, %v3445
        %3447 = vdwg.mxu0
        %3448 = vmatpush.msra.mxu0 0.0
        %3449 = vmatpush.msra.mxu0 0.0
        %3450 = vmatpush.msra.mxu0 0.0
        %3451 = vmatpush.msra.mxu0 0.0
        %3452 = vmatpush.msra.mxu0 0.0
        %3453 = vmatpush.msra.mxu0 0.0
        %3454 = vmatpush.msra.mxu0 0.0
        %3455 = vmatpush.msra.mxu0 0.0
        %3456 = vmatpush.msra.mxu0 %v1682
        %3457 = vmatpush.msra.mxu0 %v1554
        %3458 = vmatpush.msra.mxu0 %v1426
        %3459 = vmatpush.msra.mxu0 %v1298
        %3460 = vmatpush.msra.mxu0 %v1170
        %3461 = vmatpush.msra.mxu0 %v1042
        %3462 = vmatpush.msra.mxu0 %v914
        %3463 = vmatpush.msra.mxu0 %v786
        %3464 = vmatmul.f32.gmra.mxu0 %v1726
        %v3465 = vpop.f32.mrf.mxu0
        %v3466 = vadd.f32 0.0, %v3465
        %3467 = vdwg.mxu0
        %3468 = vmatpush.msra.mxu0 0.0
        %3469 = vmatpush.msra.mxu0 0.0
        %3470 = vmatpush.msra.mxu0 0.0
        %3471 = vmatpush.msra.mxu0 0.0
        %3472 = vmatpush.msra.mxu0 0.0
        %3473 = vmatpush.msra.mxu0 0.0
        %3474 = vmatpush.msra.mxu0 0.0
        %3475 = vmatpush.msra.mxu0 0.0
        %3476 = vmatpush.msra.mxu0 %v1683
        %3477 = vmatpush.msra.mxu0 %v1555
        %3478 = vmatpush.msra.mxu0 %v1427
        %3479 = vmatpush.msra.mxu0 %v1299
        %3480 = vmatpush.msra.mxu0 %v1171
        %3481 = vmatpush.msra.mxu0 %v1043
        %3482 = vmatpush.msra.mxu0 %v915
        %3483 = vmatpush.msra.mxu0 %v787
        %3484 = vmatmul.f32.gmra.mxu0 %v1726
        %v3485 = vpop.f32.mrf.mxu0
        %v3486 = vadd.f32 0.0, %v3485
        %3487 = vdwg.mxu0
        %3488 = vmatpush.msra.mxu0 0.0
        %3489 = vmatpush.msra.mxu0 0.0
        %3490 = vmatpush.msra.mxu0 0.0
        %3491 = vmatpush.msra.mxu0 0.0
        %3492 = vmatpush.msra.mxu0 0.0
        %3493 = vmatpush.msra.mxu0 0.0
        %3494 = vmatpush.msra.mxu0 0.0
        %3495 = vmatpush.msra.mxu0 0.0
        %3496 = vmatpush.msra.mxu0 %v1684
        %3497 = vmatpush.msra.mxu0 %v1556
        %3498 = vmatpush.msra.mxu0 %v1428
        %3499 = vmatpush.msra.mxu0 %v1300
        %3500 = vmatpush.msra.mxu0 %v1172
        %3501 = vmatpush.msra.mxu0 %v1044
        %3502 = vmatpush.msra.mxu0 %v916
        %3503 = vmatpush.msra.mxu0 %v788
        %3504 = vmatmul.f32.gmra.mxu0 %v1726
        %v3505 = vpop.f32.mrf.mxu0
        %v3506 = vadd.f32 0.0, %v3505
        %3507 = vdwg.mxu0
        %3508 = vmatpush.msra.mxu0 0.0
        %3509 = vmatpush.msra.mxu0 0.0
        %3510 = vmatpush.msra.mxu0 0.0
        %3511 = vmatpush.msra.mxu0 0.0
        %3512 = vmatpush.msra.mxu0 0.0
        %3513 = vmatpush.msra.mxu0 0.0
        %3514 = vmatpush.msra.mxu0 0.0
        %3515 = vmatpush.msra.mxu0 0.0
        %3516 = vmatpush.msra.mxu0 %v1685
        %3517 = vmatpush.msra.mxu0 %v1557
        %3518 = vmatpush.msra.mxu0 %v1429
        %3519 = vmatpush.msra.mxu0 %v1301
        %3520 = vmatpush.msra.mxu0 %v1173
        %3521 = vmatpush.msra.mxu0 %v1045
        %3522 = vmatpush.msra.mxu0 %v917
        %3523 = vmatpush.msra.mxu0 %v789
        %3524 = vmatmul.f32.gmra.mxu0 %v1726
        %v3525 = vpop.f32.mrf.mxu0
        %v3526 = vadd.f32 0.0, %v3525
        %3527 = vdwg.mxu0
        %3528 = vmatpush.msra.mxu0 0.0
        %3529 = vmatpush.msra.mxu0 0.0
        %3530 = vmatpush.msra.mxu0 0.0
        %3531 = vmatpush.msra.mxu0 0.0
        %3532 = vmatpush.msra.mxu0 0.0
        %3533 = vmatpush.msra.mxu0 0.0
        %3534 = vmatpush.msra.mxu0 0.0
        %3535 = vmatpush.msra.mxu0 0.0
        %3536 = vmatpush.msra.mxu0 %v1686
        %3537 = vmatpush.msra.mxu0 %v1558
        %3538 = vmatpush.msra.mxu0 %v1430
        %3539 = vmatpush.msra.mxu0 %v1302
        %3540 = vmatpush.msra.mxu0 %v1174
        %3541 = vmatpush.msra.mxu0 %v1046
        %3542 = vmatpush.msra.mxu0 %v918
        %3543 = vmatpush.msra.mxu0 %v790
        %3544 = vmatmul.f32.gmra.mxu0 %v1726
        %v3545 = vpop.f32.mrf.mxu0
        %v3546 = vadd.f32 0.0, %v3545
        %3547 = vdwg.mxu0
        %3548 = vmatpush.msra.mxu0 0.0
        %3549 = vmatpush.msra.mxu0 0.0
        %3550 = vmatpush.msra.mxu0 0.0
        %3551 = vmatpush.msra.mxu0 0.0
        %3552 = vmatpush.msra.mxu0 0.0
        %3553 = vmatpush.msra.mxu0 0.0
        %3554 = vmatpush.msra.mxu0 0.0
        %3555 = vmatpush.msra.mxu0 0.0
        %3556 = vmatpush.msra.mxu0 %v1687
        %3557 = vmatpush.msra.mxu0 %v1559
        %3558 = vmatpush.msra.mxu0 %v1431
        %3559 = vmatpush.msra.mxu0 %v1303
        %3560 = vmatpush.msra.mxu0 %v1175
        %3561 = vmatpush.msra.mxu0 %v1047
        %3562 = vmatpush.msra.mxu0 %v919
        %3563 = vmatpush.msra.mxu0 %v791
        %3564 = vmatmul.f32.gmra.mxu0 %v1726
        %v3565 = vpop.f32.mrf.mxu0
        %v3566 = vadd.f32 0.0, %v3565
        %3567 = vdwg.mxu0
        %3568 = vmatpush.msra.mxu0 0.0
        %3569 = vmatpush.msra.mxu0 0.0
        %3570 = vmatpush.msra.mxu0 0.0
        %3571 = vmatpush.msra.mxu0 0.0
        %3572 = vmatpush.msra.mxu0 0.0
        %3573 = vmatpush.msra.mxu0 0.0
        %3574 = vmatpush.msra.mxu0 0.0
        %3575 = vmatpush.msra.mxu0 0.0
        %3576 = vmatpush.msra.mxu0 %v1688
        %3577 = vmatpush.msra.mxu0 %v1560
        %3578 = vmatpush.msra.mxu0 %v1432
        %3579 = vmatpush.msra.mxu0 %v1304
        %3580 = vmatpush.msra.mxu0 %v1176
        %3581 = vmatpush.msra.mxu0 %v1048
        %3582 = vmatpush.msra.mxu0 %v920
        %3583 = vmatpush.msra.mxu0 %v792
        %3584 = vmatmul.f32.gmra.mxu0 %v1726
        %v3585 = vpop.f32.mrf.mxu0
        %v3586 = vadd.f32 0.0, %v3585
        %3587 = vdwg.mxu0
        %3588 = vmatpush.msra.mxu0 0.0
        %3589 = vmatpush.msra.mxu0 0.0
        %3590 = vmatpush.msra.mxu0 0.0
        %3591 = vmatpush.msra.mxu0 0.0
        %3592 = vmatpush.msra.mxu0 0.0
        %3593 = vmatpush.msra.mxu0 0.0
        %3594 = vmatpush.msra.mxu0 0.0
        %3595 = vmatpush.msra.mxu0 0.0
        %3596 = vmatpush.msra.mxu0 %v1689
        %3597 = vmatpush.msra.mxu0 %v1561
        %3598 = vmatpush.msra.mxu0 %v1433
        %3599 = vmatpush.msra.mxu0 %v1305
        %3600 = vmatpush.msra.mxu0 %v1177
        %3601 = vmatpush.msra.mxu0 %v1049
        %3602 = vmatpush.msra.mxu0 %v921
        %3603 = vmatpush.msra.mxu0 %v793
        %3604 = vmatmul.f32.gmra.mxu0 %v1726
        %v3605 = vpop.f32.mrf.mxu0
        %v3606 = vadd.f32 0.0, %v3605
        %3607 = vdwg.mxu0
        %3608 = vmatpush.msra.mxu0 0.0
        %3609 = vmatpush.msra.mxu0 0.0
        %3610 = vmatpush.msra.mxu0 0.0
        %3611 = vmatpush.msra.mxu0 0.0
        %3612 = vmatpush.msra.mxu0 0.0
        %3613 = vmatpush.msra.mxu0 0.0
        %3614 = vmatpush.msra.mxu0 0.0
        %3615 = vmatpush.msra.mxu0 0.0
        %3616 = vmatpush.msra.mxu0 %v1690
        %3617 = vmatpush.msra.mxu0 %v1562
        %3618 = vmatpush.msra.mxu0 %v1434
        %3619 = vmatpush.msra.mxu0 %v1306
        %3620 = vmatpush.msra.mxu0 %v1178
        %3621 = vmatpush.msra.mxu0 %v1050
        %3622 = vmatpush.msra.mxu0 %v922
        %3623 = vmatpush.msra.mxu0 %v794
        %3624 = vmatmul.f32.gmra.mxu0 %v1726
        %v3625 = vpop.f32.mrf.mxu0
        %v3626 = vadd.f32 0.0, %v3625
        %3627 = vdwg.mxu0
        %3628 = vmatpush.msra.mxu0 0.0
        %3629 = vmatpush.msra.mxu0 0.0
        %3630 = vmatpush.msra.mxu0 0.0
        %3631 = vmatpush.msra.mxu0 0.0
        %3632 = vmatpush.msra.mxu0 0.0
        %3633 = vmatpush.msra.mxu0 0.0
        %3634 = vmatpush.msra.mxu0 0.0
        %3635 = vmatpush.msra.mxu0 0.0
        %3636 = vmatpush.msra.mxu0 %v1691
        %3637 = vmatpush.msra.mxu0 %v1563
        %3638 = vmatpush.msra.mxu0 %v1435
        %3639 = vmatpush.msra.mxu0 %v1307
        %3640 = vmatpush.msra.mxu0 %v1179
        %3641 = vmatpush.msra.mxu0 %v1051
        %3642 = vmatpush.msra.mxu0 %v923
        %3643 = vmatpush.msra.mxu0 %v795
        %3644 = vmatmul.f32.gmra.mxu0 %v1726
        %v3645 = vpop.f32.mrf.mxu0
        %v3646 = vadd.f32 0.0, %v3645
        %3647 = vdwg.mxu0
        %3648 = vmatpush.msra.mxu0 0.0
        %3649 = vmatpush.msra.mxu0 0.0
        %3650 = vmatpush.msra.mxu0 0.0
        %3651 = vmatpush.msra.mxu0 0.0
        %3652 = vmatpush.msra.mxu0 0.0
        %3653 = vmatpush.msra.mxu0 0.0
        %3654 = vmatpush.msra.mxu0 0.0
        %3655 = vmatpush.msra.mxu0 0.0
        %3656 = vmatpush.msra.mxu0 %v1692
        %3657 = vmatpush.msra.mxu0 %v1564
        %3658 = vmatpush.msra.mxu0 %v1436
        %3659 = vmatpush.msra.mxu0 %v1308
        %3660 = vmatpush.msra.mxu0 %v1180
        %3661 = vmatpush.msra.mxu0 %v1052
        %3662 = vmatpush.msra.mxu0 %v924
        %3663 = vmatpush.msra.mxu0 %v796
        %3664 = vmatmul.f32.gmra.mxu0 %v1726
        %v3665 = vpop.f32.mrf.mxu0
        %v3666 = vadd.f32 0.0, %v3665
        %3667 = vdwg.mxu0
        %3668 = vmatpush.msra.mxu0 0.0
        %3669 = vmatpush.msra.mxu0 0.0
        %3670 = vmatpush.msra.mxu0 0.0
        %3671 = vmatpush.msra.mxu0 0.0
        %3672 = vmatpush.msra.mxu0 0.0
        %3673 = vmatpush.msra.mxu0 0.0
        %3674 = vmatpush.msra.mxu0 0.0
        %3675 = vmatpush.msra.mxu0 0.0
        %3676 = vmatpush.msra.mxu0 %v1693
        %3677 = vmatpush.msra.mxu0 %v1565
        %3678 = vmatpush.msra.mxu0 %v1437
        %3679 = vmatpush.msra.mxu0 %v1309
        %3680 = vmatpush.msra.mxu0 %v1181
        %3681 = vmatpush.msra.mxu0 %v1053
        %3682 = vmatpush.msra.mxu0 %v925
        %3683 = vmatpush.msra.mxu0 %v797
        %3684 = vmatmul.f32.gmra.mxu0 %v1726
        %v3685 = vpop.f32.mrf.mxu0
        %v3686 = vadd.f32 0.0, %v3685
        %3687 = vdwg.mxu0
        %3688 = vmatpush.msra.mxu0 0.0
        %3689 = vmatpush.msra.mxu0 0.0
        %3690 = vmatpush.msra.mxu0 0.0
        %3691 = vmatpush.msra.mxu0 0.0
        %3692 = vmatpush.msra.mxu0 0.0
        %3693 = vmatpush.msra.mxu0 0.0
        %3694 = vmatpush.msra.mxu0 0.0
        %3695 = vmatpush.msra.mxu0 0.0
        %3696 = vmatpush.msra.mxu0 %v1694
        %3697 = vmatpush.msra.mxu0 %v1566
        %3698 = vmatpush.msra.mxu0 %v1438
        %3699 = vmatpush.msra.mxu0 %v1310
        %3700 = vmatpush.msra.mxu0 %v1182
        %3701 = vmatpush.msra.mxu0 %v1054
        %3702 = vmatpush.msra.mxu0 %v926
        %3703 = vmatpush.msra.mxu0 %v798
        %3704 = vmatmul.f32.gmra.mxu0 %v1726
        %v3705 = vpop.f32.mrf.mxu0
        %v3706 = vadd.f32 0.0, %v3705
        %3707 = vdwg.mxu0
        %3708 = vmatpush.msra.mxu0 0.0
        %3709 = vmatpush.msra.mxu0 0.0
        %3710 = vmatpush.msra.mxu0 0.0
        %3711 = vmatpush.msra.mxu0 0.0
        %3712 = vmatpush.msra.mxu0 0.0
        %3713 = vmatpush.msra.mxu0 0.0
        %3714 = vmatpush.msra.mxu0 0.0
        %3715 = vmatpush.msra.mxu0 0.0
        %3716 = vmatpush.msra.mxu0 %v1695
        %3717 = vmatpush.msra.mxu0 %v1567
        %3718 = vmatpush.msra.mxu0 %v1439
        %3719 = vmatpush.msra.mxu0 %v1311
        %3720 = vmatpush.msra.mxu0 %v1183
        %3721 = vmatpush.msra.mxu0 %v1055
        %3722 = vmatpush.msra.mxu0 %v927
        %3723 = vmatpush.msra.mxu0 %v799
        %3724 = vmatmul.f32.gmra.mxu0 %v1726
        %v3725 = vpop.f32.mrf.mxu0
        %v3726 = vadd.f32 0.0, %v3725
        %3727 = vdwg.mxu0
        %3728 = vmatpush.msra.mxu0 0.0
        %3729 = vmatpush.msra.mxu0 0.0
        %3730 = vmatpush.msra.mxu0 0.0
        %3731 = vmatpush.msra.mxu0 0.0
        %3732 = vmatpush.msra.mxu0 0.0
        %3733 = vmatpush.msra.mxu0 0.0
        %3734 = vmatpush.msra.mxu0 0.0
        %3735 = vmatpush.msra.mxu0 0.0
        %3736 = vmatpush.msra.mxu0 %v1696
        %3737 = vmatpush.msra.mxu0 %v1568
        %3738 = vmatpush.msra.mxu0 %v1440
        %3739 = vmatpush.msra.mxu0 %v1312
        %3740 = vmatpush.msra.mxu0 %v1184
        %3741 = vmatpush.msra.mxu0 %v1056
        %3742 = vmatpush.msra.mxu0 %v928
        %3743 = vmatpush.msra.mxu0 %v800
        %3744 = vmatmul.f32.gmra.mxu0 %v1726
        %v3745 = vpop.f32.mrf.mxu0
        %v3746 = vadd.f32 0.0, %v3745
        %3747 = vdwg.mxu0
        %3748 = vmatpush.msra.mxu0 0.0
        %3749 = vmatpush.msra.mxu0 0.0
        %3750 = vmatpush.msra.mxu0 0.0
        %3751 = vmatpush.msra.mxu0 0.0
        %3752 = vmatpush.msra.mxu0 0.0
        %3753 = vmatpush.msra.mxu0 0.0
        %3754 = vmatpush.msra.mxu0 0.0
        %3755 = vmatpush.msra.mxu0 0.0
        %3756 = vmatpush.msra.mxu0 %v1697
        %3757 = vmatpush.msra.mxu0 %v1569
        %3758 = vmatpush.msra.mxu0 %v1441
        %3759 = vmatpush.msra.mxu0 %v1313
        %3760 = vmatpush.msra.mxu0 %v1185
        %3761 = vmatpush.msra.mxu0 %v1057
        %3762 = vmatpush.msra.mxu0 %v929
        %3763 = vmatpush.msra.mxu0 %v801
        %3764 = vmatmul.f32.gmra.mxu0 %v1726
        %v3765 = vpop.f32.mrf.mxu0
        %v3766 = vadd.f32 0.0, %v3765
        %3767 = vdwg.mxu0
        %3768 = vmatpush.msra.mxu0 0.0
        %3769 = vmatpush.msra.mxu0 0.0
        %3770 = vmatpush.msra.mxu0 0.0
        %3771 = vmatpush.msra.mxu0 0.0
        %3772 = vmatpush.msra.mxu0 0.0
        %3773 = vmatpush.msra.mxu0 0.0
        %3774 = vmatpush.msra.mxu0 0.0
        %3775 = vmatpush.msra.mxu0 0.0
        %3776 = vmatpush.msra.mxu0 %v1698
        %3777 = vmatpush.msra.mxu0 %v1570
        %3778 = vmatpush.msra.mxu0 %v1442
        %3779 = vmatpush.msra.mxu0 %v1314
        %3780 = vmatpush.msra.mxu0 %v1186
        %3781 = vmatpush.msra.mxu0 %v1058
        %3782 = vmatpush.msra.mxu0 %v930
        %3783 = vmatpush.msra.mxu0 %v802
        %3784 = vmatmul.f32.gmra.mxu0 %v1726
        %v3785 = vpop.f32.mrf.mxu0
        %v3786 = vadd.f32 0.0, %v3785
        %3787 = vdwg.mxu0
        %3788 = vmatpush.msra.mxu0 0.0
        %3789 = vmatpush.msra.mxu0 0.0
        %3790 = vmatpush.msra.mxu0 0.0
        %3791 = vmatpush.msra.mxu0 0.0
        %3792 = vmatpush.msra.mxu0 0.0
        %3793 = vmatpush.msra.mxu0 0.0
        %3794 = vmatpush.msra.mxu0 0.0
        %3795 = vmatpush.msra.mxu0 0.0
        %3796 = vmatpush.msra.mxu0 %v1699
        %3797 = vmatpush.msra.mxu0 %v1571
        %3798 = vmatpush.msra.mxu0 %v1443
        %3799 = vmatpush.msra.mxu0 %v1315
        %3800 = vmatpush.msra.mxu0 %v1187
        %3801 = vmatpush.msra.mxu0 %v1059
        %3802 = vmatpush.msra.mxu0 %v931
        %3803 = vmatpush.msra.mxu0 %v803
        %3804 = vmatmul.f32.gmra.mxu0 %v1726
        %v3805 = vpop.f32.mrf.mxu0
        %v3806 = vadd.f32 0.0, %v3805
        %3807 = vdwg.mxu0
        %3808 = vmatpush.msra.mxu0 0.0
        %3809 = vmatpush.msra.mxu0 0.0
        %3810 = vmatpush.msra.mxu0 0.0
        %3811 = vmatpush.msra.mxu0 0.0
        %3812 = vmatpush.msra.mxu0 0.0
        %3813 = vmatpush.msra.mxu0 0.0
        %3814 = vmatpush.msra.mxu0 0.0
        %3815 = vmatpush.msra.mxu0 0.0
        %3816 = vmatpush.msra.mxu0 %v1700
        %3817 = vmatpush.msra.mxu0 %v1572
        %3818 = vmatpush.msra.mxu0 %v1444
        %3819 = vmatpush.msra.mxu0 %v1316
        %3820 = vmatpush.msra.mxu0 %v1188
        %3821 = vmatpush.msra.mxu0 %v1060
        %3822 = vmatpush.msra.mxu0 %v932
        %3823 = vmatpush.msra.mxu0 %v804
        %3824 = vmatmul.f32.gmra.mxu0 %v1726
        %v3825 = vpop.f32.mrf.mxu0
        %v3826 = vadd.f32 0.0, %v3825
        %3827 = vdwg.mxu0
        %3828 = vmatpush.msra.mxu0 0.0
        %3829 = vmatpush.msra.mxu0 0.0
        %3830 = vmatpush.msra.mxu0 0.0
        %3831 = vmatpush.msra.mxu0 0.0
        %3832 = vmatpush.msra.mxu0 0.0
        %3833 = vmatpush.msra.mxu0 0.0
        %3834 = vmatpush.msra.mxu0 0.0
        %3835 = vmatpush.msra.mxu0 0.0
        %3836 = vmatpush.msra.mxu0 %v1701
        %3837 = vmatpush.msra.mxu0 %v1573
        %3838 = vmatpush.msra.mxu0 %v1445
        %3839 = vmatpush.msra.mxu0 %v1317
        %3840 = vmatpush.msra.mxu0 %v1189
        %3841 = vmatpush.msra.mxu0 %v1061
        %3842 = vmatpush.msra.mxu0 %v933
        %3843 = vmatpush.msra.mxu0 %v805
        %3844 = vmatmul.f32.gmra.mxu0 %v1726
        %v3845 = vpop.f32.mrf.mxu0
        %v3846 = vadd.f32 0.0, %v3845
        %3847 = vdwg.mxu0
        %3848 = vmatpush.msra.mxu0 0.0
        %3849 = vmatpush.msra.mxu0 0.0
        %3850 = vmatpush.msra.mxu0 0.0
        %3851 = vmatpush.msra.mxu0 0.0
        %3852 = vmatpush.msra.mxu0 0.0
        %3853 = vmatpush.msra.mxu0 0.0
        %3854 = vmatpush.msra.mxu0 0.0
        %3855 = vmatpush.msra.mxu0 0.0
        %3856 = vmatpush.msra.mxu0 %v1702
        %3857 = vmatpush.msra.mxu0 %v1574
        %3858 = vmatpush.msra.mxu0 %v1446
        %3859 = vmatpush.msra.mxu0 %v1318
        %3860 = vmatpush.msra.mxu0 %v1190
        %3861 = vmatpush.msra.mxu0 %v1062
        %3862 = vmatpush.msra.mxu0 %v934
        %3863 = vmatpush.msra.mxu0 %v806
        %3864 = vmatmul.f32.gmra.mxu0 %v1726
        %v3865 = vpop.f32.mrf.mxu0
        %v3866 = vadd.f32 0.0, %v3865
        %3867 = vdwg.mxu0
        %3868 = vmatpush.msra.mxu0 0.0
        %3869 = vmatpush.msra.mxu0 0.0
        %3870 = vmatpush.msra.mxu0 0.0
        %3871 = vmatpush.msra.mxu0 0.0
        %3872 = vmatpush.msra.mxu0 0.0
        %3873 = vmatpush.msra.mxu0 0.0
        %3874 = vmatpush.msra.mxu0 0.0
        %3875 = vmatpush.msra.mxu0 0.0
        %3876 = vmatpush.msra.mxu0 %v1703
        %3877 = vmatpush.msra.mxu0 %v1575
        %3878 = vmatpush.msra.mxu0 %v1447
        %3879 = vmatpush.msra.mxu0 %v1319
        %3880 = vmatpush.msra.mxu0 %v1191
        %3881 = vmatpush.msra.mxu0 %v1063
        %3882 = vmatpush.msra.mxu0 %v935
        %3883 = vmatpush.msra.mxu0 %v807
        %3884 = vmatmul.f32.gmra.mxu0 %v1726
        %v3885 = vpop.f32.mrf.mxu0
        %v3886 = vadd.f32 0.0, %v3885
        %3887 = vdwg.mxu0
        %3888 = vmatpush.msra.mxu0 0.0
        %3889 = vmatpush.msra.mxu0 0.0
        %3890 = vmatpush.msra.mxu0 0.0
        %3891 = vmatpush.msra.mxu0 0.0
        %3892 = vmatpush.msra.mxu0 0.0
        %3893 = vmatpush.msra.mxu0 0.0
        %3894 = vmatpush.msra.mxu0 0.0
        %3895 = vmatpush.msra.mxu0 0.0
        %3896 = vmatpush.msra.mxu0 %v1704
        %3897 = vmatpush.msra.mxu0 %v1576
        %3898 = vmatpush.msra.mxu0 %v1448
        %3899 = vmatpush.msra.mxu0 %v1320
        %3900 = vmatpush.msra.mxu0 %v1192
        %3901 = vmatpush.msra.mxu0 %v1064
        %3902 = vmatpush.msra.mxu0 %v936
        %3903 = vmatpush.msra.mxu0 %v808
        %3904 = vmatmul.f32.gmra.mxu0 %v1726
        %v3905 = vpop.f32.mrf.mxu0
        %v3906 = vadd.f32 0.0, %v3905
        %3907 = vdwg.mxu0
        %3908 = vmatpush.msra.mxu0 0.0
        %3909 = vmatpush.msra.mxu0 0.0
        %3910 = vmatpush.msra.mxu0 0.0
        %3911 = vmatpush.msra.mxu0 0.0
        %3912 = vmatpush.msra.mxu0 0.0
        %3913 = vmatpush.msra.mxu0 0.0
        %3914 = vmatpush.msra.mxu0 0.0
        %3915 = vmatpush.msra.mxu0 0.0
        %3916 = vmatpush.msra.mxu0 %v1705
        %3917 = vmatpush.msra.mxu0 %v1577
        %3918 = vmatpush.msra.mxu0 %v1449
        %3919 = vmatpush.msra.mxu0 %v1321
        %3920 = vmatpush.msra.mxu0 %v1193
        %3921 = vmatpush.msra.mxu0 %v1065
        %3922 = vmatpush.msra.mxu0 %v937
        %3923 = vmatpush.msra.mxu0 %v809
        %3924 = vmatmul.f32.gmra.mxu0 %v1726
        %v3925 = vpop.f32.mrf.mxu0
        %v3926 = vadd.f32 0.0, %v3925
        %3927 = vdwg.mxu0
        %3928 = vmatpush.msra.mxu0 0.0
        %3929 = vmatpush.msra.mxu0 0.0
        %3930 = vmatpush.msra.mxu0 0.0
        %3931 = vmatpush.msra.mxu0 0.0
        %3932 = vmatpush.msra.mxu0 0.0
        %3933 = vmatpush.msra.mxu0 0.0
        %3934 = vmatpush.msra.mxu0 0.0
        %3935 = vmatpush.msra.mxu0 0.0
        %3936 = vmatpush.msra.mxu0 %v1706
        %3937 = vmatpush.msra.mxu0 %v1578
        %3938 = vmatpush.msra.mxu0 %v1450
        %3939 = vmatpush.msra.mxu0 %v1322
        %3940 = vmatpush.msra.mxu0 %v1194
        %3941 = vmatpush.msra.mxu0 %v1066
        %3942 = vmatpush.msra.mxu0 %v938
        %3943 = vmatpush.msra.mxu0 %v810
        %3944 = vmatmul.f32.gmra.mxu0 %v1726
        %v3945 = vpop.f32.mrf.mxu0
        %v3946 = vadd.f32 0.0, %v3945
        %3947 = vdwg.mxu0
        %3948 = vmatpush.msra.mxu0 0.0
        %3949 = vmatpush.msra.mxu0 0.0
        %3950 = vmatpush.msra.mxu0 0.0
        %3951 = vmatpush.msra.mxu0 0.0
        %3952 = vmatpush.msra.mxu0 0.0
        %3953 = vmatpush.msra.mxu0 0.0
        %3954 = vmatpush.msra.mxu0 0.0
        %3955 = vmatpush.msra.mxu0 0.0
        %3956 = vmatpush.msra.mxu0 %v1707
        %3957 = vmatpush.msra.mxu0 %v1579
        %3958 = vmatpush.msra.mxu0 %v1451
        %3959 = vmatpush.msra.mxu0 %v1323
        %3960 = vmatpush.msra.mxu0 %v1195
        %3961 = vmatpush.msra.mxu0 %v1067
        %3962 = vmatpush.msra.mxu0 %v939
        %3963 = vmatpush.msra.mxu0 %v811
        %3964 = vmatmul.f32.gmra.mxu0 %v1726
        %v3965 = vpop.f32.mrf.mxu0
        %v3966 = vadd.f32 0.0, %v3965
        %3967 = vdwg.mxu0
        %3968 = vmatpush.msra.mxu0 0.0
        %3969 = vmatpush.msra.mxu0 0.0
        %3970 = vmatpush.msra.mxu0 0.0
        %3971 = vmatpush.msra.mxu0 0.0
        %3972 = vmatpush.msra.mxu0 0.0
        %3973 = vmatpush.msra.mxu0 0.0
        %3974 = vmatpush.msra.mxu0 0.0
        %3975 = vmatpush.msra.mxu0 0.0
        %3976 = vmatpush.msra.mxu0 %v1708
        %3977 = vmatpush.msra.mxu0 %v1580
        %3978 = vmatpush.msra.mxu0 %v1452
        %3979 = vmatpush.msra.mxu0 %v1324
        %3980 = vmatpush.msra.mxu0 %v1196
        %3981 = vmatpush.msra.mxu0 %v1068
        %3982 = vmatpush.msra.mxu0 %v940
        %3983 = vmatpush.msra.mxu0 %v812
        %3984 = vmatmul.f32.gmra.mxu0 %v1726
        %v3985 = vpop.f32.mrf.mxu0
        %v3986 = vadd.f32 0.0, %v3985
        %3987 = vdwg.mxu0
        %3988 = vmatpush.msra.mxu0 0.0
        %3989 = vmatpush.msra.mxu0 0.0
        %3990 = vmatpush.msra.mxu0 0.0
        %3991 = vmatpush.msra.mxu0 0.0
        %3992 = vmatpush.msra.mxu0 0.0
        %3993 = vmatpush.msra.mxu0 0.0
        %3994 = vmatpush.msra.mxu0 0.0
        %3995 = vmatpush.msra.mxu0 0.0
        %3996 = vmatpush.msra.mxu0 %v1709
        %3997 = vmatpush.msra.mxu0 %v1581
        %3998 = vmatpush.msra.mxu0 %v1453
        %3999 = vmatpush.msra.mxu0 %v1325
        %4000 = vmatpush.msra.mxu0 %v1197
        %4001 = vmatpush.msra.mxu0 %v1069
        %4002 = vmatpush.msra.mxu0 %v941
        %4003 = vmatpush.msra.mxu0 %v813
        %4004 = vmatmul.f32.gmra.mxu0 %v1726
        %v4005 = vpop.f32.mrf.mxu0
        %v4006 = vadd.f32 0.0, %v4005
        %4007 = vdwg.mxu0
        %4008 = vmatpush.msra.mxu0 0.0
        %4009 = vmatpush.msra.mxu0 0.0
        %4010 = vmatpush.msra.mxu0 0.0
        %4011 = vmatpush.msra.mxu0 0.0
        %4012 = vmatpush.msra.mxu0 0.0
        %4013 = vmatpush.msra.mxu0 0.0
        %4014 = vmatpush.msra.mxu0 0.0
        %4015 = vmatpush.msra.mxu0 0.0
        %4016 = vmatpush.msra.mxu0 %v1710
        %4017 = vmatpush.msra.mxu0 %v1582
        %4018 = vmatpush.msra.mxu0 %v1454
        %4019 = vmatpush.msra.mxu0 %v1326
        %4020 = vmatpush.msra.mxu0 %v1198
        %4021 = vmatpush.msra.mxu0 %v1070
        %4022 = vmatpush.msra.mxu0 %v942
        %4023 = vmatpush.msra.mxu0 %v814
        %4024 = vmatmul.f32.gmra.mxu0 %v1726
        %v4025 = vpop.f32.mrf.mxu0
        %v4026 = vadd.f32 0.0, %v4025
        %4027 = vdwg.mxu0
        %4028 = vmatpush.msra.mxu0 0.0
        %4029 = vmatpush.msra.mxu0 0.0
        %4030 = vmatpush.msra.mxu0 0.0
        %4031 = vmatpush.msra.mxu0 0.0
        %4032 = vmatpush.msra.mxu0 0.0
        %4033 = vmatpush.msra.mxu0 0.0
        %4034 = vmatpush.msra.mxu0 0.0
        %4035 = vmatpush.msra.mxu0 0.0
        %4036 = vmatpush.msra.mxu0 %v1711
        %4037 = vmatpush.msra.mxu0 %v1583
        %4038 = vmatpush.msra.mxu0 %v1455
        %4039 = vmatpush.msra.mxu0 %v1327
        %4040 = vmatpush.msra.mxu0 %v1199
        %4041 = vmatpush.msra.mxu0 %v1071
        %4042 = vmatpush.msra.mxu0 %v943
        %4043 = vmatpush.msra.mxu0 %v815
        %4044 = vmatmul.f32.gmra.mxu0 %v1726
        %v4045 = vpop.f32.mrf.mxu0
        %v4046 = vadd.f32 0.0, %v4045
        %4047 = vdwg.mxu0
        %4048 = vmatpush.msra.mxu0 0.0
        %4049 = vmatpush.msra.mxu0 0.0
        %4050 = vmatpush.msra.mxu0 0.0
        %4051 = vmatpush.msra.mxu0 0.0
        %4052 = vmatpush.msra.mxu0 0.0
        %4053 = vmatpush.msra.mxu0 0.0
        %4054 = vmatpush.msra.mxu0 0.0
        %4055 = vmatpush.msra.mxu0 0.0
        %4056 = vmatpush.msra.mxu0 %v1712
        %4057 = vmatpush.msra.mxu0 %v1584
        %4058 = vmatpush.msra.mxu0 %v1456
        %4059 = vmatpush.msra.mxu0 %v1328
        %4060 = vmatpush.msra.mxu0 %v1200
        %4061 = vmatpush.msra.mxu0 %v1072
        %4062 = vmatpush.msra.mxu0 %v944
        %4063 = vmatpush.msra.mxu0 %v816
        %4064 = vmatmul.f32.gmra.mxu0 %v1726
        %v4065 = vpop.f32.mrf.mxu0
        %v4066 = vadd.f32 0.0, %v4065
        %4067 = vdwg.mxu0
        %4068 = vmatpush.msra.mxu0 0.0
        %4069 = vmatpush.msra.mxu0 0.0
        %4070 = vmatpush.msra.mxu0 0.0
        %4071 = vmatpush.msra.mxu0 0.0
        %4072 = vmatpush.msra.mxu0 0.0
        %4073 = vmatpush.msra.mxu0 0.0
        %4074 = vmatpush.msra.mxu0 0.0
        %4075 = vmatpush.msra.mxu0 0.0
        %4076 = vmatpush.msra.mxu0 %v1713
        %4077 = vmatpush.msra.mxu0 %v1585
        %4078 = vmatpush.msra.mxu0 %v1457
        %4079 = vmatpush.msra.mxu0 %v1329
        %4080 = vmatpush.msra.mxu0 %v1201
        %4081 = vmatpush.msra.mxu0 %v1073
        %4082 = vmatpush.msra.mxu0 %v945
        %4083 = vmatpush.msra.mxu0 %v817
        %4084 = vmatmul.f32.gmra.mxu0 %v1726
        %v4085 = vpop.f32.mrf.mxu0
        %v4086 = vadd.f32 0.0, %v4085
        %4087 = vdwg.mxu0
        %4088 = vmatpush.msra.mxu0 0.0
        %4089 = vmatpush.msra.mxu0 0.0
        %4090 = vmatpush.msra.mxu0 0.0
        %4091 = vmatpush.msra.mxu0 0.0
        %4092 = vmatpush.msra.mxu0 0.0
        %4093 = vmatpush.msra.mxu0 0.0
        %4094 = vmatpush.msra.mxu0 0.0
        %4095 = vmatpush.msra.mxu0 0.0
        %4096 = vmatpush.msra.mxu0 %v1714
        %4097 = vmatpush.msra.mxu0 %v1586
        %4098 = vmatpush.msra.mxu0 %v1458
        %4099 = vmatpush.msra.mxu0 %v1330
        %4100 = vmatpush.msra.mxu0 %v1202
        %4101 = vmatpush.msra.mxu0 %v1074
        %4102 = vmatpush.msra.mxu0 %v946
        %4103 = vmatpush.msra.mxu0 %v818
        %4104 = vmatmul.f32.gmra.mxu0 %v1726
        %v4105 = vpop.f32.mrf.mxu0
        %v4106 = vadd.f32 0.0, %v4105
        %4107 = vdwg.mxu0
        %4108 = vmatpush.msra.mxu0 0.0
        %4109 = vmatpush.msra.mxu0 0.0
        %4110 = vmatpush.msra.mxu0 0.0
        %4111 = vmatpush.msra.mxu0 0.0
        %4112 = vmatpush.msra.mxu0 0.0
        %4113 = vmatpush.msra.mxu0 0.0
        %4114 = vmatpush.msra.mxu0 0.0
        %4115 = vmatpush.msra.mxu0 0.0
        %4116 = vmatpush.msra.mxu0 %v1715
        %4117 = vmatpush.msra.mxu0 %v1587
        %4118 = vmatpush.msra.mxu0 %v1459
        %4119 = vmatpush.msra.mxu0 %v1331
        %4120 = vmatpush.msra.mxu0 %v1203
        %4121 = vmatpush.msra.mxu0 %v1075
        %4122 = vmatpush.msra.mxu0 %v947
        %4123 = vmatpush.msra.mxu0 %v819
        %4124 = vmatmul.f32.gmra.mxu0 %v1726
        %v4125 = vpop.f32.mrf.mxu0
        %v4126 = vadd.f32 0.0, %v4125
        %4127 = vdwg.mxu0
        %4128 = vmatpush.msra.mxu0 0.0
        %4129 = vmatpush.msra.mxu0 0.0
        %4130 = vmatpush.msra.mxu0 0.0
        %4131 = vmatpush.msra.mxu0 0.0
        %4132 = vmatpush.msra.mxu0 0.0
        %4133 = vmatpush.msra.mxu0 0.0
        %4134 = vmatpush.msra.mxu0 0.0
        %4135 = vmatpush.msra.mxu0 0.0
        %4136 = vmatpush.msra.mxu0 %v1716
        %4137 = vmatpush.msra.mxu0 %v1588
        %4138 = vmatpush.msra.mxu0 %v1460
        %4139 = vmatpush.msra.mxu0 %v1332
        %4140 = vmatpush.msra.mxu0 %v1204
        %4141 = vmatpush.msra.mxu0 %v1076
        %4142 = vmatpush.msra.mxu0 %v948
        %4143 = vmatpush.msra.mxu0 %v820
        %4144 = vmatmul.f32.gmra.mxu0 %v1726
        %v4145 = vpop.f32.mrf.mxu0
        %v4146 = vadd.f32 0.0, %v4145
        %4147 = vdwg.mxu0
        %4148 = vmatpush.msra.mxu0 0.0
        %4149 = vmatpush.msra.mxu0 0.0
        %4150 = vmatpush.msra.mxu0 0.0
        %4151 = vmatpush.msra.mxu0 0.0
        %4152 = vmatpush.msra.mxu0 0.0
        %4153 = vmatpush.msra.mxu0 0.0
        %4154 = vmatpush.msra.mxu0 0.0
        %4155 = vmatpush.msra.mxu0 0.0
        %4156 = vmatpush.msra.mxu0 %v1717
        %4157 = vmatpush.msra.mxu0 %v1589
        %4158 = vmatpush.msra.mxu0 %v1461
        %4159 = vmatpush.msra.mxu0 %v1333
        %4160 = vmatpush.msra.mxu0 %v1205
        %4161 = vmatpush.msra.mxu0 %v1077
        %4162 = vmatpush.msra.mxu0 %v949
        %4163 = vmatpush.msra.mxu0 %v821
        %4164 = vmatmul.f32.gmra.mxu0 %v1726
        %v4165 = vpop.f32.mrf.mxu0
        %v4166 = vadd.f32 0.0, %v4165
        %4167 = vdwg.mxu0
        %4168 = vmatpush.msra.mxu0 0.0
        %4169 = vmatpush.msra.mxu0 0.0
        %4170 = vmatpush.msra.mxu0 0.0
        %4171 = vmatpush.msra.mxu0 0.0
        %4172 = vmatpush.msra.mxu0 0.0
        %4173 = vmatpush.msra.mxu0 0.0
        %4174 = vmatpush.msra.mxu0 0.0
        %4175 = vmatpush.msra.mxu0 0.0
        %4176 = vmatpush.msra.mxu0 %v1718
        %4177 = vmatpush.msra.mxu0 %v1590
        %4178 = vmatpush.msra.mxu0 %v1462
        %4179 = vmatpush.msra.mxu0 %v1334
        %4180 = vmatpush.msra.mxu0 %v1206
        %4181 = vmatpush.msra.mxu0 %v1078
        %4182 = vmatpush.msra.mxu0 %v950
        %4183 = vmatpush.msra.mxu0 %v822
        %4184 = vmatmul.f32.gmra.mxu0 %v1726
        %v4185 = vpop.f32.mrf.mxu0
        %v4186 = vadd.f32 0.0, %v4185
        %4187 = vdwg.mxu0
        %4188 = vmatpush.msra.mxu0 0.0
        %4189 = vmatpush.msra.mxu0 0.0
        %4190 = vmatpush.msra.mxu0 0.0
        %4191 = vmatpush.msra.mxu0 0.0
        %4192 = vmatpush.msra.mxu0 0.0
        %4193 = vmatpush.msra.mxu0 0.0
        %4194 = vmatpush.msra.mxu0 0.0
        %4195 = vmatpush.msra.mxu0 0.0
        %4196 = vmatpush.msra.mxu0 %v1719
        %4197 = vmatpush.msra.mxu0 %v1591
        %4198 = vmatpush.msra.mxu0 %v1463
        %4199 = vmatpush.msra.mxu0 %v1335
        %4200 = vmatpush.msra.mxu0 %v1207
        %4201 = vmatpush.msra.mxu0 %v1079
        %4202 = vmatpush.msra.mxu0 %v951
        %4203 = vmatpush.msra.mxu0 %v823
        %4204 = vmatmul.f32.gmra.mxu0 %v1726
        %v4205 = vpop.f32.mrf.mxu0
        %v4206 = vadd.f32 0.0, %v4205
        %4207 = vdwg.mxu0
        %4208 = vmatpush.msra.mxu0 0.0
        %4209 = vmatpush.msra.mxu0 0.0
        %4210 = vmatpush.msra.mxu0 0.0
        %4211 = vmatpush.msra.mxu0 0.0
        %4212 = vmatpush.msra.mxu0 0.0
        %4213 = vmatpush.msra.mxu0 0.0
        %4214 = vmatpush.msra.mxu0 0.0
        %4215 = vmatpush.msra.mxu0 0.0
        %4216 = vmatpush.msra.mxu0 %v1720
        %4217 = vmatpush.msra.mxu0 %v1592
        %4218 = vmatpush.msra.mxu0 %v1464
        %4219 = vmatpush.msra.mxu0 %v1336
        %4220 = vmatpush.msra.mxu0 %v1208
        %4221 = vmatpush.msra.mxu0 %v1080
        %4222 = vmatpush.msra.mxu0 %v952
        %4223 = vmatpush.msra.mxu0 %v824
        %4224 = vmatmul.f32.gmra.mxu0 %v1726
        %v4225 = vpop.f32.mrf.mxu0
        %v4226 = vadd.f32 0.0, %v4225
        %4227 = vdwg.mxu0
        %4228 = vmatpush.msra.mxu0 0.0
        %4229 = vmatpush.msra.mxu0 0.0
        %4230 = vmatpush.msra.mxu0 0.0
        %4231 = vmatpush.msra.mxu0 0.0
        %4232 = vmatpush.msra.mxu0 0.0
        %4233 = vmatpush.msra.mxu0 0.0
        %4234 = vmatpush.msra.mxu0 0.0
        %4235 = vmatpush.msra.mxu0 0.0
        %4236 = vmatpush.msra.mxu0 %v1721
        %4237 = vmatpush.msra.mxu0 %v1593
        %4238 = vmatpush.msra.mxu0 %v1465
        %4239 = vmatpush.msra.mxu0 %v1337
        %4240 = vmatpush.msra.mxu0 %v1209
        %4241 = vmatpush.msra.mxu0 %v1081
        %4242 = vmatpush.msra.mxu0 %v953
        %4243 = vmatpush.msra.mxu0 %v825
        %4244 = vmatmul.f32.gmra.mxu0 %v1726
        %v4245 = vpop.f32.mrf.mxu0
        %v4246 = vadd.f32 0.0, %v4245
        %4247 = vdwg.mxu0
        %4248 = vmatpush.msra.mxu0 0.0
        %4249 = vmatpush.msra.mxu0 0.0
        %4250 = vmatpush.msra.mxu0 0.0
        %4251 = vmatpush.msra.mxu0 0.0
        %4252 = vmatpush.msra.mxu0 0.0
        %4253 = vmatpush.msra.mxu0 0.0
        %4254 = vmatpush.msra.mxu0 0.0
        %4255 = vmatpush.msra.mxu0 0.0
        %4256 = vmatpush.msra.mxu0 %v1722
        %4257 = vmatpush.msra.mxu0 %v1594
        %4258 = vmatpush.msra.mxu0 %v1466
        %4259 = vmatpush.msra.mxu0 %v1338
        %4260 = vmatpush.msra.mxu0 %v1210
        %4261 = vmatpush.msra.mxu0 %v1082
        %4262 = vmatpush.msra.mxu0 %v954
        %4263 = vmatpush.msra.mxu0 %v826
        %4264 = vmatmul.f32.gmra.mxu0 %v1726
        %v4265 = vpop.f32.mrf.mxu0
        %v4266 = vadd.f32 0.0, %v4265
        %4267 = vdwg.mxu0
        %4268 = vmatpush.msra.mxu0 0.0
        %4269 = vmatpush.msra.mxu0 0.0
        %4270 = vmatpush.msra.mxu0 0.0
        %4271 = vmatpush.msra.mxu0 0.0
        %4272 = vmatpush.msra.mxu0 0.0
        %4273 = vmatpush.msra.mxu0 0.0
        %4274 = vmatpush.msra.mxu0 0.0
        %4275 = vmatpush.msra.mxu0 0.0
        %4276 = vmatpush.msra.mxu0 %v1723
        %4277 = vmatpush.msra.mxu0 %v1595
        %4278 = vmatpush.msra.mxu0 %v1467
        %4279 = vmatpush.msra.mxu0 %v1339
        %4280 = vmatpush.msra.mxu0 %v1211
        %4281 = vmatpush.msra.mxu0 %v1083
        %4282 = vmatpush.msra.mxu0 %v955
        %4283 = vmatpush.msra.mxu0 %v827
        %4284 = vmatmul.f32.gmra.mxu0 %v1726
        %v4285 = vpop.f32.mrf.mxu0
        %v4286 = vadd.f32 0.0, %v4285
        %4287 = vdwg.mxu0
        %v4416 = vrot.slane %v1766, 7
        %v4417 = vrot.slane %v1786, 6
        %v4418 = vrot.slane %v1806, 5
        %v4419 = vrot.slane %v1826, 4
        %v4420 = vrot.slane %v1846, 3
        %v4421 = vrot.slane %v1866, 2
        %v4422 = vrot.slane %v1886, 1
        %v4423 = vrot.slane %v1926, 7
        %v4424 = vrot.slane %v1946, 6
        %v4425 = vrot.slane %v1966, 5
        %v4426 = vrot.slane %v1986, 4
        %v4427 = vrot.slane %v2006, 3
        %v4428 = vrot.slane %v2026, 2
        %v4429 = vrot.slane %v2046, 1
        %v4430 = vrot.slane %v2086, 7
        %v4431 = vrot.slane %v2106, 6
        %v4432 = vrot.slane %v2126, 5
        %v4433 = vrot.slane %v2146, 4
        %v4434 = vrot.slane %v2166, 3
        %v4435 = vrot.slane %v2186, 2
        %v4436 = vrot.slane %v2206, 1
        %v4437 = vrot.slane %v2246, 7
        %v4438 = vrot.slane %v2266, 6
        %v4439 = vrot.slane %v2286, 5
        %v4440 = vrot.slane %v2306, 4
        %v4441 = vrot.slane %v2326, 3
        %v4442 = vrot.slane %v2346, 2
        %v4443 = vrot.slane %v2366, 1
        %v4444 = vrot.slane %v2406, 7
        %v4445 = vrot.slane %v2426, 6
        %v4446 = vrot.slane %v2446, 5
        %v4447 = vrot.slane %v2466, 4
        %v4448 = vrot.slane %v2486, 3
        %v4449 = vrot.slane %v2506, 2
        %v4450 = vrot.slane %v2526, 1
        %v4451 = vrot.slane %v2566, 7
        %v4452 = vrot.slane %v2586, 6
        %v4453 = vrot.slane %v2606, 5
        %v4454 = vrot.slane %v2626, 4
        %v4455 = vrot.slane %v2646, 3
        %v4456 = vrot.slane %v2666, 2
        %v4457 = vrot.slane %v2686, 1
        %v4458 = vrot.slane %v2726, 7
        %v4459 = vrot.slane %v2746, 6
        %v4460 = vrot.slane %v2766, 5
        %v4461 = vrot.slane %v2786, 4
        %v4462 = vrot.slane %v2806, 3
        %v4463 = vrot.slane %v2826, 2
        %v4464 = vrot.slane %v2846, 1
        %v4465 = vrot.slane %v2886, 7
        %v4466 = vrot.slane %v2906, 6
        %v4467 = vrot.slane %v2926, 5
        %v4468 = vrot.slane %v2946, 4
        %v4469 = vrot.slane %v2966, 3
        %v4470 = vrot.slane %v2986, 2
        %v4471 = vrot.slane %v3006, 1
        %v4472 = vrot.slane %v3046, 7
        %v4473 = vrot.slane %v3066, 6
        %v4474 = vrot.slane %v3086, 5
        %v4475 = vrot.slane %v3106, 4
        %v4476 = vrot.slane %v3126, 3
        %v4477 = vrot.slane %v3146, 2
        %v4478 = vrot.slane %v3166, 1
        %v4479 = vrot.slane %v3206, 7
        %v4480 = vrot.slane %v3226, 6
        %v4481 = vrot.slane %v3246, 5
        %v4482 = vrot.slane %v3266, 4
        %v4483 = vrot.slane %v3286, 3
        %v4484 = vrot.slane %v3306, 2
        %v4485 = vrot.slane %v3326, 1
        %v4486 = vrot.slane %v3366, 7
        %v4487 = vrot.slane %v3386, 6
        %v4488 = vrot.slane %v3406, 5
        %v4489 = vrot.slane %v3426, 4
        %v4490 = vrot.slane %v3446, 3
        %v4491 = vrot.slane %v3466, 2
        %v4492 = vrot.slane %v3486, 1
        %v4493 = vrot.slane %v3526, 7
        %v4494 = vrot.slane %v3546, 6
        %v4495 = vrot.slane %v3566, 5
        %v4496 = vrot.slane %v3586, 4
        %v4497 = vrot.slane %v3606, 3
        %v4498 = vrot.slane %v3626, 2
        %v4499 = vrot.slane %v3646, 1
        %v4500 = vrot.slane %v3686, 7
        %v4501 = vrot.slane %v3706, 6
        %v4502 = vrot.slane %v3726, 5
        %v4503 = vrot.slane %v3746, 4
        %v4504 = vrot.slane %v3766, 3
        %v4505 = vrot.slane %v3786, 2
        %v4506 = vrot.slane %v3806, 1
        %v4507 = vrot.slane %v3846, 7
        %v4508 = vrot.slane %v3866, 6
        %v4509 = vrot.slane %v3886, 5
        %v4510 = vrot.slane %v3906, 4
        %v4511 = vrot.slane %v3926, 3
        %v4512 = vrot.slane %v3946, 2
        %v4513 = vrot.slane %v3966, 1
        %v4514 = vrot.slane %v4006, 7
        %v4515 = vrot.slane %v4026, 6
        %v4516 = vrot.slane %v4046, 5
        %v4517 = vrot.slane %v4066, 4
        %v4518 = vrot.slane %v4086, 3
        %v4519 = vrot.slane %v4106, 2
        %v4520 = vrot.slane %v4126, 1
        %v4521 = vrot.slane %v4166, 7
        %v4522 = vrot.slane %v4186, 6
        %v4523 = vrot.slane %v4206, 5
        %v4524 = vrot.slane %v4226, 4
        %v4525 = vrot.slane %v4246, 3
        %v4526 = vrot.slane %v4266, 2
        %v4527 = vrot.slane %v4286, 1
        %vm4528 = vcmask 1040384
        %v4529 = vsel %vm4528, %v1746, %v4416
        %vm4530 = vcmask 1042434
        %v4531 = vsel %vm4530, %v4417, %v4418
        %vm4532 = vcmask 1041408
        %v4533 = vsel %vm4532, %v4529, %v4531
        %vm4534 = vcmask 1044484
        %v4535 = vsel %vm4534, %v4419, %v4420
        %vm4536 = vcmask 1046534
        %v4537 = vsel %vm4536, %v4421, %v4422
        %vm4538 = vcmask 1045508
        %v4539 = vsel %vm4538, %v4535, %v4537
        %vm4540 = vcmask 1043456
        %v4541 = vsel %vm4540, %v4533, %v4539
        %v4542 = vsel %vm4528, %v1906, %v4423
        %v4543 = vsel %vm4530, %v4424, %v4425
        %v4544 = vsel %vm4532, %v4542, %v4543
        %v4545 = vsel %vm4534, %v4426, %v4427
        %v4546 = vsel %vm4536, %v4428, %v4429
        %v4547 = vsel %vm4538, %v4545, %v4546
        %v4548 = vsel %vm4540, %v4544, %v4547
        %v4549 = vsel %vm4528, %v2066, %v4430
        %v4550 = vsel %vm4530, %v4431, %v4432
        %v4551 = vsel %vm4532, %v4549, %v4550
        %v4552 = vsel %vm4534, %v4433, %v4434
        %v4553 = vsel %vm4536, %v4435, %v4436
        %v4554 = vsel %vm4538, %v4552, %v4553
        %v4555 = vsel %vm4540, %v4551, %v4554
        %v4556 = vsel %vm4528, %v2226, %v4437
        %v4557 = vsel %vm4530, %v4438, %v4439
        %v4558 = vsel %vm4532, %v4556, %v4557
        %v4559 = vsel %vm4534, %v4440, %v4441
        %v4560 = vsel %vm4536, %v4442, %v4443
        %v4561 = vsel %vm4538, %v4559, %v4560
        %v4562 = vsel %vm4540, %v4558, %v4561
        %v4563 = vsel %vm4528, %v2386, %v4444
        %v4564 = vsel %vm4530, %v4445, %v4446
        %v4565 = vsel %vm4532, %v4563, %v4564
        %v4566 = vsel %vm4534, %v4447, %v4448
        %v4567 = vsel %vm4536, %v4449, %v4450
        %v4568 = vsel %vm4538, %v4566, %v4567
        %v4569 = vsel %vm4540, %v4565, %v4568
        %v4570 = vsel %vm4528, %v2546, %v4451
        %v4571 = vsel %vm4530, %v4452, %v4453
        %v4572 = vsel %vm4532, %v4570, %v4571
        %v4573 = vsel %vm4534, %v4454, %v4455
        %v4574 = vsel %vm4536, %v4456, %v4457
        %v4575 = vsel %vm4538, %v4573, %v4574
        %v4576 = vsel %vm4540, %v4572, %v4575
        %v4577 = vsel %vm4528, %v2706, %v4458
        %v4578 = vsel %vm4530, %v4459, %v4460
        %v4579 = vsel %vm4532, %v4577, %v4578
        %v4580 = vsel %vm4534, %v4461, %v4462
        %v4581 = vsel %vm4536, %v4463, %v4464
        %v4582 = vsel %vm4538, %v4580, %v4581
        %v4583 = vsel %vm4540, %v4579, %v4582
        %v4584 = vsel %vm4528, %v2866, %v4465
        %v4585 = vsel %vm4530, %v4466, %v4467
        %v4586 = vsel %vm4532, %v4584, %v4585
        %v4587 = vsel %vm4534, %v4468, %v4469
        %v4588 = vsel %vm4536, %v4470, %v4471
        %v4589 = vsel %vm4538, %v4587, %v4588
        %v4590 = vsel %vm4540, %v4586, %v4589
        %v4591 = vsel %vm4528, %v3026, %v4472
        %v4592 = vsel %vm4530, %v4473, %v4474
        %v4593 = vsel %vm4532, %v4591, %v4592
        %v4594 = vsel %vm4534, %v4475, %v4476
        %v4595 = vsel %vm4536, %v4477, %v4478
        %v4596 = vsel %vm4538, %v4594, %v4595
        %v4597 = vsel %vm4540, %v4593, %v4596
        %v4598 = vsel %vm4528, %v3186, %v4479
        %v4599 = vsel %vm4530, %v4480, %v4481
        %v4600 = vsel %vm4532, %v4598, %v4599
        %v4601 = vsel %vm4534, %v4482, %v4483
        %v4602 = vsel %vm4536, %v4484, %v4485
        %v4603 = vsel %vm4538, %v4601, %v4602
        %v4604 = vsel %vm4540, %v4600, %v4603
        %v4605 = vsel %vm4528, %v3346, %v4486
        %v4606 = vsel %vm4530, %v4487, %v4488
        %v4607 = vsel %vm4532, %v4605, %v4606
        %v4608 = vsel %vm4534, %v4489, %v4490
        %v4609 = vsel %vm4536, %v4491, %v4492
        %v4610 = vsel %vm4538, %v4608, %v4609
        %v4611 = vsel %vm4540, %v4607, %v4610
        %v4612 = vsel %vm4528, %v3506, %v4493
        %v4613 = vsel %vm4530, %v4494, %v4495
        %v4614 = vsel %vm4532, %v4612, %v4613
        %v4615 = vsel %vm4534, %v4496, %v4497
        %v4616 = vsel %vm4536, %v4498, %v4499
        %v4617 = vsel %vm4538, %v4615, %v4616
        %v4618 = vsel %vm4540, %v4614, %v4617
        %v4619 = vsel %vm4528, %v3666, %v4500
        %v4620 = vsel %vm4530, %v4501, %v4502
        %v4621 = vsel %vm4532, %v4619, %v4620
        %v4622 = vsel %vm4534, %v4503, %v4504
        %v4623 = vsel %vm4536, %v4505, %v4506
        %v4624 = vsel %vm4538, %v4622, %v4623
        %v4625 = vsel %vm4540, %v4621, %v4624
        %v4626 = vsel %vm4528, %v3826, %v4507
        %v4627 = vsel %vm4530, %v4508, %v4509
        %v4628 = vsel %vm4532, %v4626, %v4627
        %v4629 = vsel %vm4534, %v4510, %v4511
        %v4630 = vsel %vm4536, %v4512, %v4513
        %v4631 = vsel %vm4538, %v4629, %v4630
        %v4632 = vsel %vm4540, %v4628, %v4631
        %v4633 = vsel %vm4528, %v3986, %v4514
        %v4634 = vsel %vm4530, %v4515, %v4516
        %v4635 = vsel %vm4532, %v4633, %v4634
        %v4636 = vsel %vm4534, %v4517, %v4518
        %v4637 = vsel %vm4536, %v4519, %v4520
        %v4638 = vsel %vm4538, %v4636, %v4637
        %v4639 = vsel %vm4540, %v4635, %v4638
        %v4640 = vsel %vm4528, %v4146, %v4521
        %v4641 = vsel %vm4530, %v4522, %v4523
        %v4642 = vsel %vm4532, %v4640, %v4641
        %v4643 = vsel %vm4534, %v4524, %v4525
        %v4644 = vsel %vm4536, %v4526, %v4527
        %v4645 = vsel %vm4538, %v4643, %v4644
        %v4646 = vsel %vm4540, %v4642, %v4645
        %v4663 = vmul.f32 %v522, 0.8
        %v4664 = vmul.f32 %v523, 0.8
        %v4665 = vmul.f32 %v524, 0.8
        %v4666 = vmul.f32 %v525, 0.8
        %v4667 = vmul.f32 %v526, 0.8
        %v4668 = vmul.f32 %v527, 0.8
        %v4669 = vmul.f32 %v528, 0.8
        %v4670 = vmul.f32 %v529, 0.8
        %v4671 = vmul.f32 %v530, 0.8
        %v4672 = vmul.f32 %v531, 0.8
        %v4673 = vmul.f32 %v532, 0.8
        %v4674 = vmul.f32 %v533, 0.8
        %v4675 = vmul.f32 %v534, 0.8
        %v4676 = vmul.f32 %v535, 0.8
        %v4677 = vmul.f32 %v536, 0.8
        %v4678 = vmul.f32 %v537, 0.8
        %v4679 = vld [vmem:[%s6] sm:$0xff]
        %v4680 = vld [vmem:[%s6 + $0x8] sm:$0xff]
        %v4681 = vld [vmem:[%s6 + $0x10] sm:$0xff]
        %v4682 = vld [vmem:[%s6 + $0x18] sm:$0xff]
        %v4683 = vld [vmem:[%s6 + $0x20] sm:$0xff]
        %v4684 = vld [vmem:[%s6 + $0x28] sm:$0xff]
        %v4685 = vld [vmem:[%s6 + $0x30] sm:$0xff]
        %v4686 = vld [vmem:[%s6 + $0x38] sm:$0xff]
        %v4687 = vld [vmem:[%s6 + $0x40] sm:$0xff]
        %v4688 = vld [vmem:[%s6 + $0x48] sm:$0xff]
        %v4689 = vld [vmem:[%s6 + $0x50] sm:$0xff]
        %v4690 = vld [vmem:[%s6 + $0x58] sm:$0xff]
        %v4691 = vld [vmem:[%s6 + $0x60] sm:$0xff]
        %v4692 = vld [vmem:[%s6 + $0x68] sm:$0xff]
        %v4693 = vld [vmem:[%s6 + $0x70] sm:$0xff]
        %v4694 = vld [vmem:[%s6 + $0x78] sm:$0xff]
        %v4695 = vmul.f32 %v683, %v4679
        %v4696 = vmul.f32 %v684, %v4680
        %v4697 = vmul.f32 %v685, %v4681
        %v4698 = vmul.f32 %v686, %v4682
        %v4699 = vmul.f32 %v687, %v4683
        %v4700 = vmul.f32 %v688, %v4684
        %v4701 = vmul.f32 %v689, %v4685
        %v4702 = vmul.f32 %v690, %v4686
        %v4703 = vmul.f32 %v691, %v4687
        %v4704 = vmul.f32 %v692, %v4688
        %v4705 = vmul.f32 %v693, %v4689
        %v4706 = vmul.f32 %v694, %v4690
        %v4707 = vmul.f32 %v695, %v4691
        %v4708 = vmul.f32 %v696, %v4692
        %v4709 = vmul.f32 %v697, %v4693
        %v4710 = vmul.f32 %v698, %v4694
        %v4711 = vadd.f32 %v4695, %v4541
        %v4712 = vadd.f32 %v4696, %v4548
        %v4713 = vadd.f32 %v4697, %v4555
        %v4714 = vadd.f32 %v4698, %v4562
        %v4715 = vadd.f32 %v4699, %v4569
        %v4716 = vadd.f32 %v4700, %v4576
        %v4717 = vadd.f32 %v4701, %v4583
        %v4718 = vadd.f32 %v4702, %v4590
        %v4719 = vadd.f32 %v4703, %v4597
        %v4720 = vadd.f32 %v4704, %v4604
        %v4721 = vadd.f32 %v4705, %v4611
        %v4722 = vadd.f32 %v4706, %v4618
        %v4723 = vadd.f32 %v4707, %v4625
        %v4724 = vadd.f32 %v4708, %v4632
        %v4725 = vadd.f32 %v4709, %v4639
        %v4726 = vadd.f32 %v4710, %v4646
        %v4727 = vmul.f32 %v4711, 0.2
        %v4728 = vmul.f32 %v4712, 0.2
        %v4729 = vmul.f32 %v4713, 0.2
        %v4730 = vmul.f32 %v4714, 0.2
        %v4731 = vmul.f32 %v4715, 0.2
        %v4732 = vmul.f32 %v4716, 0.2
        %v4733 = vmul.f32 %v4717, 0.2
        %v4734 = vmul.f32 %v4718, 0.2
        %v4735 = vmul.f32 %v4719, 0.2
        %v4736 = vmul.f32 %v4720, 0.2
        %v4737 = vmul.f32 %v4721, 0.2
        %v4738 = vmul.f32 %v4722, 0.2
        %v4739 = vmul.f32 %v4723, 0.2
        %v4740 = vmul.f32 %v4724, 0.2
        %v4741 = vmul.f32 %v4725, 0.2
        %v4742 = vmul.f32 %v4726, 0.2
        %v4743 = vadd.f32 %v4663, %v4727
        %v4744 = vadd.f32 %v4664, %v4728
        %v4745 = vadd.f32 %v4665, %v4729
        %v4746 = vadd.f32 %v4666, %v4730
        %v4747 = vadd.f32 %v4667, %v4731
        %v4748 = vadd.f32 %v4668, %v4732
        %v4749 = vadd.f32 %v4669, %v4733
        %v4750 = vadd.f32 %v4670, %v4734
        %v4751 = vadd.f32 %v4671, %v4735
        %v4752 = vadd.f32 %v4672, %v4736
        %v4753 = vadd.f32 %v4673, %v4737
        %v4754 = vadd.f32 %v4674, %v4738
        %v4755 = vadd.f32 %v4675, %v4739
        %v4756 = vadd.f32 %v4676, %v4740
        %v4757 = vadd.f32 %v4677, %v4741
        %v4758 = vadd.f32 %v4678, %v4742
        %4759 = vst [vmem:[#allocation4] sm:$0xff] %v4743
        %4760 = vst [vmem:[#allocation4 + $0x8] sm:$0xff] %v4744
        %4761 = vst [vmem:[#allocation4 + $0x10] sm:$0xff] %v4745
        %4762 = vst [vmem:[#allocation4 + $0x18] sm:$0xff] %v4746
        %4763 = vst [vmem:[#allocation4 + $0x20] sm:$0xff] %v4747
        %4764 = vst [vmem:[#allocation4 + $0x28] sm:$0xff] %v4748
        %4765 = vst [vmem:[#allocation4 + $0x30] sm:$0xff] %v4749
        %4766 = vst [vmem:[#allocation4 + $0x38] sm:$0xff] %v4750
        %4767 = vst [vmem:[#allocation4 + $0x40] sm:$0xff] %v4751
        %4768 = vst [vmem:[#allocation4 + $0x48] sm:$0xff] %v4752
        %4769 = vst [vmem:[#allocation4 + $0x50] sm:$0xff] %v4753
        %4770 = vst [vmem:[#allocation4 + $0x58] sm:$0xff] %v4754
        %4771 = vst [vmem:[#allocation4 + $0x60] sm:$0xff] %v4755
        %4772 = vst [vmem:[#allocation4 + $0x68] sm:$0xff] %v4756
        %4773 = vst [vmem:[#allocation4 + $0x70] sm:$0xff] %v4757
        %4774 = vst [vmem:[#allocation4 + $0x78] sm:$0xff] %v4758
        %v4775 = vld [vmem:[%s8] sm:$0xff]
        %v4776 = vld [vmem:[%s8 + $0x8] sm:$0xff]
        %v4777 = vld [vmem:[%s8 + $0x10] sm:$0xff]
        %v4778 = vld [vmem:[%s8 + $0x18] sm:$0xff]
        %v4779 = vld [vmem:[%s8 + $0x20] sm:$0xff]
        %v4780 = vld [vmem:[%s8 + $0x28] sm:$0xff]
        %v4781 = vld [vmem:[%s8 + $0x30] sm:$0xff]
        %v4782 = vld [vmem:[%s8 + $0x38] sm:$0xff]
        %v4783 = vld [vmem:[%s9] sm:$0xff]
        %v4784 = vld [vmem:[%s9 + $0x8] sm:$0xff]
        %v4785 = vld [vmem:[%s9 + $0x10] sm:$0xff]
        %v4786 = vld [vmem:[%s9 + $0x18] sm:$0xff]
        %v4787 = vld [vmem:[%s9 + $0x20] sm:$0xff]
        %v4788 = vld [vmem:[%s9 + $0x28] sm:$0xff]
        %v4789 = vld [vmem:[%s9 + $0x30] sm:$0xff]
        %v4790 = vld [vmem:[%s9 + $0x38] sm:$0xff]
        %v4791 = vld [vmem:[%s9 + $0x40] sm:$0xff]
        %v4792 = vld [vmem:[%s9 + $0x48] sm:$0xff]
        %v4793 = vld [vmem:[%s9 + $0x50] sm:$0xff]
        %v4794 = vld [vmem:[%s9 + $0x58] sm:$0xff]
        %v4795 = vld [vmem:[%s9 + $0x60] sm:$0xff]
        %v4796 = vld [vmem:[%s9 + $0x68] sm:$0xff]
        %v4797 = vld [vmem:[%s9 + $0x70] sm:$0xff]
        %v4798 = vld [vmem:[%s9 + $0x78] sm:$0xff]
        %v4799 = vld [vmem:[%s9 + $0x80] sm:$0xff]
        %v4800 = vld [vmem:[%s9 + $0x88] sm:$0xff]
        %v4801 = vld [vmem:[%s9 + $0x90] sm:$0xff]
        %v4802 = vld [vmem:[%s9 + $0x98] sm:$0xff]
        %v4803 = vld [vmem:[%s9 + $0xa0] sm:$0xff]
        %v4804 = vld [vmem:[%s9 + $0xa8] sm:$0xff]
        %v4805 = vld [vmem:[%s9 + $0xb0] sm:$0xff]
        %v4806 = vld [vmem:[%s9 + $0xb8] sm:$0xff]
        %v4807 = vld [vmem:[%s9 + $0xc0] sm:$0xff]
        %v4808 = vld [vmem:[%s9 + $0xc8] sm:$0xff]
        %v4809 = vld [vmem:[%s9 + $0xd0] sm:$0xff]
        %v4810 = vld [vmem:[%s9 + $0xd8] sm:$0xff]
        %v4811 = vld [vmem:[%s9 + $0xe0] sm:$0xff]
        %v4812 = vld [vmem:[%s9 + $0xe8] sm:$0xff]
        %v4813 = vld [vmem:[%s9 + $0xf0] sm:$0xff]
        %v4814 = vld [vmem:[%s9 + $0xf8] sm:$0xff]
        %v4815 = vld [vmem:[%s9 + $0x100] sm:$0xff]
        %v4816 = vld [vmem:[%s9 + $0x108] sm:$0xff]
        %v4817 = vld [vmem:[%s9 + $0x110] sm:$0xff]
        %v4818 = vld [vmem:[%s9 + $0x118] sm:$0xff]
        %v4819 = vld [vmem:[%s9 + $0x120] sm:$0xff]
        %v4820 = vld [vmem:[%s9 + $0x128] sm:$0xff]
        %v4821 = vld [vmem:[%s9 + $0x130] sm:$0xff]
        %v4822 = vld [vmem:[%s9 + $0x138] sm:$0xff]
        %v4823 = vld [vmem:[%s9 + $0x140] sm:$0xff]
        %v4824 = vld [vmem:[%s9 + $0x148] sm:$0xff]
        %v4825 = vld [vmem:[%s9 + $0x150] sm:$0xff]
        %v4826 = vld [vmem:[%s9 + $0x158] sm:$0xff]
        %v4827 = vld [vmem:[%s9 + $0x160] sm:$0xff]
        %v4828 = vld [vmem:[%s9 + $0x168] sm:$0xff]
        %v4829 = vld [vmem:[%s9 + $0x170] sm:$0xff]
        %v4830 = vld [vmem:[%s9 + $0x178] sm:$0xff]
        %v4831 = vld [vmem:[%s9 + $0x180] sm:$0xff]
        %v4832 = vld [vmem:[%s9 + $0x188] sm:$0xff]
        %v4833 = vld [vmem:[%s9 + $0x190] sm:$0xff]
        %v4834 = vld [vmem:[%s9 + $0x198] sm:$0xff]
        %v4835 = vld [vmem:[%s9 + $0x1a0] sm:$0xff]
        %v4836 = vld [vmem:[%s9 + $0x1a8] sm:$0xff]
        %v4837 = vld [vmem:[%s9 + $0x1b0] sm:$0xff]
        %v4838 = vld [vmem:[%s9 + $0x1b8] sm:$0xff]
        %v4839 = vld [vmem:[%s9 + $0x1c0] sm:$0xff]
        %v4840 = vld [vmem:[%s9 + $0x1c8] sm:$0xff]
        %v4841 = vld [vmem:[%s9 + $0x1d0] sm:$0xff]
        %v4842 = vld [vmem:[%s9 + $0x1d8] sm:$0xff]
        %v4843 = vld [vmem:[%s9 + $0x1e0] sm:$0xff]
        %v4844 = vld [vmem:[%s9 + $0x1e8] sm:$0xff]
        %v4845 = vld [vmem:[%s9 + $0x1f0] sm:$0xff]
        %v4846 = vld [vmem:[%s9 + $0x1f8] sm:$0xff]
        %v4847 = vld [vmem:[%s9 + $0x200] sm:$0xff]
        %v4848 = vld [vmem:[%s9 + $0x208] sm:$0xff]
        %v4849 = vld [vmem:[%s9 + $0x210] sm:$0xff]
        %v4850 = vld [vmem:[%s9 + $0x218] sm:$0xff]
        %v4851 = vld [vmem:[%s9 + $0x220] sm:$0xff]
        %v4852 = vld [vmem:[%s9 + $0x228] sm:$0xff]
        %v4853 = vld [vmem:[%s9 + $0x230] sm:$0xff]
        %v4854 = vld [vmem:[%s9 + $0x238] sm:$0xff]
        %v4855 = vld [vmem:[%s9 + $0x240] sm:$0xff]
        %v4856 = vld [vmem:[%s9 + $0x248] sm:$0xff]
        %v4857 = vld [vmem:[%s9 + $0x250] sm:$0xff]
        %v4858 = vld [vmem:[%s9 + $0x258] sm:$0xff]
        %v4859 = vld [vmem:[%s9 + $0x260] sm:$0xff]
        %v4860 = vld [vmem:[%s9 + $0x268] sm:$0xff]
        %v4861 = vld [vmem:[%s9 + $0x270] sm:$0xff]
        %v4862 = vld [vmem:[%s9 + $0x278] sm:$0xff]
        %v4863 = vld [vmem:[%s9 + $0x280] sm:$0xff]
        %v4864 = vld [vmem:[%s9 + $0x288] sm:$0xff]
        %v4865 = vld [vmem:[%s9 + $0x290] sm:$0xff]
        %v4866 = vld [vmem:[%s9 + $0x298] sm:$0xff]
        %v4867 = vld [vmem:[%s9 + $0x2a0] sm:$0xff]
        %v4868 = vld [vmem:[%s9 + $0x2a8] sm:$0xff]
        %v4869 = vld [vmem:[%s9 + $0x2b0] sm:$0xff]
        %v4870 = vld [vmem:[%s9 + $0x2b8] sm:$0xff]
        %v4871 = vld [vmem:[%s9 + $0x2c0] sm:$0xff]
        %v4872 = vld [vmem:[%s9 + $0x2c8] sm:$0xff]
        %v4873 = vld [vmem:[%s9 + $0x2d0] sm:$0xff]
        %v4874 = vld [vmem:[%s9 + $0x2d8] sm:$0xff]
        %v4875 = vld [vmem:[%s9 + $0x2e0] sm:$0xff]
        %v4876 = vld [vmem:[%s9 + $0x2e8] sm:$0xff]
        %v4877 = vld [vmem:[%s9 + $0x2f0] sm:$0xff]
        %v4878 = vld [vmem:[%s9 + $0x2f8] sm:$0xff]
        %v4879 = vld [vmem:[%s9 + $0x300] sm:$0xff]
        %v4880 = vld [vmem:[%s9 + $0x308] sm:$0xff]
        %v4881 = vld [vmem:[%s9 + $0x310] sm:$0xff]
        %v4882 = vld [vmem:[%s9 + $0x318] sm:$0xff]
        %v4883 = vld [vmem:[%s9 + $0x320] sm:$0xff]
        %v4884 = vld [vmem:[%s9 + $0x328] sm:$0xff]
        %v4885 = vld [vmem:[%s9 + $0x330] sm:$0xff]
        %v4886 = vld [vmem:[%s9 + $0x338] sm:$0xff]
        %v4887 = vld [vmem:[%s9 + $0x340] sm:$0xff]
        %v4888 = vld [vmem:[%s9 + $0x348] sm:$0xff]
        %v4889 = vld [vmem:[%s9 + $0x350] sm:$0xff]
        %v4890 = vld [vmem:[%s9 + $0x358] sm:$0xff]
        %v4891 = vld [vmem:[%s9 + $0x360] sm:$0xff]
        %v4892 = vld [vmem:[%s9 + $0x368] sm:$0xff]
        %v4893 = vld [vmem:[%s9 + $0x370] sm:$0xff]
        %v4894 = vld [vmem:[%s9 + $0x378] sm:$0xff]
        %v4895 = vld [vmem:[%s9 + $0x380] sm:$0xff]
        %v4896 = vld [vmem:[%s9 + $0x388] sm:$0xff]
        %v4897 = vld [vmem:[%s9 + $0x390] sm:$0xff]
        %v4898 = vld [vmem:[%s9 + $0x398] sm:$0xff]
        %v4899 = vld [vmem:[%s9 + $0x3a0] sm:$0xff]
        %v4900 = vld [vmem:[%s9 + $0x3a8] sm:$0xff]
        %v4901 = vld [vmem:[%s9 + $0x3b0] sm:$0xff]
        %v4902 = vld [vmem:[%s9 + $0x3b8] sm:$0xff]
        %v4903 = vld [vmem:[%s9 + $0x3c0] sm:$0xff]
        %v4904 = vld [vmem:[%s9 + $0x3c8] sm:$0xff]
        %v4905 = vld [vmem:[%s9 + $0x3d0] sm:$0xff]
        %v4906 = vld [vmem:[%s9 + $0x3d8] sm:$0xff]
        %v4907 = vld [vmem:[%s9 + $0x3e0] sm:$0xff]
        %v4908 = vld [vmem:[%s9 + $0x3e8] sm:$0xff]
        %v4909 = vld [vmem:[%s9 + $0x3f0] sm:$0xff]
        %v4910 = vld [vmem:[%s9 + $0x3f8] sm:$0xff]
        %v4911 = vld [vmem:[%s9 + $0x400] sm:$0xff]
        %v4912 = vld [vmem:[%s9 + $0x408] sm:$0xff]
        %v4913 = vld [vmem:[%s9 + $0x410] sm:$0xff]
        %v4914 = vld [vmem:[%s9 + $0x418] sm:$0xff]
        %v4915 = vld [vmem:[%s9 + $0x420] sm:$0xff]
        %v4916 = vld [vmem:[%s9 + $0x428] sm:$0xff]
        %v4917 = vld [vmem:[%s9 + $0x430] sm:$0xff]
        %v4918 = vld [vmem:[%s9 + $0x438] sm:$0xff]
        %v4919 = vld [vmem:[%s9 + $0x440] sm:$0xff]
        %v4920 = vld [vmem:[%s9 + $0x448] sm:$0xff]
        %v4921 = vld [vmem:[%s9 + $0x450] sm:$0xff]
        %v4922 = vld [vmem:[%s9 + $0x458] sm:$0xff]
        %v4923 = vld [vmem:[%s9 + $0x460] sm:$0xff]
        %v4924 = vld [vmem:[%s9 + $0x468] sm:$0xff]
        %v4925 = vld [vmem:[%s9 + $0x470] sm:$0xff]
        %v4926 = vld [vmem:[%s9 + $0x478] sm:$0xff]
        %v4927 = vld [vmem:[%s9 + $0x480] sm:$0xff]
        %v4928 = vld [vmem:[%s9 + $0x488] sm:$0xff]
        %v4929 = vld [vmem:[%s9 + $0x490] sm:$0xff]
        %v4930 = vld [vmem:[%s9 + $0x498] sm:$0xff]
        %v4931 = vld [vmem:[%s9 + $0x4a0] sm:$0xff]
        %v4932 = vld [vmem:[%s9 + $0x4a8] sm:$0xff]
        %v4933 = vld [vmem:[%s9 + $0x4b0] sm:$0xff]
        %v4934 = vld [vmem:[%s9 + $0x4b8] sm:$0xff]
        %v4935 = vld [vmem:[%s9 + $0x4c0] sm:$0xff]
        %v4936 = vld [vmem:[%s9 + $0x4c8] sm:$0xff]
        %v4937 = vld [vmem:[%s9 + $0x4d0] sm:$0xff]
        %v4938 = vld [vmem:[%s9 + $0x4d8] sm:$0xff]
        %v4939 = vld [vmem:[%s9 + $0x4e0] sm:$0xff]
        %v4940 = vld [vmem:[%s9 + $0x4e8] sm:$0xff]
        %v4941 = vld [vmem:[%s9 + $0x4f0] sm:$0xff]
        %v4942 = vld [vmem:[%s9 + $0x4f8] sm:$0xff]
        %v4943 = vld [vmem:[%s9 + $0x500] sm:$0xff]
        %v4944 = vld [vmem:[%s9 + $0x508] sm:$0xff]
        %v4945 = vld [vmem:[%s9 + $0x510] sm:$0xff]
        %v4946 = vld [vmem:[%s9 + $0x518] sm:$0xff]
        %v4947 = vld [vmem:[%s9 + $0x520] sm:$0xff]
        %v4948 = vld [vmem:[%s9 + $0x528] sm:$0xff]
        %v4949 = vld [vmem:[%s9 + $0x530] sm:$0xff]
        %v4950 = vld [vmem:[%s9 + $0x538] sm:$0xff]
        %v4951 = vld [vmem:[%s9 + $0x540] sm:$0xff]
        %v4952 = vld [vmem:[%s9 + $0x548] sm:$0xff]
        %v4953 = vld [vmem:[%s9 + $0x550] sm:$0xff]
        %v4954 = vld [vmem:[%s9 + $0x558] sm:$0xff]
        %v4955 = vld [vmem:[%s9 + $0x560] sm:$0xff]
        %v4956 = vld [vmem:[%s9 + $0x568] sm:$0xff]
        %v4957 = vld [vmem:[%s9 + $0x570] sm:$0xff]
        %v4958 = vld [vmem:[%s9 + $0x578] sm:$0xff]
        %v4959 = vld [vmem:[%s9 + $0x580] sm:$0xff]
        %v4960 = vld [vmem:[%s9 + $0x588] sm:$0xff]
        %v4961 = vld [vmem:[%s9 + $0x590] sm:$0xff]
        %v4962 = vld [vmem:[%s9 + $0x598] sm:$0xff]
        %v4963 = vld [vmem:[%s9 + $0x5a0] sm:$0xff]
        %v4964 = vld [vmem:[%s9 + $0x5a8] sm:$0xff]
        %v4965 = vld [vmem:[%s9 + $0x5b0] sm:$0xff]
        %v4966 = vld [vmem:[%s9 + $0x5b8] sm:$0xff]
        %v4967 = vld [vmem:[%s9 + $0x5c0] sm:$0xff]
        %v4968 = vld [vmem:[%s9 + $0x5c8] sm:$0xff]
        %v4969 = vld [vmem:[%s9 + $0x5d0] sm:$0xff]
        %v4970 = vld [vmem:[%s9 + $0x5d8] sm:$0xff]
        %v4971 = vld [vmem:[%s9 + $0x5e0] sm:$0xff]
        %v4972 = vld [vmem:[%s9 + $0x5e8] sm:$0xff]
        %v4973 = vld [vmem:[%s9 + $0x5f0] sm:$0xff]
        %v4974 = vld [vmem:[%s9 + $0x5f8] sm:$0xff]
        %v4975 = vld [vmem:[%s9 + $0x600] sm:$0xff]
        %v4976 = vld [vmem:[%s9 + $0x608] sm:$0xff]
        %v4977 = vld [vmem:[%s9 + $0x610] sm:$0xff]
        %v4978 = vld [vmem:[%s9 + $0x618] sm:$0xff]
        %v4979 = vld [vmem:[%s9 + $0x620] sm:$0xff]
        %v4980 = vld [vmem:[%s9 + $0x628] sm:$0xff]
        %v4981 = vld [vmem:[%s9 + $0x630] sm:$0xff]
        %v4982 = vld [vmem:[%s9 + $0x638] sm:$0xff]
        %v4983 = vld [vmem:[%s9 + $0x640] sm:$0xff]
        %v4984 = vld [vmem:[%s9 + $0x648] sm:$0xff]
        %v4985 = vld [vmem:[%s9 + $0x650] sm:$0xff]
        %v4986 = vld [vmem:[%s9 + $0x658] sm:$0xff]
        %v4987 = vld [vmem:[%s9 + $0x660] sm:$0xff]
        %v4988 = vld [vmem:[%s9 + $0x668] sm:$0xff]
        %v4989 = vld [vmem:[%s9 + $0x670] sm:$0xff]
        %v4990 = vld [vmem:[%s9 + $0x678] sm:$0xff]
        %v4991 = vld [vmem:[%s9 + $0x680] sm:$0xff]
        %v4992 = vld [vmem:[%s9 + $0x688] sm:$0xff]
        %v4993 = vld [vmem:[%s9 + $0x690] sm:$0xff]
        %v4994 = vld [vmem:[%s9 + $0x698] sm:$0xff]
        %v4995 = vld [vmem:[%s9 + $0x6a0] sm:$0xff]
        %v4996 = vld [vmem:[%s9 + $0x6a8] sm:$0xff]
        %v4997 = vld [vmem:[%s9 + $0x6b0] sm:$0xff]
        %v4998 = vld [vmem:[%s9 + $0x6b8] sm:$0xff]
        %v4999 = vld [vmem:[%s9 + $0x6c0] sm:$0xff]
        %v5000 = vld [vmem:[%s9 + $0x6c8] sm:$0xff]
        %v5001 = vld [vmem:[%s9 + $0x6d0] sm:$0xff]
        %v5002 = vld [vmem:[%s9 + $0x6d8] sm:$0xff]
        %v5003 = vld [vmem:[%s9 + $0x6e0] sm:$0xff]
        %v5004 = vld [vmem:[%s9 + $0x6e8] sm:$0xff]
        %v5005 = vld [vmem:[%s9 + $0x6f0] sm:$0xff]
        %v5006 = vld [vmem:[%s9 + $0x6f8] sm:$0xff]
        %v5007 = vld [vmem:[%s9 + $0x700] sm:$0xff]
        %v5008 = vld [vmem:[%s9 + $0x708] sm:$0xff]
        %v5009 = vld [vmem:[%s9 + $0x710] sm:$0xff]
        %v5010 = vld [vmem:[%s9 + $0x718] sm:$0xff]
        %v5011 = vld [vmem:[%s9 + $0x720] sm:$0xff]
        %v5012 = vld [vmem:[%s9 + $0x728] sm:$0xff]
        %v5013 = vld [vmem:[%s9 + $0x730] sm:$0xff]
        %v5014 = vld [vmem:[%s9 + $0x738] sm:$0xff]
        %v5015 = vld [vmem:[%s9 + $0x740] sm:$0xff]
        %v5016 = vld [vmem:[%s9 + $0x748] sm:$0xff]
        %v5017 = vld [vmem:[%s9 + $0x750] sm:$0xff]
        %v5018 = vld [vmem:[%s9 + $0x758] sm:$0xff]
        %v5019 = vld [vmem:[%s9 + $0x760] sm:$0xff]
        %v5020 = vld [vmem:[%s9 + $0x768] sm:$0xff]
        %v5021 = vld [vmem:[%s9 + $0x770] sm:$0xff]
        %v5022 = vld [vmem:[%s9 + $0x778] sm:$0xff]
        %v5023 = vld [vmem:[%s9 + $0x780] sm:$0xff]
        %v5024 = vld [vmem:[%s9 + $0x788] sm:$0xff]
        %v5025 = vld [vmem:[%s9 + $0x790] sm:$0xff]
        %v5026 = vld [vmem:[%s9 + $0x798] sm:$0xff]
        %v5027 = vld [vmem:[%s9 + $0x7a0] sm:$0xff]
        %v5028 = vld [vmem:[%s9 + $0x7a8] sm:$0xff]
        %v5029 = vld [vmem:[%s9 + $0x7b0] sm:$0xff]
        %v5030 = vld [vmem:[%s9 + $0x7b8] sm:$0xff]
        %v5031 = vld [vmem:[%s9 + $0x7c0] sm:$0xff]
        %v5032 = vld [vmem:[%s9 + $0x7c8] sm:$0xff]
        %v5033 = vld [vmem:[%s9 + $0x7d0] sm:$0xff]
        %v5034 = vld [vmem:[%s9 + $0x7d8] sm:$0xff]
        %v5035 = vld [vmem:[%s9 + $0x7e0] sm:$0xff]
        %v5036 = vld [vmem:[%s9 + $0x7e8] sm:$0xff]
        %v5037 = vld [vmem:[%s9 + $0x7f0] sm:$0xff]
        %v5038 = vld [vmem:[%s9 + $0x7f8] sm:$0xff]
        %v5039 = vld [vmem:[%s9 + $0x800] sm:$0xff]
        %v5040 = vld [vmem:[%s9 + $0x808] sm:$0xff]
        %v5041 = vld [vmem:[%s9 + $0x810] sm:$0xff]
        %v5042 = vld [vmem:[%s9 + $0x818] sm:$0xff]
        %v5043 = vld [vmem:[%s9 + $0x820] sm:$0xff]
        %v5044 = vld [vmem:[%s9 + $0x828] sm:$0xff]
        %v5045 = vld [vmem:[%s9 + $0x830] sm:$0xff]
        %v5046 = vld [vmem:[%s9 + $0x838] sm:$0xff]
        %v5047 = vld [vmem:[%s9 + $0x840] sm:$0xff]
        %v5048 = vld [vmem:[%s9 + $0x848] sm:$0xff]
        %v5049 = vld [vmem:[%s9 + $0x850] sm:$0xff]
        %v5050 = vld [vmem:[%s9 + $0x858] sm:$0xff]
        %v5051 = vld [vmem:[%s9 + $0x860] sm:$0xff]
        %v5052 = vld [vmem:[%s9 + $0x868] sm:$0xff]
        %v5053 = vld [vmem:[%s9 + $0x870] sm:$0xff]
        %v5054 = vld [vmem:[%s9 + $0x878] sm:$0xff]
        %v5055 = vld [vmem:[%s9 + $0x880] sm:$0xff]
        %v5056 = vld [vmem:[%s9 + $0x888] sm:$0xff]
        %v5057 = vld [vmem:[%s9 + $0x890] sm:$0xff]
        %v5058 = vld [vmem:[%s9 + $0x898] sm:$0xff]
        %v5059 = vld [vmem:[%s9 + $0x8a0] sm:$0xff]
        %v5060 = vld [vmem:[%s9 + $0x8a8] sm:$0xff]
        %v5061 = vld [vmem:[%s9 + $0x8b0] sm:$0xff]
        %v5062 = vld [vmem:[%s9 + $0x8b8] sm:$0xff]
        %v5063 = vld [vmem:[%s9 + $0x8c0] sm:$0xff]
        %v5064 = vld [vmem:[%s9 + $0x8c8] sm:$0xff]
        %v5065 = vld [vmem:[%s9 + $0x8d0] sm:$0xff]
        %v5066 = vld [vmem:[%s9 + $0x8d8] sm:$0xff]
        %v5067 = vld [vmem:[%s9 + $0x8e0] sm:$0xff]
        %v5068 = vld [vmem:[%s9 + $0x8e8] sm:$0xff]
        %v5069 = vld [vmem:[%s9 + $0x8f0] sm:$0xff]
        %v5070 = vld [vmem:[%s9 + $0x8f8] sm:$0xff]
        %v5071 = vld [vmem:[%s9 + $0x900] sm:$0xff]
        %v5072 = vld [vmem:[%s9 + $0x908] sm:$0xff]
        %v5073 = vld [vmem:[%s9 + $0x910] sm:$0xff]
        %v5074 = vld [vmem:[%s9 + $0x918] sm:$0xff]
        %v5075 = vld [vmem:[%s9 + $0x920] sm:$0xff]
        %v5076 = vld [vmem:[%s9 + $0x928] sm:$0xff]
        %v5077 = vld [vmem:[%s9 + $0x930] sm:$0xff]
        %v5078 = vld [vmem:[%s9 + $0x938] sm:$0xff]
        %v5079 = vld [vmem:[%s9 + $0x940] sm:$0xff]
        %v5080 = vld [vmem:[%s9 + $0x948] sm:$0xff]
        %v5081 = vld [vmem:[%s9 + $0x950] sm:$0xff]
        %v5082 = vld [vmem:[%s9 + $0x958] sm:$0xff]
        %v5083 = vld [vmem:[%s9 + $0x960] sm:$0xff]
        %v5084 = vld [vmem:[%s9 + $0x968] sm:$0xff]
        %v5085 = vld [vmem:[%s9 + $0x970] sm:$0xff]
        %v5086 = vld [vmem:[%s9 + $0x978] sm:$0xff]
        %v5087 = vld [vmem:[%s9 + $0x980] sm:$0xff]
        %v5088 = vld [vmem:[%s9 + $0x988] sm:$0xff]
        %v5089 = vld [vmem:[%s9 + $0x990] sm:$0xff]
        %v5090 = vld [vmem:[%s9 + $0x998] sm:$0xff]
        %v5091 = vld [vmem:[%s9 + $0x9a0] sm:$0xff]
        %v5092 = vld [vmem:[%s9 + $0x9a8] sm:$0xff]
        %v5093 = vld [vmem:[%s9 + $0x9b0] sm:$0xff]
        %v5094 = vld [vmem:[%s9 + $0x9b8] sm:$0xff]
        %v5095 = vld [vmem:[%s9 + $0x9c0] sm:$0xff]
        %v5096 = vld [vmem:[%s9 + $0x9c8] sm:$0xff]
        %v5097 = vld [vmem:[%s9 + $0x9d0] sm:$0xff]
        %v5098 = vld [vmem:[%s9 + $0x9d8] sm:$0xff]
        %v5099 = vld [vmem:[%s9 + $0x9e0] sm:$0xff]
        %v5100 = vld [vmem:[%s9 + $0x9e8] sm:$0xff]
        %v5101 = vld [vmem:[%s9 + $0x9f0] sm:$0xff]
        %v5102 = vld [vmem:[%s9 + $0x9f8] sm:$0xff]
        %v5103 = vld [vmem:[%s9 + $0xa00] sm:$0xff]
        %v5104 = vld [vmem:[%s9 + $0xa08] sm:$0xff]
        %v5105 = vld [vmem:[%s9 + $0xa10] sm:$0xff]
        %v5106 = vld [vmem:[%s9 + $0xa18] sm:$0xff]
        %v5107 = vld [vmem:[%s9 + $0xa20] sm:$0xff]
        %v5108 = vld [vmem:[%s9 + $0xa28] sm:$0xff]
        %v5109 = vld [vmem:[%s9 + $0xa30] sm:$0xff]
        %v5110 = vld [vmem:[%s9 + $0xa38] sm:$0xff]
        %v5111 = vld [vmem:[%s9 + $0xa40] sm:$0xff]
        %v5112 = vld [vmem:[%s9 + $0xa48] sm:$0xff]
        %v5113 = vld [vmem:[%s9 + $0xa50] sm:$0xff]
        %v5114 = vld [vmem:[%s9 + $0xa58] sm:$0xff]
        %v5115 = vld [vmem:[%s9 + $0xa60] sm:$0xff]
        %v5116 = vld [vmem:[%s9 + $0xa68] sm:$0xff]
        %v5117 = vld [vmem:[%s9 + $0xa70] sm:$0xff]
        %v5118 = vld [vmem:[%s9 + $0xa78] sm:$0xff]
        %v5119 = vld [vmem:[%s9 + $0xa80] sm:$0xff]
        %v5120 = vld [vmem:[%s9 + $0xa88] sm:$0xff]
        %v5121 = vld [vmem:[%s9 + $0xa90] sm:$0xff]
        %v5122 = vld [vmem:[%s9 + $0xa98] sm:$0xff]
        %v5123 = vld [vmem:[%s9 + $0xaa0] sm:$0xff]
        %v5124 = vld [vmem:[%s9 + $0xaa8] sm:$0xff]
        %v5125 = vld [vmem:[%s9 + $0xab0] sm:$0xff]
        %v5126 = vld [vmem:[%s9 + $0xab8] sm:$0xff]
        %v5127 = vld [vmem:[%s9 + $0xac0] sm:$0xff]
        %v5128 = vld [vmem:[%s9 + $0xac8] sm:$0xff]
        %v5129 = vld [vmem:[%s9 + $0xad0] sm:$0xff]
        %v5130 = vld [vmem:[%s9 + $0xad8] sm:$0xff]
        %v5131 = vld [vmem:[%s9 + $0xae0] sm:$0xff]
        %v5132 = vld [vmem:[%s9 + $0xae8] sm:$0xff]
        %v5133 = vld [vmem:[%s9 + $0xaf0] sm:$0xff]
        %v5134 = vld [vmem:[%s9 + $0xaf8] sm:$0xff]
        %v5135 = vld [vmem:[%s9 + $0xb00] sm:$0xff]
        %v5136 = vld [vmem:[%s9 + $0xb08] sm:$0xff]
        %v5137 = vld [vmem:[%s9 + $0xb10] sm:$0xff]
        %v5138 = vld [vmem:[%s9 + $0xb18] sm:$0xff]
        %v5139 = vld [vmem:[%s9 + $0xb20] sm:$0xff]
        %v5140 = vld [vmem:[%s9 + $0xb28] sm:$0xff]
        %v5141 = vld [vmem:[%s9 + $0xb30] sm:$0xff]
        %v5142 = vld [vmem:[%s9 + $0xb38] sm:$0xff]
        %v5143 = vld [vmem:[%s9 + $0xb40] sm:$0xff]
        %v5144 = vld [vmem:[%s9 + $0xb48] sm:$0xff]
        %v5145 = vld [vmem:[%s9 + $0xb50] sm:$0xff]
        %v5146 = vld [vmem:[%s9 + $0xb58] sm:$0xff]
        %v5147 = vld [vmem:[%s9 + $0xb60] sm:$0xff]
        %v5148 = vld [vmem:[%s9 + $0xb68] sm:$0xff]
        %v5149 = vld [vmem:[%s9 + $0xb70] sm:$0xff]
        %v5150 = vld [vmem:[%s9 + $0xb78] sm:$0xff]
        %v5151 = vld [vmem:[%s9 + $0xb80] sm:$0xff]
        %v5152 = vld [vmem:[%s9 + $0xb88] sm:$0xff]
        %v5153 = vld [vmem:[%s9 + $0xb90] sm:$0xff]
        %v5154 = vld [vmem:[%s9 + $0xb98] sm:$0xff]
        %v5155 = vld [vmem:[%s9 + $0xba0] sm:$0xff]
        %v5156 = vld [vmem:[%s9 + $0xba8] sm:$0xff]
        %v5157 = vld [vmem:[%s9 + $0xbb0] sm:$0xff]
        %v5158 = vld [vmem:[%s9 + $0xbb8] sm:$0xff]
        %v5159 = vld [vmem:[%s9 + $0xbc0] sm:$0xff]
        %v5160 = vld [vmem:[%s9 + $0xbc8] sm:$0xff]
        %v5161 = vld [vmem:[%s9 + $0xbd0] sm:$0xff]
        %v5162 = vld [vmem:[%s9 + $0xbd8] sm:$0xff]
        %v5163 = vld [vmem:[%s9 + $0xbe0] sm:$0xff]
        %v5164 = vld [vmem:[%s9 + $0xbe8] sm:$0xff]
        %v5165 = vld [vmem:[%s9 + $0xbf0] sm:$0xff]
        %v5166 = vld [vmem:[%s9 + $0xbf8] sm:$0xff]
        %v5167 = vld [vmem:[%s9 + $0xc00] sm:$0xff]
        %v5168 = vld [vmem:[%s9 + $0xc08] sm:$0xff]
        %v5169 = vld [vmem:[%s9 + $0xc10] sm:$0xff]
        %v5170 = vld [vmem:[%s9 + $0xc18] sm:$0xff]
        %v5171 = vld [vmem:[%s9 + $0xc20] sm:$0xff]
        %v5172 = vld [vmem:[%s9 + $0xc28] sm:$0xff]
        %v5173 = vld [vmem:[%s9 + $0xc30] sm:$0xff]
        %v5174 = vld [vmem:[%s9 + $0xc38] sm:$0xff]
        %v5175 = vld [vmem:[%s9 + $0xc40] sm:$0xff]
        %v5176 = vld [vmem:[%s9 + $0xc48] sm:$0xff]
        %v5177 = vld [vmem:[%s9 + $0xc50] sm:$0xff]
        %v5178 = vld [vmem:[%s9 + $0xc58] sm:$0xff]
        %v5179 = vld [vmem:[%s9 + $0xc60] sm:$0xff]
        %v5180 = vld [vmem:[%s9 + $0xc68] sm:$0xff]
        %v5181 = vld [vmem:[%s9 + $0xc70] sm:$0xff]
        %v5182 = vld [vmem:[%s9 + $0xc78] sm:$0xff]
        %v5183 = vld [vmem:[%s9 + $0xc80] sm:$0xff]
        %v5184 = vld [vmem:[%s9 + $0xc88] sm:$0xff]
        %v5185 = vld [vmem:[%s9 + $0xc90] sm:$0xff]
        %v5186 = vld [vmem:[%s9 + $0xc98] sm:$0xff]
        %v5187 = vld [vmem:[%s9 + $0xca0] sm:$0xff]
        %v5188 = vld [vmem:[%s9 + $0xca8] sm:$0xff]
        %v5189 = vld [vmem:[%s9 + $0xcb0] sm:$0xff]
        %v5190 = vld [vmem:[%s9 + $0xcb8] sm:$0xff]
        %v5191 = vld [vmem:[%s9 + $0xcc0] sm:$0xff]
        %v5192 = vld [vmem:[%s9 + $0xcc8] sm:$0xff]
        %v5193 = vld [vmem:[%s9 + $0xcd0] sm:$0xff]
        %v5194 = vld [vmem:[%s9 + $0xcd8] sm:$0xff]
        %v5195 = vld [vmem:[%s9 + $0xce0] sm:$0xff]
        %v5196 = vld [vmem:[%s9 + $0xce8] sm:$0xff]
        %v5197 = vld [vmem:[%s9 + $0xcf0] sm:$0xff]
        %v5198 = vld [vmem:[%s9 + $0xcf8] sm:$0xff]
        %v5199 = vld [vmem:[%s9 + $0xd00] sm:$0xff]
        %v5200 = vld [vmem:[%s9 + $0xd08] sm:$0xff]
        %v5201 = vld [vmem:[%s9 + $0xd10] sm:$0xff]
        %v5202 = vld [vmem:[%s9 + $0xd18] sm:$0xff]
        %v5203 = vld [vmem:[%s9 + $0xd20] sm:$0xff]
        %v5204 = vld [vmem:[%s9 + $0xd28] sm:$0xff]
        %v5205 = vld [vmem:[%s9 + $0xd30] sm:$0xff]
        %v5206 = vld [vmem:[%s9 + $0xd38] sm:$0xff]
        %v5207 = vld [vmem:[%s9 + $0xd40] sm:$0xff]
        %v5208 = vld [vmem:[%s9 + $0xd48] sm:$0xff]
        %v5209 = vld [vmem:[%s9 + $0xd50] sm:$0xff]
        %v5210 = vld [vmem:[%s9 + $0xd58] sm:$0xff]
        %v5211 = vld [vmem:[%s9 + $0xd60] sm:$0xff]
        %v5212 = vld [vmem:[%s9 + $0xd68] sm:$0xff]
        %v5213 = vld [vmem:[%s9 + $0xd70] sm:$0xff]
        %v5214 = vld [vmem:[%s9 + $0xd78] sm:$0xff]
        %v5215 = vld [vmem:[%s9 + $0xd80] sm:$0xff]
        %v5216 = vld [vmem:[%s9 + $0xd88] sm:$0xff]
        %v5217 = vld [vmem:[%s9 + $0xd90] sm:$0xff]
        %v5218 = vld [vmem:[%s9 + $0xd98] sm:$0xff]
        %v5219 = vld [vmem:[%s9 + $0xda0] sm:$0xff]
        %v5220 = vld [vmem:[%s9 + $0xda8] sm:$0xff]
        %v5221 = vld [vmem:[%s9 + $0xdb0] sm:$0xff]
        %v5222 = vld [vmem:[%s9 + $0xdb8] sm:$0xff]
        %v5223 = vld [vmem:[%s9 + $0xdc0] sm:$0xff]
        %v5224 = vld [vmem:[%s9 + $0xdc8] sm:$0xff]
        %v5225 = vld [vmem:[%s9 + $0xdd0] sm:$0xff]
        %v5226 = vld [vmem:[%s9 + $0xdd8] sm:$0xff]
        %v5227 = vld [vmem:[%s9 + $0xde0] sm:$0xff]
        %v5228 = vld [vmem:[%s9 + $0xde8] sm:$0xff]
        %v5229 = vld [vmem:[%s9 + $0xdf0] sm:$0xff]
        %v5230 = vld [vmem:[%s9 + $0xdf8] sm:$0xff]
        %v5231 = vld [vmem:[%s9 + $0xe00] sm:$0xff]
        %v5232 = vld [vmem:[%s9 + $0xe08] sm:$0xff]
        %v5233 = vld [vmem:[%s9 + $0xe10] sm:$0xff]
        %v5234 = vld [vmem:[%s9 + $0xe18] sm:$0xff]
        %v5235 = vld [vmem:[%s9 + $0xe20] sm:$0xff]
        %v5236 = vld [vmem:[%s9 + $0xe28] sm:$0xff]
        %v5237 = vld [vmem:[%s9 + $0xe30] sm:$0xff]
        %v5238 = vld [vmem:[%s9 + $0xe38] sm:$0xff]
        %v5239 = vld [vmem:[%s9 + $0xe40] sm:$0xff]
        %v5240 = vld [vmem:[%s9 + $0xe48] sm:$0xff]
        %v5241 = vld [vmem:[%s9 + $0xe50] sm:$0xff]
        %v5242 = vld [vmem:[%s9 + $0xe58] sm:$0xff]
        %v5243 = vld [vmem:[%s9 + $0xe60] sm:$0xff]
        %v5244 = vld [vmem:[%s9 + $0xe68] sm:$0xff]
        %v5245 = vld [vmem:[%s9 + $0xe70] sm:$0xff]
        %v5246 = vld [vmem:[%s9 + $0xe78] sm:$0xff]
        %v5247 = vld [vmem:[%s9 + $0xe80] sm:$0xff]
        %v5248 = vld [vmem:[%s9 + $0xe88] sm:$0xff]
        %v5249 = vld [vmem:[%s9 + $0xe90] sm:$0xff]
        %v5250 = vld [vmem:[%s9 + $0xe98] sm:$0xff]
        %v5251 = vld [vmem:[%s9 + $0xea0] sm:$0xff]
        %v5252 = vld [vmem:[%s9 + $0xea8] sm:$0xff]
        %v5253 = vld [vmem:[%s9 + $0xeb0] sm:$0xff]
        %v5254 = vld [vmem:[%s9 + $0xeb8] sm:$0xff]
        %v5255 = vld [vmem:[%s9 + $0xec0] sm:$0xff]
        %v5256 = vld [vmem:[%s9 + $0xec8] sm:$0xff]
        %v5257 = vld [vmem:[%s9 + $0xed0] sm:$0xff]
        %v5258 = vld [vmem:[%s9 + $0xed8] sm:$0xff]
        %v5259 = vld [vmem:[%s9 + $0xee0] sm:$0xff]
        %v5260 = vld [vmem:[%s9 + $0xee8] sm:$0xff]
        %v5261 = vld [vmem:[%s9 + $0xef0] sm:$0xff]
        %v5262 = vld [vmem:[%s9 + $0xef8] sm:$0xff]
        %v5263 = vld [vmem:[%s9 + $0xf00] sm:$0xff]
        %v5264 = vld [vmem:[%s9 + $0xf08] sm:$0xff]
        %v5265 = vld [vmem:[%s9 + $0xf10] sm:$0xff]
        %v5266 = vld [vmem:[%s9 + $0xf18] sm:$0xff]
        %v5267 = vld [vmem:[%s9 + $0xf20] sm:$0xff]
        %v5268 = vld [vmem:[%s9 + $0xf28] sm:$0xff]
        %v5269 = vld [vmem:[%s9 + $0xf30] sm:$0xff]
        %v5270 = vld [vmem:[%s9 + $0xf38] sm:$0xff]
        %v5271 = vld [vmem:[%s9 + $0xf40] sm:$0xff]
        %v5272 = vld [vmem:[%s9 + $0xf48] sm:$0xff]
        %v5273 = vld [vmem:[%s9 + $0xf50] sm:$0xff]
        %v5274 = vld [vmem:[%s9 + $0xf58] sm:$0xff]
        %v5275 = vld [vmem:[%s9 + $0xf60] sm:$0xff]
        %v5276 = vld [vmem:[%s9 + $0xf68] sm:$0xff]
        %v5277 = vld [vmem:[%s9 + $0xf70] sm:$0xff]
        %v5278 = vld [vmem:[%s9 + $0xf78] sm:$0xff]
        %v5279 = vld [vmem:[%s9 + $0xf80] sm:$0xff]
        %v5280 = vld [vmem:[%s9 + $0xf88] sm:$0xff]
        %v5281 = vld [vmem:[%s9 + $0xf90] sm:$0xff]
        %v5282 = vld [vmem:[%s9 + $0xf98] sm:$0xff]
        %v5283 = vld [vmem:[%s9 + $0xfa0] sm:$0xff]
        %v5284 = vld [vmem:[%s9 + $0xfa8] sm:$0xff]
        %v5285 = vld [vmem:[%s9 + $0xfb0] sm:$0xff]
        %v5286 = vld [vmem:[%s9 + $0xfb8] sm:$0xff]
        %v5287 = vld [vmem:[%s9 + $0xfc0] sm:$0xff]
        %v5288 = vld [vmem:[%s9 + $0xfc8] sm:$0xff]
        %v5289 = vld [vmem:[%s9 + $0xfd0] sm:$0xff]
        %v5290 = vld [vmem:[%s9 + $0xfd8] sm:$0xff]
        %v5291 = vld [vmem:[%s9 + $0xfe0] sm:$0xff]
        %v5292 = vld [vmem:[%s9 + $0xfe8] sm:$0xff]
        %v5293 = vld [vmem:[%s9 + $0xff0] sm:$0xff]
        %v5294 = vld [vmem:[%s9 + $0xff8] sm:$0xff]
        %v5295 = vld [vmem:[%s9 + $0x1000] sm:$0xff]
        %v5296 = vld [vmem:[%s9 + $0x1008] sm:$0xff]
        %v5297 = vld [vmem:[%s9 + $0x1010] sm:$0xff]
        %v5298 = vld [vmem:[%s9 + $0x1018] sm:$0xff]
        %v5299 = vld [vmem:[%s9 + $0x1020] sm:$0xff]
        %v5300 = vld [vmem:[%s9 + $0x1028] sm:$0xff]
        %v5301 = vld [vmem:[%s9 + $0x1030] sm:$0xff]
        %v5302 = vld [vmem:[%s9 + $0x1038] sm:$0xff]
        %v5303 = vld [vmem:[%s9 + $0x1040] sm:$0xff]
        %v5304 = vld [vmem:[%s9 + $0x1048] sm:$0xff]
        %v5305 = vld [vmem:[%s9 + $0x1050] sm:$0xff]
        %v5306 = vld [vmem:[%s9 + $0x1058] sm:$0xff]
        %v5307 = vld [vmem:[%s9 + $0x1060] sm:$0xff]
        %v5308 = vld [vmem:[%s9 + $0x1068] sm:$0xff]
        %v5309 = vld [vmem:[%s9 + $0x1070] sm:$0xff]
        %v5310 = vld [vmem:[%s9 + $0x1078] sm:$0xff]
        %v5311 = vld [vmem:[%s9 + $0x1080] sm:$0xff]
        %v5312 = vld [vmem:[%s9 + $0x1088] sm:$0xff]
        %v5313 = vld [vmem:[%s9 + $0x1090] sm:$0xff]
        %v5314 = vld [vmem:[%s9 + $0x1098] sm:$0xff]
        %v5315 = vld [vmem:[%s9 + $0x10a0] sm:$0xff]
        %v5316 = vld [vmem:[%s9 + $0x10a8] sm:$0xff]
        %v5317 = vld [vmem:[%s9 + $0x10b0] sm:$0xff]
        %v5318 = vld [vmem:[%s9 + $0x10b8] sm:$0xff]
        %v5319 = vld [vmem:[%s9 + $0x10c0] sm:$0xff]
        %v5320 = vld [vmem:[%s9 + $0x10c8] sm:$0xff]
        %v5321 = vld [vmem:[%s9 + $0x10d0] sm:$0xff]
        %v5322 = vld [vmem:[%s9 + $0x10d8] sm:$0xff]
        %v5323 = vld [vmem:[%s9 + $0x10e0] sm:$0xff]
        %v5324 = vld [vmem:[%s9 + $0x10e8] sm:$0xff]
        %v5325 = vld [vmem:[%s9 + $0x10f0] sm:$0xff]
        %v5326 = vld [vmem:[%s9 + $0x10f8] sm:$0xff]
        %v5327 = vld [vmem:[%s9 + $0x1100] sm:$0xff]
        %v5328 = vld [vmem:[%s9 + $0x1108] sm:$0xff]
        %v5329 = vld [vmem:[%s9 + $0x1110] sm:$0xff]
        %v5330 = vld [vmem:[%s9 + $0x1118] sm:$0xff]
        %v5331 = vld [vmem:[%s9 + $0x1120] sm:$0xff]
        %v5332 = vld [vmem:[%s9 + $0x1128] sm:$0xff]
        %v5333 = vld [vmem:[%s9 + $0x1130] sm:$0xff]
        %v5334 = vld [vmem:[%s9 + $0x1138] sm:$0xff]
        %v5335 = vld [vmem:[%s9 + $0x1140] sm:$0xff]
        %v5336 = vld [vmem:[%s9 + $0x1148] sm:$0xff]
        %v5337 = vld [vmem:[%s9 + $0x1150] sm:$0xff]
        %v5338 = vld [vmem:[%s9 + $0x1158] sm:$0xff]
        %v5339 = vld [vmem:[%s9 + $0x1160] sm:$0xff]
        %v5340 = vld [vmem:[%s9 + $0x1168] sm:$0xff]
        %v5341 = vld [vmem:[%s9 + $0x1170] sm:$0xff]
        %v5342 = vld [vmem:[%s9 + $0x1178] sm:$0xff]
        %v5343 = vld [vmem:[%s9 + $0x1180] sm:$0xff]
        %v5344 = vld [vmem:[%s9 + $0x1188] sm:$0xff]
        %v5345 = vld [vmem:[%s9 + $0x1190] sm:$0xff]
        %v5346 = vld [vmem:[%s9 + $0x1198] sm:$0xff]
        %v5347 = vld [vmem:[%s9 + $0x11a0] sm:$0xff]
        %v5348 = vld [vmem:[%s9 + $0x11a8] sm:$0xff]
        %v5349 = vld [vmem:[%s9 + $0x11b0] sm:$0xff]
        %v5350 = vld [vmem:[%s9 + $0x11b8] sm:$0xff]
        %v5351 = vld [vmem:[%s9 + $0x11c0] sm:$0xff]
        %v5352 = vld [vmem:[%s9 + $0x11c8] sm:$0xff]
        %v5353 = vld [vmem:[%s9 + $0x11d0] sm:$0xff]
        %v5354 = vld [vmem:[%s9 + $0x11d8] sm:$0xff]
        %v5355 = vld [vmem:[%s9 + $0x11e0] sm:$0xff]
        %v5356 = vld [vmem:[%s9 + $0x11e8] sm:$0xff]
        %v5357 = vld [vmem:[%s9 + $0x11f0] sm:$0xff]
        %v5358 = vld [vmem:[%s9 + $0x11f8] sm:$0xff]
        %v5359 = vld [vmem:[%s9 + $0x1200] sm:$0xff]
        %v5360 = vld [vmem:[%s9 + $0x1208] sm:$0xff]
        %v5361 = vld [vmem:[%s9 + $0x1210] sm:$0xff]
        %v5362 = vld [vmem:[%s9 + $0x1218] sm:$0xff]
        %v5363 = vld [vmem:[%s9 + $0x1220] sm:$0xff]
        %v5364 = vld [vmem:[%s9 + $0x1228] sm:$0xff]
        %v5365 = vld [vmem:[%s9 + $0x1230] sm:$0xff]
        %v5366 = vld [vmem:[%s9 + $0x1238] sm:$0xff]
        %v5367 = vld [vmem:[%s9 + $0x1240] sm:$0xff]
        %v5368 = vld [vmem:[%s9 + $0x1248] sm:$0xff]
        %v5369 = vld [vmem:[%s9 + $0x1250] sm:$0xff]
        %v5370 = vld [vmem:[%s9 + $0x1258] sm:$0xff]
        %v5371 = vld [vmem:[%s9 + $0x1260] sm:$0xff]
        %v5372 = vld [vmem:[%s9 + $0x1268] sm:$0xff]
        %v5373 = vld [vmem:[%s9 + $0x1270] sm:$0xff]
        %v5374 = vld [vmem:[%s9 + $0x1278] sm:$0xff]
        %v5375 = vld [vmem:[%s9 + $0x1280] sm:$0xff]
        %v5376 = vld [vmem:[%s9 + $0x1288] sm:$0xff]
        %v5377 = vld [vmem:[%s9 + $0x1290] sm:$0xff]
        %v5378 = vld [vmem:[%s9 + $0x1298] sm:$0xff]
        %v5379 = vld [vmem:[%s9 + $0x12a0] sm:$0xff]
        %v5380 = vld [vmem:[%s9 + $0x12a8] sm:$0xff]
        %v5381 = vld [vmem:[%s9 + $0x12b0] sm:$0xff]
        %v5382 = vld [vmem:[%s9 + $0x12b8] sm:$0xff]
        %v5383 = vld [vmem:[%s9 + $0x12c0] sm:$0xff]
        %v5384 = vld [vmem:[%s9 + $0x12c8] sm:$0xff]
        %v5385 = vld [vmem:[%s9 + $0x12d0] sm:$0xff]
        %v5386 = vld [vmem:[%s9 + $0x12d8] sm:$0xff]
        %v5387 = vld [vmem:[%s9 + $0x12e0] sm:$0xff]
        %v5388 = vld [vmem:[%s9 + $0x12e8] sm:$0xff]
        %v5389 = vld [vmem:[%s9 + $0x12f0] sm:$0xff]
        %v5390 = vld [vmem:[%s9 + $0x12f8] sm:$0xff]
        %v5391 = vld [vmem:[%s9 + $0x1300] sm:$0xff]
        %v5392 = vld [vmem:[%s9 + $0x1308] sm:$0xff]
        %v5393 = vld [vmem:[%s9 + $0x1310] sm:$0xff]
        %v5394 = vld [vmem:[%s9 + $0x1318] sm:$0xff]
        %v5395 = vld [vmem:[%s9 + $0x1320] sm:$0xff]
        %v5396 = vld [vmem:[%s9 + $0x1328] sm:$0xff]
        %v5397 = vld [vmem:[%s9 + $0x1330] sm:$0xff]
        %v5398 = vld [vmem:[%s9 + $0x1338] sm:$0xff]
        %v5399 = vld [vmem:[%s9 + $0x1340] sm:$0xff]
        %v5400 = vld [vmem:[%s9 + $0x1348] sm:$0xff]
        %v5401 = vld [vmem:[%s9 + $0x1350] sm:$0xff]
        %v5402 = vld [vmem:[%s9 + $0x1358] sm:$0xff]
        %v5403 = vld [vmem:[%s9 + $0x1360] sm:$0xff]
        %v5404 = vld [vmem:[%s9 + $0x1368] sm:$0xff]
        %v5405 = vld [vmem:[%s9 + $0x1370] sm:$0xff]
        %v5406 = vld [vmem:[%s9 + $0x1378] sm:$0xff]
        %v5407 = vld [vmem:[%s9 + $0x1380] sm:$0xff]
        %v5408 = vld [vmem:[%s9 + $0x1388] sm:$0xff]
        %v5409 = vld [vmem:[%s9 + $0x1390] sm:$0xff]
        %v5410 = vld [vmem:[%s9 + $0x1398] sm:$0xff]
        %v5411 = vld [vmem:[%s9 + $0x13a0] sm:$0xff]
        %v5412 = vld [vmem:[%s9 + $0x13a8] sm:$0xff]
        %v5413 = vld [vmem:[%s9 + $0x13b0] sm:$0xff]
        %v5414 = vld [vmem:[%s9 + $0x13b8] sm:$0xff]
        %v5415 = vld [vmem:[%s9 + $0x13c0] sm:$0xff]
        %v5416 = vld [vmem:[%s9 + $0x13c8] sm:$0xff]
        %v5417 = vld [vmem:[%s9 + $0x13d0] sm:$0xff]
        %v5418 = vld [vmem:[%s9 + $0x13d8] sm:$0xff]
        %v5419 = vld [vmem:[%s9 + $0x13e0] sm:$0xff]
        %v5420 = vld [vmem:[%s9 + $0x13e8] sm:$0xff]
        %v5421 = vld [vmem:[%s9 + $0x13f0] sm:$0xff]
        %v5422 = vld [vmem:[%s9 + $0x13f8] sm:$0xff]
        %v5423 = vld [vmem:[%s9 + $0x1400] sm:$0xff]
        %v5424 = vld [vmem:[%s9 + $0x1408] sm:$0xff]
        %v5425 = vld [vmem:[%s9 + $0x1410] sm:$0xff]
        %v5426 = vld [vmem:[%s9 + $0x1418] sm:$0xff]
        %v5427 = vld [vmem:[%s9 + $0x1420] sm:$0xff]
        %v5428 = vld [vmem:[%s9 + $0x1428] sm:$0xff]
        %v5429 = vld [vmem:[%s9 + $0x1430] sm:$0xff]
        %v5430 = vld [vmem:[%s9 + $0x1438] sm:$0xff]
        %v5431 = vld [vmem:[%s9 + $0x1440] sm:$0xff]
        %v5432 = vld [vmem:[%s9 + $0x1448] sm:$0xff]
        %v5433 = vld [vmem:[%s9 + $0x1450] sm:$0xff]
        %v5434 = vld [vmem:[%s9 + $0x1458] sm:$0xff]
        %v5435 = vld [vmem:[%s9 + $0x1460] sm:$0xff]
        %v5436 = vld [vmem:[%s9 + $0x1468] sm:$0xff]
        %v5437 = vld [vmem:[%s9 + $0x1470] sm:$0xff]
        %v5438 = vld [vmem:[%s9 + $0x1478] sm:$0xff]
        %v5439 = vld [vmem:[%s9 + $0x1480] sm:$0xff]
        %v5440 = vld [vmem:[%s9 + $0x1488] sm:$0xff]
        %v5441 = vld [vmem:[%s9 + $0x1490] sm:$0xff]
        %v5442 = vld [vmem:[%s9 + $0x1498] sm:$0xff]
        %v5443 = vld [vmem:[%s9 + $0x14a0] sm:$0xff]
        %v5444 = vld [vmem:[%s9 + $0x14a8] sm:$0xff]
        %v5445 = vld [vmem:[%s9 + $0x14b0] sm:$0xff]
        %v5446 = vld [vmem:[%s9 + $0x14b8] sm:$0xff]
        %v5447 = vld [vmem:[%s9 + $0x14c0] sm:$0xff]
        %v5448 = vld [vmem:[%s9 + $0x14c8] sm:$0xff]
        %v5449 = vld [vmem:[%s9 + $0x14d0] sm:$0xff]
        %v5450 = vld [vmem:[%s9 + $0x14d8] sm:$0xff]
        %v5451 = vld [vmem:[%s9 + $0x14e0] sm:$0xff]
        %v5452 = vld [vmem:[%s9 + $0x14e8] sm:$0xff]
        %v5453 = vld [vmem:[%s9 + $0x14f0] sm:$0xff]
        %v5454 = vld [vmem:[%s9 + $0x14f8] sm:$0xff]
        %v5455 = vld [vmem:[%s9 + $0x1500] sm:$0xff]
        %v5456 = vld [vmem:[%s9 + $0x1508] sm:$0xff]
        %v5457 = vld [vmem:[%s9 + $0x1510] sm:$0xff]
        %v5458 = vld [vmem:[%s9 + $0x1518] sm:$0xff]
        %v5459 = vld [vmem:[%s9 + $0x1520] sm:$0xff]
        %v5460 = vld [vmem:[%s9 + $0x1528] sm:$0xff]
        %v5461 = vld [vmem:[%s9 + $0x1530] sm:$0xff]
        %v5462 = vld [vmem:[%s9 + $0x1538] sm:$0xff]
        %v5463 = vld [vmem:[%s9 + $0x1540] sm:$0xff]
        %v5464 = vld [vmem:[%s9 + $0x1548] sm:$0xff]
        %v5465 = vld [vmem:[%s9 + $0x1550] sm:$0xff]
        %v5466 = vld [vmem:[%s9 + $0x1558] sm:$0xff]
        %v5467 = vld [vmem:[%s9 + $0x1560] sm:$0xff]
        %v5468 = vld [vmem:[%s9 + $0x1568] sm:$0xff]
        %v5469 = vld [vmem:[%s9 + $0x1570] sm:$0xff]
        %v5470 = vld [vmem:[%s9 + $0x1578] sm:$0xff]
        %v5471 = vld [vmem:[%s9 + $0x1580] sm:$0xff]
        %v5472 = vld [vmem:[%s9 + $0x1588] sm:$0xff]
        %v5473 = vld [vmem:[%s9 + $0x1590] sm:$0xff]
        %v5474 = vld [vmem:[%s9 + $0x1598] sm:$0xff]
        %v5475 = vld [vmem:[%s9 + $0x15a0] sm:$0xff]
        %v5476 = vld [vmem:[%s9 + $0x15a8] sm:$0xff]
        %v5477 = vld [vmem:[%s9 + $0x15b0] sm:$0xff]
        %v5478 = vld [vmem:[%s9 + $0x15b8] sm:$0xff]
        %v5479 = vld [vmem:[%s9 + $0x15c0] sm:$0xff]
        %v5480 = vld [vmem:[%s9 + $0x15c8] sm:$0xff]
        %v5481 = vld [vmem:[%s9 + $0x15d0] sm:$0xff]
        %v5482 = vld [vmem:[%s9 + $0x15d8] sm:$0xff]
        %v5483 = vld [vmem:[%s9 + $0x15e0] sm:$0xff]
        %v5484 = vld [vmem:[%s9 + $0x15e8] sm:$0xff]
        %v5485 = vld [vmem:[%s9 + $0x15f0] sm:$0xff]
        %v5486 = vld [vmem:[%s9 + $0x15f8] sm:$0xff]
        %v5487 = vld [vmem:[%s9 + $0x1600] sm:$0xff]
        %v5488 = vld [vmem:[%s9 + $0x1608] sm:$0xff]
        %v5489 = vld [vmem:[%s9 + $0x1610] sm:$0xff]
        %v5490 = vld [vmem:[%s9 + $0x1618] sm:$0xff]
        %v5491 = vld [vmem:[%s9 + $0x1620] sm:$0xff]
        %v5492 = vld [vmem:[%s9 + $0x1628] sm:$0xff]
        %v5493 = vld [vmem:[%s9 + $0x1630] sm:$0xff]
        %v5494 = vld [vmem:[%s9 + $0x1638] sm:$0xff]
        %v5495 = vld [vmem:[%s9 + $0x1640] sm:$0xff]
        %v5496 = vld [vmem:[%s9 + $0x1648] sm:$0xff]
        %v5497 = vld [vmem:[%s9 + $0x1650] sm:$0xff]
        %v5498 = vld [vmem:[%s9 + $0x1658] sm:$0xff]
        %v5499 = vld [vmem:[%s9 + $0x1660] sm:$0xff]
        %v5500 = vld [vmem:[%s9 + $0x1668] sm:$0xff]
        %v5501 = vld [vmem:[%s9 + $0x1670] sm:$0xff]
        %v5502 = vld [vmem:[%s9 + $0x1678] sm:$0xff]
        %v5503 = vld [vmem:[%s9 + $0x1680] sm:$0xff]
        %v5504 = vld [vmem:[%s9 + $0x1688] sm:$0xff]
        %v5505 = vld [vmem:[%s9 + $0x1690] sm:$0xff]
        %v5506 = vld [vmem:[%s9 + $0x1698] sm:$0xff]
        %v5507 = vld [vmem:[%s9 + $0x16a0] sm:$0xff]
        %v5508 = vld [vmem:[%s9 + $0x16a8] sm:$0xff]
        %v5509 = vld [vmem:[%s9 + $0x16b0] sm:$0xff]
        %v5510 = vld [vmem:[%s9 + $0x16b8] sm:$0xff]
        %v5511 = vld [vmem:[%s9 + $0x16c0] sm:$0xff]
        %v5512 = vld [vmem:[%s9 + $0x16c8] sm:$0xff]
        %v5513 = vld [vmem:[%s9 + $0x16d0] sm:$0xff]
        %v5514 = vld [vmem:[%s9 + $0x16d8] sm:$0xff]
        %v5515 = vld [vmem:[%s9 + $0x16e0] sm:$0xff]
        %v5516 = vld [vmem:[%s9 + $0x16e8] sm:$0xff]
        %v5517 = vld [vmem:[%s9 + $0x16f0] sm:$0xff]
        %v5518 = vld [vmem:[%s9 + $0x16f8] sm:$0xff]
        %v5519 = vld [vmem:[%s9 + $0x1700] sm:$0xff]
        %v5520 = vld [vmem:[%s9 + $0x1708] sm:$0xff]
        %v5521 = vld [vmem:[%s9 + $0x1710] sm:$0xff]
        %v5522 = vld [vmem:[%s9 + $0x1718] sm:$0xff]
        %v5523 = vld [vmem:[%s9 + $0x1720] sm:$0xff]
        %v5524 = vld [vmem:[%s9 + $0x1728] sm:$0xff]
        %v5525 = vld [vmem:[%s9 + $0x1730] sm:$0xff]
        %v5526 = vld [vmem:[%s9 + $0x1738] sm:$0xff]
        %v5527 = vld [vmem:[%s9 + $0x1740] sm:$0xff]
        %v5528 = vld [vmem:[%s9 + $0x1748] sm:$0xff]
        %v5529 = vld [vmem:[%s9 + $0x1750] sm:$0xff]
        %v5530 = vld [vmem:[%s9 + $0x1758] sm:$0xff]
        %v5531 = vld [vmem:[%s9 + $0x1760] sm:$0xff]
        %v5532 = vld [vmem:[%s9 + $0x1768] sm:$0xff]
        %v5533 = vld [vmem:[%s9 + $0x1770] sm:$0xff]
        %v5534 = vld [vmem:[%s9 + $0x1778] sm:$0xff]
        %v5535 = vld [vmem:[%s9 + $0x1780] sm:$0xff]
        %v5536 = vld [vmem:[%s9 + $0x1788] sm:$0xff]
        %v5537 = vld [vmem:[%s9 + $0x1790] sm:$0xff]
        %v5538 = vld [vmem:[%s9 + $0x1798] sm:$0xff]
        %v5539 = vld [vmem:[%s9 + $0x17a0] sm:$0xff]
        %v5540 = vld [vmem:[%s9 + $0x17a8] sm:$0xff]
        %v5541 = vld [vmem:[%s9 + $0x17b0] sm:$0xff]
        %v5542 = vld [vmem:[%s9 + $0x17b8] sm:$0xff]
        %v5543 = vld [vmem:[%s9 + $0x17c0] sm:$0xff]
        %v5544 = vld [vmem:[%s9 + $0x17c8] sm:$0xff]
        %v5545 = vld [vmem:[%s9 + $0x17d0] sm:$0xff]
        %v5546 = vld [vmem:[%s9 + $0x17d8] sm:$0xff]
        %v5547 = vld [vmem:[%s9 + $0x17e0] sm:$0xff]
        %v5548 = vld [vmem:[%s9 + $0x17e8] sm:$0xff]
        %v5549 = vld [vmem:[%s9 + $0x17f0] sm:$0xff]
        %v5550 = vld [vmem:[%s9 + $0x17f8] sm:$0xff]
        %v5551 = vld [vmem:[%s9 + $0x1800] sm:$0xff]
        %v5552 = vld [vmem:[%s9 + $0x1808] sm:$0xff]
        %v5553 = vld [vmem:[%s9 + $0x1810] sm:$0xff]
        %v5554 = vld [vmem:[%s9 + $0x1818] sm:$0xff]
        %v5555 = vld [vmem:[%s9 + $0x1820] sm:$0xff]
        %v5556 = vld [vmem:[%s9 + $0x1828] sm:$0xff]
        %v5557 = vld [vmem:[%s9 + $0x1830] sm:$0xff]
        %v5558 = vld [vmem:[%s9 + $0x1838] sm:$0xff]
        %v5559 = vld [vmem:[%s9 + $0x1840] sm:$0xff]
        %v5560 = vld [vmem:[%s9 + $0x1848] sm:$0xff]
        %v5561 = vld [vmem:[%s9 + $0x1850] sm:$0xff]
        %v5562 = vld [vmem:[%s9 + $0x1858] sm:$0xff]
        %v5563 = vld [vmem:[%s9 + $0x1860] sm:$0xff]
        %v5564 = vld [vmem:[%s9 + $0x1868] sm:$0xff]
        %v5565 = vld [vmem:[%s9 + $0x1870] sm:$0xff]
        %v5566 = vld [vmem:[%s9 + $0x1878] sm:$0xff]
        %v5567 = vld [vmem:[%s9 + $0x1880] sm:$0xff]
        %v5568 = vld [vmem:[%s9 + $0x1888] sm:$0xff]
        %v5569 = vld [vmem:[%s9 + $0x1890] sm:$0xff]
        %v5570 = vld [vmem:[%s9 + $0x1898] sm:$0xff]
        %v5571 = vld [vmem:[%s9 + $0x18a0] sm:$0xff]
        %v5572 = vld [vmem:[%s9 + $0x18a8] sm:$0xff]
        %v5573 = vld [vmem:[%s9 + $0x18b0] sm:$0xff]
        %v5574 = vld [vmem:[%s9 + $0x18b8] sm:$0xff]
        %v5575 = vld [vmem:[%s9 + $0x18c0] sm:$0xff]
        %v5576 = vld [vmem:[%s9 + $0x18c8] sm:$0xff]
        %v5577 = vld [vmem:[%s9 + $0x18d0] sm:$0xff]
        %v5578 = vld [vmem:[%s9 + $0x18d8] sm:$0xff]
        %v5579 = vld [vmem:[%s9 + $0x18e0] sm:$0xff]
        %v5580 = vld [vmem:[%s9 + $0x18e8] sm:$0xff]
        %v5581 = vld [vmem:[%s9 + $0x18f0] sm:$0xff]
        %v5582 = vld [vmem:[%s9 + $0x18f8] sm:$0xff]
        %v5583 = vld [vmem:[%s9 + $0x1900] sm:$0xff]
        %v5584 = vld [vmem:[%s9 + $0x1908] sm:$0xff]
        %v5585 = vld [vmem:[%s9 + $0x1910] sm:$0xff]
        %v5586 = vld [vmem:[%s9 + $0x1918] sm:$0xff]
        %v5587 = vld [vmem:[%s9 + $0x1920] sm:$0xff]
        %v5588 = vld [vmem:[%s9 + $0x1928] sm:$0xff]
        %v5589 = vld [vmem:[%s9 + $0x1930] sm:$0xff]
        %v5590 = vld [vmem:[%s9 + $0x1938] sm:$0xff]
        %v5591 = vld [vmem:[%s9 + $0x1940] sm:$0xff]
        %v5592 = vld [vmem:[%s9 + $0x1948] sm:$0xff]
        %v5593 = vld [vmem:[%s9 + $0x1950] sm:$0xff]
        %v5594 = vld [vmem:[%s9 + $0x1958] sm:$0xff]
        %v5595 = vld [vmem:[%s9 + $0x1960] sm:$0xff]
        %v5596 = vld [vmem:[%s9 + $0x1968] sm:$0xff]
        %v5597 = vld [vmem:[%s9 + $0x1970] sm:$0xff]
        %v5598 = vld [vmem:[%s9 + $0x1978] sm:$0xff]
        %v5599 = vld [vmem:[%s9 + $0x1980] sm:$0xff]
        %v5600 = vld [vmem:[%s9 + $0x1988] sm:$0xff]
        %v5601 = vld [vmem:[%s9 + $0x1990] sm:$0xff]
        %v5602 = vld [vmem:[%s9 + $0x1998] sm:$0xff]
        %v5603 = vld [vmem:[%s9 + $0x19a0] sm:$0xff]
        %v5604 = vld [vmem:[%s9 + $0x19a8] sm:$0xff]
        %v5605 = vld [vmem:[%s9 + $0x19b0] sm:$0xff]
        %v5606 = vld [vmem:[%s9 + $0x19b8] sm:$0xff]
        %v5607 = vld [vmem:[%s9 + $0x19c0] sm:$0xff]
        %v5608 = vld [vmem:[%s9 + $0x19c8] sm:$0xff]
        %v5609 = vld [vmem:[%s9 + $0x19d0] sm:$0xff]
        %v5610 = vld [vmem:[%s9 + $0x19d8] sm:$0xff]
        %v5611 = vld [vmem:[%s9 + $0x19e0] sm:$0xff]
        %v5612 = vld [vmem:[%s9 + $0x19e8] sm:$0xff]
        %v5613 = vld [vmem:[%s9 + $0x19f0] sm:$0xff]
        %v5614 = vld [vmem:[%s9 + $0x19f8] sm:$0xff]
        %v5615 = vld [vmem:[%s9 + $0x1a00] sm:$0xff]
        %v5616 = vld [vmem:[%s9 + $0x1a08] sm:$0xff]
        %v5617 = vld [vmem:[%s9 + $0x1a10] sm:$0xff]
        %v5618 = vld [vmem:[%s9 + $0x1a18] sm:$0xff]
        %v5619 = vld [vmem:[%s9 + $0x1a20] sm:$0xff]
        %v5620 = vld [vmem:[%s9 + $0x1a28] sm:$0xff]
        %v5621 = vld [vmem:[%s9 + $0x1a30] sm:$0xff]
        %v5622 = vld [vmem:[%s9 + $0x1a38] sm:$0xff]
        %v5623 = vld [vmem:[%s9 + $0x1a40] sm:$0xff]
        %v5624 = vld [vmem:[%s9 + $0x1a48] sm:$0xff]
        %v5625 = vld [vmem:[%s9 + $0x1a50] sm:$0xff]
        %v5626 = vld [vmem:[%s9 + $0x1a58] sm:$0xff]
        %v5627 = vld [vmem:[%s9 + $0x1a60] sm:$0xff]
        %v5628 = vld [vmem:[%s9 + $0x1a68] sm:$0xff]
        %v5629 = vld [vmem:[%s9 + $0x1a70] sm:$0xff]
        %v5630 = vld [vmem:[%s9 + $0x1a78] sm:$0xff]
        %v5631 = vld [vmem:[%s9 + $0x1a80] sm:$0xff]
        %v5632 = vld [vmem:[%s9 + $0x1a88] sm:$0xff]
        %v5633 = vld [vmem:[%s9 + $0x1a90] sm:$0xff]
        %v5634 = vld [vmem:[%s9 + $0x1a98] sm:$0xff]
        %v5635 = vld [vmem:[%s9 + $0x1aa0] sm:$0xff]
        %v5636 = vld [vmem:[%s9 + $0x1aa8] sm:$0xff]
        %v5637 = vld [vmem:[%s9 + $0x1ab0] sm:$0xff]
        %v5638 = vld [vmem:[%s9 + $0x1ab8] sm:$0xff]
        %v5639 = vld [vmem:[%s9 + $0x1ac0] sm:$0xff]
        %v5640 = vld [vmem:[%s9 + $0x1ac8] sm:$0xff]
        %v5641 = vld [vmem:[%s9 + $0x1ad0] sm:$0xff]
        %v5642 = vld [vmem:[%s9 + $0x1ad8] sm:$0xff]
        %v5643 = vld [vmem:[%s9 + $0x1ae0] sm:$0xff]
        %v5644 = vld [vmem:[%s9 + $0x1ae8] sm:$0xff]
        %v5645 = vld [vmem:[%s9 + $0x1af0] sm:$0xff]
        %v5646 = vld [vmem:[%s9 + $0x1af8] sm:$0xff]
        %v5647 = vld [vmem:[%s9 + $0x1b00] sm:$0xff]
        %v5648 = vld [vmem:[%s9 + $0x1b08] sm:$0xff]
        %v5649 = vld [vmem:[%s9 + $0x1b10] sm:$0xff]
        %v5650 = vld [vmem:[%s9 + $0x1b18] sm:$0xff]
        %v5651 = vld [vmem:[%s9 + $0x1b20] sm:$0xff]
        %v5652 = vld [vmem:[%s9 + $0x1b28] sm:$0xff]
        %v5653 = vld [vmem:[%s9 + $0x1b30] sm:$0xff]
        %v5654 = vld [vmem:[%s9 + $0x1b38] sm:$0xff]
        %v5655 = vld [vmem:[%s9 + $0x1b40] sm:$0xff]
        %v5656 = vld [vmem:[%s9 + $0x1b48] sm:$0xff]
        %v5657 = vld [vmem:[%s9 + $0x1b50] sm:$0xff]
        %v5658 = vld [vmem:[%s9 + $0x1b58] sm:$0xff]
        %v5659 = vld [vmem:[%s9 + $0x1b60] sm:$0xff]
        %v5660 = vld [vmem:[%s9 + $0x1b68] sm:$0xff]
        %v5661 = vld [vmem:[%s9 + $0x1b70] sm:$0xff]
        %v5662 = vld [vmem:[%s9 + $0x1b78] sm:$0xff]
        %v5663 = vld [vmem:[%s9 + $0x1b80] sm:$0xff]
        %v5664 = vld [vmem:[%s9 + $0x1b88] sm:$0xff]
        %v5665 = vld [vmem:[%s9 + $0x1b90] sm:$0xff]
        %v5666 = vld [vmem:[%s9 + $0x1b98] sm:$0xff]
        %v5667 = vld [vmem:[%s9 + $0x1ba0] sm:$0xff]
        %v5668 = vld [vmem:[%s9 + $0x1ba8] sm:$0xff]
        %v5669 = vld [vmem:[%s9 + $0x1bb0] sm:$0xff]
        %v5670 = vld [vmem:[%s9 + $0x1bb8] sm:$0xff]
        %v5671 = vld [vmem:[%s9 + $0x1bc0] sm:$0xff]
        %v5672 = vld [vmem:[%s9 + $0x1bc8] sm:$0xff]
        %v5673 = vld [vmem:[%s9 + $0x1bd0] sm:$0xff]
        %v5674 = vld [vmem:[%s9 + $0x1bd8] sm:$0xff]
        %v5675 = vld [vmem:[%s9 + $0x1be0] sm:$0xff]
        %v5676 = vld [vmem:[%s9 + $0x1be8] sm:$0xff]
        %v5677 = vld [vmem:[%s9 + $0x1bf0] sm:$0xff]
        %v5678 = vld [vmem:[%s9 + $0x1bf8] sm:$0xff]
        %v5679 = vld [vmem:[%s9 + $0x1c00] sm:$0xff]
        %v5680 = vld [vmem:[%s9 + $0x1c08] sm:$0xff]
        %v5681 = vld [vmem:[%s9 + $0x1c10] sm:$0xff]
        %v5682 = vld [vmem:[%s9 + $0x1c18] sm:$0xff]
        %v5683 = vld [vmem:[%s9 + $0x1c20] sm:$0xff]
        %v5684 = vld [vmem:[%s9 + $0x1c28] sm:$0xff]
        %v5685 = vld [vmem:[%s9 + $0x1c30] sm:$0xff]
        %v5686 = vld [vmem:[%s9 + $0x1c38] sm:$0xff]
        %v5687 = vld [vmem:[%s9 + $0x1c40] sm:$0xff]
        %v5688 = vld [vmem:[%s9 + $0x1c48] sm:$0xff]
        %v5689 = vld [vmem:[%s9 + $0x1c50] sm:$0xff]
        %v5690 = vld [vmem:[%s9 + $0x1c58] sm:$0xff]
        %v5691 = vld [vmem:[%s9 + $0x1c60] sm:$0xff]
        %v5692 = vld [vmem:[%s9 + $0x1c68] sm:$0xff]
        %v5693 = vld [vmem:[%s9 + $0x1c70] sm:$0xff]
        %v5694 = vld [vmem:[%s9 + $0x1c78] sm:$0xff]
        %v5695 = vld [vmem:[%s9 + $0x1c80] sm:$0xff]
        %v5696 = vld [vmem:[%s9 + $0x1c88] sm:$0xff]
        %v5697 = vld [vmem:[%s9 + $0x1c90] sm:$0xff]
        %v5698 = vld [vmem:[%s9 + $0x1c98] sm:$0xff]
        %v5699 = vld [vmem:[%s9 + $0x1ca0] sm:$0xff]
        %v5700 = vld [vmem:[%s9 + $0x1ca8] sm:$0xff]
        %v5701 = vld [vmem:[%s9 + $0x1cb0] sm:$0xff]
        %v5702 = vld [vmem:[%s9 + $0x1cb8] sm:$0xff]
        %v5703 = vld [vmem:[%s9 + $0x1cc0] sm:$0xff]
        %v5704 = vld [vmem:[%s9 + $0x1cc8] sm:$0xff]
        %v5705 = vld [vmem:[%s9 + $0x1cd0] sm:$0xff]
        %v5706 = vld [vmem:[%s9 + $0x1cd8] sm:$0xff]
        %v5707 = vld [vmem:[%s9 + $0x1ce0] sm:$0xff]
        %v5708 = vld [vmem:[%s9 + $0x1ce8] sm:$0xff]
        %v5709 = vld [vmem:[%s9 + $0x1cf0] sm:$0xff]
        %v5710 = vld [vmem:[%s9 + $0x1cf8] sm:$0xff]
        %v5711 = vld [vmem:[%s9 + $0x1d00] sm:$0xff]
        %v5712 = vld [vmem:[%s9 + $0x1d08] sm:$0xff]
        %v5713 = vld [vmem:[%s9 + $0x1d10] sm:$0xff]
        %v5714 = vld [vmem:[%s9 + $0x1d18] sm:$0xff]
        %v5715 = vld [vmem:[%s9 + $0x1d20] sm:$0xff]
        %v5716 = vld [vmem:[%s9 + $0x1d28] sm:$0xff]
        %v5717 = vld [vmem:[%s9 + $0x1d30] sm:$0xff]
        %v5718 = vld [vmem:[%s9 + $0x1d38] sm:$0xff]
        %v5719 = vld [vmem:[%s9 + $0x1d40] sm:$0xff]
        %v5720 = vld [vmem:[%s9 + $0x1d48] sm:$0xff]
        %v5721 = vld [vmem:[%s9 + $0x1d50] sm:$0xff]
        %v5722 = vld [vmem:[%s9 + $0x1d58] sm:$0xff]
        %v5723 = vld [vmem:[%s9 + $0x1d60] sm:$0xff]
        %v5724 = vld [vmem:[%s9 + $0x1d68] sm:$0xff]
        %v5725 = vld [vmem:[%s9 + $0x1d70] sm:$0xff]
        %v5726 = vld [vmem:[%s9 + $0x1d78] sm:$0xff]
        %v5727 = vld [vmem:[%s9 + $0x1d80] sm:$0xff]
        %v5728 = vld [vmem:[%s9 + $0x1d88] sm:$0xff]
        %v5729 = vld [vmem:[%s9 + $0x1d90] sm:$0xff]
        %v5730 = vld [vmem:[%s9 + $0x1d98] sm:$0xff]
        %v5731 = vld [vmem:[%s9 + $0x1da0] sm:$0xff]
        %v5732 = vld [vmem:[%s9 + $0x1da8] sm:$0xff]
        %v5733 = vld [vmem:[%s9 + $0x1db0] sm:$0xff]
        %v5734 = vld [vmem:[%s9 + $0x1db8] sm:$0xff]
        %v5735 = vld [vmem:[%s9 + $0x1dc0] sm:$0xff]
        %v5736 = vld [vmem:[%s9 + $0x1dc8] sm:$0xff]
        %v5737 = vld [vmem:[%s9 + $0x1dd0] sm:$0xff]
        %v5738 = vld [vmem:[%s9 + $0x1dd8] sm:$0xff]
        %v5739 = vld [vmem:[%s9 + $0x1de0] sm:$0xff]
        %v5740 = vld [vmem:[%s9 + $0x1de8] sm:$0xff]
        %v5741 = vld [vmem:[%s9 + $0x1df0] sm:$0xff]
        %v5742 = vld [vmem:[%s9 + $0x1df8] sm:$0xff]
        %v5743 = vld [vmem:[%s9 + $0x1e00] sm:$0xff]
        %v5744 = vld [vmem:[%s9 + $0x1e08] sm:$0xff]
        %v5745 = vld [vmem:[%s9 + $0x1e10] sm:$0xff]
        %v5746 = vld [vmem:[%s9 + $0x1e18] sm:$0xff]
        %v5747 = vld [vmem:[%s9 + $0x1e20] sm:$0xff]
        %v5748 = vld [vmem:[%s9 + $0x1e28] sm:$0xff]
        %v5749 = vld [vmem:[%s9 + $0x1e30] sm:$0xff]
        %v5750 = vld [vmem:[%s9 + $0x1e38] sm:$0xff]
        %v5751 = vld [vmem:[%s9 + $0x1e40] sm:$0xff]
        %v5752 = vld [vmem:[%s9 + $0x1e48] sm:$0xff]
        %v5753 = vld [vmem:[%s9 + $0x1e50] sm:$0xff]
        %v5754 = vld [vmem:[%s9 + $0x1e58] sm:$0xff]
        %v5755 = vld [vmem:[%s9 + $0x1e60] sm:$0xff]
        %v5756 = vld [vmem:[%s9 + $0x1e68] sm:$0xff]
        %v5757 = vld [vmem:[%s9 + $0x1e70] sm:$0xff]
        %v5758 = vld [vmem:[%s9 + $0x1e78] sm:$0xff]
        %v5759 = vld [vmem:[%s9 + $0x1e80] sm:$0xff]
        %v5760 = vld [vmem:[%s9 + $0x1e88] sm:$0xff]
        %v5761 = vld [vmem:[%s9 + $0x1e90] sm:$0xff]
        %v5762 = vld [vmem:[%s9 + $0x1e98] sm:$0xff]
        %v5763 = vld [vmem:[%s9 + $0x1ea0] sm:$0xff]
        %v5764 = vld [vmem:[%s9 + $0x1ea8] sm:$0xff]
        %v5765 = vld [vmem:[%s9 + $0x1eb0] sm:$0xff]
        %v5766 = vld [vmem:[%s9 + $0x1eb8] sm:$0xff]
        %v5767 = vld [vmem:[%s9 + $0x1ec0] sm:$0xff]
        %v5768 = vld [vmem:[%s9 + $0x1ec8] sm:$0xff]
        %v5769 = vld [vmem:[%s9 + $0x1ed0] sm:$0xff]
        %v5770 = vld [vmem:[%s9 + $0x1ed8] sm:$0xff]
        %v5771 = vld [vmem:[%s9 + $0x1ee0] sm:$0xff]
        %v5772 = vld [vmem:[%s9 + $0x1ee8] sm:$0xff]
        %v5773 = vld [vmem:[%s9 + $0x1ef0] sm:$0xff]
        %v5774 = vld [vmem:[%s9 + $0x1ef8] sm:$0xff]
        %v5775 = vld [vmem:[%s9 + $0x1f00] sm:$0xff]
        %v5776 = vld [vmem:[%s9 + $0x1f08] sm:$0xff]
        %v5777 = vld [vmem:[%s9 + $0x1f10] sm:$0xff]
        %v5778 = vld [vmem:[%s9 + $0x1f18] sm:$0xff]
        %v5779 = vld [vmem:[%s9 + $0x1f20] sm:$0xff]
        %v5780 = vld [vmem:[%s9 + $0x1f28] sm:$0xff]
        %v5781 = vld [vmem:[%s9 + $0x1f30] sm:$0xff]
        %v5782 = vld [vmem:[%s9 + $0x1f38] sm:$0xff]
        %v5783 = vld [vmem:[%s9 + $0x1f40] sm:$0xff]
        %v5784 = vld [vmem:[%s9 + $0x1f48] sm:$0xff]
        %v5785 = vld [vmem:[%s9 + $0x1f50] sm:$0xff]
        %v5786 = vld [vmem:[%s9 + $0x1f58] sm:$0xff]
        %v5787 = vld [vmem:[%s9 + $0x1f60] sm:$0xff]
        %v5788 = vld [vmem:[%s9 + $0x1f68] sm:$0xff]
        %v5789 = vld [vmem:[%s9 + $0x1f70] sm:$0xff]
        %v5790 = vld [vmem:[%s9 + $0x1f78] sm:$0xff]
        %v5791 = vld [vmem:[%s9 + $0x1f80] sm:$0xff]
        %v5792 = vld [vmem:[%s9 + $0x1f88] sm:$0xff]
        %v5793 = vld [vmem:[%s9 + $0x1f90] sm:$0xff]
        %v5794 = vld [vmem:[%s9 + $0x1f98] sm:$0xff]
        %v5795 = vld [vmem:[%s9 + $0x1fa0] sm:$0xff]
        %v5796 = vld [vmem:[%s9 + $0x1fa8] sm:$0xff]
        %v5797 = vld [vmem:[%s9 + $0x1fb0] sm:$0xff]
        %v5798 = vld [vmem:[%s9 + $0x1fb8] sm:$0xff]
        %v5799 = vld [vmem:[%s9 + $0x1fc0] sm:$0xff]
        %v5800 = vld [vmem:[%s9 + $0x1fc8] sm:$0xff]
        %v5801 = vld [vmem:[%s9 + $0x1fd0] sm:$0xff]
        %v5802 = vld [vmem:[%s9 + $0x1fd8] sm:$0xff]
        %v5803 = vld [vmem:[%s9 + $0x1fe0] sm:$0xff]
        %v5804 = vld [vmem:[%s9 + $0x1fe8] sm:$0xff]
        %v5805 = vld [vmem:[%s9 + $0x1ff0] sm:$0xff]
        %v5806 = vld [vmem:[%s9 + $0x1ff8] sm:$0xff]
        %v5807 = vld [vmem:[%s9 + $0x2000] sm:$0xff]
        %v5808 = vld [vmem:[%s9 + $0x2008] sm:$0xff]
        %v5809 = vld [vmem:[%s9 + $0x2010] sm:$0xff]
        %v5810 = vld [vmem:[%s9 + $0x2018] sm:$0xff]
        %v5811 = vld [vmem:[%s9 + $0x2020] sm:$0xff]
        %v5812 = vld [vmem:[%s9 + $0x2028] sm:$0xff]
        %v5813 = vld [vmem:[%s9 + $0x2030] sm:$0xff]
        %v5814 = vld [vmem:[%s9 + $0x2038] sm:$0xff]
        %v5815 = vld [vmem:[%s9 + $0x2040] sm:$0xff]
        %v5816 = vld [vmem:[%s9 + $0x2048] sm:$0xff]
        %v5817 = vld [vmem:[%s9 + $0x2050] sm:$0xff]
        %v5818 = vld [vmem:[%s9 + $0x2058] sm:$0xff]
        %v5819 = vld [vmem:[%s9 + $0x2060] sm:$0xff]
        %v5820 = vld [vmem:[%s9 + $0x2068] sm:$0xff]
        %v5821 = vld [vmem:[%s9 + $0x2070] sm:$0xff]
        %v5822 = vld [vmem:[%s9 + $0x2078] sm:$0xff]
        %v5823 = vld [vmem:[%s9 + $0x2080] sm:$0xff]
        %v5824 = vld [vmem:[%s9 + $0x2088] sm:$0xff]
        %v5825 = vld [vmem:[%s9 + $0x2090] sm:$0xff]
        %v5826 = vld [vmem:[%s9 + $0x2098] sm:$0xff]
        %v5827 = vld [vmem:[%s9 + $0x20a0] sm:$0xff]
        %v5828 = vld [vmem:[%s9 + $0x20a8] sm:$0xff]
        %v5829 = vld [vmem:[%s9 + $0x20b0] sm:$0xff]
        %v5830 = vld [vmem:[%s9 + $0x20b8] sm:$0xff]
        %v5831 = vld [vmem:[%s9 + $0x20c0] sm:$0xff]
        %v5832 = vld [vmem:[%s9 + $0x20c8] sm:$0xff]
        %v5833 = vld [vmem:[%s9 + $0x20d0] sm:$0xff]
        %v5834 = vld [vmem:[%s9 + $0x20d8] sm:$0xff]
        %v5835 = vld [vmem:[%s9 + $0x20e0] sm:$0xff]
        %v5836 = vld [vmem:[%s9 + $0x20e8] sm:$0xff]
        %v5837 = vld [vmem:[%s9 + $0x20f0] sm:$0xff]
        %v5838 = vld [vmem:[%s9 + $0x20f8] sm:$0xff]
        %v5839 = vld [vmem:[%s9 + $0x2100] sm:$0xff]
        %v5840 = vld [vmem:[%s9 + $0x2108] sm:$0xff]
        %v5841 = vld [vmem:[%s9 + $0x2110] sm:$0xff]
        %v5842 = vld [vmem:[%s9 + $0x2118] sm:$0xff]
        %v5843 = vld [vmem:[%s9 + $0x2120] sm:$0xff]
        %v5844 = vld [vmem:[%s9 + $0x2128] sm:$0xff]
        %v5845 = vld [vmem:[%s9 + $0x2130] sm:$0xff]
        %v5846 = vld [vmem:[%s9 + $0x2138] sm:$0xff]
        %v5847 = vld [vmem:[%s9 + $0x2140] sm:$0xff]
        %v5848 = vld [vmem:[%s9 + $0x2148] sm:$0xff]
        %v5849 = vld [vmem:[%s9 + $0x2150] sm:$0xff]
        %v5850 = vld [vmem:[%s9 + $0x2158] sm:$0xff]
        %v5851 = vld [vmem:[%s9 + $0x2160] sm:$0xff]
        %v5852 = vld [vmem:[%s9 + $0x2168] sm:$0xff]
        %v5853 = vld [vmem:[%s9 + $0x2170] sm:$0xff]
        %v5854 = vld [vmem:[%s9 + $0x2178] sm:$0xff]
        %v5855 = vld [vmem:[%s9 + $0x2180] sm:$0xff]
        %v5856 = vld [vmem:[%s9 + $0x2188] sm:$0xff]
        %v5857 = vld [vmem:[%s9 + $0x2190] sm:$0xff]
        %v5858 = vld [vmem:[%s9 + $0x2198] sm:$0xff]
        %v5859 = vld [vmem:[%s9 + $0x21a0] sm:$0xff]
        %v5860 = vld [vmem:[%s9 + $0x21a8] sm:$0xff]
        %v5861 = vld [vmem:[%s9 + $0x21b0] sm:$0xff]
        %v5862 = vld [vmem:[%s9 + $0x21b8] sm:$0xff]
        %v5863 = vld [vmem:[%s9 + $0x21c0] sm:$0xff]
        %v5864 = vld [vmem:[%s9 + $0x21c8] sm:$0xff]
        %v5865 = vld [vmem:[%s9 + $0x21d0] sm:$0xff]
        %v5866 = vld [vmem:[%s9 + $0x21d8] sm:$0xff]
        %v5867 = vld [vmem:[%s9 + $0x21e0] sm:$0xff]
        %v5868 = vld [vmem:[%s9 + $0x21e8] sm:$0xff]
        %v5869 = vld [vmem:[%s9 + $0x21f0] sm:$0xff]
        %v5870 = vld [vmem:[%s9 + $0x21f8] sm:$0xff]
        %v5871 = vld [vmem:[%s9 + $0x2200] sm:$0xff]
        %v5872 = vld [vmem:[%s9 + $0x2208] sm:$0xff]
        %v5873 = vld [vmem:[%s9 + $0x2210] sm:$0xff]
        %v5874 = vld [vmem:[%s9 + $0x2218] sm:$0xff]
        %v5875 = vld [vmem:[%s9 + $0x2220] sm:$0xff]
        %v5876 = vld [vmem:[%s9 + $0x2228] sm:$0xff]
        %v5877 = vld [vmem:[%s9 + $0x2230] sm:$0xff]
        %v5878 = vld [vmem:[%s9 + $0x2238] sm:$0xff]
        %v5879 = vld [vmem:[%s9 + $0x2240] sm:$0xff]
        %v5880 = vld [vmem:[%s9 + $0x2248] sm:$0xff]
        %v5881 = vld [vmem:[%s9 + $0x2250] sm:$0xff]
        %v5882 = vld [vmem:[%s9 + $0x2258] sm:$0xff]
        %v5883 = vld [vmem:[%s9 + $0x2260] sm:$0xff]
        %v5884 = vld [vmem:[%s9 + $0x2268] sm:$0xff]
        %v5885 = vld [vmem:[%s9 + $0x2270] sm:$0xff]
        %v5886 = vld [vmem:[%s9 + $0x2278] sm:$0xff]
        %v5887 = vld [vmem:[%s9 + $0x2280] sm:$0xff]
        %v5888 = vld [vmem:[%s9 + $0x2288] sm:$0xff]
        %v5889 = vld [vmem:[%s9 + $0x2290] sm:$0xff]
        %v5890 = vld [vmem:[%s9 + $0x2298] sm:$0xff]
        %v5891 = vld [vmem:[%s9 + $0x22a0] sm:$0xff]
        %v5892 = vld [vmem:[%s9 + $0x22a8] sm:$0xff]
        %v5893 = vld [vmem:[%s9 + $0x22b0] sm:$0xff]
        %v5894 = vld [vmem:[%s9 + $0x22b8] sm:$0xff]
        %v5895 = vld [vmem:[%s9 + $0x22c0] sm:$0xff]
        %v5896 = vld [vmem:[%s9 + $0x22c8] sm:$0xff]
        %v5897 = vld [vmem:[%s9 + $0x22d0] sm:$0xff]
        %v5898 = vld [vmem:[%s9 + $0x22d8] sm:$0xff]
        %v5899 = vld [vmem:[%s9 + $0x22e0] sm:$0xff]
        %v5900 = vld [vmem:[%s9 + $0x22e8] sm:$0xff]
        %v5901 = vld [vmem:[%s9 + $0x22f0] sm:$0xff]
        %v5902 = vld [vmem:[%s9 + $0x22f8] sm:$0xff]
        %v5903 = vld [vmem:[%s9 + $0x2300] sm:$0xff]
        %v5904 = vld [vmem:[%s9 + $0x2308] sm:$0xff]
        %v5905 = vld [vmem:[%s9 + $0x2310] sm:$0xff]
        %v5906 = vld [vmem:[%s9 + $0x2318] sm:$0xff]
        %v5907 = vld [vmem:[%s9 + $0x2320] sm:$0xff]
        %v5908 = vld [vmem:[%s9 + $0x2328] sm:$0xff]
        %v5909 = vld [vmem:[%s9 + $0x2330] sm:$0xff]
        %v5910 = vld [vmem:[%s9 + $0x2338] sm:$0xff]
        %v5911 = vld [vmem:[%s9 + $0x2340] sm:$0xff]
        %v5912 = vld [vmem:[%s9 + $0x2348] sm:$0xff]
        %v5913 = vld [vmem:[%s9 + $0x2350] sm:$0xff]
        %v5914 = vld [vmem:[%s9 + $0x2358] sm:$0xff]
        %v5915 = vld [vmem:[%s9 + $0x2360] sm:$0xff]
        %v5916 = vld [vmem:[%s9 + $0x2368] sm:$0xff]
        %v5917 = vld [vmem:[%s9 + $0x2370] sm:$0xff]
        %v5918 = vld [vmem:[%s9 + $0x2378] sm:$0xff]
        %v5919 = vld [vmem:[%s9 + $0x2380] sm:$0xff]
        %v5920 = vld [vmem:[%s9 + $0x2388] sm:$0xff]
        %v5921 = vld [vmem:[%s9 + $0x2390] sm:$0xff]
        %v5922 = vld [vmem:[%s9 + $0x2398] sm:$0xff]
        %v5923 = vld [vmem:[%s9 + $0x23a0] sm:$0xff]
        %v5924 = vld [vmem:[%s9 + $0x23a8] sm:$0xff]
        %v5925 = vld [vmem:[%s9 + $0x23b0] sm:$0xff]
        %v5926 = vld [vmem:[%s9 + $0x23b8] sm:$0xff]
        %v5927 = vld [vmem:[%s9 + $0x23c0] sm:$0xff]
        %v5928 = vld [vmem:[%s9 + $0x23c8] sm:$0xff]
        %v5929 = vld [vmem:[%s9 + $0x23d0] sm:$0xff]
        %v5930 = vld [vmem:[%s9 + $0x23d8] sm:$0xff]
        %v5931 = vld [vmem:[%s9 + $0x23e0] sm:$0xff]
        %v5932 = vld [vmem:[%s9 + $0x23e8] sm:$0xff]
        %v5933 = vld [vmem:[%s9 + $0x23f0] sm:$0xff]
        %v5934 = vld [vmem:[%s9 + $0x23f8] sm:$0xff]
        %v5935 = vld [vmem:[%s9 + $0x2400] sm:$0xff]
        %v5936 = vld [vmem:[%s9 + $0x2408] sm:$0xff]
        %v5937 = vld [vmem:[%s9 + $0x2410] sm:$0xff]
        %v5938 = vld [vmem:[%s9 + $0x2418] sm:$0xff]
        %v5939 = vld [vmem:[%s9 + $0x2420] sm:$0xff]
        %v5940 = vld [vmem:[%s9 + $0x2428] sm:$0xff]
        %v5941 = vld [vmem:[%s9 + $0x2430] sm:$0xff]
        %v5942 = vld [vmem:[%s9 + $0x2438] sm:$0xff]
        %v5943 = vld [vmem:[%s9 + $0x2440] sm:$0xff]
        %v5944 = vld [vmem:[%s9 + $0x2448] sm:$0xff]
        %v5945 = vld [vmem:[%s9 + $0x2450] sm:$0xff]
        %v5946 = vld [vmem:[%s9 + $0x2458] sm:$0xff]
        %v5947 = vld [vmem:[%s9 + $0x2460] sm:$0xff]
        %v5948 = vld [vmem:[%s9 + $0x2468] sm:$0xff]
        %v5949 = vld [vmem:[%s9 + $0x2470] sm:$0xff]
        %v5950 = vld [vmem:[%s9 + $0x2478] sm:$0xff]
        %v5951 = vld [vmem:[%s9 + $0x2480] sm:$0xff]
        %v5952 = vld [vmem:[%s9 + $0x2488] sm:$0xff]
        %v5953 = vld [vmem:[%s9 + $0x2490] sm:$0xff]
        %v5954 = vld [vmem:[%s9 + $0x2498] sm:$0xff]
        %v5955 = vld [vmem:[%s9 + $0x24a0] sm:$0xff]
        %v5956 = vld [vmem:[%s9 + $0x24a8] sm:$0xff]
        %v5957 = vld [vmem:[%s9 + $0x24b0] sm:$0xff]
        %v5958 = vld [vmem:[%s9 + $0x24b8] sm:$0xff]
        %v5959 = vld [vmem:[%s9 + $0x24c0] sm:$0xff]
        %v5960 = vld [vmem:[%s9 + $0x24c8] sm:$0xff]
        %v5961 = vld [vmem:[%s9 + $0x24d0] sm:$0xff]
        %v5962 = vld [vmem:[%s9 + $0x24d8] sm:$0xff]
        %v5963 = vld [vmem:[%s9 + $0x24e0] sm:$0xff]
        %v5964 = vld [vmem:[%s9 + $0x24e8] sm:$0xff]
        %v5965 = vld [vmem:[%s9 + $0x24f0] sm:$0xff]
        %v5966 = vld [vmem:[%s9 + $0x24f8] sm:$0xff]
        %v5967 = vld [vmem:[%s9 + $0x2500] sm:$0xff]
        %v5968 = vld [vmem:[%s9 + $0x2508] sm:$0xff]
        %v5969 = vld [vmem:[%s9 + $0x2510] sm:$0xff]
        %v5970 = vld [vmem:[%s9 + $0x2518] sm:$0xff]
        %v5971 = vld [vmem:[%s9 + $0x2520] sm:$0xff]
        %v5972 = vld [vmem:[%s9 + $0x2528] sm:$0xff]
        %v5973 = vld [vmem:[%s9 + $0x2530] sm:$0xff]
        %v5974 = vld [vmem:[%s9 + $0x2538] sm:$0xff]
        %v5975 = vld [vmem:[%s9 + $0x2540] sm:$0xff]
        %v5976 = vld [vmem:[%s9 + $0x2548] sm:$0xff]
        %v5977 = vld [vmem:[%s9 + $0x2550] sm:$0xff]
        %v5978 = vld [vmem:[%s9 + $0x2558] sm:$0xff]
        %v5979 = vld [vmem:[%s9 + $0x2560] sm:$0xff]
        %v5980 = vld [vmem:[%s9 + $0x2568] sm:$0xff]
        %v5981 = vld [vmem:[%s9 + $0x2570] sm:$0xff]
        %v5982 = vld [vmem:[%s9 + $0x2578] sm:$0xff]
        %v5983 = vld [vmem:[%s9 + $0x2580] sm:$0xff]
        %v5984 = vld [vmem:[%s9 + $0x2588] sm:$0xff]
        %v5985 = vld [vmem:[%s9 + $0x2590] sm:$0xff]
        %v5986 = vld [vmem:[%s9 + $0x2598] sm:$0xff]
        %v5987 = vld [vmem:[%s9 + $0x25a0] sm:$0xff]
        %v5988 = vld [vmem:[%s9 + $0x25a8] sm:$0xff]
        %v5989 = vld [vmem:[%s9 + $0x25b0] sm:$0xff]
        %v5990 = vld [vmem:[%s9 + $0x25b8] sm:$0xff]
        %v5991 = vld [vmem:[%s9 + $0x25c0] sm:$0xff]
        %v5992 = vld [vmem:[%s9 + $0x25c8] sm:$0xff]
        %v5993 = vld [vmem:[%s9 + $0x25d0] sm:$0xff]
        %v5994 = vld [vmem:[%s9 + $0x25d8] sm:$0xff]
        %v5995 = vld [vmem:[%s9 + $0x25e0] sm:$0xff]
        %v5996 = vld [vmem:[%s9 + $0x25e8] sm:$0xff]
        %v5997 = vld [vmem:[%s9 + $0x25f0] sm:$0xff]
        %v5998 = vld [vmem:[%s9 + $0x25f8] sm:$0xff]
        %v5999 = vld [vmem:[%s9 + $0x2600] sm:$0xff]
        %v6000 = vld [vmem:[%s9 + $0x2608] sm:$0xff]
        %v6001 = vld [vmem:[%s9 + $0x2610] sm:$0xff]
        %v6002 = vld [vmem:[%s9 + $0x2618] sm:$0xff]
        %v6003 = vld [vmem:[%s9 + $0x2620] sm:$0xff]
        %v6004 = vld [vmem:[%s9 + $0x2628] sm:$0xff]
        %v6005 = vld [vmem:[%s9 + $0x2630] sm:$0xff]
        %v6006 = vld [vmem:[%s9 + $0x2638] sm:$0xff]
        %v6007 = vld [vmem:[%s9 + $0x2640] sm:$0xff]
        %v6008 = vld [vmem:[%s9 + $0x2648] sm:$0xff]
        %v6009 = vld [vmem:[%s9 + $0x2650] sm:$0xff]
        %v6010 = vld [vmem:[%s9 + $0x2658] sm:$0xff]
        %v6011 = vld [vmem:[%s9 + $0x2660] sm:$0xff]
        %v6012 = vld [vmem:[%s9 + $0x2668] sm:$0xff]
        %v6013 = vld [vmem:[%s9 + $0x2670] sm:$0xff]
        %v6014 = vld [vmem:[%s9 + $0x2678] sm:$0xff]
        %v6015 = vld [vmem:[%s9 + $0x2680] sm:$0xff]
        %v6016 = vld [vmem:[%s9 + $0x2688] sm:$0xff]
        %v6017 = vld [vmem:[%s9 + $0x2690] sm:$0xff]
        %v6018 = vld [vmem:[%s9 + $0x2698] sm:$0xff]
        %v6019 = vld [vmem:[%s9 + $0x26a0] sm:$0xff]
        %v6020 = vld [vmem:[%s9 + $0x26a8] sm:$0xff]
        %v6021 = vld [vmem:[%s9 + $0x26b0] sm:$0xff]
        %v6022 = vld [vmem:[%s9 + $0x26b8] sm:$0xff]
        %v6023 = vld [vmem:[%s9 + $0x26c0] sm:$0xff]
        %v6024 = vld [vmem:[%s9 + $0x26c8] sm:$0xff]
        %v6025 = vld [vmem:[%s9 + $0x26d0] sm:$0xff]
        %v6026 = vld [vmem:[%s9 + $0x26d8] sm:$0xff]
        %v6027 = vld [vmem:[%s9 + $0x26e0] sm:$0xff]
        %v6028 = vld [vmem:[%s9 + $0x26e8] sm:$0xff]
        %v6029 = vld [vmem:[%s9 + $0x26f0] sm:$0xff]
        %v6030 = vld [vmem:[%s9 + $0x26f8] sm:$0xff]
        %v6031 = vld [vmem:[%s9 + $0x2700] sm:$0xff]
        %v6032 = vld [vmem:[%s9 + $0x2708] sm:$0xff]
        %v6033 = vld [vmem:[%s9 + $0x2710] sm:$0xff]
        %v6034 = vld [vmem:[%s9 + $0x2718] sm:$0xff]
        %v6035 = vld [vmem:[%s9 + $0x2720] sm:$0xff]
        %v6036 = vld [vmem:[%s9 + $0x2728] sm:$0xff]
        %v6037 = vld [vmem:[%s9 + $0x2730] sm:$0xff]
        %v6038 = vld [vmem:[%s9 + $0x2738] sm:$0xff]
        %v6039 = vld [vmem:[%s9 + $0x2740] sm:$0xff]
        %v6040 = vld [vmem:[%s9 + $0x2748] sm:$0xff]
        %v6041 = vld [vmem:[%s9 + $0x2750] sm:$0xff]
        %v6042 = vld [vmem:[%s9 + $0x2758] sm:$0xff]
        %v6043 = vld [vmem:[%s9 + $0x2760] sm:$0xff]
        %v6044 = vld [vmem:[%s9 + $0x2768] sm:$0xff]
        %v6045 = vld [vmem:[%s9 + $0x2770] sm:$0xff]
        %v6046 = vld [vmem:[%s9 + $0x2778] sm:$0xff]
        %v6047 = vld [vmem:[%s9 + $0x2780] sm:$0xff]
        %v6048 = vld [vmem:[%s9 + $0x2788] sm:$0xff]
        %v6049 = vld [vmem:[%s9 + $0x2790] sm:$0xff]
        %v6050 = vld [vmem:[%s9 + $0x2798] sm:$0xff]
        %v6051 = vld [vmem:[%s9 + $0x27a0] sm:$0xff]
        %v6052 = vld [vmem:[%s9 + $0x27a8] sm:$0xff]
        %v6053 = vld [vmem:[%s9 + $0x27b0] sm:$0xff]
        %v6054 = vld [vmem:[%s9 + $0x27b8] sm:$0xff]
        %v6055 = vld [vmem:[%s9 + $0x27c0] sm:$0xff]
        %v6056 = vld [vmem:[%s9 + $0x27c8] sm:$0xff]
        %v6057 = vld [vmem:[%s9 + $0x27d0] sm:$0xff]
        %v6058 = vld [vmem:[%s9 + $0x27d8] sm:$0xff]
        %v6059 = vld [vmem:[%s9 + $0x27e0] sm:$0xff]
        %v6060 = vld [vmem:[%s9 + $0x27e8] sm:$0xff]
        %v6061 = vld [vmem:[%s9 + $0x27f0] sm:$0xff]
        %v6062 = vld [vmem:[%s9 + $0x27f8] sm:$0xff]
        %v6063 = vld [vmem:[%s9 + $0x2800] sm:$0xff]
        %v6064 = vld [vmem:[%s9 + $0x2808] sm:$0xff]
        %v6065 = vld [vmem:[%s9 + $0x2810] sm:$0xff]
        %v6066 = vld [vmem:[%s9 + $0x2818] sm:$0xff]
        %v6067 = vld [vmem:[%s9 + $0x2820] sm:$0xff]
        %v6068 = vld [vmem:[%s9 + $0x2828] sm:$0xff]
        %v6069 = vld [vmem:[%s9 + $0x2830] sm:$0xff]
        %v6070 = vld [vmem:[%s9 + $0x2838] sm:$0xff]
        %v6071 = vld [vmem:[%s9 + $0x2840] sm:$0xff]
        %v6072 = vld [vmem:[%s9 + $0x2848] sm:$0xff]
        %v6073 = vld [vmem:[%s9 + $0x2850] sm:$0xff]
        %v6074 = vld [vmem:[%s9 + $0x2858] sm:$0xff]
        %v6075 = vld [vmem:[%s9 + $0x2860] sm:$0xff]
        %v6076 = vld [vmem:[%s9 + $0x2868] sm:$0xff]
        %v6077 = vld [vmem:[%s9 + $0x2870] sm:$0xff]
        %v6078 = vld [vmem:[%s9 + $0x2878] sm:$0xff]
        %v6079 = vld [vmem:[%s9 + $0x2880] sm:$0xff]
        %v6080 = vld [vmem:[%s9 + $0x2888] sm:$0xff]
        %v6081 = vld [vmem:[%s9 + $0x2890] sm:$0xff]
        %v6082 = vld [vmem:[%s9 + $0x2898] sm:$0xff]
        %v6083 = vld [vmem:[%s9 + $0x28a0] sm:$0xff]
        %v6084 = vld [vmem:[%s9 + $0x28a8] sm:$0xff]
        %v6085 = vld [vmem:[%s9 + $0x28b0] sm:$0xff]
        %v6086 = vld [vmem:[%s9 + $0x28b8] sm:$0xff]
        %v6087 = vld [vmem:[%s9 + $0x28c0] sm:$0xff]
        %v6088 = vld [vmem:[%s9 + $0x28c8] sm:$0xff]
        %v6089 = vld [vmem:[%s9 + $0x28d0] sm:$0xff]
        %v6090 = vld [vmem:[%s9 + $0x28d8] sm:$0xff]
        %v6091 = vld [vmem:[%s9 + $0x28e0] sm:$0xff]
        %v6092 = vld [vmem:[%s9 + $0x28e8] sm:$0xff]
        %v6093 = vld [vmem:[%s9 + $0x28f0] sm:$0xff]
        %v6094 = vld [vmem:[%s9 + $0x28f8] sm:$0xff]
        %v6095 = vld [vmem:[%s9 + $0x2900] sm:$0xff]
        %v6096 = vld [vmem:[%s9 + $0x2908] sm:$0xff]
        %v6097 = vld [vmem:[%s9 + $0x2910] sm:$0xff]
        %v6098 = vld [vmem:[%s9 + $0x2918] sm:$0xff]
        %v6099 = vld [vmem:[%s9 + $0x2920] sm:$0xff]
        %v6100 = vld [vmem:[%s9 + $0x2928] sm:$0xff]
        %v6101 = vld [vmem:[%s9 + $0x2930] sm:$0xff]
        %v6102 = vld [vmem:[%s9 + $0x2938] sm:$0xff]
        %v6103 = vld [vmem:[%s9 + $0x2940] sm:$0xff]
        %v6104 = vld [vmem:[%s9 + $0x2948] sm:$0xff]
        %v6105 = vld [vmem:[%s9 + $0x2950] sm:$0xff]
        %v6106 = vld [vmem:[%s9 + $0x2958] sm:$0xff]
        %v6107 = vld [vmem:[%s9 + $0x2960] sm:$0xff]
        %v6108 = vld [vmem:[%s9 + $0x2968] sm:$0xff]
        %v6109 = vld [vmem:[%s9 + $0x2970] sm:$0xff]
        %v6110 = vld [vmem:[%s9 + $0x2978] sm:$0xff]
        %v6111 = vld [vmem:[%s9 + $0x2980] sm:$0xff]
        %v6112 = vld [vmem:[%s9 + $0x2988] sm:$0xff]
        %v6113 = vld [vmem:[%s9 + $0x2990] sm:$0xff]
        %v6114 = vld [vmem:[%s9 + $0x2998] sm:$0xff]
        %v6115 = vld [vmem:[%s9 + $0x29a0] sm:$0xff]
        %v6116 = vld [vmem:[%s9 + $0x29a8] sm:$0xff]
        %v6117 = vld [vmem:[%s9 + $0x29b0] sm:$0xff]
        %v6118 = vld [vmem:[%s9 + $0x29b8] sm:$0xff]
        %v6119 = vld [vmem:[%s9 + $0x29c0] sm:$0xff]
        %v6120 = vld [vmem:[%s9 + $0x29c8] sm:$0xff]
        %v6121 = vld [vmem:[%s9 + $0x29d0] sm:$0xff]
        %v6122 = vld [vmem:[%s9 + $0x29d8] sm:$0xff]
        %v6123 = vld [vmem:[%s9 + $0x29e0] sm:$0xff]
        %v6124 = vld [vmem:[%s9 + $0x29e8] sm:$0xff]
        %v6125 = vld [vmem:[%s9 + $0x29f0] sm:$0xff]
        %v6126 = vld [vmem:[%s9 + $0x29f8] sm:$0xff]
        %v6127 = vld [vmem:[%s9 + $0x2a00] sm:$0xff]
        %v6128 = vld [vmem:[%s9 + $0x2a08] sm:$0xff]
        %v6129 = vld [vmem:[%s9 + $0x2a10] sm:$0xff]
        %v6130 = vld [vmem:[%s9 + $0x2a18] sm:$0xff]
        %v6131 = vld [vmem:[%s9 + $0x2a20] sm:$0xff]
        %v6132 = vld [vmem:[%s9 + $0x2a28] sm:$0xff]
        %v6133 = vld [vmem:[%s9 + $0x2a30] sm:$0xff]
        %v6134 = vld [vmem:[%s9 + $0x2a38] sm:$0xff]
        %v6135 = vld [vmem:[%s9 + $0x2a40] sm:$0xff]
        %v6136 = vld [vmem:[%s9 + $0x2a48] sm:$0xff]
        %v6137 = vld [vmem:[%s9 + $0x2a50] sm:$0xff]
        %v6138 = vld [vmem:[%s9 + $0x2a58] sm:$0xff]
        %v6139 = vld [vmem:[%s9 + $0x2a60] sm:$0xff]
        %v6140 = vld [vmem:[%s9 + $0x2a68] sm:$0xff]
        %v6141 = vld [vmem:[%s9 + $0x2a70] sm:$0xff]
        %v6142 = vld [vmem:[%s9 + $0x2a78] sm:$0xff]
        %v6143 = vld [vmem:[%s9 + $0x2a80] sm:$0xff]
        %v6144 = vld [vmem:[%s9 + $0x2a88] sm:$0xff]
        %v6145 = vld [vmem:[%s9 + $0x2a90] sm:$0xff]
        %v6146 = vld [vmem:[%s9 + $0x2a98] sm:$0xff]
        %v6147 = vld [vmem:[%s9 + $0x2aa0] sm:$0xff]
        %v6148 = vld [vmem:[%s9 + $0x2aa8] sm:$0xff]
        %v6149 = vld [vmem:[%s9 + $0x2ab0] sm:$0xff]
        %v6150 = vld [vmem:[%s9 + $0x2ab8] sm:$0xff]
        %v6151 = vld [vmem:[%s9 + $0x2ac0] sm:$0xff]
        %v6152 = vld [vmem:[%s9 + $0x2ac8] sm:$0xff]
        %v6153 = vld [vmem:[%s9 + $0x2ad0] sm:$0xff]
        %v6154 = vld [vmem:[%s9 + $0x2ad8] sm:$0xff]
        %v6155 = vld [vmem:[%s9 + $0x2ae0] sm:$0xff]
        %v6156 = vld [vmem:[%s9 + $0x2ae8] sm:$0xff]
        %v6157 = vld [vmem:[%s9 + $0x2af0] sm:$0xff]
        %v6158 = vld [vmem:[%s9 + $0x2af8] sm:$0xff]
        %v6159 = vld [vmem:[%s9 + $0x2b00] sm:$0xff]
        %v6160 = vld [vmem:[%s9 + $0x2b08] sm:$0xff]
        %v6161 = vld [vmem:[%s9 + $0x2b10] sm:$0xff]
        %v6162 = vld [vmem:[%s9 + $0x2b18] sm:$0xff]
        %v6163 = vld [vmem:[%s9 + $0x2b20] sm:$0xff]
        %v6164 = vld [vmem:[%s9 + $0x2b28] sm:$0xff]
        %v6165 = vld [vmem:[%s9 + $0x2b30] sm:$0xff]
        %v6166 = vld [vmem:[%s9 + $0x2b38] sm:$0xff]
        %v6167 = vld [vmem:[%s9 + $0x2b40] sm:$0xff]
        %v6168 = vld [vmem:[%s9 + $0x2b48] sm:$0xff]
        %v6169 = vld [vmem:[%s9 + $0x2b50] sm:$0xff]
        %v6170 = vld [vmem:[%s9 + $0x2b58] sm:$0xff]
        %v6171 = vld [vmem:[%s9 + $0x2b60] sm:$0xff]
        %v6172 = vld [vmem:[%s9 + $0x2b68] sm:$0xff]
        %v6173 = vld [vmem:[%s9 + $0x2b70] sm:$0xff]
        %v6174 = vld [vmem:[%s9 + $0x2b78] sm:$0xff]
        %v6175 = vld [vmem:[%s9 + $0x2b80] sm:$0xff]
        %v6176 = vld [vmem:[%s9 + $0x2b88] sm:$0xff]
        %v6177 = vld [vmem:[%s9 + $0x2b90] sm:$0xff]
        %v6178 = vld [vmem:[%s9 + $0x2b98] sm:$0xff]
        %v6179 = vld [vmem:[%s9 + $0x2ba0] sm:$0xff]
        %v6180 = vld [vmem:[%s9 + $0x2ba8] sm:$0xff]
        %v6181 = vld [vmem:[%s9 + $0x2bb0] sm:$0xff]
        %v6182 = vld [vmem:[%s9 + $0x2bb8] sm:$0xff]
        %v6183 = vld [vmem:[%s9 + $0x2bc0] sm:$0xff]
        %v6184 = vld [vmem:[%s9 + $0x2bc8] sm:$0xff]
        %v6185 = vld [vmem:[%s9 + $0x2bd0] sm:$0xff]
        %v6186 = vld [vmem:[%s9 + $0x2bd8] sm:$0xff]
        %v6187 = vld [vmem:[%s9 + $0x2be0] sm:$0xff]
        %v6188 = vld [vmem:[%s9 + $0x2be8] sm:$0xff]
        %v6189 = vld [vmem:[%s9 + $0x2bf0] sm:$0xff]
        %v6190 = vld [vmem:[%s9 + $0x2bf8] sm:$0xff]
        %v6191 = vld [vmem:[%s9 + $0x2c00] sm:$0xff]
        %v6192 = vld [vmem:[%s9 + $0x2c08] sm:$0xff]
        %v6193 = vld [vmem:[%s9 + $0x2c10] sm:$0xff]
        %v6194 = vld [vmem:[%s9 + $0x2c18] sm:$0xff]
        %v6195 = vld [vmem:[%s9 + $0x2c20] sm:$0xff]
        %v6196 = vld [vmem:[%s9 + $0x2c28] sm:$0xff]
        %v6197 = vld [vmem:[%s9 + $0x2c30] sm:$0xff]
        %v6198 = vld [vmem:[%s9 + $0x2c38] sm:$0xff]
        %v6199 = vld [vmem:[%s9 + $0x2c40] sm:$0xff]
        %v6200 = vld [vmem:[%s9 + $0x2c48] sm:$0xff]
        %v6201 = vld [vmem:[%s9 + $0x2c50] sm:$0xff]
        %v6202 = vld [vmem:[%s9 + $0x2c58] sm:$0xff]
        %v6203 = vld [vmem:[%s9 + $0x2c60] sm:$0xff]
        %v6204 = vld [vmem:[%s9 + $0x2c68] sm:$0xff]
        %v6205 = vld [vmem:[%s9 + $0x2c70] sm:$0xff]
        %v6206 = vld [vmem:[%s9 + $0x2c78] sm:$0xff]
        %v6207 = vld [vmem:[%s9 + $0x2c80] sm:$0xff]
        %v6208 = vld [vmem:[%s9 + $0x2c88] sm:$0xff]
        %v6209 = vld [vmem:[%s9 + $0x2c90] sm:$0xff]
        %v6210 = vld [vmem:[%s9 + $0x2c98] sm:$0xff]
        %v6211 = vld [vmem:[%s9 + $0x2ca0] sm:$0xff]
        %v6212 = vld [vmem:[%s9 + $0x2ca8] sm:$0xff]
        %v6213 = vld [vmem:[%s9 + $0x2cb0] sm:$0xff]
        %v6214 = vld [vmem:[%s9 + $0x2cb8] sm:$0xff]
        %v6215 = vld [vmem:[%s9 + $0x2cc0] sm:$0xff]
        %v6216 = vld [vmem:[%s9 + $0x2cc8] sm:$0xff]
        %v6217 = vld [vmem:[%s9 + $0x2cd0] sm:$0xff]
        %v6218 = vld [vmem:[%s9 + $0x2cd8] sm:$0xff]
        %v6219 = vld [vmem:[%s9 + $0x2ce0] sm:$0xff]
        %v6220 = vld [vmem:[%s9 + $0x2ce8] sm:$0xff]
        %v6221 = vld [vmem:[%s9 + $0x2cf0] sm:$0xff]
        %v6222 = vld [vmem:[%s9 + $0x2cf8] sm:$0xff]
        %v6223 = vld [vmem:[%s9 + $0x2d00] sm:$0xff]
        %v6224 = vld [vmem:[%s9 + $0x2d08] sm:$0xff]
        %v6225 = vld [vmem:[%s9 + $0x2d10] sm:$0xff]
        %v6226 = vld [vmem:[%s9 + $0x2d18] sm:$0xff]
        %v6227 = vld [vmem:[%s9 + $0x2d20] sm:$0xff]
        %v6228 = vld [vmem:[%s9 + $0x2d28] sm:$0xff]
        %v6229 = vld [vmem:[%s9 + $0x2d30] sm:$0xff]
        %v6230 = vld [vmem:[%s9 + $0x2d38] sm:$0xff]
        %v6231 = vld [vmem:[%s9 + $0x2d40] sm:$0xff]
        %v6232 = vld [vmem:[%s9 + $0x2d48] sm:$0xff]
        %v6233 = vld [vmem:[%s9 + $0x2d50] sm:$0xff]
        %v6234 = vld [vmem:[%s9 + $0x2d58] sm:$0xff]
        %v6235 = vld [vmem:[%s9 + $0x2d60] sm:$0xff]
        %v6236 = vld [vmem:[%s9 + $0x2d68] sm:$0xff]
        %v6237 = vld [vmem:[%s9 + $0x2d70] sm:$0xff]
        %v6238 = vld [vmem:[%s9 + $0x2d78] sm:$0xff]
        %v6239 = vld [vmem:[%s9 + $0x2d80] sm:$0xff]
        %v6240 = vld [vmem:[%s9 + $0x2d88] sm:$0xff]
        %v6241 = vld [vmem:[%s9 + $0x2d90] sm:$0xff]
        %v6242 = vld [vmem:[%s9 + $0x2d98] sm:$0xff]
        %v6243 = vld [vmem:[%s9 + $0x2da0] sm:$0xff]
        %v6244 = vld [vmem:[%s9 + $0x2da8] sm:$0xff]
        %v6245 = vld [vmem:[%s9 + $0x2db0] sm:$0xff]
        %v6246 = vld [vmem:[%s9 + $0x2db8] sm:$0xff]
        %v6247 = vld [vmem:[%s9 + $0x2dc0] sm:$0xff]
        %v6248 = vld [vmem:[%s9 + $0x2dc8] sm:$0xff]
        %v6249 = vld [vmem:[%s9 + $0x2dd0] sm:$0xff]
        %v6250 = vld [vmem:[%s9 + $0x2dd8] sm:$0xff]
        %v6251 = vld [vmem:[%s9 + $0x2de0] sm:$0xff]
        %v6252 = vld [vmem:[%s9 + $0x2de8] sm:$0xff]
        %v6253 = vld [vmem:[%s9 + $0x2df0] sm:$0xff]
        %v6254 = vld [vmem:[%s9 + $0x2df8] sm:$0xff]
        %v6255 = vld [vmem:[%s9 + $0x2e00] sm:$0xff]
        %v6256 = vld [vmem:[%s9 + $0x2e08] sm:$0xff]
        %v6257 = vld [vmem:[%s9 + $0x2e10] sm:$0xff]
        %v6258 = vld [vmem:[%s9 + $0x2e18] sm:$0xff]
        %v6259 = vld [vmem:[%s9 + $0x2e20] sm:$0xff]
        %v6260 = vld [vmem:[%s9 + $0x2e28] sm:$0xff]
        %v6261 = vld [vmem:[%s9 + $0x2e30] sm:$0xff]
        %v6262 = vld [vmem:[%s9 + $0x2e38] sm:$0xff]
        %v6263 = vld [vmem:[%s9 + $0x2e40] sm:$0xff]
        %v6264 = vld [vmem:[%s9 + $0x2e48] sm:$0xff]
        %v6265 = vld [vmem:[%s9 + $0x2e50] sm:$0xff]
        %v6266 = vld [vmem:[%s9 + $0x2e58] sm:$0xff]
        %v6267 = vld [vmem:[%s9 + $0x2e60] sm:$0xff]
        %v6268 = vld [vmem:[%s9 + $0x2e68] sm:$0xff]
        %v6269 = vld [vmem:[%s9 + $0x2e70] sm:$0xff]
        %v6270 = vld [vmem:[%s9 + $0x2e78] sm:$0xff]
        %v6271 = vld [vmem:[%s9 + $0x2e80] sm:$0xff]
        %v6272 = vld [vmem:[%s9 + $0x2e88] sm:$0xff]
        %v6273 = vld [vmem:[%s9 + $0x2e90] sm:$0xff]
        %v6274 = vld [vmem:[%s9 + $0x2e98] sm:$0xff]
        %v6275 = vld [vmem:[%s9 + $0x2ea0] sm:$0xff]
        %v6276 = vld [vmem:[%s9 + $0x2ea8] sm:$0xff]
        %v6277 = vld [vmem:[%s9 + $0x2eb0] sm:$0xff]
        %v6278 = vld [vmem:[%s9 + $0x2eb8] sm:$0xff]
        %v6279 = vld [vmem:[%s9 + $0x2ec0] sm:$0xff]
        %v6280 = vld [vmem:[%s9 + $0x2ec8] sm:$0xff]
        %v6281 = vld [vmem:[%s9 + $0x2ed0] sm:$0xff]
        %v6282 = vld [vmem:[%s9 + $0x2ed8] sm:$0xff]
        %v6283 = vld [vmem:[%s9 + $0x2ee0] sm:$0xff]
        %v6284 = vld [vmem:[%s9 + $0x2ee8] sm:$0xff]
        %v6285 = vld [vmem:[%s9 + $0x2ef0] sm:$0xff]
        %v6286 = vld [vmem:[%s9 + $0x2ef8] sm:$0xff]
        %v6287 = vld [vmem:[%s9 + $0x2f00] sm:$0xff]
        %v6288 = vld [vmem:[%s9 + $0x2f08] sm:$0xff]
        %v6289 = vld [vmem:[%s9 + $0x2f10] sm:$0xff]
        %v6290 = vld [vmem:[%s9 + $0x2f18] sm:$0xff]
        %v6291 = vld [vmem:[%s9 + $0x2f20] sm:$0xff]
        %v6292 = vld [vmem:[%s9 + $0x2f28] sm:$0xff]
        %v6293 = vld [vmem:[%s9 + $0x2f30] sm:$0xff]
        %v6294 = vld [vmem:[%s9 + $0x2f38] sm:$0xff]
        %v6295 = vld [vmem:[%s9 + $0x2f40] sm:$0xff]
        %v6296 = vld [vmem:[%s9 + $0x2f48] sm:$0xff]
        %v6297 = vld [vmem:[%s9 + $0x2f50] sm:$0xff]
        %v6298 = vld [vmem:[%s9 + $0x2f58] sm:$0xff]
        %v6299 = vld [vmem:[%s9 + $0x2f60] sm:$0xff]
        %v6300 = vld [vmem:[%s9 + $0x2f68] sm:$0xff]
        %v6301 = vld [vmem:[%s9 + $0x2f70] sm:$0xff]
        %v6302 = vld [vmem:[%s9 + $0x2f78] sm:$0xff]
        %v6303 = vld [vmem:[%s9 + $0x2f80] sm:$0xff]
        %v6304 = vld [vmem:[%s9 + $0x2f88] sm:$0xff]
        %v6305 = vld [vmem:[%s9 + $0x2f90] sm:$0xff]
        %v6306 = vld [vmem:[%s9 + $0x2f98] sm:$0xff]
        %v6307 = vld [vmem:[%s9 + $0x2fa0] sm:$0xff]
        %v6308 = vld [vmem:[%s9 + $0x2fa8] sm:$0xff]
        %v6309 = vld [vmem:[%s9 + $0x2fb0] sm:$0xff]
        %v6310 = vld [vmem:[%s9 + $0x2fb8] sm:$0xff]
        %v6311 = vld [vmem:[%s9 + $0x2fc0] sm:$0xff]
        %v6312 = vld [vmem:[%s9 + $0x2fc8] sm:$0xff]
        %v6313 = vld [vmem:[%s9 + $0x2fd0] sm:$0xff]
        %v6314 = vld [vmem:[%s9 + $0x2fd8] sm:$0xff]
        %v6315 = vld [vmem:[%s9 + $0x2fe0] sm:$0xff]
        %v6316 = vld [vmem:[%s9 + $0x2fe8] sm:$0xff]
        %v6317 = vld [vmem:[%s9 + $0x2ff0] sm:$0xff]
        %v6318 = vld [vmem:[%s9 + $0x2ff8] sm:$0xff]
        %v6319 = vld [vmem:[%s9 + $0x3000] sm:$0xff]
        %v6320 = vld [vmem:[%s9 + $0x3008] sm:$0xff]
        %v6321 = vld [vmem:[%s9 + $0x3010] sm:$0xff]
        %v6322 = vld [vmem:[%s9 + $0x3018] sm:$0xff]
        %v6323 = vld [vmem:[%s9 + $0x3020] sm:$0xff]
        %v6324 = vld [vmem:[%s9 + $0x3028] sm:$0xff]
        %v6325 = vld [vmem:[%s9 + $0x3030] sm:$0xff]
        %v6326 = vld [vmem:[%s9 + $0x3038] sm:$0xff]
        %v6327 = vld [vmem:[%s9 + $0x3040] sm:$0xff]
        %v6328 = vld [vmem:[%s9 + $0x3048] sm:$0xff]
        %v6329 = vld [vmem:[%s9 + $0x3050] sm:$0xff]
        %v6330 = vld [vmem:[%s9 + $0x3058] sm:$0xff]
        %v6331 = vld [vmem:[%s9 + $0x3060] sm:$0xff]
        %v6332 = vld [vmem:[%s9 + $0x3068] sm:$0xff]
        %v6333 = vld [vmem:[%s9 + $0x3070] sm:$0xff]
        %v6334 = vld [vmem:[%s9 + $0x3078] sm:$0xff]
        %v6335 = vld [vmem:[%s9 + $0x3080] sm:$0xff]
        %v6336 = vld [vmem:[%s9 + $0x3088] sm:$0xff]
        %v6337 = vld [vmem:[%s9 + $0x3090] sm:$0xff]
        %v6338 = vld [vmem:[%s9 + $0x3098] sm:$0xff]
        %v6339 = vld [vmem:[%s9 + $0x30a0] sm:$0xff]
        %v6340 = vld [vmem:[%s9 + $0x30a8] sm:$0xff]
        %v6341 = vld [vmem:[%s9 + $0x30b0] sm:$0xff]
        %v6342 = vld [vmem:[%s9 + $0x30b8] sm:$0xff]
        %v6343 = vld [vmem:[%s9 + $0x30c0] sm:$0xff]
        %v6344 = vld [vmem:[%s9 + $0x30c8] sm:$0xff]
        %v6345 = vld [vmem:[%s9 + $0x30d0] sm:$0xff]
        %v6346 = vld [vmem:[%s9 + $0x30d8] sm:$0xff]
        %v6347 = vld [vmem:[%s9 + $0x30e0] sm:$0xff]
        %v6348 = vld [vmem:[%s9 + $0x30e8] sm:$0xff]
        %v6349 = vld [vmem:[%s9 + $0x30f0] sm:$0xff]
        %v6350 = vld [vmem:[%s9 + $0x30f8] sm:$0xff]
        %v6351 = vld [vmem:[%s9 + $0x3100] sm:$0xff]
        %v6352 = vld [vmem:[%s9 + $0x3108] sm:$0xff]
        %v6353 = vld [vmem:[%s9 + $0x3110] sm:$0xff]
        %v6354 = vld [vmem:[%s9 + $0x3118] sm:$0xff]
        %v6355 = vld [vmem:[%s9 + $0x3120] sm:$0xff]
        %v6356 = vld [vmem:[%s9 + $0x3128] sm:$0xff]
        %v6357 = vld [vmem:[%s9 + $0x3130] sm:$0xff]
        %v6358 = vld [vmem:[%s9 + $0x3138] sm:$0xff]
        %v6359 = vld [vmem:[%s9 + $0x3140] sm:$0xff]
        %v6360 = vld [vmem:[%s9 + $0x3148] sm:$0xff]
        %v6361 = vld [vmem:[%s9 + $0x3150] sm:$0xff]
        %v6362 = vld [vmem:[%s9 + $0x3158] sm:$0xff]
        %v6363 = vld [vmem:[%s9 + $0x3160] sm:$0xff]
        %v6364 = vld [vmem:[%s9 + $0x3168] sm:$0xff]
        %v6365 = vld [vmem:[%s9 + $0x3170] sm:$0xff]
        %v6366 = vld [vmem:[%s9 + $0x3178] sm:$0xff]
        %v6367 = vld [vmem:[%s9 + $0x3180] sm:$0xff]
        %v6368 = vld [vmem:[%s9 + $0x3188] sm:$0xff]
        %v6369 = vld [vmem:[%s9 + $0x3190] sm:$0xff]
        %v6370 = vld [vmem:[%s9 + $0x3198] sm:$0xff]
        %v6371 = vld [vmem:[%s9 + $0x31a0] sm:$0xff]
        %v6372 = vld [vmem:[%s9 + $0x31a8] sm:$0xff]
        %v6373 = vld [vmem:[%s9 + $0x31b0] sm:$0xff]
        %v6374 = vld [vmem:[%s9 + $0x31b8] sm:$0xff]
        %v6375 = vld [vmem:[%s9 + $0x31c0] sm:$0xff]
        %v6376 = vld [vmem:[%s9 + $0x31c8] sm:$0xff]
        %v6377 = vld [vmem:[%s9 + $0x31d0] sm:$0xff]
        %v6378 = vld [vmem:[%s9 + $0x31d8] sm:$0xff]
        %v6379 = vld [vmem:[%s9 + $0x31e0] sm:$0xff]
        %v6380 = vld [vmem:[%s9 + $0x31e8] sm:$0xff]
        %v6381 = vld [vmem:[%s9 + $0x31f0] sm:$0xff]
        %v6382 = vld [vmem:[%s9 + $0x31f8] sm:$0xff]
        %v6383 = vld [vmem:[%s9 + $0x3200] sm:$0xff]
        %v6384 = vld [vmem:[%s9 + $0x3208] sm:$0xff]
        %v6385 = vld [vmem:[%s9 + $0x3210] sm:$0xff]
        %v6386 = vld [vmem:[%s9 + $0x3218] sm:$0xff]
        %v6387 = vld [vmem:[%s9 + $0x3220] sm:$0xff]
        %v6388 = vld [vmem:[%s9 + $0x3228] sm:$0xff]
        %v6389 = vld [vmem:[%s9 + $0x3230] sm:$0xff]
        %v6390 = vld [vmem:[%s9 + $0x3238] sm:$0xff]
        %v6391 = vld [vmem:[%s9 + $0x3240] sm:$0xff]
        %v6392 = vld [vmem:[%s9 + $0x3248] sm:$0xff]
        %v6393 = vld [vmem:[%s9 + $0x3250] sm:$0xff]
        %v6394 = vld [vmem:[%s9 + $0x3258] sm:$0xff]
        %v6395 = vld [vmem:[%s9 + $0x3260] sm:$0xff]
        %v6396 = vld [vmem:[%s9 + $0x3268] sm:$0xff]
        %v6397 = vld [vmem:[%s9 + $0x3270] sm:$0xff]
        %v6398 = vld [vmem:[%s9 + $0x3278] sm:$0xff]
        %v6399 = vld [vmem:[%s9 + $0x3280] sm:$0xff]
        %v6400 = vld [vmem:[%s9 + $0x3288] sm:$0xff]
        %v6401 = vld [vmem:[%s9 + $0x3290] sm:$0xff]
        %v6402 = vld [vmem:[%s9 + $0x3298] sm:$0xff]
        %v6403 = vld [vmem:[%s9 + $0x32a0] sm:$0xff]
        %v6404 = vld [vmem:[%s9 + $0x32a8] sm:$0xff]
        %v6405 = vld [vmem:[%s9 + $0x32b0] sm:$0xff]
        %v6406 = vld [vmem:[%s9 + $0x32b8] sm:$0xff]
        %v6407 = vld [vmem:[%s9 + $0x32c0] sm:$0xff]
        %v6408 = vld [vmem:[%s9 + $0x32c8] sm:$0xff]
        %v6409 = vld [vmem:[%s9 + $0x32d0] sm:$0xff]
        %v6410 = vld [vmem:[%s9 + $0x32d8] sm:$0xff]
        %v6411 = vld [vmem:[%s9 + $0x32e0] sm:$0xff]
        %v6412 = vld [vmem:[%s9 + $0x32e8] sm:$0xff]
        %v6413 = vld [vmem:[%s9 + $0x32f0] sm:$0xff]
        %v6414 = vld [vmem:[%s9 + $0x32f8] sm:$0xff]
        %v6415 = vld [vmem:[%s9 + $0x3300] sm:$0xff]
        %v6416 = vld [vmem:[%s9 + $0x3308] sm:$0xff]
        %v6417 = vld [vmem:[%s9 + $0x3310] sm:$0xff]
        %v6418 = vld [vmem:[%s9 + $0x3318] sm:$0xff]
        %v6419 = vld [vmem:[%s9 + $0x3320] sm:$0xff]
        %v6420 = vld [vmem:[%s9 + $0x3328] sm:$0xff]
        %v6421 = vld [vmem:[%s9 + $0x3330] sm:$0xff]
        %v6422 = vld [vmem:[%s9 + $0x3338] sm:$0xff]
        %v6423 = vld [vmem:[%s9 + $0x3340] sm:$0xff]
        %v6424 = vld [vmem:[%s9 + $0x3348] sm:$0xff]
        %v6425 = vld [vmem:[%s9 + $0x3350] sm:$0xff]
        %v6426 = vld [vmem:[%s9 + $0x3358] sm:$0xff]
        %v6427 = vld [vmem:[%s9 + $0x3360] sm:$0xff]
        %v6428 = vld [vmem:[%s9 + $0x3368] sm:$0xff]
        %v6429 = vld [vmem:[%s9 + $0x3370] sm:$0xff]
        %v6430 = vld [vmem:[%s9 + $0x3378] sm:$0xff]
        %v6431 = vld [vmem:[%s9 + $0x3380] sm:$0xff]
        %v6432 = vld [vmem:[%s9 + $0x3388] sm:$0xff]
        %v6433 = vld [vmem:[%s9 + $0x3390] sm:$0xff]
        %v6434 = vld [vmem:[%s9 + $0x3398] sm:$0xff]
        %v6435 = vld [vmem:[%s9 + $0x33a0] sm:$0xff]
        %v6436 = vld [vmem:[%s9 + $0x33a8] sm:$0xff]
        %v6437 = vld [vmem:[%s9 + $0x33b0] sm:$0xff]
        %v6438 = vld [vmem:[%s9 + $0x33b8] sm:$0xff]
        %v6439 = vld [vmem:[%s9 + $0x33c0] sm:$0xff]
        %v6440 = vld [vmem:[%s9 + $0x33c8] sm:$0xff]
        %v6441 = vld [vmem:[%s9 + $0x33d0] sm:$0xff]
        %v6442 = vld [vmem:[%s9 + $0x33d8] sm:$0xff]
        %v6443 = vld [vmem:[%s9 + $0x33e0] sm:$0xff]
        %v6444 = vld [vmem:[%s9 + $0x33e8] sm:$0xff]
        %v6445 = vld [vmem:[%s9 + $0x33f0] sm:$0xff]
        %v6446 = vld [vmem:[%s9 + $0x33f8] sm:$0xff]
        %v6447 = vld [vmem:[%s9 + $0x3400] sm:$0xff]
        %v6448 = vld [vmem:[%s9 + $0x3408] sm:$0xff]
        %v6449 = vld [vmem:[%s9 + $0x3410] sm:$0xff]
        %v6450 = vld [vmem:[%s9 + $0x3418] sm:$0xff]
        %v6451 = vld [vmem:[%s9 + $0x3420] sm:$0xff]
        %v6452 = vld [vmem:[%s9 + $0x3428] sm:$0xff]
        %v6453 = vld [vmem:[%s9 + $0x3430] sm:$0xff]
        %v6454 = vld [vmem:[%s9 + $0x3438] sm:$0xff]
        %v6455 = vld [vmem:[%s9 + $0x3440] sm:$0xff]
        %v6456 = vld [vmem:[%s9 + $0x3448] sm:$0xff]
        %v6457 = vld [vmem:[%s9 + $0x3450] sm:$0xff]
        %v6458 = vld [vmem:[%s9 + $0x3458] sm:$0xff]
        %v6459 = vld [vmem:[%s9 + $0x3460] sm:$0xff]
        %v6460 = vld [vmem:[%s9 + $0x3468] sm:$0xff]
        %v6461 = vld [vmem:[%s9 + $0x3470] sm:$0xff]
        %v6462 = vld [vmem:[%s9 + $0x3478] sm:$0xff]
        %v6463 = vld [vmem:[%s9 + $0x3480] sm:$0xff]
        %v6464 = vld [vmem:[%s9 + $0x3488] sm:$0xff]
        %v6465 = vld [vmem:[%s9 + $0x3490] sm:$0xff]
        %v6466 = vld [vmem:[%s9 + $0x3498] sm:$0xff]
        %v6467 = vld [vmem:[%s9 + $0x34a0] sm:$0xff]
        %v6468 = vld [vmem:[%s9 + $0x34a8] sm:$0xff]
        %v6469 = vld [vmem:[%s9 + $0x34b0] sm:$0xff]
        %v6470 = vld [vmem:[%s9 + $0x34b8] sm:$0xff]
        %v6471 = vld [vmem:[%s9 + $0x34c0] sm:$0xff]
        %v6472 = vld [vmem:[%s9 + $0x34c8] sm:$0xff]
        %v6473 = vld [vmem:[%s9 + $0x34d0] sm:$0xff]
        %v6474 = vld [vmem:[%s9 + $0x34d8] sm:$0xff]
        %v6475 = vld [vmem:[%s9 + $0x34e0] sm:$0xff]
        %v6476 = vld [vmem:[%s9 + $0x34e8] sm:$0xff]
        %v6477 = vld [vmem:[%s9 + $0x34f0] sm:$0xff]
        %v6478 = vld [vmem:[%s9 + $0x34f8] sm:$0xff]
        %v6479 = vld [vmem:[%s9 + $0x3500] sm:$0xff]
        %v6480 = vld [vmem:[%s9 + $0x3508] sm:$0xff]
        %v6481 = vld [vmem:[%s9 + $0x3510] sm:$0xff]
        %v6482 = vld [vmem:[%s9 + $0x3518] sm:$0xff]
        %v6483 = vld [vmem:[%s9 + $0x3520] sm:$0xff]
        %v6484 = vld [vmem:[%s9 + $0x3528] sm:$0xff]
        %v6485 = vld [vmem:[%s9 + $0x3530] sm:$0xff]
        %v6486 = vld [vmem:[%s9 + $0x3538] sm:$0xff]
        %v6487 = vld [vmem:[%s9 + $0x3540] sm:$0xff]
        %v6488 = vld [vmem:[%s9 + $0x3548] sm:$0xff]
        %v6489 = vld [vmem:[%s9 + $0x3550] sm:$0xff]
        %v6490 = vld [vmem:[%s9 + $0x3558] sm:$0xff]
        %v6491 = vld [vmem:[%s9 + $0x3560] sm:$0xff]
        %v6492 = vld [vmem:[%s9 + $0x3568] sm:$0xff]
        %v6493 = vld [vmem:[%s9 + $0x3570] sm:$0xff]
        %v6494 = vld [vmem:[%s9 + $0x3578] sm:$0xff]
        %v6495 = vld [vmem:[%s9 + $0x3580] sm:$0xff]
        %v6496 = vld [vmem:[%s9 + $0x3588] sm:$0xff]
        %v6497 = vld [vmem:[%s9 + $0x3590] sm:$0xff]
        %v6498 = vld [vmem:[%s9 + $0x3598] sm:$0xff]
        %v6499 = vld [vmem:[%s9 + $0x35a0] sm:$0xff]
        %v6500 = vld [vmem:[%s9 + $0x35a8] sm:$0xff]
        %v6501 = vld [vmem:[%s9 + $0x35b0] sm:$0xff]
        %v6502 = vld [vmem:[%s9 + $0x35b8] sm:$0xff]
        %v6503 = vld [vmem:[%s9 + $0x35c0] sm:$0xff]
        %v6504 = vld [vmem:[%s9 + $0x35c8] sm:$0xff]
        %v6505 = vld [vmem:[%s9 + $0x35d0] sm:$0xff]
        %v6506 = vld [vmem:[%s9 + $0x35d8] sm:$0xff]
        %v6507 = vld [vmem:[%s9 + $0x35e0] sm:$0xff]
        %v6508 = vld [vmem:[%s9 + $0x35e8] sm:$0xff]
        %v6509 = vld [vmem:[%s9 + $0x35f0] sm:$0xff]
        %v6510 = vld [vmem:[%s9 + $0x35f8] sm:$0xff]
        %v6511 = vld [vmem:[%s9 + $0x3600] sm:$0xff]
        %v6512 = vld [vmem:[%s9 + $0x3608] sm:$0xff]
        %v6513 = vld [vmem:[%s9 + $0x3610] sm:$0xff]
        %v6514 = vld [vmem:[%s9 + $0x3618] sm:$0xff]
        %v6515 = vld [vmem:[%s9 + $0x3620] sm:$0xff]
        %v6516 = vld [vmem:[%s9 + $0x3628] sm:$0xff]
        %v6517 = vld [vmem:[%s9 + $0x3630] sm:$0xff]
        %v6518 = vld [vmem:[%s9 + $0x3638] sm:$0xff]
        %v6519 = vld [vmem:[%s9 + $0x3640] sm:$0xff]
        %v6520 = vld [vmem:[%s9 + $0x3648] sm:$0xff]
        %v6521 = vld [vmem:[%s9 + $0x3650] sm:$0xff]
        %v6522 = vld [vmem:[%s9 + $0x3658] sm:$0xff]
        %v6523 = vld [vmem:[%s9 + $0x3660] sm:$0xff]
        %v6524 = vld [vmem:[%s9 + $0x3668] sm:$0xff]
        %v6525 = vld [vmem:[%s9 + $0x3670] sm:$0xff]
        %v6526 = vld [vmem:[%s9 + $0x3678] sm:$0xff]
        %v6527 = vld [vmem:[%s9 + $0x3680] sm:$0xff]
        %v6528 = vld [vmem:[%s9 + $0x3688] sm:$0xff]
        %v6529 = vld [vmem:[%s9 + $0x3690] sm:$0xff]
        %v6530 = vld [vmem:[%s9 + $0x3698] sm:$0xff]
        %v6531 = vld [vmem:[%s9 + $0x36a0] sm:$0xff]
        %v6532 = vld [vmem:[%s9 + $0x36a8] sm:$0xff]
        %v6533 = vld [vmem:[%s9 + $0x36b0] sm:$0xff]
        %v6534 = vld [vmem:[%s9 + $0x36b8] sm:$0xff]
        %v6535 = vld [vmem:[%s9 + $0x36c0] sm:$0xff]
        %v6536 = vld [vmem:[%s9 + $0x36c8] sm:$0xff]
        %v6537 = vld [vmem:[%s9 + $0x36d0] sm:$0xff]
        %v6538 = vld [vmem:[%s9 + $0x36d8] sm:$0xff]
        %v6539 = vld [vmem:[%s9 + $0x36e0] sm:$0xff]
        %v6540 = vld [vmem:[%s9 + $0x36e8] sm:$0xff]
        %v6541 = vld [vmem:[%s9 + $0x36f0] sm:$0xff]
        %v6542 = vld [vmem:[%s9 + $0x36f8] sm:$0xff]
        %v6543 = vld [vmem:[%s9 + $0x3700] sm:$0xff]
        %v6544 = vld [vmem:[%s9 + $0x3708] sm:$0xff]
        %v6545 = vld [vmem:[%s9 + $0x3710] sm:$0xff]
        %v6546 = vld [vmem:[%s9 + $0x3718] sm:$0xff]
        %v6547 = vld [vmem:[%s9 + $0x3720] sm:$0xff]
        %v6548 = vld [vmem:[%s9 + $0x3728] sm:$0xff]
        %v6549 = vld [vmem:[%s9 + $0x3730] sm:$0xff]
        %v6550 = vld [vmem:[%s9 + $0x3738] sm:$0xff]
        %v6551 = vld [vmem:[%s9 + $0x3740] sm:$0xff]
        %v6552 = vld [vmem:[%s9 + $0x3748] sm:$0xff]
        %v6553 = vld [vmem:[%s9 + $0x3750] sm:$0xff]
        %v6554 = vld [vmem:[%s9 + $0x3758] sm:$0xff]
        %v6555 = vld [vmem:[%s9 + $0x3760] sm:$0xff]
        %v6556 = vld [vmem:[%s9 + $0x3768] sm:$0xff]
        %v6557 = vld [vmem:[%s9 + $0x3770] sm:$0xff]
        %v6558 = vld [vmem:[%s9 + $0x3778] sm:$0xff]
        %v6559 = vld [vmem:[%s9 + $0x3780] sm:$0xff]
        %v6560 = vld [vmem:[%s9 + $0x3788] sm:$0xff]
        %v6561 = vld [vmem:[%s9 + $0x3790] sm:$0xff]
        %v6562 = vld [vmem:[%s9 + $0x3798] sm:$0xff]
        %v6563 = vld [vmem:[%s9 + $0x37a0] sm:$0xff]
        %v6564 = vld [vmem:[%s9 + $0x37a8] sm:$0xff]
        %v6565 = vld [vmem:[%s9 + $0x37b0] sm:$0xff]
        %v6566 = vld [vmem:[%s9 + $0x37b8] sm:$0xff]
        %v6567 = vld [vmem:[%s9 + $0x37c0] sm:$0xff]
        %v6568 = vld [vmem:[%s9 + $0x37c8] sm:$0xff]
        %v6569 = vld [vmem:[%s9 + $0x37d0] sm:$0xff]
        %v6570 = vld [vmem:[%s9 + $0x37d8] sm:$0xff]
        %v6571 = vld [vmem:[%s9 + $0x37e0] sm:$0xff]
        %v6572 = vld [vmem:[%s9 + $0x37e8] sm:$0xff]
        %v6573 = vld [vmem:[%s9 + $0x37f0] sm:$0xff]
        %v6574 = vld [vmem:[%s9 + $0x37f8] sm:$0xff]
        %v6575 = vld [vmem:[%s9 + $0x3800] sm:$0xff]
        %v6576 = vld [vmem:[%s9 + $0x3808] sm:$0xff]
        %v6577 = vld [vmem:[%s9 + $0x3810] sm:$0xff]
        %v6578 = vld [vmem:[%s9 + $0x3818] sm:$0xff]
        %v6579 = vld [vmem:[%s9 + $0x3820] sm:$0xff]
        %v6580 = vld [vmem:[%s9 + $0x3828] sm:$0xff]
        %v6581 = vld [vmem:[%s9 + $0x3830] sm:$0xff]
        %v6582 = vld [vmem:[%s9 + $0x3838] sm:$0xff]
        %v6583 = vld [vmem:[%s9 + $0x3840] sm:$0xff]
        %v6584 = vld [vmem:[%s9 + $0x3848] sm:$0xff]
        %v6585 = vld [vmem:[%s9 + $0x3850] sm:$0xff]
        %v6586 = vld [vmem:[%s9 + $0x3858] sm:$0xff]
        %v6587 = vld [vmem:[%s9 + $0x3860] sm:$0xff]
        %v6588 = vld [vmem:[%s9 + $0x3868] sm:$0xff]
        %v6589 = vld [vmem:[%s9 + $0x3870] sm:$0xff]
        %v6590 = vld [vmem:[%s9 + $0x3878] sm:$0xff]
        %v6591 = vld [vmem:[%s9 + $0x3880] sm:$0xff]
        %v6592 = vld [vmem:[%s9 + $0x3888] sm:$0xff]
        %v6593 = vld [vmem:[%s9 + $0x3890] sm:$0xff]
        %v6594 = vld [vmem:[%s9 + $0x3898] sm:$0xff]
        %v6595 = vld [vmem:[%s9 + $0x38a0] sm:$0xff]
        %v6596 = vld [vmem:[%s9 + $0x38a8] sm:$0xff]
        %v6597 = vld [vmem:[%s9 + $0x38b0] sm:$0xff]
        %v6598 = vld [vmem:[%s9 + $0x38b8] sm:$0xff]
        %v6599 = vld [vmem:[%s9 + $0x38c0] sm:$0xff]
        %v6600 = vld [vmem:[%s9 + $0x38c8] sm:$0xff]
        %v6601 = vld [vmem:[%s9 + $0x38d0] sm:$0xff]
        %v6602 = vld [vmem:[%s9 + $0x38d8] sm:$0xff]
        %v6603 = vld [vmem:[%s9 + $0x38e0] sm:$0xff]
        %v6604 = vld [vmem:[%s9 + $0x38e8] sm:$0xff]
        %v6605 = vld [vmem:[%s9 + $0x38f0] sm:$0xff]
        %v6606 = vld [vmem:[%s9 + $0x38f8] sm:$0xff]
        %v6607 = vld [vmem:[%s9 + $0x3900] sm:$0xff]
        %v6608 = vld [vmem:[%s9 + $0x3908] sm:$0xff]
        %v6609 = vld [vmem:[%s9 + $0x3910] sm:$0xff]
        %v6610 = vld [vmem:[%s9 + $0x3918] sm:$0xff]
        %v6611 = vld [vmem:[%s9 + $0x3920] sm:$0xff]
        %v6612 = vld [vmem:[%s9 + $0x3928] sm:$0xff]
        %v6613 = vld [vmem:[%s9 + $0x3930] sm:$0xff]
        %v6614 = vld [vmem:[%s9 + $0x3938] sm:$0xff]
        %v6615 = vld [vmem:[%s9 + $0x3940] sm:$0xff]
        %v6616 = vld [vmem:[%s9 + $0x3948] sm:$0xff]
        %v6617 = vld [vmem:[%s9 + $0x3950] sm:$0xff]
        %v6618 = vld [vmem:[%s9 + $0x3958] sm:$0xff]
        %v6619 = vld [vmem:[%s9 + $0x3960] sm:$0xff]
        %v6620 = vld [vmem:[%s9 + $0x3968] sm:$0xff]
        %v6621 = vld [vmem:[%s9 + $0x3970] sm:$0xff]
        %v6622 = vld [vmem:[%s9 + $0x3978] sm:$0xff]
        %v6623 = vld [vmem:[%s9 + $0x3980] sm:$0xff]
        %v6624 = vld [vmem:[%s9 + $0x3988] sm:$0xff]
        %v6625 = vld [vmem:[%s9 + $0x3990] sm:$0xff]
        %v6626 = vld [vmem:[%s9 + $0x3998] sm:$0xff]
        %v6627 = vld [vmem:[%s9 + $0x39a0] sm:$0xff]
        %v6628 = vld [vmem:[%s9 + $0x39a8] sm:$0xff]
        %v6629 = vld [vmem:[%s9 + $0x39b0] sm:$0xff]
        %v6630 = vld [vmem:[%s9 + $0x39b8] sm:$0xff]
        %v6631 = vld [vmem:[%s9 + $0x39c0] sm:$0xff]
        %v6632 = vld [vmem:[%s9 + $0x39c8] sm:$0xff]
        %v6633 = vld [vmem:[%s9 + $0x39d0] sm:$0xff]
        %v6634 = vld [vmem:[%s9 + $0x39d8] sm:$0xff]
        %v6635 = vld [vmem:[%s9 + $0x39e0] sm:$0xff]
        %v6636 = vld [vmem:[%s9 + $0x39e8] sm:$0xff]
        %v6637 = vld [vmem:[%s9 + $0x39f0] sm:$0xff]
        %v6638 = vld [vmem:[%s9 + $0x39f8] sm:$0xff]
        %v6639 = vld [vmem:[%s9 + $0x3a00] sm:$0xff]
        %v6640 = vld [vmem:[%s9 + $0x3a08] sm:$0xff]
        %v6641 = vld [vmem:[%s9 + $0x3a10] sm:$0xff]
        %v6642 = vld [vmem:[%s9 + $0x3a18] sm:$0xff]
        %v6643 = vld [vmem:[%s9 + $0x3a20] sm:$0xff]
        %v6644 = vld [vmem:[%s9 + $0x3a28] sm:$0xff]
        %v6645 = vld [vmem:[%s9 + $0x3a30] sm:$0xff]
        %v6646 = vld [vmem:[%s9 + $0x3a38] sm:$0xff]
        %v6647 = vld [vmem:[%s9 + $0x3a40] sm:$0xff]
        %v6648 = vld [vmem:[%s9 + $0x3a48] sm:$0xff]
        %v6649 = vld [vmem:[%s9 + $0x3a50] sm:$0xff]
        %v6650 = vld [vmem:[%s9 + $0x3a58] sm:$0xff]
        %v6651 = vld [vmem:[%s9 + $0x3a60] sm:$0xff]
        %v6652 = vld [vmem:[%s9 + $0x3a68] sm:$0xff]
        %v6653 = vld [vmem:[%s9 + $0x3a70] sm:$0xff]
        %v6654 = vld [vmem:[%s9 + $0x3a78] sm:$0xff]
        %v6655 = vld [vmem:[%s9 + $0x3a80] sm:$0xff]
        %v6656 = vld [vmem:[%s9 + $0x3a88] sm:$0xff]
        %v6657 = vld [vmem:[%s9 + $0x3a90] sm:$0xff]
        %v6658 = vld [vmem:[%s9 + $0x3a98] sm:$0xff]
        %v6659 = vld [vmem:[%s9 + $0x3aa0] sm:$0xff]
        %v6660 = vld [vmem:[%s9 + $0x3aa8] sm:$0xff]
        %v6661 = vld [vmem:[%s9 + $0x3ab0] sm:$0xff]
        %v6662 = vld [vmem:[%s9 + $0x3ab8] sm:$0xff]
        %v6663 = vld [vmem:[%s9 + $0x3ac0] sm:$0xff]
        %v6664 = vld [vmem:[%s9 + $0x3ac8] sm:$0xff]
        %v6665 = vld [vmem:[%s9 + $0x3ad0] sm:$0xff]
        %v6666 = vld [vmem:[%s9 + $0x3ad8] sm:$0xff]
        %v6667 = vld [vmem:[%s9 + $0x3ae0] sm:$0xff]
        %v6668 = vld [vmem:[%s9 + $0x3ae8] sm:$0xff]
        %v6669 = vld [vmem:[%s9 + $0x3af0] sm:$0xff]
        %v6670 = vld [vmem:[%s9 + $0x3af8] sm:$0xff]
        %v6671 = vld [vmem:[%s9 + $0x3b00] sm:$0xff]
        %v6672 = vld [vmem:[%s9 + $0x3b08] sm:$0xff]
        %v6673 = vld [vmem:[%s9 + $0x3b10] sm:$0xff]
        %v6674 = vld [vmem:[%s9 + $0x3b18] sm:$0xff]
        %v6675 = vld [vmem:[%s9 + $0x3b20] sm:$0xff]
        %v6676 = vld [vmem:[%s9 + $0x3b28] sm:$0xff]
        %v6677 = vld [vmem:[%s9 + $0x3b30] sm:$0xff]
        %v6678 = vld [vmem:[%s9 + $0x3b38] sm:$0xff]
        %v6679 = vld [vmem:[%s9 + $0x3b40] sm:$0xff]
        %v6680 = vld [vmem:[%s9 + $0x3b48] sm:$0xff]
        %v6681 = vld [vmem:[%s9 + $0x3b50] sm:$0xff]
        %v6682 = vld [vmem:[%s9 + $0x3b58] sm:$0xff]
        %v6683 = vld [vmem:[%s9 + $0x3b60] sm:$0xff]
        %v6684 = vld [vmem:[%s9 + $0x3b68] sm:$0xff]
        %v6685 = vld [vmem:[%s9 + $0x3b70] sm:$0xff]
        %v6686 = vld [vmem:[%s9 + $0x3b78] sm:$0xff]
        %v6687 = vld [vmem:[%s9 + $0x3b80] sm:$0xff]
        %v6688 = vld [vmem:[%s9 + $0x3b88] sm:$0xff]
        %v6689 = vld [vmem:[%s9 + $0x3b90] sm:$0xff]
        %v6690 = vld [vmem:[%s9 + $0x3b98] sm:$0xff]
        %v6691 = vld [vmem:[%s9 + $0x3ba0] sm:$0xff]
        %v6692 = vld [vmem:[%s9 + $0x3ba8] sm:$0xff]
        %v6693 = vld [vmem:[%s9 + $0x3bb0] sm:$0xff]
        %v6694 = vld [vmem:[%s9 + $0x3bb8] sm:$0xff]
        %v6695 = vld [vmem:[%s9 + $0x3bc0] sm:$0xff]
        %v6696 = vld [vmem:[%s9 + $0x3bc8] sm:$0xff]
        %v6697 = vld [vmem:[%s9 + $0x3bd0] sm:$0xff]
        %v6698 = vld [vmem:[%s9 + $0x3bd8] sm:$0xff]
        %v6699 = vld [vmem:[%s9 + $0x3be0] sm:$0xff]
        %v6700 = vld [vmem:[%s9 + $0x3be8] sm:$0xff]
        %v6701 = vld [vmem:[%s9 + $0x3bf0] sm:$0xff]
        %v6702 = vld [vmem:[%s9 + $0x3bf8] sm:$0xff]
        %v6703 = vld [vmem:[%s9 + $0x3c00] sm:$0xff]
        %v6704 = vld [vmem:[%s9 + $0x3c08] sm:$0xff]
        %v6705 = vld [vmem:[%s9 + $0x3c10] sm:$0xff]
        %v6706 = vld [vmem:[%s9 + $0x3c18] sm:$0xff]
        %v6707 = vld [vmem:[%s9 + $0x3c20] sm:$0xff]
        %v6708 = vld [vmem:[%s9 + $0x3c28] sm:$0xff]
        %v6709 = vld [vmem:[%s9 + $0x3c30] sm:$0xff]
        %v6710 = vld [vmem:[%s9 + $0x3c38] sm:$0xff]
        %v6711 = vld [vmem:[%s9 + $0x3c40] sm:$0xff]
        %v6712 = vld [vmem:[%s9 + $0x3c48] sm:$0xff]
        %v6713 = vld [vmem:[%s9 + $0x3c50] sm:$0xff]
        %v6714 = vld [vmem:[%s9 + $0x3c58] sm:$0xff]
        %v6715 = vld [vmem:[%s9 + $0x3c60] sm:$0xff]
        %v6716 = vld [vmem:[%s9 + $0x3c68] sm:$0xff]
        %v6717 = vld [vmem:[%s9 + $0x3c70] sm:$0xff]
        %v6718 = vld [vmem:[%s9 + $0x3c78] sm:$0xff]
        %v6719 = vld [vmem:[%s9 + $0x3c80] sm:$0xff]
        %v6720 = vld [vmem:[%s9 + $0x3c88] sm:$0xff]
        %v6721 = vld [vmem:[%s9 + $0x3c90] sm:$0xff]
        %v6722 = vld [vmem:[%s9 + $0x3c98] sm:$0xff]
        %v6723 = vld [vmem:[%s9 + $0x3ca0] sm:$0xff]
        %v6724 = vld [vmem:[%s9 + $0x3ca8] sm:$0xff]
        %v6725 = vld [vmem:[%s9 + $0x3cb0] sm:$0xff]
        %v6726 = vld [vmem:[%s9 + $0x3cb8] sm:$0xff]
        %v6727 = vld [vmem:[%s9 + $0x3cc0] sm:$0xff]
        %v6728 = vld [vmem:[%s9 + $0x3cc8] sm:$0xff]
        %v6729 = vld [vmem:[%s9 + $0x3cd0] sm:$0xff]
        %v6730 = vld [vmem:[%s9 + $0x3cd8] sm:$0xff]
        %v6731 = vld [vmem:[%s9 + $0x3ce0] sm:$0xff]
        %v6732 = vld [vmem:[%s9 + $0x3ce8] sm:$0xff]
        %v6733 = vld [vmem:[%s9 + $0x3cf0] sm:$0xff]
        %v6734 = vld [vmem:[%s9 + $0x3cf8] sm:$0xff]
        %v6735 = vld [vmem:[%s9 + $0x3d00] sm:$0xff]
        %v6736 = vld [vmem:[%s9 + $0x3d08] sm:$0xff]
        %v6737 = vld [vmem:[%s9 + $0x3d10] sm:$0xff]
        %v6738 = vld [vmem:[%s9 + $0x3d18] sm:$0xff]
        %v6739 = vld [vmem:[%s9 + $0x3d20] sm:$0xff]
        %v6740 = vld [vmem:[%s9 + $0x3d28] sm:$0xff]
        %v6741 = vld [vmem:[%s9 + $0x3d30] sm:$0xff]
        %v6742 = vld [vmem:[%s9 + $0x3d38] sm:$0xff]
        %v6743 = vld [vmem:[%s9 + $0x3d40] sm:$0xff]
        %v6744 = vld [vmem:[%s9 + $0x3d48] sm:$0xff]
        %v6745 = vld [vmem:[%s9 + $0x3d50] sm:$0xff]
        %v6746 = vld [vmem:[%s9 + $0x3d58] sm:$0xff]
        %v6747 = vld [vmem:[%s9 + $0x3d60] sm:$0xff]
        %v6748 = vld [vmem:[%s9 + $0x3d68] sm:$0xff]
        %v6749 = vld [vmem:[%s9 + $0x3d70] sm:$0xff]
        %v6750 = vld [vmem:[%s9 + $0x3d78] sm:$0xff]
        %v6751 = vld [vmem:[%s9 + $0x3d80] sm:$0xff]
        %v6752 = vld [vmem:[%s9 + $0x3d88] sm:$0xff]
        %v6753 = vld [vmem:[%s9 + $0x3d90] sm:$0xff]
        %v6754 = vld [vmem:[%s9 + $0x3d98] sm:$0xff]
        %v6755 = vld [vmem:[%s9 + $0x3da0] sm:$0xff]
        %v6756 = vld [vmem:[%s9 + $0x3da8] sm:$0xff]
        %v6757 = vld [vmem:[%s9 + $0x3db0] sm:$0xff]
        %v6758 = vld [vmem:[%s9 + $0x3db8] sm:$0xff]
        %v6759 = vld [vmem:[%s9 + $0x3dc0] sm:$0xff]
        %v6760 = vld [vmem:[%s9 + $0x3dc8] sm:$0xff]
        %v6761 = vld [vmem:[%s9 + $0x3dd0] sm:$0xff]
        %v6762 = vld [vmem:[%s9 + $0x3dd8] sm:$0xff]
        %v6763 = vld [vmem:[%s9 + $0x3de0] sm:$0xff]
        %v6764 = vld [vmem:[%s9 + $0x3de8] sm:$0xff]
        %v6765 = vld [vmem:[%s9 + $0x3df0] sm:$0xff]
        %v6766 = vld [vmem:[%s9 + $0x3df8] sm:$0xff]
        %v6767 = vld [vmem:[%s9 + $0x3e00] sm:$0xff]
        %v6768 = vld [vmem:[%s9 + $0x3e08] sm:$0xff]
        %v6769 = vld [vmem:[%s9 + $0x3e10] sm:$0xff]
        %v6770 = vld [vmem:[%s9 + $0x3e18] sm:$0xff]
        %v6771 = vld [vmem:[%s9 + $0x3e20] sm:$0xff]
        %v6772 = vld [vmem:[%s9 + $0x3e28] sm:$0xff]
        %v6773 = vld [vmem:[%s9 + $0x3e30] sm:$0xff]
        %v6774 = vld [vmem:[%s9 + $0x3e38] sm:$0xff]
        %v6775 = vld [vmem:[%s9 + $0x3e40] sm:$0xff]
        %v6776 = vld [vmem:[%s9 + $0x3e48] sm:$0xff]
        %v6777 = vld [vmem:[%s9 + $0x3e50] sm:$0xff]
        %v6778 = vld [vmem:[%s9 + $0x3e58] sm:$0xff]
        %v6779 = vld [vmem:[%s9 + $0x3e60] sm:$0xff]
        %v6780 = vld [vmem:[%s9 + $0x3e68] sm:$0xff]
        %v6781 = vld [vmem:[%s9 + $0x3e70] sm:$0xff]
        %v6782 = vld [vmem:[%s9 + $0x3e78] sm:$0xff]
        %v6783 = vld [vmem:[%s9 + $0x3e80] sm:$0xff]
        %v6784 = vld [vmem:[%s9 + $0x3e88] sm:$0xff]
        %v6785 = vld [vmem:[%s9 + $0x3e90] sm:$0xff]
        %v6786 = vld [vmem:[%s9 + $0x3e98] sm:$0xff]
        %v6787 = vld [vmem:[%s9 + $0x3ea0] sm:$0xff]
        %v6788 = vld [vmem:[%s9 + $0x3ea8] sm:$0xff]
        %v6789 = vld [vmem:[%s9 + $0x3eb0] sm:$0xff]
        %v6790 = vld [vmem:[%s9 + $0x3eb8] sm:$0xff]
        %v6791 = vld [vmem:[%s9 + $0x3ec0] sm:$0xff]
        %v6792 = vld [vmem:[%s9 + $0x3ec8] sm:$0xff]
        %v6793 = vld [vmem:[%s9 + $0x3ed0] sm:$0xff]
        %v6794 = vld [vmem:[%s9 + $0x3ed8] sm:$0xff]
        %v6795 = vld [vmem:[%s9 + $0x3ee0] sm:$0xff]
        %v6796 = vld [vmem:[%s9 + $0x3ee8] sm:$0xff]
        %v6797 = vld [vmem:[%s9 + $0x3ef0] sm:$0xff]
        %v6798 = vld [vmem:[%s9 + $0x3ef8] sm:$0xff]
        %v6799 = vld [vmem:[%s9 + $0x3f00] sm:$0xff]
        %v6800 = vld [vmem:[%s9 + $0x3f08] sm:$0xff]
        %v6801 = vld [vmem:[%s9 + $0x3f10] sm:$0xff]
        %v6802 = vld [vmem:[%s9 + $0x3f18] sm:$0xff]
        %v6803 = vld [vmem:[%s9 + $0x3f20] sm:$0xff]
        %v6804 = vld [vmem:[%s9 + $0x3f28] sm:$0xff]
        %v6805 = vld [vmem:[%s9 + $0x3f30] sm:$0xff]
        %v6806 = vld [vmem:[%s9 + $0x3f38] sm:$0xff]
        %v6807 = vld [vmem:[%s9 + $0x3f40] sm:$0xff]
        %v6808 = vld [vmem:[%s9 + $0x3f48] sm:$0xff]
        %v6809 = vld [vmem:[%s9 + $0x3f50] sm:$0xff]
        %v6810 = vld [vmem:[%s9 + $0x3f58] sm:$0xff]
        %v6811 = vld [vmem:[%s9 + $0x3f60] sm:$0xff]
        %v6812 = vld [vmem:[%s9 + $0x3f68] sm:$0xff]
        %v6813 = vld [vmem:[%s9 + $0x3f70] sm:$0xff]
        %v6814 = vld [vmem:[%s9 + $0x3f78] sm:$0xff]
        %v6815 = vld [vmem:[%s9 + $0x3f80] sm:$0xff]
        %v6816 = vld [vmem:[%s9 + $0x3f88] sm:$0xff]
        %v6817 = vld [vmem:[%s9 + $0x3f90] sm:$0xff]
        %v6818 = vld [vmem:[%s9 + $0x3f98] sm:$0xff]
        %v6819 = vld [vmem:[%s9 + $0x3fa0] sm:$0xff]
        %v6820 = vld [vmem:[%s9 + $0x3fa8] sm:$0xff]
        %v6821 = vld [vmem:[%s9 + $0x3fb0] sm:$0xff]
        %v6822 = vld [vmem:[%s9 + $0x3fb8] sm:$0xff]
        %v6823 = vld [vmem:[%s9 + $0x3fc0] sm:$0xff]
        %v6824 = vld [vmem:[%s9 + $0x3fc8] sm:$0xff]
        %v6825 = vld [vmem:[%s9 + $0x3fd0] sm:$0xff]
        %v6826 = vld [vmem:[%s9 + $0x3fd8] sm:$0xff]
        %v6827 = vld [vmem:[%s9 + $0x3fe0] sm:$0xff]
        %v6828 = vld [vmem:[%s9 + $0x3fe8] sm:$0xff]
        %v6829 = vld [vmem:[%s9 + $0x3ff0] sm:$0xff]
        %v6830 = vld [vmem:[%s9 + $0x3ff8] sm:$0xff]
        %v6847 = vperm.slane %v683, 0
        %v6848 = vperm.slane %v683, 1
        %v6849 = vperm.slane %v683, 2
        %v6850 = vperm.slane %v683, 3
        %v6851 = vperm.slane %v683, 4
        %v6852 = vperm.slane %v683, 5
        %v6853 = vperm.slane %v683, 6
        %v6854 = vperm.slane %v683, 7
        %v6855 = vperm.slane %v684, 0
        %v6856 = vperm.slane %v684, 1
        %v6857 = vperm.slane %v684, 2
        %v6858 = vperm.slane %v684, 3
        %v6859 = vperm.slane %v684, 4
        %v6860 = vperm.slane %v684, 5
        %v6861 = vperm.slane %v684, 6
        %v6862 = vperm.slane %v684, 7
        %v6863 = vperm.slane %v685, 0
        %v6864 = vperm.slane %v685, 1
        %v6865 = vperm.slane %v685, 2
        %v6866 = vperm.slane %v685, 3
        %v6867 = vperm.slane %v685, 4
        %v6868 = vperm.slane %v685, 5
        %v6869 = vperm.slane %v685, 6
        %v6870 = vperm.slane %v685, 7
        %v6871 = vperm.slane %v686, 0
        %v6872 = vperm.slane %v686, 1
        %v6873 = vperm.slane %v686, 2
        %v6874 = vperm.slane %v686, 3
        %v6875 = vperm.slane %v686, 4
        %v6876 = vperm.slane %v686, 5
        %v6877 = vperm.slane %v686, 6
        %v6878 = vperm.slane %v686, 7
        %v6879 = vperm.slane %v687, 0
        %v6880 = vperm.slane %v687, 1
        %v6881 = vperm.slane %v687, 2
        %v6882 = vperm.slane %v687, 3
        %v6883 = vperm.slane %v687, 4
        %v6884 = vperm.slane %v687, 5
        %v6885 = vperm.slane %v687, 6
        %v6886 = vperm.slane %v687, 7
        %v6887 = vperm.slane %v688, 0
        %v6888 = vperm.slane %v688, 1
        %v6889 = vperm.slane %v688, 2
        %v6890 = vperm.slane %v688, 3
        %v6891 = vperm.slane %v688, 4
        %v6892 = vperm.slane %v688, 5
        %v6893 = vperm.slane %v688, 6
        %v6894 = vperm.slane %v688, 7
        %v6895 = vperm.slane %v689, 0
        %v6896 = vperm.slane %v689, 1
        %v6897 = vperm.slane %v689, 2
        %v6898 = vperm.slane %v689, 3
        %v6899 = vperm.slane %v689, 4
        %v6900 = vperm.slane %v689, 5
        %v6901 = vperm.slane %v689, 6
        %v6902 = vperm.slane %v689, 7
        %v6903 = vperm.slane %v690, 0
        %v6904 = vperm.slane %v690, 1
        %v6905 = vperm.slane %v690, 2
        %v6906 = vperm.slane %v690, 3
        %v6907 = vperm.slane %v690, 4
        %v6908 = vperm.slane %v690, 5
        %v6909 = vperm.slane %v690, 6
        %v6910 = vperm.slane %v690, 7
        %v6911 = vperm.slane %v691, 0
        %v6912 = vperm.slane %v691, 1
        %v6913 = vperm.slane %v691, 2
        %v6914 = vperm.slane %v691, 3
        %v6915 = vperm.slane %v691, 4
        %v6916 = vperm.slane %v691, 5
        %v6917 = vperm.slane %v691, 6
        %v6918 = vperm.slane %v691, 7
        %v6919 = vperm.slane %v692, 0
        %v6920 = vperm.slane %v692, 1
        %v6921 = vperm.slane %v692, 2
        %v6922 = vperm.slane %v692, 3
        %v6923 = vperm.slane %v692, 4
        %v6924 = vperm.slane %v692, 5
        %v6925 = vperm.slane %v692, 6
        %v6926 = vperm.slane %v692, 7
        %v6927 = vperm.slane %v693, 0
        %v6928 = vperm.slane %v693, 1
        %v6929 = vperm.slane %v693, 2
        %v6930 = vperm.slane %v693, 3
        %v6931 = vperm.slane %v693, 4
        %v6932 = vperm.slane %v693, 5
        %v6933 = vperm.slane %v693, 6
        %v6934 = vperm.slane %v693, 7
        %v6935 = vperm.slane %v694, 0
        %v6936 = vperm.slane %v694, 1
        %v6937 = vperm.slane %v694, 2
        %v6938 = vperm.slane %v694, 3
        %v6939 = vperm.slane %v694, 4
        %v6940 = vperm.slane %v694, 5
        %v6941 = vperm.slane %v694, 6
        %v6942 = vperm.slane %v694, 7
        %v6943 = vperm.slane %v695, 0
        %v6944 = vperm.slane %v695, 1
        %v6945 = vperm.slane %v695, 2
        %v6946 = vperm.slane %v695, 3
        %v6947 = vperm.slane %v695, 4
        %v6948 = vperm.slane %v695, 5
        %v6949 = vperm.slane %v695, 6
        %v6950 = vperm.slane %v695, 7
        %v6951 = vperm.slane %v696, 0
        %v6952 = vperm.slane %v696, 1
        %v6953 = vperm.slane %v696, 2
        %v6954 = vperm.slane %v696, 3
        %v6955 = vperm.slane %v696, 4
        %v6956 = vperm.slane %v696, 5
        %v6957 = vperm.slane %v696, 6
        %v6958 = vperm.slane %v696, 7
        %v6959 = vperm.slane %v697, 0
        %v6960 = vperm.slane %v697, 1
        %v6961 = vperm.slane %v697, 2
        %v6962 = vperm.slane %v697, 3
        %v6963 = vperm.slane %v697, 4
        %v6964 = vperm.slane %v697, 5
        %v6965 = vperm.slane %v697, 6
        %v6966 = vperm.slane %v697, 7
        %v6967 = vperm.slane %v698, 0
        %v6968 = vperm.slane %v698, 1
        %v6969 = vperm.slane %v698, 2
        %v6970 = vperm.slane %v698, 3
        %v6971 = vperm.slane %v698, 4
        %v6972 = vperm.slane %v698, 5
        %v6973 = vperm.slane %v698, 6
        %v6974 = vperm.slane %v698, 7
        %7103 = vmatpush.msra.mxu0 %v4798
        %7104 = vmatpush.msra.mxu0 %v4797
        %7105 = vmatpush.msra.mxu0 %v4796
        %7106 = vmatpush.msra.mxu0 %v4795
        %7107 = vmatpush.msra.mxu0 %v4794
        %7108 = vmatpush.msra.mxu0 %v4793
        %7109 = vmatpush.msra.mxu0 %v4792
        %7110 = vmatpush.msra.mxu0 %v4791
        %7111 = vmatpush.msra.mxu0 %v4790
        %7112 = vmatpush.msra.mxu0 %v4789
        %7113 = vmatpush.msra.mxu0 %v4788
        %7114 = vmatpush.msra.mxu0 %v4787
        %7115 = vmatpush.msra.mxu0 %v4786
        %7116 = vmatpush.msra.mxu0 %v4785
        %7117 = vmatpush.msra.mxu0 %v4784
        %7118 = vmatpush.msra.mxu0 %v4783
        %7119 = vmatmul.f32.gmra.mxu0 %v6847
        %v7120 = vpop.f32.mrf.mxu0
        %v7121 = vadd.f32 0.0, %v7120
        %7122 = vdwg.mxu0
        %7123 = vmatpush.msra.mxu0 %v4814
        %7124 = vmatpush.msra.mxu0 %v4813
        %7125 = vmatpush.msra.mxu0 %v4812
        %7126 = vmatpush.msra.mxu0 %v4811
        %7127 = vmatpush.msra.mxu0 %v4810
        %7128 = vmatpush.msra.mxu0 %v4809
        %7129 = vmatpush.msra.mxu0 %v4808
        %7130 = vmatpush.msra.mxu0 %v4807
        %7131 = vmatpush.msra.mxu0 %v4806
        %7132 = vmatpush.msra.mxu0 %v4805
        %7133 = vmatpush.msra.mxu0 %v4804
        %7134 = vmatpush.msra.mxu0 %v4803
        %7135 = vmatpush.msra.mxu0 %v4802
        %7136 = vmatpush.msra.mxu0 %v4801
        %7137 = vmatpush.msra.mxu0 %v4800
        %7138 = vmatpush.msra.mxu0 %v4799
        %7139 = vmatmul.f32.gmra.mxu0 %v6848
        %v7140 = vpop.f32.mrf.mxu0
        %v7141 = vadd.f32 %v7121, %v7140
        %7142 = vdwg.mxu0
        %7143 = vmatpush.msra.mxu0 %v4830
        %7144 = vmatpush.msra.mxu0 %v4829
        %7145 = vmatpush.msra.mxu0 %v4828
        %7146 = vmatpush.msra.mxu0 %v4827
        %7147 = vmatpush.msra.mxu0 %v4826
        %7148 = vmatpush.msra.mxu0 %v4825
        %7149 = vmatpush.msra.mxu0 %v4824
        %7150 = vmatpush.msra.mxu0 %v4823
        %7151 = vmatpush.msra.mxu0 %v4822
        %7152 = vmatpush.msra.mxu0 %v4821
        %7153 = vmatpush.msra.mxu0 %v4820
        %7154 = vmatpush.msra.mxu0 %v4819
        %7155 = vmatpush.msra.mxu0 %v4818
        %7156 = vmatpush.msra.mxu0 %v4817
        %7157 = vmatpush.msra.mxu0 %v4816
        %7158 = vmatpush.msra.mxu0 %v4815
        %7159 = vmatmul.f32.gmra.mxu0 %v6849
        %v7160 = vpop.f32.mrf.mxu0
        %v7161 = vadd.f32 %v7141, %v7160
        %7162 = vdwg.mxu0
        %7163 = vmatpush.msra.mxu0 %v4846
        %7164 = vmatpush.msra.mxu0 %v4845
        %7165 = vmatpush.msra.mxu0 %v4844
        %7166 = vmatpush.msra.mxu0 %v4843
        %7167 = vmatpush.msra.mxu0 %v4842
        %7168 = vmatpush.msra.mxu0 %v4841
        %7169 = vmatpush.msra.mxu0 %v4840
        %7170 = vmatpush.msra.mxu0 %v4839
        %7171 = vmatpush.msra.mxu0 %v4838
        %7172 = vmatpush.msra.mxu0 %v4837
        %7173 = vmatpush.msra.mxu0 %v4836
        %7174 = vmatpush.msra.mxu0 %v4835
        %7175 = vmatpush.msra.mxu0 %v4834
        %7176 = vmatpush.msra.mxu0 %v4833
        %7177 = vmatpush.msra.mxu0 %v4832
        %7178 = vmatpush.msra.mxu0 %v4831
        %7179 = vmatmul.f32.gmra.mxu0 %v6850
        %v7180 = vpop.f32.mrf.mxu0
        %v7181 = vadd.f32 %v7161, %v7180
        %7182 = vdwg.mxu0
        %7183 = vmatpush.msra.mxu0 %v4862
        %7184 = vmatpush.msra.mxu0 %v4861
        %7185 = vmatpush.msra.mxu0 %v4860
        %7186 = vmatpush.msra.mxu0 %v4859
        %7187 = vmatpush.msra.mxu0 %v4858
        %7188 = vmatpush.msra.mxu0 %v4857
        %7189 = vmatpush.msra.mxu0 %v4856
        %7190 = vmatpush.msra.mxu0 %v4855
        %7191 = vmatpush.msra.mxu0 %v4854
        %7192 = vmatpush.msra.mxu0 %v4853
        %7193 = vmatpush.msra.mxu0 %v4852
        %7194 = vmatpush.msra.mxu0 %v4851
        %7195 = vmatpush.msra.mxu0 %v4850
        %7196 = vmatpush.msra.mxu0 %v4849
        %7197 = vmatpush.msra.mxu0 %v4848
        %7198 = vmatpush.msra.mxu0 %v4847
        %7199 = vmatmul.f32.gmra.mxu0 %v6851
        %v7200 = vpop.f32.mrf.mxu0
        %v7201 = vadd.f32 %v7181, %v7200
        %7202 = vdwg.mxu0
        %7203 = vmatpush.msra.mxu0 %v4878
        %7204 = vmatpush.msra.mxu0 %v4877
        %7205 = vmatpush.msra.mxu0 %v4876
        %7206 = vmatpush.msra.mxu0 %v4875
        %7207 = vmatpush.msra.mxu0 %v4874
        %7208 = vmatpush.msra.mxu0 %v4873
        %7209 = vmatpush.msra.mxu0 %v4872
        %7210 = vmatpush.msra.mxu0 %v4871
        %7211 = vmatpush.msra.mxu0 %v4870
        %7212 = vmatpush.msra.mxu0 %v4869
        %7213 = vmatpush.msra.mxu0 %v4868
        %7214 = vmatpush.msra.mxu0 %v4867
        %7215 = vmatpush.msra.mxu0 %v4866
        %7216 = vmatpush.msra.mxu0 %v4865
        %7217 = vmatpush.msra.mxu0 %v4864
        %7218 = vmatpush.msra.mxu0 %v4863
        %7219 = vmatmul.f32.gmra.mxu0 %v6852
        %v7220 = vpop.f32.mrf.mxu0
        %v7221 = vadd.f32 %v7201, %v7220
        %7222 = vdwg.mxu0
        %7223 = vmatpush.msra.mxu0 %v4894
        %7224 = vmatpush.msra.mxu0 %v4893
        %7225 = vmatpush.msra.mxu0 %v4892
        %7226 = vmatpush.msra.mxu0 %v4891
        %7227 = vmatpush.msra.mxu0 %v4890
        %7228 = vmatpush.msra.mxu0 %v4889
        %7229 = vmatpush.msra.mxu0 %v4888
        %7230 = vmatpush.msra.mxu0 %v4887
        %7231 = vmatpush.msra.mxu0 %v4886
        %7232 = vmatpush.msra.mxu0 %v4885
        %7233 = vmatpush.msra.mxu0 %v4884
        %7234 = vmatpush.msra.mxu0 %v4883
        %7235 = vmatpush.msra.mxu0 %v4882
        %7236 = vmatpush.msra.mxu0 %v4881
        %7237 = vmatpush.msra.mxu0 %v4880
        %7238 = vmatpush.msra.mxu0 %v4879
        %7239 = vmatmul.f32.gmra.mxu0 %v6853
        %v7240 = vpop.f32.mrf.mxu0
        %v7241 = vadd.f32 %v7221, %v7240
        %7242 = vdwg.mxu0
        %7243 = vmatpush.msra.mxu0 %v4910
        %7244 = vmatpush.msra.mxu0 %v4909
        %7245 = vmatpush.msra.mxu0 %v4908
        %7246 = vmatpush.msra.mxu0 %v4907
        %7247 = vmatpush.msra.mxu0 %v4906
        %7248 = vmatpush.msra.mxu0 %v4905
        %7249 = vmatpush.msra.mxu0 %v4904
        %7250 = vmatpush.msra.mxu0 %v4903
        %7251 = vmatpush.msra.mxu0 %v4902
        %7252 = vmatpush.msra.mxu0 %v4901
        %7253 = vmatpush.msra.mxu0 %v4900
        %7254 = vmatpush.msra.mxu0 %v4899
        %7255 = vmatpush.msra.mxu0 %v4898
        %7256 = vmatpush.msra.mxu0 %v4897
        %7257 = vmatpush.msra.mxu0 %v4896
        %7258 = vmatpush.msra.mxu0 %v4895
        %7259 = vmatmul.f32.gmra.mxu0 %v6854
        %v7260 = vpop.f32.mrf.mxu0
        %v7261 = vadd.f32 %v7241, %v7260
        %7262 = vdwg.mxu0
        %7263 = vmatpush.msra.mxu0 %v4926
        %7264 = vmatpush.msra.mxu0 %v4925
        %7265 = vmatpush.msra.mxu0 %v4924
        %7266 = vmatpush.msra.mxu0 %v4923
        %7267 = vmatpush.msra.mxu0 %v4922
        %7268 = vmatpush.msra.mxu0 %v4921
        %7269 = vmatpush.msra.mxu0 %v4920
        %7270 = vmatpush.msra.mxu0 %v4919
        %7271 = vmatpush.msra.mxu0 %v4918
        %7272 = vmatpush.msra.mxu0 %v4917
        %7273 = vmatpush.msra.mxu0 %v4916
        %7274 = vmatpush.msra.mxu0 %v4915
        %7275 = vmatpush.msra.mxu0 %v4914
        %7276 = vmatpush.msra.mxu0 %v4913
        %7277 = vmatpush.msra.mxu0 %v4912
        %7278 = vmatpush.msra.mxu0 %v4911
        %7279 = vmatmul.f32.gmra.mxu0 %v6855
        %v7280 = vpop.f32.mrf.mxu0
        %v7281 = vadd.f32 %v7261, %v7280
        %7282 = vdwg.mxu0
        %7283 = vmatpush.msra.mxu0 %v4942
        %7284 = vmatpush.msra.mxu0 %v4941
        %7285 = vmatpush.msra.mxu0 %v4940
        %7286 = vmatpush.msra.mxu0 %v4939
        %7287 = vmatpush.msra.mxu0 %v4938
        %7288 = vmatpush.msra.mxu0 %v4937
        %7289 = vmatpush.msra.mxu0 %v4936
        %7290 = vmatpush.msra.mxu0 %v4935
        %7291 = vmatpush.msra.mxu0 %v4934
        %7292 = vmatpush.msra.mxu0 %v4933
        %7293 = vmatpush.msra.mxu0 %v4932
        %7294 = vmatpush.msra.mxu0 %v4931
        %7295 = vmatpush.msra.mxu0 %v4930
        %7296 = vmatpush.msra.mxu0 %v4929
        %7297 = vmatpush.msra.mxu0 %v4928
        %7298 = vmatpush.msra.mxu0 %v4927
        %7299 = vmatmul.f32.gmra.mxu0 %v6856
        %v7300 = vpop.f32.mrf.mxu0
        %v7301 = vadd.f32 %v7281, %v7300
        %7302 = vdwg.mxu0
        %7303 = vmatpush.msra.mxu0 %v4958
        %7304 = vmatpush.msra.mxu0 %v4957
        %7305 = vmatpush.msra.mxu0 %v4956
        %7306 = vmatpush.msra.mxu0 %v4955
        %7307 = vmatpush.msra.mxu0 %v4954
        %7308 = vmatpush.msra.mxu0 %v4953
        %7309 = vmatpush.msra.mxu0 %v4952
        %7310 = vmatpush.msra.mxu0 %v4951
        %7311 = vmatpush.msra.mxu0 %v4950
        %7312 = vmatpush.msra.mxu0 %v4949
        %7313 = vmatpush.msra.mxu0 %v4948
        %7314 = vmatpush.msra.mxu0 %v4947
        %7315 = vmatpush.msra.mxu0 %v4946
        %7316 = vmatpush.msra.mxu0 %v4945
        %7317 = vmatpush.msra.mxu0 %v4944
        %7318 = vmatpush.msra.mxu0 %v4943
        %7319 = vmatmul.f32.gmra.mxu0 %v6857
        %v7320 = vpop.f32.mrf.mxu0
        %v7321 = vadd.f32 %v7301, %v7320
        %7322 = vdwg.mxu0
        %7323 = vmatpush.msra.mxu0 %v4974
        %7324 = vmatpush.msra.mxu0 %v4973
        %7325 = vmatpush.msra.mxu0 %v4972
        %7326 = vmatpush.msra.mxu0 %v4971
        %7327 = vmatpush.msra.mxu0 %v4970
        %7328 = vmatpush.msra.mxu0 %v4969
        %7329 = vmatpush.msra.mxu0 %v4968
        %7330 = vmatpush.msra.mxu0 %v4967
        %7331 = vmatpush.msra.mxu0 %v4966
        %7332 = vmatpush.msra.mxu0 %v4965
        %7333 = vmatpush.msra.mxu0 %v4964
        %7334 = vmatpush.msra.mxu0 %v4963
        %7335 = vmatpush.msra.mxu0 %v4962
        %7336 = vmatpush.msra.mxu0 %v4961
        %7337 = vmatpush.msra.mxu0 %v4960
        %7338 = vmatpush.msra.mxu0 %v4959
        %7339 = vmatmul.f32.gmra.mxu0 %v6858
        %v7340 = vpop.f32.mrf.mxu0
        %v7341 = vadd.f32 %v7321, %v7340
        %7342 = vdwg.mxu0
        %7343 = vmatpush.msra.mxu0 %v4990
        %7344 = vmatpush.msra.mxu0 %v4989
        %7345 = vmatpush.msra.mxu0 %v4988
        %7346 = vmatpush.msra.mxu0 %v4987
        %7347 = vmatpush.msra.mxu0 %v4986
        %7348 = vmatpush.msra.mxu0 %v4985
        %7349 = vmatpush.msra.mxu0 %v4984
        %7350 = vmatpush.msra.mxu0 %v4983
        %7351 = vmatpush.msra.mxu0 %v4982
        %7352 = vmatpush.msra.mxu0 %v4981
        %7353 = vmatpush.msra.mxu0 %v4980
        %7354 = vmatpush.msra.mxu0 %v4979
        %7355 = vmatpush.msra.mxu0 %v4978
        %7356 = vmatpush.msra.mxu0 %v4977
        %7357 = vmatpush.msra.mxu0 %v4976
        %7358 = vmatpush.msra.mxu0 %v4975
        %7359 = vmatmul.f32.gmra.mxu0 %v6859
        %v7360 = vpop.f32.mrf.mxu0
        %v7361 = vadd.f32 %v7341, %v7360
        %7362 = vdwg.mxu0
        %7363 = vmatpush.msra.mxu0 %v5006
        %7364 = vmatpush.msra.mxu0 %v5005
        %7365 = vmatpush.msra.mxu0 %v5004
        %7366 = vmatpush.msra.mxu0 %v5003
        %7367 = vmatpush.msra.mxu0 %v5002
        %7368 = vmatpush.msra.mxu0 %v5001
        %7369 = vmatpush.msra.mxu0 %v5000
        %7370 = vmatpush.msra.mxu0 %v4999
        %7371 = vmatpush.msra.mxu0 %v4998
        %7372 = vmatpush.msra.mxu0 %v4997
        %7373 = vmatpush.msra.mxu0 %v4996
        %7374 = vmatpush.msra.mxu0 %v4995
        %7375 = vmatpush.msra.mxu0 %v4994
        %7376 = vmatpush.msra.mxu0 %v4993
        %7377 = vmatpush.msra.mxu0 %v4992
        %7378 = vmatpush.msra.mxu0 %v4991
        %7379 = vmatmul.f32.gmra.mxu0 %v6860
        %v7380 = vpop.f32.mrf.mxu0
        %v7381 = vadd.f32 %v7361, %v7380
        %7382 = vdwg.mxu0
        %7383 = vmatpush.msra.mxu0 %v5022
        %7384 = vmatpush.msra.mxu0 %v5021
        %7385 = vmatpush.msra.mxu0 %v5020
        %7386 = vmatpush.msra.mxu0 %v5019
        %7387 = vmatpush.msra.mxu0 %v5018
        %7388 = vmatpush.msra.mxu0 %v5017
        %7389 = vmatpush.msra.mxu0 %v5016
        %7390 = vmatpush.msra.mxu0 %v5015
        %7391 = vmatpush.msra.mxu0 %v5014
        %7392 = vmatpush.msra.mxu0 %v5013
        %7393 = vmatpush.msra.mxu0 %v5012
        %7394 = vmatpush.msra.mxu0 %v5011
        %7395 = vmatpush.msra.mxu0 %v5010
        %7396 = vmatpush.msra.mxu0 %v5009
        %7397 = vmatpush.msra.mxu0 %v5008
        %7398 = vmatpush.msra.mxu0 %v5007
        %7399 = vmatmul.f32.gmra.mxu0 %v6861
        %v7400 = vpop.f32.mrf.mxu0
        %v7401 = vadd.f32 %v7381, %v7400
        %7402 = vdwg.mxu0
        %7403 = vmatpush.msra.mxu0 %v5038
        %7404 = vmatpush.msra.mxu0 %v5037
        %7405 = vmatpush.msra.mxu0 %v5036
        %7406 = vmatpush.msra.mxu0 %v5035
        %7407 = vmatpush.msra.mxu0 %v5034
        %7408 = vmatpush.msra.mxu0 %v5033
        %7409 = vmatpush.msra.mxu0 %v5032
        %7410 = vmatpush.msra.mxu0 %v5031
        %7411 = vmatpush.msra.mxu0 %v5030
        %7412 = vmatpush.msra.mxu0 %v5029
        %7413 = vmatpush.msra.mxu0 %v5028
        %7414 = vmatpush.msra.mxu0 %v5027
        %7415 = vmatpush.msra.mxu0 %v5026
        %7416 = vmatpush.msra.mxu0 %v5025
        %7417 = vmatpush.msra.mxu0 %v5024
        %7418 = vmatpush.msra.mxu0 %v5023
        %7419 = vmatmul.f32.gmra.mxu0 %v6862
        %v7420 = vpop.f32.mrf.mxu0
        %v7421 = vadd.f32 %v7401, %v7420
        %7422 = vdwg.mxu0
        %7423 = vmatpush.msra.mxu0 %v5054
        %7424 = vmatpush.msra.mxu0 %v5053
        %7425 = vmatpush.msra.mxu0 %v5052
        %7426 = vmatpush.msra.mxu0 %v5051
        %7427 = vmatpush.msra.mxu0 %v5050
        %7428 = vmatpush.msra.mxu0 %v5049
        %7429 = vmatpush.msra.mxu0 %v5048
        %7430 = vmatpush.msra.mxu0 %v5047
        %7431 = vmatpush.msra.mxu0 %v5046
        %7432 = vmatpush.msra.mxu0 %v5045
        %7433 = vmatpush.msra.mxu0 %v5044
        %7434 = vmatpush.msra.mxu0 %v5043
        %7435 = vmatpush.msra.mxu0 %v5042
        %7436 = vmatpush.msra.mxu0 %v5041
        %7437 = vmatpush.msra.mxu0 %v5040
        %7438 = vmatpush.msra.mxu0 %v5039
        %7439 = vmatmul.f32.gmra.mxu0 %v6863
        %v7440 = vpop.f32.mrf.mxu0
        %v7441 = vadd.f32 %v7421, %v7440
        %7442 = vdwg.mxu0
        %7443 = vmatpush.msra.mxu0 %v5070
        %7444 = vmatpush.msra.mxu0 %v5069
        %7445 = vmatpush.msra.mxu0 %v5068
        %7446 = vmatpush.msra.mxu0 %v5067
        %7447 = vmatpush.msra.mxu0 %v5066
        %7448 = vmatpush.msra.mxu0 %v5065
        %7449 = vmatpush.msra.mxu0 %v5064
        %7450 = vmatpush.msra.mxu0 %v5063
        %7451 = vmatpush.msra.mxu0 %v5062
        %7452 = vmatpush.msra.mxu0 %v5061
        %7453 = vmatpush.msra.mxu0 %v5060
        %7454 = vmatpush.msra.mxu0 %v5059
        %7455 = vmatpush.msra.mxu0 %v5058
        %7456 = vmatpush.msra.mxu0 %v5057
        %7457 = vmatpush.msra.mxu0 %v5056
        %7458 = vmatpush.msra.mxu0 %v5055
        %7459 = vmatmul.f32.gmra.mxu0 %v6864
        %v7460 = vpop.f32.mrf.mxu0
        %v7461 = vadd.f32 %v7441, %v7460
        %7462 = vdwg.mxu0
        %7463 = vmatpush.msra.mxu0 %v5086
        %7464 = vmatpush.msra.mxu0 %v5085
        %7465 = vmatpush.msra.mxu0 %v5084
        %7466 = vmatpush.msra.mxu0 %v5083
        %7467 = vmatpush.msra.mxu0 %v5082
        %7468 = vmatpush.msra.mxu0 %v5081
        %7469 = vmatpush.msra.mxu0 %v5080
        %7470 = vmatpush.msra.mxu0 %v5079
        %7471 = vmatpush.msra.mxu0 %v5078
        %7472 = vmatpush.msra.mxu0 %v5077
        %7473 = vmatpush.msra.mxu0 %v5076
        %7474 = vmatpush.msra.mxu0 %v5075
        %7475 = vmatpush.msra.mxu0 %v5074
        %7476 = vmatpush.msra.mxu0 %v5073
        %7477 = vmatpush.msra.mxu0 %v5072
        %7478 = vmatpush.msra.mxu0 %v5071
        %7479 = vmatmul.f32.gmra.mxu0 %v6865
        %v7480 = vpop.f32.mrf.mxu0
        %v7481 = vadd.f32 %v7461, %v7480
        %7482 = vdwg.mxu0
        %7483 = vmatpush.msra.mxu0 %v5102
        %7484 = vmatpush.msra.mxu0 %v5101
        %7485 = vmatpush.msra.mxu0 %v5100
        %7486 = vmatpush.msra.mxu0 %v5099
        %7487 = vmatpush.msra.mxu0 %v5098
        %7488 = vmatpush.msra.mxu0 %v5097
        %7489 = vmatpush.msra.mxu0 %v5096
        %7490 = vmatpush.msra.mxu0 %v5095
        %7491 = vmatpush.msra.mxu0 %v5094
        %7492 = vmatpush.msra.mxu0 %v5093
        %7493 = vmatpush.msra.mxu0 %v5092
        %7494 = vmatpush.msra.mxu0 %v5091
        %7495 = vmatpush.msra.mxu0 %v5090
        %7496 = vmatpush.msra.mxu0 %v5089
        %7497 = vmatpush.msra.mxu0 %v5088
        %7498 = vmatpush.msra.mxu0 %v5087
        %7499 = vmatmul.f32.gmra.mxu0 %v6866
        %v7500 = vpop.f32.mrf.mxu0
        %v7501 = vadd.f32 %v7481, %v7500
        %7502 = vdwg.mxu0
        %7503 = vmatpush.msra.mxu0 %v5118
        %7504 = vmatpush.msra.mxu0 %v5117
        %7505 = vmatpush.msra.mxu0 %v5116
        %7506 = vmatpush.msra.mxu0 %v5115
        %7507 = vmatpush.msra.mxu0 %v5114
        %7508 = vmatpush.msra.mxu0 %v5113
        %7509 = vmatpush.msra.mxu0 %v5112
        %7510 = vmatpush.msra.mxu0 %v5111
        %7511 = vmatpush.msra.mxu0 %v5110
        %7512 = vmatpush.msra.mxu0 %v5109
        %7513 = vmatpush.msra.mxu0 %v5108
        %7514 = vmatpush.msra.mxu0 %v5107
        %7515 = vmatpush.msra.mxu0 %v5106
        %7516 = vmatpush.msra.mxu0 %v5105
        %7517 = vmatpush.msra.mxu0 %v5104
        %7518 = vmatpush.msra.mxu0 %v5103
        %7519 = vmatmul.f32.gmra.mxu0 %v6867
        %v7520 = vpop.f32.mrf.mxu0
        %v7521 = vadd.f32 %v7501, %v7520
        %7522 = vdwg.mxu0
        %7523 = vmatpush.msra.mxu0 %v5134
        %7524 = vmatpush.msra.mxu0 %v5133
        %7525 = vmatpush.msra.mxu0 %v5132
        %7526 = vmatpush.msra.mxu0 %v5131
        %7527 = vmatpush.msra.mxu0 %v5130
        %7528 = vmatpush.msra.mxu0 %v5129
        %7529 = vmatpush.msra.mxu0 %v5128
        %7530 = vmatpush.msra.mxu0 %v5127
        %7531 = vmatpush.msra.mxu0 %v5126
        %7532 = vmatpush.msra.mxu0 %v5125
        %7533 = vmatpush.msra.mxu0 %v5124
        %7534 = vmatpush.msra.mxu0 %v5123
        %7535 = vmatpush.msra.mxu0 %v5122
        %7536 = vmatpush.msra.mxu0 %v5121
        %7537 = vmatpush.msra.mxu0 %v5120
        %7538 = vmatpush.msra.mxu0 %v5119
        %7539 = vmatmul.f32.gmra.mxu0 %v6868
        %v7540 = vpop.f32.mrf.mxu0
        %v7541 = vadd.f32 %v7521, %v7540
        %7542 = vdwg.mxu0
        %7543 = vmatpush.msra.mxu0 %v5150
        %7544 = vmatpush.msra.mxu0 %v5149
        %7545 = vmatpush.msra.mxu0 %v5148
        %7546 = vmatpush.msra.mxu0 %v5147
        %7547 = vmatpush.msra.mxu0 %v5146
        %7548 = vmatpush.msra.mxu0 %v5145
        %7549 = vmatpush.msra.mxu0 %v5144
        %7550 = vmatpush.msra.mxu0 %v5143
        %7551 = vmatpush.msra.mxu0 %v5142
        %7552 = vmatpush.msra.mxu0 %v5141
        %7553 = vmatpush.msra.mxu0 %v5140
        %7554 = vmatpush.msra.mxu0 %v5139
        %7555 = vmatpush.msra.mxu0 %v5138
        %7556 = vmatpush.msra.mxu0 %v5137
        %7557 = vmatpush.msra.mxu0 %v5136
        %7558 = vmatpush.msra.mxu0 %v5135
        %7559 = vmatmul.f32.gmra.mxu0 %v6869
        %v7560 = vpop.f32.mrf.mxu0
        %v7561 = vadd.f32 %v7541, %v7560
        %7562 = vdwg.mxu0
        %7563 = vmatpush.msra.mxu0 %v5166
        %7564 = vmatpush.msra.mxu0 %v5165
        %7565 = vmatpush.msra.mxu0 %v5164
        %7566 = vmatpush.msra.mxu0 %v5163
        %7567 = vmatpush.msra.mxu0 %v5162
        %7568 = vmatpush.msra.mxu0 %v5161
        %7569 = vmatpush.msra.mxu0 %v5160
        %7570 = vmatpush.msra.mxu0 %v5159
        %7571 = vmatpush.msra.mxu0 %v5158
        %7572 = vmatpush.msra.mxu0 %v5157
        %7573 = vmatpush.msra.mxu0 %v5156
        %7574 = vmatpush.msra.mxu0 %v5155
        %7575 = vmatpush.msra.mxu0 %v5154
        %7576 = vmatpush.msra.mxu0 %v5153
        %7577 = vmatpush.msra.mxu0 %v5152
        %7578 = vmatpush.msra.mxu0 %v5151
        %7579 = vmatmul.f32.gmra.mxu0 %v6870
        %v7580 = vpop.f32.mrf.mxu0
        %v7581 = vadd.f32 %v7561, %v7580
        %7582 = vdwg.mxu0
        %7583 = vmatpush.msra.mxu0 %v5182
        %7584 = vmatpush.msra.mxu0 %v5181
        %7585 = vmatpush.msra.mxu0 %v5180
        %7586 = vmatpush.msra.mxu0 %v5179
        %7587 = vmatpush.msra.mxu0 %v5178
        %7588 = vmatpush.msra.mxu0 %v5177
        %7589 = vmatpush.msra.mxu0 %v5176
        %7590 = vmatpush.msra.mxu0 %v5175
        %7591 = vmatpush.msra.mxu0 %v5174
        %7592 = vmatpush.msra.mxu0 %v5173
        %7593 = vmatpush.msra.mxu0 %v5172
        %7594 = vmatpush.msra.mxu0 %v5171
        %7595 = vmatpush.msra.mxu0 %v5170
        %7596 = vmatpush.msra.mxu0 %v5169
        %7597 = vmatpush.msra.mxu0 %v5168
        %7598 = vmatpush.msra.mxu0 %v5167
        %7599 = vmatmul.f32.gmra.mxu0 %v6871
        %v7600 = vpop.f32.mrf.mxu0
        %v7601 = vadd.f32 %v7581, %v7600
        %7602 = vdwg.mxu0
        %7603 = vmatpush.msra.mxu0 %v5198
        %7604 = vmatpush.msra.mxu0 %v5197
        %7605 = vmatpush.msra.mxu0 %v5196
        %7606 = vmatpush.msra.mxu0 %v5195
        %7607 = vmatpush.msra.mxu0 %v5194
        %7608 = vmatpush.msra.mxu0 %v5193
        %7609 = vmatpush.msra.mxu0 %v5192
        %7610 = vmatpush.msra.mxu0 %v5191
        %7611 = vmatpush.msra.mxu0 %v5190
        %7612 = vmatpush.msra.mxu0 %v5189
        %7613 = vmatpush.msra.mxu0 %v5188
        %7614 = vmatpush.msra.mxu0 %v5187
        %7615 = vmatpush.msra.mxu0 %v5186
        %7616 = vmatpush.msra.mxu0 %v5185
        %7617 = vmatpush.msra.mxu0 %v5184
        %7618 = vmatpush.msra.mxu0 %v5183
        %7619 = vmatmul.f32.gmra.mxu0 %v6872
        %v7620 = vpop.f32.mrf.mxu0
        %v7621 = vadd.f32 %v7601, %v7620
        %7622 = vdwg.mxu0
        %7623 = vmatpush.msra.mxu0 %v5214
        %7624 = vmatpush.msra.mxu0 %v5213
        %7625 = vmatpush.msra.mxu0 %v5212
        %7626 = vmatpush.msra.mxu0 %v5211
        %7627 = vmatpush.msra.mxu0 %v5210
        %7628 = vmatpush.msra.mxu0 %v5209
        %7629 = vmatpush.msra.mxu0 %v5208
        %7630 = vmatpush.msra.mxu0 %v5207
        %7631 = vmatpush.msra.mxu0 %v5206
        %7632 = vmatpush.msra.mxu0 %v5205
        %7633 = vmatpush.msra.mxu0 %v5204
        %7634 = vmatpush.msra.mxu0 %v5203
        %7635 = vmatpush.msra.mxu0 %v5202
        %7636 = vmatpush.msra.mxu0 %v5201
        %7637 = vmatpush.msra.mxu0 %v5200
        %7638 = vmatpush.msra.mxu0 %v5199
        %7639 = vmatmul.f32.gmra.mxu0 %v6873
        %v7640 = vpop.f32.mrf.mxu0
        %v7641 = vadd.f32 %v7621, %v7640
        %7642 = vdwg.mxu0
        %7643 = vmatpush.msra.mxu0 %v5230
        %7644 = vmatpush.msra.mxu0 %v5229
        %7645 = vmatpush.msra.mxu0 %v5228
        %7646 = vmatpush.msra.mxu0 %v5227
        %7647 = vmatpush.msra.mxu0 %v5226
        %7648 = vmatpush.msra.mxu0 %v5225
        %7649 = vmatpush.msra.mxu0 %v5224
        %7650 = vmatpush.msra.mxu0 %v5223
        %7651 = vmatpush.msra.mxu0 %v5222
        %7652 = vmatpush.msra.mxu0 %v5221
        %7653 = vmatpush.msra.mxu0 %v5220
        %7654 = vmatpush.msra.mxu0 %v5219
        %7655 = vmatpush.msra.mxu0 %v5218
        %7656 = vmatpush.msra.mxu0 %v5217
        %7657 = vmatpush.msra.mxu0 %v5216
        %7658 = vmatpush.msra.mxu0 %v5215
        %7659 = vmatmul.f32.gmra.mxu0 %v6874
        %v7660 = vpop.f32.mrf.mxu0
        %v7661 = vadd.f32 %v7641, %v7660
        %7662 = vdwg.mxu0
        %7663 = vmatpush.msra.mxu0 %v5246
        %7664 = vmatpush.msra.mxu0 %v5245
        %7665 = vmatpush.msra.mxu0 %v5244
        %7666 = vmatpush.msra.mxu0 %v5243
        %7667 = vmatpush.msra.mxu0 %v5242
        %7668 = vmatpush.msra.mxu0 %v5241
        %7669 = vmatpush.msra.mxu0 %v5240
        %7670 = vmatpush.msra.mxu0 %v5239
        %7671 = vmatpush.msra.mxu0 %v5238
        %7672 = vmatpush.msra.mxu0 %v5237
        %7673 = vmatpush.msra.mxu0 %v5236
        %7674 = vmatpush.msra.mxu0 %v5235
        %7675 = vmatpush.msra.mxu0 %v5234
        %7676 = vmatpush.msra.mxu0 %v5233
        %7677 = vmatpush.msra.mxu0 %v5232
        %7678 = vmatpush.msra.mxu0 %v5231
        %7679 = vmatmul.f32.gmra.mxu0 %v6875
        %v7680 = vpop.f32.mrf.mxu0
        %v7681 = vadd.f32 %v7661, %v7680
        %7682 = vdwg.mxu0
        %7683 = vmatpush.msra.mxu0 %v5262
        %7684 = vmatpush.msra.mxu0 %v5261
        %7685 = vmatpush.msra.mxu0 %v5260
        %7686 = vmatpush.msra.mxu0 %v5259
        %7687 = vmatpush.msra.mxu0 %v5258
        %7688 = vmatpush.msra.mxu0 %v5257
        %7689 = vmatpush.msra.mxu0 %v5256
        %7690 = vmatpush.msra.mxu0 %v5255
        %7691 = vmatpush.msra.mxu0 %v5254
        %7692 = vmatpush.msra.mxu0 %v5253
        %7693 = vmatpush.msra.mxu0 %v5252
        %7694 = vmatpush.msra.mxu0 %v5251
        %7695 = vmatpush.msra.mxu0 %v5250
        %7696 = vmatpush.msra.mxu0 %v5249
        %7697 = vmatpush.msra.mxu0 %v5248
        %7698 = vmatpush.msra.mxu0 %v5247
        %7699 = vmatmul.f32.gmra.mxu0 %v6876
        %v7700 = vpop.f32.mrf.mxu0
        %v7701 = vadd.f32 %v7681, %v7700
        %7702 = vdwg.mxu0
        %7703 = vmatpush.msra.mxu0 %v5278
        %7704 = vmatpush.msra.mxu0 %v5277
        %7705 = vmatpush.msra.mxu0 %v5276
        %7706 = vmatpush.msra.mxu0 %v5275
        %7707 = vmatpush.msra.mxu0 %v5274
        %7708 = vmatpush.msra.mxu0 %v5273
        %7709 = vmatpush.msra.mxu0 %v5272
        %7710 = vmatpush.msra.mxu0 %v5271
        %7711 = vmatpush.msra.mxu0 %v5270
        %7712 = vmatpush.msra.mxu0 %v5269
        %7713 = vmatpush.msra.mxu0 %v5268
        %7714 = vmatpush.msra.mxu0 %v5267
        %7715 = vmatpush.msra.mxu0 %v5266
        %7716 = vmatpush.msra.mxu0 %v5265
        %7717 = vmatpush.msra.mxu0 %v5264
        %7718 = vmatpush.msra.mxu0 %v5263
        %7719 = vmatmul.f32.gmra.mxu0 %v6877
        %v7720 = vpop.f32.mrf.mxu0
        %v7721 = vadd.f32 %v7701, %v7720
        %7722 = vdwg.mxu0
        %7723 = vmatpush.msra.mxu0 %v5294
        %7724 = vmatpush.msra.mxu0 %v5293
        %7725 = vmatpush.msra.mxu0 %v5292
        %7726 = vmatpush.msra.mxu0 %v5291
        %7727 = vmatpush.msra.mxu0 %v5290
        %7728 = vmatpush.msra.mxu0 %v5289
        %7729 = vmatpush.msra.mxu0 %v5288
        %7730 = vmatpush.msra.mxu0 %v5287
        %7731 = vmatpush.msra.mxu0 %v5286
        %7732 = vmatpush.msra.mxu0 %v5285
        %7733 = vmatpush.msra.mxu0 %v5284
        %7734 = vmatpush.msra.mxu0 %v5283
        %7735 = vmatpush.msra.mxu0 %v5282
        %7736 = vmatpush.msra.mxu0 %v5281
        %7737 = vmatpush.msra.mxu0 %v5280
        %7738 = vmatpush.msra.mxu0 %v5279
        %7739 = vmatmul.f32.gmra.mxu0 %v6878
        %v7740 = vpop.f32.mrf.mxu0
        %v7741 = vadd.f32 %v7721, %v7740
        %7742 = vdwg.mxu0
        %7743 = vmatpush.msra.mxu0 %v5310
        %7744 = vmatpush.msra.mxu0 %v5309
        %7745 = vmatpush.msra.mxu0 %v5308
        %7746 = vmatpush.msra.mxu0 %v5307
        %7747 = vmatpush.msra.mxu0 %v5306
        %7748 = vmatpush.msra.mxu0 %v5305
        %7749 = vmatpush.msra.mxu0 %v5304
        %7750 = vmatpush.msra.mxu0 %v5303
        %7751 = vmatpush.msra.mxu0 %v5302
        %7752 = vmatpush.msra.mxu0 %v5301
        %7753 = vmatpush.msra.mxu0 %v5300
        %7754 = vmatpush.msra.mxu0 %v5299
        %7755 = vmatpush.msra.mxu0 %v5298
        %7756 = vmatpush.msra.mxu0 %v5297
        %7757 = vmatpush.msra.mxu0 %v5296
        %7758 = vmatpush.msra.mxu0 %v5295
        %7759 = vmatmul.f32.gmra.mxu0 %v6879
        %v7760 = vpop.f32.mrf.mxu0
        %v7761 = vadd.f32 %v7741, %v7760
        %7762 = vdwg.mxu0
        %7763 = vmatpush.msra.mxu0 %v5326
        %7764 = vmatpush.msra.mxu0 %v5325
        %7765 = vmatpush.msra.mxu0 %v5324
        %7766 = vmatpush.msra.mxu0 %v5323
        %7767 = vmatpush.msra.mxu0 %v5322
        %7768 = vmatpush.msra.mxu0 %v5321
        %7769 = vmatpush.msra.mxu0 %v5320
        %7770 = vmatpush.msra.mxu0 %v5319
        %7771 = vmatpush.msra.mxu0 %v5318
        %7772 = vmatpush.msra.mxu0 %v5317
        %7773 = vmatpush.msra.mxu0 %v5316
        %7774 = vmatpush.msra.mxu0 %v5315
        %7775 = vmatpush.msra.mxu0 %v5314
        %7776 = vmatpush.msra.mxu0 %v5313
        %7777 = vmatpush.msra.mxu0 %v5312
        %7778 = vmatpush.msra.mxu0 %v5311
        %7779 = vmatmul.f32.gmra.mxu0 %v6880
        %v7780 = vpop.f32.mrf.mxu0
        %v7781 = vadd.f32 %v7761, %v7780
        %7782 = vdwg.mxu0
        %7783 = vmatpush.msra.mxu0 %v5342
        %7784 = vmatpush.msra.mxu0 %v5341
        %7785 = vmatpush.msra.mxu0 %v5340
        %7786 = vmatpush.msra.mxu0 %v5339
        %7787 = vmatpush.msra.mxu0 %v5338
        %7788 = vmatpush.msra.mxu0 %v5337
        %7789 = vmatpush.msra.mxu0 %v5336
        %7790 = vmatpush.msra.mxu0 %v5335
        %7791 = vmatpush.msra.mxu0 %v5334
        %7792 = vmatpush.msra.mxu0 %v5333
        %7793 = vmatpush.msra.mxu0 %v5332
        %7794 = vmatpush.msra.mxu0 %v5331
        %7795 = vmatpush.msra.mxu0 %v5330
        %7796 = vmatpush.msra.mxu0 %v5329
        %7797 = vmatpush.msra.mxu0 %v5328
        %7798 = vmatpush.msra.mxu0 %v5327
        %7799 = vmatmul.f32.gmra.mxu0 %v6881
        %v7800 = vpop.f32.mrf.mxu0
        %v7801 = vadd.f32 %v7781, %v7800
        %7802 = vdwg.mxu0
        %7803 = vmatpush.msra.mxu0 %v5358
        %7804 = vmatpush.msra.mxu0 %v5357
        %7805 = vmatpush.msra.mxu0 %v5356
        %7806 = vmatpush.msra.mxu0 %v5355
        %7807 = vmatpush.msra.mxu0 %v5354
        %7808 = vmatpush.msra.mxu0 %v5353
        %7809 = vmatpush.msra.mxu0 %v5352
        %7810 = vmatpush.msra.mxu0 %v5351
        %7811 = vmatpush.msra.mxu0 %v5350
        %7812 = vmatpush.msra.mxu0 %v5349
        %7813 = vmatpush.msra.mxu0 %v5348
        %7814 = vmatpush.msra.mxu0 %v5347
        %7815 = vmatpush.msra.mxu0 %v5346
        %7816 = vmatpush.msra.mxu0 %v5345
        %7817 = vmatpush.msra.mxu0 %v5344
        %7818 = vmatpush.msra.mxu0 %v5343
        %7819 = vmatmul.f32.gmra.mxu0 %v6882
        %v7820 = vpop.f32.mrf.mxu0
        %v7821 = vadd.f32 %v7801, %v7820
        %7822 = vdwg.mxu0
        %7823 = vmatpush.msra.mxu0 %v5374
        %7824 = vmatpush.msra.mxu0 %v5373
        %7825 = vmatpush.msra.mxu0 %v5372
        %7826 = vmatpush.msra.mxu0 %v5371
        %7827 = vmatpush.msra.mxu0 %v5370
        %7828 = vmatpush.msra.mxu0 %v5369
        %7829 = vmatpush.msra.mxu0 %v5368
        %7830 = vmatpush.msra.mxu0 %v5367
        %7831 = vmatpush.msra.mxu0 %v5366
        %7832 = vmatpush.msra.mxu0 %v5365
        %7833 = vmatpush.msra.mxu0 %v5364
        %7834 = vmatpush.msra.mxu0 %v5363
        %7835 = vmatpush.msra.mxu0 %v5362
        %7836 = vmatpush.msra.mxu0 %v5361
        %7837 = vmatpush.msra.mxu0 %v5360
        %7838 = vmatpush.msra.mxu0 %v5359
        %7839 = vmatmul.f32.gmra.mxu0 %v6883
        %v7840 = vpop.f32.mrf.mxu0
        %v7841 = vadd.f32 %v7821, %v7840
        %7842 = vdwg.mxu0
        %7843 = vmatpush.msra.mxu0 %v5390
        %7844 = vmatpush.msra.mxu0 %v5389
        %7845 = vmatpush.msra.mxu0 %v5388
        %7846 = vmatpush.msra.mxu0 %v5387
        %7847 = vmatpush.msra.mxu0 %v5386
        %7848 = vmatpush.msra.mxu0 %v5385
        %7849 = vmatpush.msra.mxu0 %v5384
        %7850 = vmatpush.msra.mxu0 %v5383
        %7851 = vmatpush.msra.mxu0 %v5382
        %7852 = vmatpush.msra.mxu0 %v5381
        %7853 = vmatpush.msra.mxu0 %v5380
        %7854 = vmatpush.msra.mxu0 %v5379
        %7855 = vmatpush.msra.mxu0 %v5378
        %7856 = vmatpush.msra.mxu0 %v5377
        %7857 = vmatpush.msra.mxu0 %v5376
        %7858 = vmatpush.msra.mxu0 %v5375
        %7859 = vmatmul.f32.gmra.mxu0 %v6884
        %v7860 = vpop.f32.mrf.mxu0
        %v7861 = vadd.f32 %v7841, %v7860
        %7862 = vdwg.mxu0
        %7863 = vmatpush.msra.mxu0 %v5406
        %7864 = vmatpush.msra.mxu0 %v5405
        %7865 = vmatpush.msra.mxu0 %v5404
        %7866 = vmatpush.msra.mxu0 %v5403
        %7867 = vmatpush.msra.mxu0 %v5402
        %7868 = vmatpush.msra.mxu0 %v5401
        %7869 = vmatpush.msra.mxu0 %v5400
        %7870 = vmatpush.msra.mxu0 %v5399
        %7871 = vmatpush.msra.mxu0 %v5398
        %7872 = vmatpush.msra.mxu0 %v5397
        %7873 = vmatpush.msra.mxu0 %v5396
        %7874 = vmatpush.msra.mxu0 %v5395
        %7875 = vmatpush.msra.mxu0 %v5394
        %7876 = vmatpush.msra.mxu0 %v5393
        %7877 = vmatpush.msra.mxu0 %v5392
        %7878 = vmatpush.msra.mxu0 %v5391
        %7879 = vmatmul.f32.gmra.mxu0 %v6885
        %v7880 = vpop.f32.mrf.mxu0
        %v7881 = vadd.f32 %v7861, %v7880
        %7882 = vdwg.mxu0
        %7883 = vmatpush.msra.mxu0 %v5422
        %7884 = vmatpush.msra.mxu0 %v5421
        %7885 = vmatpush.msra.mxu0 %v5420
        %7886 = vmatpush.msra.mxu0 %v5419
        %7887 = vmatpush.msra.mxu0 %v5418
        %7888 = vmatpush.msra.mxu0 %v5417
        %7889 = vmatpush.msra.mxu0 %v5416
        %7890 = vmatpush.msra.mxu0 %v5415
        %7891 = vmatpush.msra.mxu0 %v5414
        %7892 = vmatpush.msra.mxu0 %v5413
        %7893 = vmatpush.msra.mxu0 %v5412
        %7894 = vmatpush.msra.mxu0 %v5411
        %7895 = vmatpush.msra.mxu0 %v5410
        %7896 = vmatpush.msra.mxu0 %v5409
        %7897 = vmatpush.msra.mxu0 %v5408
        %7898 = vmatpush.msra.mxu0 %v5407
        %7899 = vmatmul.f32.gmra.mxu0 %v6886
        %v7900 = vpop.f32.mrf.mxu0
        %v7901 = vadd.f32 %v7881, %v7900
        %7902 = vdwg.mxu0
        %7903 = vmatpush.msra.mxu0 %v5438
        %7904 = vmatpush.msra.mxu0 %v5437
        %7905 = vmatpush.msra.mxu0 %v5436
        %7906 = vmatpush.msra.mxu0 %v5435
        %7907 = vmatpush.msra.mxu0 %v5434
        %7908 = vmatpush.msra.mxu0 %v5433
        %7909 = vmatpush.msra.mxu0 %v5432
        %7910 = vmatpush.msra.mxu0 %v5431
        %7911 = vmatpush.msra.mxu0 %v5430
        %7912 = vmatpush.msra.mxu0 %v5429
        %7913 = vmatpush.msra.mxu0 %v5428
        %7914 = vmatpush.msra.mxu0 %v5427
        %7915 = vmatpush.msra.mxu0 %v5426
        %7916 = vmatpush.msra.mxu0 %v5425
        %7917 = vmatpush.msra.mxu0 %v5424
        %7918 = vmatpush.msra.mxu0 %v5423
        %7919 = vmatmul.f32.gmra.mxu0 %v6887
        %v7920 = vpop.f32.mrf.mxu0
        %v7921 = vadd.f32 %v7901, %v7920
        %7922 = vdwg.mxu0
        %7923 = vmatpush.msra.mxu0 %v5454
        %7924 = vmatpush.msra.mxu0 %v5453
        %7925 = vmatpush.msra.mxu0 %v5452
        %7926 = vmatpush.msra.mxu0 %v5451
        %7927 = vmatpush.msra.mxu0 %v5450
        %7928 = vmatpush.msra.mxu0 %v5449
        %7929 = vmatpush.msra.mxu0 %v5448
        %7930 = vmatpush.msra.mxu0 %v5447
        %7931 = vmatpush.msra.mxu0 %v5446
        %7932 = vmatpush.msra.mxu0 %v5445
        %7933 = vmatpush.msra.mxu0 %v5444
        %7934 = vmatpush.msra.mxu0 %v5443
        %7935 = vmatpush.msra.mxu0 %v5442
        %7936 = vmatpush.msra.mxu0 %v5441
        %7937 = vmatpush.msra.mxu0 %v5440
        %7938 = vmatpush.msra.mxu0 %v5439
        %7939 = vmatmul.f32.gmra.mxu0 %v6888
        %v7940 = vpop.f32.mrf.mxu0
        %v7941 = vadd.f32 %v7921, %v7940
        %7942 = vdwg.mxu0
        %7943 = vmatpush.msra.mxu0 %v5470
        %7944 = vmatpush.msra.mxu0 %v5469
        %7945 = vmatpush.msra.mxu0 %v5468
        %7946 = vmatpush.msra.mxu0 %v5467
        %7947 = vmatpush.msra.mxu0 %v5466
        %7948 = vmatpush.msra.mxu0 %v5465
        %7949 = vmatpush.msra.mxu0 %v5464
        %7950 = vmatpush.msra.mxu0 %v5463
        %7951 = vmatpush.msra.mxu0 %v5462
        %7952 = vmatpush.msra.mxu0 %v5461
        %7953 = vmatpush.msra.mxu0 %v5460
        %7954 = vmatpush.msra.mxu0 %v5459
        %7955 = vmatpush.msra.mxu0 %v5458
        %7956 = vmatpush.msra.mxu0 %v5457
        %7957 = vmatpush.msra.mxu0 %v5456
        %7958 = vmatpush.msra.mxu0 %v5455
        %7959 = vmatmul.f32.gmra.mxu0 %v6889
        %v7960 = vpop.f32.mrf.mxu0
        %v7961 = vadd.f32 %v7941, %v7960
        %7962 = vdwg.mxu0
        %7963 = vmatpush.msra.mxu0 %v5486
        %7964 = vmatpush.msra.mxu0 %v5485
        %7965 = vmatpush.msra.mxu0 %v5484
        %7966 = vmatpush.msra.mxu0 %v5483
        %7967 = vmatpush.msra.mxu0 %v5482
        %7968 = vmatpush.msra.mxu0 %v5481
        %7969 = vmatpush.msra.mxu0 %v5480
        %7970 = vmatpush.msra.mxu0 %v5479
        %7971 = vmatpush.msra.mxu0 %v5478
        %7972 = vmatpush.msra.mxu0 %v5477
        %7973 = vmatpush.msra.mxu0 %v5476
        %7974 = vmatpush.msra.mxu0 %v5475
        %7975 = vmatpush.msra.mxu0 %v5474
        %7976 = vmatpush.msra.mxu0 %v5473
        %7977 = vmatpush.msra.mxu0 %v5472
        %7978 = vmatpush.msra.mxu0 %v5471
        %7979 = vmatmul.f32.gmra.mxu0 %v6890
        %v7980 = vpop.f32.mrf.mxu0
        %v7981 = vadd.f32 %v7961, %v7980
        %7982 = vdwg.mxu0
        %7983 = vmatpush.msra.mxu0 %v5502
        %7984 = vmatpush.msra.mxu0 %v5501
        %7985 = vmatpush.msra.mxu0 %v5500
        %7986 = vmatpush.msra.mxu0 %v5499
        %7987 = vmatpush.msra.mxu0 %v5498
        %7988 = vmatpush.msra.mxu0 %v5497
        %7989 = vmatpush.msra.mxu0 %v5496
        %7990 = vmatpush.msra.mxu0 %v5495
        %7991 = vmatpush.msra.mxu0 %v5494
        %7992 = vmatpush.msra.mxu0 %v5493
        %7993 = vmatpush.msra.mxu0 %v5492
        %7994 = vmatpush.msra.mxu0 %v5491
        %7995 = vmatpush.msra.mxu0 %v5490
        %7996 = vmatpush.msra.mxu0 %v5489
        %7997 = vmatpush.msra.mxu0 %v5488
        %7998 = vmatpush.msra.mxu0 %v5487
        %7999 = vmatmul.f32.gmra.mxu0 %v6891
        %v8000 = vpop.f32.mrf.mxu0
        %v8001 = vadd.f32 %v7981, %v8000
        %8002 = vdwg.mxu0
        %8003 = vmatpush.msra.mxu0 %v5518
        %8004 = vmatpush.msra.mxu0 %v5517
        %8005 = vmatpush.msra.mxu0 %v5516
        %8006 = vmatpush.msra.mxu0 %v5515
        %8007 = vmatpush.msra.mxu0 %v5514
        %8008 = vmatpush.msra.mxu0 %v5513
        %8009 = vmatpush.msra.mxu0 %v5512
        %8010 = vmatpush.msra.mxu0 %v5511
        %8011 = vmatpush.msra.mxu0 %v5510
        %8012 = vmatpush.msra.mxu0 %v5509
        %8013 = vmatpush.msra.mxu0 %v5508
        %8014 = vmatpush.msra.mxu0 %v5507
        %8015 = vmatpush.msra.mxu0 %v5506
        %8016 = vmatpush.msra.mxu0 %v5505
        %8017 = vmatpush.msra.mxu0 %v5504
        %8018 = vmatpush.msra.mxu0 %v5503
        %8019 = vmatmul.f32.gmra.mxu0 %v6892
        %v8020 = vpop.f32.mrf.mxu0
        %v8021 = vadd.f32 %v8001, %v8020
        %8022 = vdwg.mxu0
        %8023 = vmatpush.msra.mxu0 %v5534
        %8024 = vmatpush.msra.mxu0 %v5533
        %8025 = vmatpush.msra.mxu0 %v5532
        %8026 = vmatpush.msra.mxu0 %v5531
        %8027 = vmatpush.msra.mxu0 %v5530
        %8028 = vmatpush.msra.mxu0 %v5529
        %8029 = vmatpush.msra.mxu0 %v5528
        %8030 = vmatpush.msra.mxu0 %v5527
        %8031 = vmatpush.msra.mxu0 %v5526
        %8032 = vmatpush.msra.mxu0 %v5525
        %8033 = vmatpush.msra.mxu0 %v5524
        %8034 = vmatpush.msra.mxu0 %v5523
        %8035 = vmatpush.msra.mxu0 %v5522
        %8036 = vmatpush.msra.mxu0 %v5521
        %8037 = vmatpush.msra.mxu0 %v5520
        %8038 = vmatpush.msra.mxu0 %v5519
        %8039 = vmatmul.f32.gmra.mxu0 %v6893
        %v8040 = vpop.f32.mrf.mxu0
        %v8041 = vadd.f32 %v8021, %v8040
        %8042 = vdwg.mxu0
        %8043 = vmatpush.msra.mxu0 %v5550
        %8044 = vmatpush.msra.mxu0 %v5549
        %8045 = vmatpush.msra.mxu0 %v5548
        %8046 = vmatpush.msra.mxu0 %v5547
        %8047 = vmatpush.msra.mxu0 %v5546
        %8048 = vmatpush.msra.mxu0 %v5545
        %8049 = vmatpush.msra.mxu0 %v5544
        %8050 = vmatpush.msra.mxu0 %v5543
        %8051 = vmatpush.msra.mxu0 %v5542
        %8052 = vmatpush.msra.mxu0 %v5541
        %8053 = vmatpush.msra.mxu0 %v5540
        %8054 = vmatpush.msra.mxu0 %v5539
        %8055 = vmatpush.msra.mxu0 %v5538
        %8056 = vmatpush.msra.mxu0 %v5537
        %8057 = vmatpush.msra.mxu0 %v5536
        %8058 = vmatpush.msra.mxu0 %v5535
        %8059 = vmatmul.f32.gmra.mxu0 %v6894
        %v8060 = vpop.f32.mrf.mxu0
        %v8061 = vadd.f32 %v8041, %v8060
        %8062 = vdwg.mxu0
        %8063 = vmatpush.msra.mxu0 %v5566
        %8064 = vmatpush.msra.mxu0 %v5565
        %8065 = vmatpush.msra.mxu0 %v5564
        %8066 = vmatpush.msra.mxu0 %v5563
        %8067 = vmatpush.msra.mxu0 %v5562
        %8068 = vmatpush.msra.mxu0 %v5561
        %8069 = vmatpush.msra.mxu0 %v5560
        %8070 = vmatpush.msra.mxu0 %v5559
        %8071 = vmatpush.msra.mxu0 %v5558
        %8072 = vmatpush.msra.mxu0 %v5557
        %8073 = vmatpush.msra.mxu0 %v5556
        %8074 = vmatpush.msra.mxu0 %v5555
        %8075 = vmatpush.msra.mxu0 %v5554
        %8076 = vmatpush.msra.mxu0 %v5553
        %8077 = vmatpush.msra.mxu0 %v5552
        %8078 = vmatpush.msra.mxu0 %v5551
        %8079 = vmatmul.f32.gmra.mxu0 %v6895
        %v8080 = vpop.f32.mrf.mxu0
        %v8081 = vadd.f32 %v8061, %v8080
        %8082 = vdwg.mxu0
        %8083 = vmatpush.msra.mxu0 %v5582
        %8084 = vmatpush.msra.mxu0 %v5581
        %8085 = vmatpush.msra.mxu0 %v5580
        %8086 = vmatpush.msra.mxu0 %v5579
        %8087 = vmatpush.msra.mxu0 %v5578
        %8088 = vmatpush.msra.mxu0 %v5577
        %8089 = vmatpush.msra.mxu0 %v5576
        %8090 = vmatpush.msra.mxu0 %v5575
        %8091 = vmatpush.msra.mxu0 %v5574
        %8092 = vmatpush.msra.mxu0 %v5573
        %8093 = vmatpush.msra.mxu0 %v5572
        %8094 = vmatpush.msra.mxu0 %v5571
        %8095 = vmatpush.msra.mxu0 %v5570
        %8096 = vmatpush.msra.mxu0 %v5569
        %8097 = vmatpush.msra.mxu0 %v5568
        %8098 = vmatpush.msra.mxu0 %v5567
        %8099 = vmatmul.f32.gmra.mxu0 %v6896
        %v8100 = vpop.f32.mrf.mxu0
        %v8101 = vadd.f32 %v8081, %v8100
        %8102 = vdwg.mxu0
        %8103 = vmatpush.msra.mxu0 %v5598
        %8104 = vmatpush.msra.mxu0 %v5597
        %8105 = vmatpush.msra.mxu0 %v5596
        %8106 = vmatpush.msra.mxu0 %v5595
        %8107 = vmatpush.msra.mxu0 %v5594
        %8108 = vmatpush.msra.mxu0 %v5593
        %8109 = vmatpush.msra.mxu0 %v5592
        %8110 = vmatpush.msra.mxu0 %v5591
        %8111 = vmatpush.msra.mxu0 %v5590
        %8112 = vmatpush.msra.mxu0 %v5589
        %8113 = vmatpush.msra.mxu0 %v5588
        %8114 = vmatpush.msra.mxu0 %v5587
        %8115 = vmatpush.msra.mxu0 %v5586
        %8116 = vmatpush.msra.mxu0 %v5585
        %8117 = vmatpush.msra.mxu0 %v5584
        %8118 = vmatpush.msra.mxu0 %v5583
        %8119 = vmatmul.f32.gmra.mxu0 %v6897
        %v8120 = vpop.f32.mrf.mxu0
        %v8121 = vadd.f32 %v8101, %v8120
        %8122 = vdwg.mxu0
        %8123 = vmatpush.msra.mxu0 %v5614
        %8124 = vmatpush.msra.mxu0 %v5613
        %8125 = vmatpush.msra.mxu0 %v5612
        %8126 = vmatpush.msra.mxu0 %v5611
        %8127 = vmatpush.msra.mxu0 %v5610
        %8128 = vmatpush.msra.mxu0 %v5609
        %8129 = vmatpush.msra.mxu0 %v5608
        %8130 = vmatpush.msra.mxu0 %v5607
        %8131 = vmatpush.msra.mxu0 %v5606
        %8132 = vmatpush.msra.mxu0 %v5605
        %8133 = vmatpush.msra.mxu0 %v5604
        %8134 = vmatpush.msra.mxu0 %v5603
        %8135 = vmatpush.msra.mxu0 %v5602
        %8136 = vmatpush.msra.mxu0 %v5601
        %8137 = vmatpush.msra.mxu0 %v5600
        %8138 = vmatpush.msra.mxu0 %v5599
        %8139 = vmatmul.f32.gmra.mxu0 %v6898
        %v8140 = vpop.f32.mrf.mxu0
        %v8141 = vadd.f32 %v8121, %v8140
        %8142 = vdwg.mxu0
        %8143 = vmatpush.msra.mxu0 %v5630
        %8144 = vmatpush.msra.mxu0 %v5629
        %8145 = vmatpush.msra.mxu0 %v5628
        %8146 = vmatpush.msra.mxu0 %v5627
        %8147 = vmatpush.msra.mxu0 %v5626
        %8148 = vmatpush.msra.mxu0 %v5625
        %8149 = vmatpush.msra.mxu0 %v5624
        %8150 = vmatpush.msra.mxu0 %v5623
        %8151 = vmatpush.msra.mxu0 %v5622
        %8152 = vmatpush.msra.mxu0 %v5621
        %8153 = vmatpush.msra.mxu0 %v5620
        %8154 = vmatpush.msra.mxu0 %v5619
        %8155 = vmatpush.msra.mxu0 %v5618
        %8156 = vmatpush.msra.mxu0 %v5617
        %8157 = vmatpush.msra.mxu0 %v5616
        %8158 = vmatpush.msra.mxu0 %v5615
        %8159 = vmatmul.f32.gmra.mxu0 %v6899
        %v8160 = vpop.f32.mrf.mxu0
        %v8161 = vadd.f32 %v8141, %v8160
        %8162 = vdwg.mxu0
        %8163 = vmatpush.msra.mxu0 %v5646
        %8164 = vmatpush.msra.mxu0 %v5645
        %8165 = vmatpush.msra.mxu0 %v5644
        %8166 = vmatpush.msra.mxu0 %v5643
        %8167 = vmatpush.msra.mxu0 %v5642
        %8168 = vmatpush.msra.mxu0 %v5641
        %8169 = vmatpush.msra.mxu0 %v5640
        %8170 = vmatpush.msra.mxu0 %v5639
        %8171 = vmatpush.msra.mxu0 %v5638
        %8172 = vmatpush.msra.mxu0 %v5637
        %8173 = vmatpush.msra.mxu0 %v5636
        %8174 = vmatpush.msra.mxu0 %v5635
        %8175 = vmatpush.msra.mxu0 %v5634
        %8176 = vmatpush.msra.mxu0 %v5633
        %8177 = vmatpush.msra.mxu0 %v5632
        %8178 = vmatpush.msra.mxu0 %v5631
        %8179 = vmatmul.f32.gmra.mxu0 %v6900
        %v8180 = vpop.f32.mrf.mxu0
        %v8181 = vadd.f32 %v8161, %v8180
        %8182 = vdwg.mxu0
        %8183 = vmatpush.msra.mxu0 %v5662
        %8184 = vmatpush.msra.mxu0 %v5661
        %8185 = vmatpush.msra.mxu0 %v5660
        %8186 = vmatpush.msra.mxu0 %v5659
        %8187 = vmatpush.msra.mxu0 %v5658
        %8188 = vmatpush.msra.mxu0 %v5657
        %8189 = vmatpush.msra.mxu0 %v5656
        %8190 = vmatpush.msra.mxu0 %v5655
        %8191 = vmatpush.msra.mxu0 %v5654
        %8192 = vmatpush.msra.mxu0 %v5653
        %8193 = vmatpush.msra.mxu0 %v5652
        %8194 = vmatpush.msra.mxu0 %v5651
        %8195 = vmatpush.msra.mxu0 %v5650
        %8196 = vmatpush.msra.mxu0 %v5649
        %8197 = vmatpush.msra.mxu0 %v5648
        %8198 = vmatpush.msra.mxu0 %v5647
        %8199 = vmatmul.f32.gmra.mxu0 %v6901
        %v8200 = vpop.f32.mrf.mxu0
        %v8201 = vadd.f32 %v8181, %v8200
        %8202 = vdwg.mxu0
        %8203 = vmatpush.msra.mxu0 %v5678
        %8204 = vmatpush.msra.mxu0 %v5677
        %8205 = vmatpush.msra.mxu0 %v5676
        %8206 = vmatpush.msra.mxu0 %v5675
        %8207 = vmatpush.msra.mxu0 %v5674
        %8208 = vmatpush.msra.mxu0 %v5673
        %8209 = vmatpush.msra.mxu0 %v5672
        %8210 = vmatpush.msra.mxu0 %v5671
        %8211 = vmatpush.msra.mxu0 %v5670
        %8212 = vmatpush.msra.mxu0 %v5669
        %8213 = vmatpush.msra.mxu0 %v5668
        %8214 = vmatpush.msra.mxu0 %v5667
        %8215 = vmatpush.msra.mxu0 %v5666
        %8216 = vmatpush.msra.mxu0 %v5665
        %8217 = vmatpush.msra.mxu0 %v5664
        %8218 = vmatpush.msra.mxu0 %v5663
        %8219 = vmatmul.f32.gmra.mxu0 %v6902
        %v8220 = vpop.f32.mrf.mxu0
        %v8221 = vadd.f32 %v8201, %v8220
        %8222 = vdwg.mxu0
        %8223 = vmatpush.msra.mxu0 %v5694
        %8224 = vmatpush.msra.mxu0 %v5693
        %8225 = vmatpush.msra.mxu0 %v5692
        %8226 = vmatpush.msra.mxu0 %v5691
        %8227 = vmatpush.msra.mxu0 %v5690
        %8228 = vmatpush.msra.mxu0 %v5689
        %8229 = vmatpush.msra.mxu0 %v5688
        %8230 = vmatpush.msra.mxu0 %v5687
        %8231 = vmatpush.msra.mxu0 %v5686
        %8232 = vmatpush.msra.mxu0 %v5685
        %8233 = vmatpush.msra.mxu0 %v5684
        %8234 = vmatpush.msra.mxu0 %v5683
        %8235 = vmatpush.msra.mxu0 %v5682
        %8236 = vmatpush.msra.mxu0 %v5681
        %8237 = vmatpush.msra.mxu0 %v5680
        %8238 = vmatpush.msra.mxu0 %v5679
        %8239 = vmatmul.f32.gmra.mxu0 %v6903
        %v8240 = vpop.f32.mrf.mxu0
        %v8241 = vadd.f32 %v8221, %v8240
        %8242 = vdwg.mxu0
        %8243 = vmatpush.msra.mxu0 %v5710
        %8244 = vmatpush.msra.mxu0 %v5709
        %8245 = vmatpush.msra.mxu0 %v5708
        %8246 = vmatpush.msra.mxu0 %v5707
        %8247 = vmatpush.msra.mxu0 %v5706
        %8248 = vmatpush.msra.mxu0 %v5705
        %8249 = vmatpush.msra.mxu0 %v5704
        %8250 = vmatpush.msra.mxu0 %v5703
        %8251 = vmatpush.msra.mxu0 %v5702
        %8252 = vmatpush.msra.mxu0 %v5701
        %8253 = vmatpush.msra.mxu0 %v5700
        %8254 = vmatpush.msra.mxu0 %v5699
        %8255 = vmatpush.msra.mxu0 %v5698
        %8256 = vmatpush.msra.mxu0 %v5697
        %8257 = vmatpush.msra.mxu0 %v5696
        %8258 = vmatpush.msra.mxu0 %v5695
        %8259 = vmatmul.f32.gmra.mxu0 %v6904
        %v8260 = vpop.f32.mrf.mxu0
        %v8261 = vadd.f32 %v8241, %v8260
        %8262 = vdwg.mxu0
        %8263 = vmatpush.msra.mxu0 %v5726
        %8264 = vmatpush.msra.mxu0 %v5725
        %8265 = vmatpush.msra.mxu0 %v5724
        %8266 = vmatpush.msra.mxu0 %v5723
        %8267 = vmatpush.msra.mxu0 %v5722
        %8268 = vmatpush.msra.mxu0 %v5721
        %8269 = vmatpush.msra.mxu0 %v5720
        %8270 = vmatpush.msra.mxu0 %v5719
        %8271 = vmatpush.msra.mxu0 %v5718
        %8272 = vmatpush.msra.mxu0 %v5717
        %8273 = vmatpush.msra.mxu0 %v5716
        %8274 = vmatpush.msra.mxu0 %v5715
        %8275 = vmatpush.msra.mxu0 %v5714
        %8276 = vmatpush.msra.mxu0 %v5713
        %8277 = vmatpush.msra.mxu0 %v5712
        %8278 = vmatpush.msra.mxu0 %v5711
        %8279 = vmatmul.f32.gmra.mxu0 %v6905
        %v8280 = vpop.f32.mrf.mxu0
        %v8281 = vadd.f32 %v8261, %v8280
        %8282 = vdwg.mxu0
        %8283 = vmatpush.msra.mxu0 %v5742
        %8284 = vmatpush.msra.mxu0 %v5741
        %8285 = vmatpush.msra.mxu0 %v5740
        %8286 = vmatpush.msra.mxu0 %v5739
        %8287 = vmatpush.msra.mxu0 %v5738
        %8288 = vmatpush.msra.mxu0 %v5737
        %8289 = vmatpush.msra.mxu0 %v5736
        %8290 = vmatpush.msra.mxu0 %v5735
        %8291 = vmatpush.msra.mxu0 %v5734
        %8292 = vmatpush.msra.mxu0 %v5733
        %8293 = vmatpush.msra.mxu0 %v5732
        %8294 = vmatpush.msra.mxu0 %v5731
        %8295 = vmatpush.msra.mxu0 %v5730
        %8296 = vmatpush.msra.mxu0 %v5729
        %8297 = vmatpush.msra.mxu0 %v5728
        %8298 = vmatpush.msra.mxu0 %v5727
        %8299 = vmatmul.f32.gmra.mxu0 %v6906
        %v8300 = vpop.f32.mrf.mxu0
        %v8301 = vadd.f32 %v8281, %v8300
        %8302 = vdwg.mxu0
        %8303 = vmatpush.msra.mxu0 %v5758
        %8304 = vmatpush.msra.mxu0 %v5757
        %8305 = vmatpush.msra.mxu0 %v5756
        %8306 = vmatpush.msra.mxu0 %v5755
        %8307 = vmatpush.msra.mxu0 %v5754
        %8308 = vmatpush.msra.mxu0 %v5753
        %8309 = vmatpush.msra.mxu0 %v5752
        %8310 = vmatpush.msra.mxu0 %v5751
        %8311 = vmatpush.msra.mxu0 %v5750
        %8312 = vmatpush.msra.mxu0 %v5749
        %8313 = vmatpush.msra.mxu0 %v5748
        %8314 = vmatpush.msra.mxu0 %v5747
        %8315 = vmatpush.msra.mxu0 %v5746
        %8316 = vmatpush.msra.mxu0 %v5745
        %8317 = vmatpush.msra.mxu0 %v5744
        %8318 = vmatpush.msra.mxu0 %v5743
        %8319 = vmatmul.f32.gmra.mxu0 %v6907
        %v8320 = vpop.f32.mrf.mxu0
        %v8321 = vadd.f32 %v8301, %v8320
        %8322 = vdwg.mxu0
        %8323 = vmatpush.msra.mxu0 %v5774
        %8324 = vmatpush.msra.mxu0 %v5773
        %8325 = vmatpush.msra.mxu0 %v5772
        %8326 = vmatpush.msra.mxu0 %v5771
        %8327 = vmatpush.msra.mxu0 %v5770
        %8328 = vmatpush.msra.mxu0 %v5769
        %8329 = vmatpush.msra.mxu0 %v5768
        %8330 = vmatpush.msra.mxu0 %v5767
        %8331 = vmatpush.msra.mxu0 %v5766
        %8332 = vmatpush.msra.mxu0 %v5765
        %8333 = vmatpush.msra.mxu0 %v5764
        %8334 = vmatpush.msra.mxu0 %v5763
        %8335 = vmatpush.msra.mxu0 %v5762
        %8336 = vmatpush.msra.mxu0 %v5761
        %8337 = vmatpush.msra.mxu0 %v5760
        %8338 = vmatpush.msra.mxu0 %v5759
        %8339 = vmatmul.f32.gmra.mxu0 %v6908
        %v8340 = vpop.f32.mrf.mxu0
        %v8341 = vadd.f32 %v8321, %v8340
        %8342 = vdwg.mxu0
        %8343 = vmatpush.msra.mxu0 %v5790
        %8344 = vmatpush.msra.mxu0 %v5789
        %8345 = vmatpush.msra.mxu0 %v5788
        %8346 = vmatpush.msra.mxu0 %v5787
        %8347 = vmatpush.msra.mxu0 %v5786
        %8348 = vmatpush.msra.mxu0 %v5785
        %8349 = vmatpush.msra.mxu0 %v5784
        %8350 = vmatpush.msra.mxu0 %v5783
        %8351 = vmatpush.msra.mxu0 %v5782
        %8352 = vmatpush.msra.mxu0 %v5781
        %8353 = vmatpush.msra.mxu0 %v5780
        %8354 = vmatpush.msra.mxu0 %v5779
        %8355 = vmatpush.msra.mxu0 %v5778
        %8356 = vmatpush.msra.mxu0 %v5777
        %8357 = vmatpush.msra.mxu0 %v5776
        %8358 = vmatpush.msra.mxu0 %v5775
        %8359 = vmatmul.f32.gmra.mxu0 %v6909
        %v8360 = vpop.f32.mrf.mxu0
        %v8361 = vadd.f32 %v8341, %v8360
        %8362 = vdwg.mxu0
        %8363 = vmatpush.msra.mxu0 %v5806
        %8364 = vmatpush.msra.mxu0 %v5805
        %8365 = vmatpush.msra.mxu0 %v5804
        %8366 = vmatpush.msra.mxu0 %v5803
        %8367 = vmatpush.msra.mxu0 %v5802
        %8368 = vmatpush.msra.mxu0 %v5801
        %8369 = vmatpush.msra.mxu0 %v5800
        %8370 = vmatpush.msra.mxu0 %v5799
        %8371 = vmatpush.msra.mxu0 %v5798
        %8372 = vmatpush.msra.mxu0 %v5797
        %8373 = vmatpush.msra.mxu0 %v5796
        %8374 = vmatpush.msra.mxu0 %v5795
        %8375 = vmatpush.msra.mxu0 %v5794
        %8376 = vmatpush.msra.mxu0 %v5793
        %8377 = vmatpush.msra.mxu0 %v5792
        %8378 = vmatpush.msra.mxu0 %v5791
        %8379 = vmatmul.f32.gmra.mxu0 %v6910
        %v8380 = vpop.f32.mrf.mxu0
        %v8381 = vadd.f32 %v8361, %v8380
        %8382 = vdwg.mxu0
        %8383 = vmatpush.msra.mxu0 %v5822
        %8384 = vmatpush.msra.mxu0 %v5821
        %8385 = vmatpush.msra.mxu0 %v5820
        %8386 = vmatpush.msra.mxu0 %v5819
        %8387 = vmatpush.msra.mxu0 %v5818
        %8388 = vmatpush.msra.mxu0 %v5817
        %8389 = vmatpush.msra.mxu0 %v5816
        %8390 = vmatpush.msra.mxu0 %v5815
        %8391 = vmatpush.msra.mxu0 %v5814
        %8392 = vmatpush.msra.mxu0 %v5813
        %8393 = vmatpush.msra.mxu0 %v5812
        %8394 = vmatpush.msra.mxu0 %v5811
        %8395 = vmatpush.msra.mxu0 %v5810
        %8396 = vmatpush.msra.mxu0 %v5809
        %8397 = vmatpush.msra.mxu0 %v5808
        %8398 = vmatpush.msra.mxu0 %v5807
        %8399 = vmatmul.f32.gmra.mxu0 %v6911
        %v8400 = vpop.f32.mrf.mxu0
        %v8401 = vadd.f32 %v8381, %v8400
        %8402 = vdwg.mxu0
        %8403 = vmatpush.msra.mxu0 %v5838
        %8404 = vmatpush.msra.mxu0 %v5837
        %8405 = vmatpush.msra.mxu0 %v5836
        %8406 = vmatpush.msra.mxu0 %v5835
        %8407 = vmatpush.msra.mxu0 %v5834
        %8408 = vmatpush.msra.mxu0 %v5833
        %8409 = vmatpush.msra.mxu0 %v5832
        %8410 = vmatpush.msra.mxu0 %v5831
        %8411 = vmatpush.msra.mxu0 %v5830
        %8412 = vmatpush.msra.mxu0 %v5829
        %8413 = vmatpush.msra.mxu0 %v5828
        %8414 = vmatpush.msra.mxu0 %v5827
        %8415 = vmatpush.msra.mxu0 %v5826
        %8416 = vmatpush.msra.mxu0 %v5825
        %8417 = vmatpush.msra.mxu0 %v5824
        %8418 = vmatpush.msra.mxu0 %v5823
        %8419 = vmatmul.f32.gmra.mxu0 %v6912
        %v8420 = vpop.f32.mrf.mxu0
        %v8421 = vadd.f32 %v8401, %v8420
        %8422 = vdwg.mxu0
        %8423 = vmatpush.msra.mxu0 %v5854
        %8424 = vmatpush.msra.mxu0 %v5853
        %8425 = vmatpush.msra.mxu0 %v5852
        %8426 = vmatpush.msra.mxu0 %v5851
        %8427 = vmatpush.msra.mxu0 %v5850
        %8428 = vmatpush.msra.mxu0 %v5849
        %8429 = vmatpush.msra.mxu0 %v5848
        %8430 = vmatpush.msra.mxu0 %v5847
        %8431 = vmatpush.msra.mxu0 %v5846
        %8432 = vmatpush.msra.mxu0 %v5845
        %8433 = vmatpush.msra.mxu0 %v5844
        %8434 = vmatpush.msra.mxu0 %v5843
        %8435 = vmatpush.msra.mxu0 %v5842
        %8436 = vmatpush.msra.mxu0 %v5841
        %8437 = vmatpush.msra.mxu0 %v5840
        %8438 = vmatpush.msra.mxu0 %v5839
        %8439 = vmatmul.f32.gmra.mxu0 %v6913
        %v8440 = vpop.f32.mrf.mxu0
        %v8441 = vadd.f32 %v8421, %v8440
        %8442 = vdwg.mxu0
        %8443 = vmatpush.msra.mxu0 %v5870
        %8444 = vmatpush.msra.mxu0 %v5869
        %8445 = vmatpush.msra.mxu0 %v5868
        %8446 = vmatpush.msra.mxu0 %v5867
        %8447 = vmatpush.msra.mxu0 %v5866
        %8448 = vmatpush.msra.mxu0 %v5865
        %8449 = vmatpush.msra.mxu0 %v5864
        %8450 = vmatpush.msra.mxu0 %v5863
        %8451 = vmatpush.msra.mxu0 %v5862
        %8452 = vmatpush.msra.mxu0 %v5861
        %8453 = vmatpush.msra.mxu0 %v5860
        %8454 = vmatpush.msra.mxu0 %v5859
        %8455 = vmatpush.msra.mxu0 %v5858
        %8456 = vmatpush.msra.mxu0 %v5857
        %8457 = vmatpush.msra.mxu0 %v5856
        %8458 = vmatpush.msra.mxu0 %v5855
        %8459 = vmatmul.f32.gmra.mxu0 %v6914
        %v8460 = vpop.f32.mrf.mxu0
        %v8461 = vadd.f32 %v8441, %v8460
        %8462 = vdwg.mxu0
        %8463 = vmatpush.msra.mxu0 %v5886
        %8464 = vmatpush.msra.mxu0 %v5885
        %8465 = vmatpush.msra.mxu0 %v5884
        %8466 = vmatpush.msra.mxu0 %v5883
        %8467 = vmatpush.msra.mxu0 %v5882
        %8468 = vmatpush.msra.mxu0 %v5881
        %8469 = vmatpush.msra.mxu0 %v5880
        %8470 = vmatpush.msra.mxu0 %v5879
        %8471 = vmatpush.msra.mxu0 %v5878
        %8472 = vmatpush.msra.mxu0 %v5877
        %8473 = vmatpush.msra.mxu0 %v5876
        %8474 = vmatpush.msra.mxu0 %v5875
        %8475 = vmatpush.msra.mxu0 %v5874
        %8476 = vmatpush.msra.mxu0 %v5873
        %8477 = vmatpush.msra.mxu0 %v5872
        %8478 = vmatpush.msra.mxu0 %v5871
        %8479 = vmatmul.f32.gmra.mxu0 %v6915
        %v8480 = vpop.f32.mrf.mxu0
        %v8481 = vadd.f32 %v8461, %v8480
        %8482 = vdwg.mxu0
        %8483 = vmatpush.msra.mxu0 %v5902
        %8484 = vmatpush.msra.mxu0 %v5901
        %8485 = vmatpush.msra.mxu0 %v5900
        %8486 = vmatpush.msra.mxu0 %v5899
        %8487 = vmatpush.msra.mxu0 %v5898
        %8488 = vmatpush.msra.mxu0 %v5897
        %8489 = vmatpush.msra.mxu0 %v5896
        %8490 = vmatpush.msra.mxu0 %v5895
        %8491 = vmatpush.msra.mxu0 %v5894
        %8492 = vmatpush.msra.mxu0 %v5893
        %8493 = vmatpush.msra.mxu0 %v5892
        %8494 = vmatpush.msra.mxu0 %v5891
        %8495 = vmatpush.msra.mxu0 %v5890
        %8496 = vmatpush.msra.mxu0 %v5889
        %8497 = vmatpush.msra.mxu0 %v5888
        %8498 = vmatpush.msra.mxu0 %v5887
        %8499 = vmatmul.f32.gmra.mxu0 %v6916
        %v8500 = vpop.f32.mrf.mxu0
        %v8501 = vadd.f32 %v8481, %v8500
        %8502 = vdwg.mxu0
        %8503 = vmatpush.msra.mxu0 %v5918
        %8504 = vmatpush.msra.mxu0 %v5917
        %8505 = vmatpush.msra.mxu0 %v5916
        %8506 = vmatpush.msra.mxu0 %v5915
        %8507 = vmatpush.msra.mxu0 %v5914
        %8508 = vmatpush.msra.mxu0 %v5913
        %8509 = vmatpush.msra.mxu0 %v5912
        %8510 = vmatpush.msra.mxu0 %v5911
        %8511 = vmatpush.msra.mxu0 %v5910
        %8512 = vmatpush.msra.mxu0 %v5909
        %8513 = vmatpush.msra.mxu0 %v5908
        %8514 = vmatpush.msra.mxu0 %v5907
        %8515 = vmatpush.msra.mxu0 %v5906
        %8516 = vmatpush.msra.mxu0 %v5905
        %8517 = vmatpush.msra.mxu0 %v5904
        %8518 = vmatpush.msra.mxu0 %v5903
        %8519 = vmatmul.f32.gmra.mxu0 %v6917
        %v8520 = vpop.f32.mrf.mxu0
        %v8521 = vadd.f32 %v8501, %v8520
        %8522 = vdwg.mxu0
        %8523 = vmatpush.msra.mxu0 %v5934
        %8524 = vmatpush.msra.mxu0 %v5933
        %8525 = vmatpush.msra.mxu0 %v5932
        %8526 = vmatpush.msra.mxu0 %v5931
        %8527 = vmatpush.msra.mxu0 %v5930
        %8528 = vmatpush.msra.mxu0 %v5929
        %8529 = vmatpush.msra.mxu0 %v5928
        %8530 = vmatpush.msra.mxu0 %v5927
        %8531 = vmatpush.msra.mxu0 %v5926
        %8532 = vmatpush.msra.mxu0 %v5925
        %8533 = vmatpush.msra.mxu0 %v5924
        %8534 = vmatpush.msra.mxu0 %v5923
        %8535 = vmatpush.msra.mxu0 %v5922
        %8536 = vmatpush.msra.mxu0 %v5921
        %8537 = vmatpush.msra.mxu0 %v5920
        %8538 = vmatpush.msra.mxu0 %v5919
        %8539 = vmatmul.f32.gmra.mxu0 %v6918
        %v8540 = vpop.f32.mrf.mxu0
        %v8541 = vadd.f32 %v8521, %v8540
        %8542 = vdwg.mxu0
        %8543 = vmatpush.msra.mxu0 %v5950
        %8544 = vmatpush.msra.mxu0 %v5949
        %8545 = vmatpush.msra.mxu0 %v5948
        %8546 = vmatpush.msra.mxu0 %v5947
        %8547 = vmatpush.msra.mxu0 %v5946
        %8548 = vmatpush.msra.mxu0 %v5945
        %8549 = vmatpush.msra.mxu0 %v5944
        %8550 = vmatpush.msra.mxu0 %v5943
        %8551 = vmatpush.msra.mxu0 %v5942
        %8552 = vmatpush.msra.mxu0 %v5941
        %8553 = vmatpush.msra.mxu0 %v5940
        %8554 = vmatpush.msra.mxu0 %v5939
        %8555 = vmatpush.msra.mxu0 %v5938
        %8556 = vmatpush.msra.mxu0 %v5937
        %8557 = vmatpush.msra.mxu0 %v5936
        %8558 = vmatpush.msra.mxu0 %v5935
        %8559 = vmatmul.f32.gmra.mxu0 %v6919
        %v8560 = vpop.f32.mrf.mxu0
        %v8561 = vadd.f32 %v8541, %v8560
        %8562 = vdwg.mxu0
        %8563 = vmatpush.msra.mxu0 %v5966
        %8564 = vmatpush.msra.mxu0 %v5965
        %8565 = vmatpush.msra.mxu0 %v5964
        %8566 = vmatpush.msra.mxu0 %v5963
        %8567 = vmatpush.msra.mxu0 %v5962
        %8568 = vmatpush.msra.mxu0 %v5961
        %8569 = vmatpush.msra.mxu0 %v5960
        %8570 = vmatpush.msra.mxu0 %v5959
        %8571 = vmatpush.msra.mxu0 %v5958
        %8572 = vmatpush.msra.mxu0 %v5957
        %8573 = vmatpush.msra.mxu0 %v5956
        %8574 = vmatpush.msra.mxu0 %v5955
        %8575 = vmatpush.msra.mxu0 %v5954
        %8576 = vmatpush.msra.mxu0 %v5953
        %8577 = vmatpush.msra.mxu0 %v5952
        %8578 = vmatpush.msra.mxu0 %v5951
        %8579 = vmatmul.f32.gmra.mxu0 %v6920
        %v8580 = vpop.f32.mrf.mxu0
        %v8581 = vadd.f32 %v8561, %v8580
        %8582 = vdwg.mxu0
        %8583 = vmatpush.msra.mxu0 %v5982
        %8584 = vmatpush.msra.mxu0 %v5981
        %8585 = vmatpush.msra.mxu0 %v5980
        %8586 = vmatpush.msra.mxu0 %v5979
        %8587 = vmatpush.msra.mxu0 %v5978
        %8588 = vmatpush.msra.mxu0 %v5977
        %8589 = vmatpush.msra.mxu0 %v5976
        %8590 = vmatpush.msra.mxu0 %v5975
        %8591 = vmatpush.msra.mxu0 %v5974
        %8592 = vmatpush.msra.mxu0 %v5973
        %8593 = vmatpush.msra.mxu0 %v5972
        %8594 = vmatpush.msra.mxu0 %v5971
        %8595 = vmatpush.msra.mxu0 %v5970
        %8596 = vmatpush.msra.mxu0 %v5969
        %8597 = vmatpush.msra.mxu0 %v5968
        %8598 = vmatpush.msra.mxu0 %v5967
        %8599 = vmatmul.f32.gmra.mxu0 %v6921
        %v8600 = vpop.f32.mrf.mxu0
        %v8601 = vadd.f32 %v8581, %v8600
        %8602 = vdwg.mxu0
        %8603 = vmatpush.msra.mxu0 %v5998
        %8604 = vmatpush.msra.mxu0 %v5997
        %8605 = vmatpush.msra.mxu0 %v5996
        %8606 = vmatpush.msra.mxu0 %v5995
        %8607 = vmatpush.msra.mxu0 %v5994
        %8608 = vmatpush.msra.mxu0 %v5993
        %8609 = vmatpush.msra.mxu0 %v5992
        %8610 = vmatpush.msra.mxu0 %v5991
        %8611 = vmatpush.msra.mxu0 %v5990
        %8612 = vmatpush.msra.mxu0 %v5989
        %8613 = vmatpush.msra.mxu0 %v5988
        %8614 = vmatpush.msra.mxu0 %v5987
        %8615 = vmatpush.msra.mxu0 %v5986
        %8616 = vmatpush.msra.mxu0 %v5985
        %8617 = vmatpush.msra.mxu0 %v5984
        %8618 = vmatpush.msra.mxu0 %v5983
        %8619 = vmatmul.f32.gmra.mxu0 %v6922
        %v8620 = vpop.f32.mrf.mxu0
        %v8621 = vadd.f32 %v8601, %v8620
        %8622 = vdwg.mxu0
        %8623 = vmatpush.msra.mxu0 %v6014
        %8624 = vmatpush.msra.mxu0 %v6013
        %8625 = vmatpush.msra.mxu0 %v6012
        %8626 = vmatpush.msra.mxu0 %v6011
        %8627 = vmatpush.msra.mxu0 %v6010
        %8628 = vmatpush.msra.mxu0 %v6009
        %8629 = vmatpush.msra.mxu0 %v6008
        %8630 = vmatpush.msra.mxu0 %v6007
        %8631 = vmatpush.msra.mxu0 %v6006
        %8632 = vmatpush.msra.mxu0 %v6005
        %8633 = vmatpush.msra.mxu0 %v6004
        %8634 = vmatpush.msra.mxu0 %v6003
        %8635 = vmatpush.msra.mxu0 %v6002
        %8636 = vmatpush.msra.mxu0 %v6001
        %8637 = vmatpush.msra.mxu0 %v6000
        %8638 = vmatpush.msra.mxu0 %v5999
        %8639 = vmatmul.f32.gmra.mxu0 %v6923
        %v8640 = vpop.f32.mrf.mxu0
        %v8641 = vadd.f32 %v8621, %v8640
        %8642 = vdwg.mxu0
        %8643 = vmatpush.msra.mxu0 %v6030
        %8644 = vmatpush.msra.mxu0 %v6029
        %8645 = vmatpush.msra.mxu0 %v6028
        %8646 = vmatpush.msra.mxu0 %v6027
        %8647 = vmatpush.msra.mxu0 %v6026
        %8648 = vmatpush.msra.mxu0 %v6025
        %8649 = vmatpush.msra.mxu0 %v6024
        %8650 = vmatpush.msra.mxu0 %v6023
        %8651 = vmatpush.msra.mxu0 %v6022
        %8652 = vmatpush.msra.mxu0 %v6021
        %8653 = vmatpush.msra.mxu0 %v6020
        %8654 = vmatpush.msra.mxu0 %v6019
        %8655 = vmatpush.msra.mxu0 %v6018
        %8656 = vmatpush.msra.mxu0 %v6017
        %8657 = vmatpush.msra.mxu0 %v6016
        %8658 = vmatpush.msra.mxu0 %v6015
        %8659 = vmatmul.f32.gmra.mxu0 %v6924
        %v8660 = vpop.f32.mrf.mxu0
        %v8661 = vadd.f32 %v8641, %v8660
        %8662 = vdwg.mxu0
        %8663 = vmatpush.msra.mxu0 %v6046
        %8664 = vmatpush.msra.mxu0 %v6045
        %8665 = vmatpush.msra.mxu0 %v6044
        %8666 = vmatpush.msra.mxu0 %v6043
        %8667 = vmatpush.msra.mxu0 %v6042
        %8668 = vmatpush.msra.mxu0 %v6041
        %8669 = vmatpush.msra.mxu0 %v6040
        %8670 = vmatpush.msra.mxu0 %v6039
        %8671 = vmatpush.msra.mxu0 %v6038
        %8672 = vmatpush.msra.mxu0 %v6037
        %8673 = vmatpush.msra.mxu0 %v6036
        %8674 = vmatpush.msra.mxu0 %v6035
        %8675 = vmatpush.msra.mxu0 %v6034
        %8676 = vmatpush.msra.mxu0 %v6033
        %8677 = vmatpush.msra.mxu0 %v6032
        %8678 = vmatpush.msra.mxu0 %v6031
        %8679 = vmatmul.f32.gmra.mxu0 %v6925
        %v8680 = vpop.f32.mrf.mxu0
        %v8681 = vadd.f32 %v8661, %v8680
        %8682 = vdwg.mxu0
        %8683 = vmatpush.msra.mxu0 %v6062
        %8684 = vmatpush.msra.mxu0 %v6061
        %8685 = vmatpush.msra.mxu0 %v6060
        %8686 = vmatpush.msra.mxu0 %v6059
        %8687 = vmatpush.msra.mxu0 %v6058
        %8688 = vmatpush.msra.mxu0 %v6057
        %8689 = vmatpush.msra.mxu0 %v6056
        %8690 = vmatpush.msra.mxu0 %v6055
        %8691 = vmatpush.msra.mxu0 %v6054
        %8692 = vmatpush.msra.mxu0 %v6053
        %8693 = vmatpush.msra.mxu0 %v6052
        %8694 = vmatpush.msra.mxu0 %v6051
        %8695 = vmatpush.msra.mxu0 %v6050
        %8696 = vmatpush.msra.mxu0 %v6049
        %8697 = vmatpush.msra.mxu0 %v6048
        %8698 = vmatpush.msra.mxu0 %v6047
        %8699 = vmatmul.f32.gmra.mxu0 %v6926
        %v8700 = vpop.f32.mrf.mxu0
        %v8701 = vadd.f32 %v8681, %v8700
        %8702 = vdwg.mxu0
        %8703 = vmatpush.msra.mxu0 %v6078
        %8704 = vmatpush.msra.mxu0 %v6077
        %8705 = vmatpush.msra.mxu0 %v6076
        %8706 = vmatpush.msra.mxu0 %v6075
        %8707 = vmatpush.msra.mxu0 %v6074
        %8708 = vmatpush.msra.mxu0 %v6073
        %8709 = vmatpush.msra.mxu0 %v6072
        %8710 = vmatpush.msra.mxu0 %v6071
        %8711 = vmatpush.msra.mxu0 %v6070
        %8712 = vmatpush.msra.mxu0 %v6069
        %8713 = vmatpush.msra.mxu0 %v6068
        %8714 = vmatpush.msra.mxu0 %v6067
        %8715 = vmatpush.msra.mxu0 %v6066
        %8716 = vmatpush.msra.mxu0 %v6065
        %8717 = vmatpush.msra.mxu0 %v6064
        %8718 = vmatpush.msra.mxu0 %v6063
        %8719 = vmatmul.f32.gmra.mxu0 %v6927
        %v8720 = vpop.f32.mrf.mxu0
        %v8721 = vadd.f32 %v8701, %v8720
        %8722 = vdwg.mxu0
        %8723 = vmatpush.msra.mxu0 %v6094
        %8724 = vmatpush.msra.mxu0 %v6093
        %8725 = vmatpush.msra.mxu0 %v6092
        %8726 = vmatpush.msra.mxu0 %v6091
        %8727 = vmatpush.msra.mxu0 %v6090
        %8728 = vmatpush.msra.mxu0 %v6089
        %8729 = vmatpush.msra.mxu0 %v6088
        %8730 = vmatpush.msra.mxu0 %v6087
        %8731 = vmatpush.msra.mxu0 %v6086
        %8732 = vmatpush.msra.mxu0 %v6085
        %8733 = vmatpush.msra.mxu0 %v6084
        %8734 = vmatpush.msra.mxu0 %v6083
        %8735 = vmatpush.msra.mxu0 %v6082
        %8736 = vmatpush.msra.mxu0 %v6081
        %8737 = vmatpush.msra.mxu0 %v6080
        %8738 = vmatpush.msra.mxu0 %v6079
        %8739 = vmatmul.f32.gmra.mxu0 %v6928
        %v8740 = vpop.f32.mrf.mxu0
        %v8741 = vadd.f32 %v8721, %v8740
        %8742 = vdwg.mxu0
        %8743 = vmatpush.msra.mxu0 %v6110
        %8744 = vmatpush.msra.mxu0 %v6109
        %8745 = vmatpush.msra.mxu0 %v6108
        %8746 = vmatpush.msra.mxu0 %v6107
        %8747 = vmatpush.msra.mxu0 %v6106
        %8748 = vmatpush.msra.mxu0 %v6105
        %8749 = vmatpush.msra.mxu0 %v6104
        %8750 = vmatpush.msra.mxu0 %v6103
        %8751 = vmatpush.msra.mxu0 %v6102
        %8752 = vmatpush.msra.mxu0 %v6101
        %8753 = vmatpush.msra.mxu0 %v6100
        %8754 = vmatpush.msra.mxu0 %v6099
        %8755 = vmatpush.msra.mxu0 %v6098
        %8756 = vmatpush.msra.mxu0 %v6097
        %8757 = vmatpush.msra.mxu0 %v6096
        %8758 = vmatpush.msra.mxu0 %v6095
        %8759 = vmatmul.f32.gmra.mxu0 %v6929
        %v8760 = vpop.f32.mrf.mxu0
        %v8761 = vadd.f32 %v8741, %v8760
        %8762 = vdwg.mxu0
        %8763 = vmatpush.msra.mxu0 %v6126
        %8764 = vmatpush.msra.mxu0 %v6125
        %8765 = vmatpush.msra.mxu0 %v6124
        %8766 = vmatpush.msra.mxu0 %v6123
        %8767 = vmatpush.msra.mxu0 %v6122
        %8768 = vmatpush.msra.mxu0 %v6121
        %8769 = vmatpush.msra.mxu0 %v6120
        %8770 = vmatpush.msra.mxu0 %v6119
        %8771 = vmatpush.msra.mxu0 %v6118
        %8772 = vmatpush.msra.mxu0 %v6117
        %8773 = vmatpush.msra.mxu0 %v6116
        %8774 = vmatpush.msra.mxu0 %v6115
        %8775 = vmatpush.msra.mxu0 %v6114
        %8776 = vmatpush.msra.mxu0 %v6113
        %8777 = vmatpush.msra.mxu0 %v6112
        %8778 = vmatpush.msra.mxu0 %v6111
        %8779 = vmatmul.f32.gmra.mxu0 %v6930
        %v8780 = vpop.f32.mrf.mxu0
        %v8781 = vadd.f32 %v8761, %v8780
        %8782 = vdwg.mxu0
        %8783 = vmatpush.msra.mxu0 %v6142
        %8784 = vmatpush.msra.mxu0 %v6141
        %8785 = vmatpush.msra.mxu0 %v6140
        %8786 = vmatpush.msra.mxu0 %v6139
        %8787 = vmatpush.msra.mxu0 %v6138
        %8788 = vmatpush.msra.mxu0 %v6137
        %8789 = vmatpush.msra.mxu0 %v6136
        %8790 = vmatpush.msra.mxu0 %v6135
        %8791 = vmatpush.msra.mxu0 %v6134
        %8792 = vmatpush.msra.mxu0 %v6133
        %8793 = vmatpush.msra.mxu0 %v6132
        %8794 = vmatpush.msra.mxu0 %v6131
        %8795 = vmatpush.msra.mxu0 %v6130
        %8796 = vmatpush.msra.mxu0 %v6129
        %8797 = vmatpush.msra.mxu0 %v6128
        %8798 = vmatpush.msra.mxu0 %v6127
        %8799 = vmatmul.f32.gmra.mxu0 %v6931
        %v8800 = vpop.f32.mrf.mxu0
        %v8801 = vadd.f32 %v8781, %v8800
        %8802 = vdwg.mxu0
        %8803 = vmatpush.msra.mxu0 %v6158
        %8804 = vmatpush.msra.mxu0 %v6157
        %8805 = vmatpush.msra.mxu0 %v6156
        %8806 = vmatpush.msra.mxu0 %v6155
        %8807 = vmatpush.msra.mxu0 %v6154
        %8808 = vmatpush.msra.mxu0 %v6153
        %8809 = vmatpush.msra.mxu0 %v6152
        %8810 = vmatpush.msra.mxu0 %v6151
        %8811 = vmatpush.msra.mxu0 %v6150
        %8812 = vmatpush.msra.mxu0 %v6149
        %8813 = vmatpush.msra.mxu0 %v6148
        %8814 = vmatpush.msra.mxu0 %v6147
        %8815 = vmatpush.msra.mxu0 %v6146
        %8816 = vmatpush.msra.mxu0 %v6145
        %8817 = vmatpush.msra.mxu0 %v6144
        %8818 = vmatpush.msra.mxu0 %v6143
        %8819 = vmatmul.f32.gmra.mxu0 %v6932
        %v8820 = vpop.f32.mrf.mxu0
        %v8821 = vadd.f32 %v8801, %v8820
        %8822 = vdwg.mxu0
        %8823 = vmatpush.msra.mxu0 %v6174
        %8824 = vmatpush.msra.mxu0 %v6173
        %8825 = vmatpush.msra.mxu0 %v6172
        %8826 = vmatpush.msra.mxu0 %v6171
        %8827 = vmatpush.msra.mxu0 %v6170
        %8828 = vmatpush.msra.mxu0 %v6169
        %8829 = vmatpush.msra.mxu0 %v6168
        %8830 = vmatpush.msra.mxu0 %v6167
        %8831 = vmatpush.msra.mxu0 %v6166
        %8832 = vmatpush.msra.mxu0 %v6165
        %8833 = vmatpush.msra.mxu0 %v6164
        %8834 = vmatpush.msra.mxu0 %v6163
        %8835 = vmatpush.msra.mxu0 %v6162
        %8836 = vmatpush.msra.mxu0 %v6161
        %8837 = vmatpush.msra.mxu0 %v6160
        %8838 = vmatpush.msra.mxu0 %v6159
        %8839 = vmatmul.f32.gmra.mxu0 %v6933
        %v8840 = vpop.f32.mrf.mxu0
        %v8841 = vadd.f32 %v8821, %v8840
        %8842 = vdwg.mxu0
        %8843 = vmatpush.msra.mxu0 %v6190
        %8844 = vmatpush.msra.mxu0 %v6189
        %8845 = vmatpush.msra.mxu0 %v6188
        %8846 = vmatpush.msra.mxu0 %v6187
        %8847 = vmatpush.msra.mxu0 %v6186
        %8848 = vmatpush.msra.mxu0 %v6185
        %8849 = vmatpush.msra.mxu0 %v6184
        %8850 = vmatpush.msra.mxu0 %v6183
        %8851 = vmatpush.msra.mxu0 %v6182
        %8852 = vmatpush.msra.mxu0 %v6181
        %8853 = vmatpush.msra.mxu0 %v6180
        %8854 = vmatpush.msra.mxu0 %v6179
        %8855 = vmatpush.msra.mxu0 %v6178
        %8856 = vmatpush.msra.mxu0 %v6177
        %8857 = vmatpush.msra.mxu0 %v6176
        %8858 = vmatpush.msra.mxu0 %v6175
        %8859 = vmatmul.f32.gmra.mxu0 %v6934
        %v8860 = vpop.f32.mrf.mxu0
        %v8861 = vadd.f32 %v8841, %v8860
        %8862 = vdwg.mxu0
        %8863 = vmatpush.msra.mxu0 %v6206
        %8864 = vmatpush.msra.mxu0 %v6205
        %8865 = vmatpush.msra.mxu0 %v6204
        %8866 = vmatpush.msra.mxu0 %v6203
        %8867 = vmatpush.msra.mxu0 %v6202
        %8868 = vmatpush.msra.mxu0 %v6201
        %8869 = vmatpush.msra.mxu0 %v6200
        %8870 = vmatpush.msra.mxu0 %v6199
        %8871 = vmatpush.msra.mxu0 %v6198
        %8872 = vmatpush.msra.mxu0 %v6197
        %8873 = vmatpush.msra.mxu0 %v6196
        %8874 = vmatpush.msra.mxu0 %v6195
        %8875 = vmatpush.msra.mxu0 %v6194
        %8876 = vmatpush.msra.mxu0 %v6193
        %8877 = vmatpush.msra.mxu0 %v6192
        %8878 = vmatpush.msra.mxu0 %v6191
        %8879 = vmatmul.f32.gmra.mxu0 %v6935
        %v8880 = vpop.f32.mrf.mxu0
        %v8881 = vadd.f32 %v8861, %v8880
        %8882 = vdwg.mxu0
        %8883 = vmatpush.msra.mxu0 %v6222
        %8884 = vmatpush.msra.mxu0 %v6221
        %8885 = vmatpush.msra.mxu0 %v6220
        %8886 = vmatpush.msra.mxu0 %v6219
        %8887 = vmatpush.msra.mxu0 %v6218
        %8888 = vmatpush.msra.mxu0 %v6217
        %8889 = vmatpush.msra.mxu0 %v6216
        %8890 = vmatpush.msra.mxu0 %v6215
        %8891 = vmatpush.msra.mxu0 %v6214
        %8892 = vmatpush.msra.mxu0 %v6213
        %8893 = vmatpush.msra.mxu0 %v6212
        %8894 = vmatpush.msra.mxu0 %v6211
        %8895 = vmatpush.msra.mxu0 %v6210
        %8896 = vmatpush.msra.mxu0 %v6209
        %8897 = vmatpush.msra.mxu0 %v6208
        %8898 = vmatpush.msra.mxu0 %v6207
        %8899 = vmatmul.f32.gmra.mxu0 %v6936
        %v8900 = vpop.f32.mrf.mxu0
        %v8901 = vadd.f32 %v8881, %v8900
        %8902 = vdwg.mxu0
        %8903 = vmatpush.msra.mxu0 %v6238
        %8904 = vmatpush.msra.mxu0 %v6237
        %8905 = vmatpush.msra.mxu0 %v6236
        %8906 = vmatpush.msra.mxu0 %v6235
        %8907 = vmatpush.msra.mxu0 %v6234
        %8908 = vmatpush.msra.mxu0 %v6233
        %8909 = vmatpush.msra.mxu0 %v6232
        %8910 = vmatpush.msra.mxu0 %v6231
        %8911 = vmatpush.msra.mxu0 %v6230
        %8912 = vmatpush.msra.mxu0 %v6229
        %8913 = vmatpush.msra.mxu0 %v6228
        %8914 = vmatpush.msra.mxu0 %v6227
        %8915 = vmatpush.msra.mxu0 %v6226
        %8916 = vmatpush.msra.mxu0 %v6225
        %8917 = vmatpush.msra.mxu0 %v6224
        %8918 = vmatpush.msra.mxu0 %v6223
        %8919 = vmatmul.f32.gmra.mxu0 %v6937
        %v8920 = vpop.f32.mrf.mxu0
        %v8921 = vadd.f32 %v8901, %v8920
        %8922 = vdwg.mxu0
        %8923 = vmatpush.msra.mxu0 %v6254
        %8924 = vmatpush.msra.mxu0 %v6253
        %8925 = vmatpush.msra.mxu0 %v6252
        %8926 = vmatpush.msra.mxu0 %v6251
        %8927 = vmatpush.msra.mxu0 %v6250
        %8928 = vmatpush.msra.mxu0 %v6249
        %8929 = vmatpush.msra.mxu0 %v6248
        %8930 = vmatpush.msra.mxu0 %v6247
        %8931 = vmatpush.msra.mxu0 %v6246
        %8932 = vmatpush.msra.mxu0 %v6245
        %8933 = vmatpush.msra.mxu0 %v6244
        %8934 = vmatpush.msra.mxu0 %v6243
        %8935 = vmatpush.msra.mxu0 %v6242
        %8936 = vmatpush.msra.mxu0 %v6241
        %8937 = vmatpush.msra.mxu0 %v6240
        %8938 = vmatpush.msra.mxu0 %v6239
        %8939 = vmatmul.f32.gmra.mxu0 %v6938
        %v8940 = vpop.f32.mrf.mxu0
        %v8941 = vadd.f32 %v8921, %v8940
        %8942 = vdwg.mxu0
        %8943 = vmatpush.msra.mxu0 %v6270
        %8944 = vmatpush.msra.mxu0 %v6269
        %8945 = vmatpush.msra.mxu0 %v6268
        %8946 = vmatpush.msra.mxu0 %v6267
        %8947 = vmatpush.msra.mxu0 %v6266
        %8948 = vmatpush.msra.mxu0 %v6265
        %8949 = vmatpush.msra.mxu0 %v6264
        %8950 = vmatpush.msra.mxu0 %v6263
        %8951 = vmatpush.msra.mxu0 %v6262
        %8952 = vmatpush.msra.mxu0 %v6261
        %8953 = vmatpush.msra.mxu0 %v6260
        %8954 = vmatpush.msra.mxu0 %v6259
        %8955 = vmatpush.msra.mxu0 %v6258
        %8956 = vmatpush.msra.mxu0 %v6257
        %8957 = vmatpush.msra.mxu0 %v6256
        %8958 = vmatpush.msra.mxu0 %v6255
        %8959 = vmatmul.f32.gmra.mxu0 %v6939
        %v8960 = vpop.f32.mrf.mxu0
        %v8961 = vadd.f32 %v8941, %v8960
        %8962 = vdwg.mxu0
        %8963 = vmatpush.msra.mxu0 %v6286
        %8964 = vmatpush.msra.mxu0 %v6285
        %8965 = vmatpush.msra.mxu0 %v6284
        %8966 = vmatpush.msra.mxu0 %v6283
        %8967 = vmatpush.msra.mxu0 %v6282
        %8968 = vmatpush.msra.mxu0 %v6281
        %8969 = vmatpush.msra.mxu0 %v6280
        %8970 = vmatpush.msra.mxu0 %v6279
        %8971 = vmatpush.msra.mxu0 %v6278
        %8972 = vmatpush.msra.mxu0 %v6277
        %8973 = vmatpush.msra.mxu0 %v6276
        %8974 = vmatpush.msra.mxu0 %v6275
        %8975 = vmatpush.msra.mxu0 %v6274
        %8976 = vmatpush.msra.mxu0 %v6273
        %8977 = vmatpush.msra.mxu0 %v6272
        %8978 = vmatpush.msra.mxu0 %v6271
        %8979 = vmatmul.f32.gmra.mxu0 %v6940
        %v8980 = vpop.f32.mrf.mxu0
        %v8981 = vadd.f32 %v8961, %v8980
        %8982 = vdwg.mxu0
        %8983 = vmatpush.msra.mxu0 %v6302
        %8984 = vmatpush.msra.mxu0 %v6301
        %8985 = vmatpush.msra.mxu0 %v6300
        %8986 = vmatpush.msra.mxu0 %v6299
        %8987 = vmatpush.msra.mxu0 %v6298
        %8988 = vmatpush.msra.mxu0 %v6297
        %8989 = vmatpush.msra.mxu0 %v6296
        %8990 = vmatpush.msra.mxu0 %v6295
        %8991 = vmatpush.msra.mxu0 %v6294
        %8992 = vmatpush.msra.mxu0 %v6293
        %8993 = vmatpush.msra.mxu0 %v6292
        %8994 = vmatpush.msra.mxu0 %v6291
        %8995 = vmatpush.msra.mxu0 %v6290
        %8996 = vmatpush.msra.mxu0 %v6289
        %8997 = vmatpush.msra.mxu0 %v6288
        %8998 = vmatpush.msra.mxu0 %v6287
        %8999 = vmatmul.f32.gmra.mxu0 %v6941
        %v9000 = vpop.f32.mrf.mxu0
        %v9001 = vadd.f32 %v8981, %v9000
        %9002 = vdwg.mxu0
        %9003 = vmatpush.msra.mxu0 %v6318
        %9004 = vmatpush.msra.mxu0 %v6317
        %9005 = vmatpush.msra.mxu0 %v6316
        %9006 = vmatpush.msra.mxu0 %v6315
        %9007 = vmatpush.msra.mxu0 %v6314
        %9008 = vmatpush.msra.mxu0 %v6313
        %9009 = vmatpush.msra.mxu0 %v6312
        %9010 = vmatpush.msra.mxu0 %v6311
        %9011 = vmatpush.msra.mxu0 %v6310
        %9012 = vmatpush.msra.mxu0 %v6309
        %9013 = vmatpush.msra.mxu0 %v6308
        %9014 = vmatpush.msra.mxu0 %v6307
        %9015 = vmatpush.msra.mxu0 %v6306
        %9016 = vmatpush.msra.mxu0 %v6305
        %9017 = vmatpush.msra.mxu0 %v6304
        %9018 = vmatpush.msra.mxu0 %v6303
        %9019 = vmatmul.f32.gmra.mxu0 %v6942
        %v9020 = vpop.f32.mrf.mxu0
        %v9021 = vadd.f32 %v9001, %v9020
        %9022 = vdwg.mxu0
        %9023 = vmatpush.msra.mxu0 %v6334
        %9024 = vmatpush.msra.mxu0 %v6333
        %9025 = vmatpush.msra.mxu0 %v6332
        %9026 = vmatpush.msra.mxu0 %v6331
        %9027 = vmatpush.msra.mxu0 %v6330
        %9028 = vmatpush.msra.mxu0 %v6329
        %9029 = vmatpush.msra.mxu0 %v6328
        %9030 = vmatpush.msra.mxu0 %v6327
        %9031 = vmatpush.msra.mxu0 %v6326
        %9032 = vmatpush.msra.mxu0 %v6325
        %9033 = vmatpush.msra.mxu0 %v6324
        %9034 = vmatpush.msra.mxu0 %v6323
        %9035 = vmatpush.msra.mxu0 %v6322
        %9036 = vmatpush.msra.mxu0 %v6321
        %9037 = vmatpush.msra.mxu0 %v6320
        %9038 = vmatpush.msra.mxu0 %v6319
        %9039 = vmatmul.f32.gmra.mxu0 %v6943
        %v9040 = vpop.f32.mrf.mxu0
        %v9041 = vadd.f32 %v9021, %v9040
        %9042 = vdwg.mxu0
        %9043 = vmatpush.msra.mxu0 %v6350
        %9044 = vmatpush.msra.mxu0 %v6349
        %9045 = vmatpush.msra.mxu0 %v6348
        %9046 = vmatpush.msra.mxu0 %v6347
        %9047 = vmatpush.msra.mxu0 %v6346
        %9048 = vmatpush.msra.mxu0 %v6345
        %9049 = vmatpush.msra.mxu0 %v6344
        %9050 = vmatpush.msra.mxu0 %v6343
        %9051 = vmatpush.msra.mxu0 %v6342
        %9052 = vmatpush.msra.mxu0 %v6341
        %9053 = vmatpush.msra.mxu0 %v6340
        %9054 = vmatpush.msra.mxu0 %v6339
        %9055 = vmatpush.msra.mxu0 %v6338
        %9056 = vmatpush.msra.mxu0 %v6337
        %9057 = vmatpush.msra.mxu0 %v6336
        %9058 = vmatpush.msra.mxu0 %v6335
        %9059 = vmatmul.f32.gmra.mxu0 %v6944
        %v9060 = vpop.f32.mrf.mxu0
        %v9061 = vadd.f32 %v9041, %v9060
        %9062 = vdwg.mxu0
        %9063 = vmatpush.msra.mxu0 %v6366
        %9064 = vmatpush.msra.mxu0 %v6365
        %9065 = vmatpush.msra.mxu0 %v6364
        %9066 = vmatpush.msra.mxu0 %v6363
        %9067 = vmatpush.msra.mxu0 %v6362
        %9068 = vmatpush.msra.mxu0 %v6361
        %9069 = vmatpush.msra.mxu0 %v6360
        %9070 = vmatpush.msra.mxu0 %v6359
        %9071 = vmatpush.msra.mxu0 %v6358
        %9072 = vmatpush.msra.mxu0 %v6357
        %9073 = vmatpush.msra.mxu0 %v6356
        %9074 = vmatpush.msra.mxu0 %v6355
        %9075 = vmatpush.msra.mxu0 %v6354
        %9076 = vmatpush.msra.mxu0 %v6353
        %9077 = vmatpush.msra.mxu0 %v6352
        %9078 = vmatpush.msra.mxu0 %v6351
        %9079 = vmatmul.f32.gmra.mxu0 %v6945
        %v9080 = vpop.f32.mrf.mxu0
        %v9081 = vadd.f32 %v9061, %v9080
        %9082 = vdwg.mxu0
        %9083 = vmatpush.msra.mxu0 %v6382
        %9084 = vmatpush.msra.mxu0 %v6381
        %9085 = vmatpush.msra.mxu0 %v6380
        %9086 = vmatpush.msra.mxu0 %v6379
        %9087 = vmatpush.msra.mxu0 %v6378
        %9088 = vmatpush.msra.mxu0 %v6377
        %9089 = vmatpush.msra.mxu0 %v6376
        %9090 = vmatpush.msra.mxu0 %v6375
        %9091 = vmatpush.msra.mxu0 %v6374
        %9092 = vmatpush.msra.mxu0 %v6373
        %9093 = vmatpush.msra.mxu0 %v6372
        %9094 = vmatpush.msra.mxu0 %v6371
        %9095 = vmatpush.msra.mxu0 %v6370
        %9096 = vmatpush.msra.mxu0 %v6369
        %9097 = vmatpush.msra.mxu0 %v6368
        %9098 = vmatpush.msra.mxu0 %v6367
        %9099 = vmatmul.f32.gmra.mxu0 %v6946
        %v9100 = vpop.f32.mrf.mxu0
        %v9101 = vadd.f32 %v9081, %v9100
        %9102 = vdwg.mxu0
        %9103 = vmatpush.msra.mxu0 %v6398
        %9104 = vmatpush.msra.mxu0 %v6397
        %9105 = vmatpush.msra.mxu0 %v6396
        %9106 = vmatpush.msra.mxu0 %v6395
        %9107 = vmatpush.msra.mxu0 %v6394
        %9108 = vmatpush.msra.mxu0 %v6393
        %9109 = vmatpush.msra.mxu0 %v6392
        %9110 = vmatpush.msra.mxu0 %v6391
        %9111 = vmatpush.msra.mxu0 %v6390
        %9112 = vmatpush.msra.mxu0 %v6389
        %9113 = vmatpush.msra.mxu0 %v6388
        %9114 = vmatpush.msra.mxu0 %v6387
        %9115 = vmatpush.msra.mxu0 %v6386
        %9116 = vmatpush.msra.mxu0 %v6385
        %9117 = vmatpush.msra.mxu0 %v6384
        %9118 = vmatpush.msra.mxu0 %v6383
        %9119 = vmatmul.f32.gmra.mxu0 %v6947
        %v9120 = vpop.f32.mrf.mxu0
        %v9121 = vadd.f32 %v9101, %v9120
        %9122 = vdwg.mxu0
        %9123 = vmatpush.msra.mxu0 %v6414
        %9124 = vmatpush.msra.mxu0 %v6413
        %9125 = vmatpush.msra.mxu0 %v6412
        %9126 = vmatpush.msra.mxu0 %v6411
        %9127 = vmatpush.msra.mxu0 %v6410
        %9128 = vmatpush.msra.mxu0 %v6409
        %9129 = vmatpush.msra.mxu0 %v6408
        %9130 = vmatpush.msra.mxu0 %v6407
        %9131 = vmatpush.msra.mxu0 %v6406
        %9132 = vmatpush.msra.mxu0 %v6405
        %9133 = vmatpush.msra.mxu0 %v6404
        %9134 = vmatpush.msra.mxu0 %v6403
        %9135 = vmatpush.msra.mxu0 %v6402
        %9136 = vmatpush.msra.mxu0 %v6401
        %9137 = vmatpush.msra.mxu0 %v6400
        %9138 = vmatpush.msra.mxu0 %v6399
        %9139 = vmatmul.f32.gmra.mxu0 %v6948
        %v9140 = vpop.f32.mrf.mxu0
        %v9141 = vadd.f32 %v9121, %v9140
        %9142 = vdwg.mxu0
        %9143 = vmatpush.msra.mxu0 %v6430
        %9144 = vmatpush.msra.mxu0 %v6429
        %9145 = vmatpush.msra.mxu0 %v6428
        %9146 = vmatpush.msra.mxu0 %v6427
        %9147 = vmatpush.msra.mxu0 %v6426
        %9148 = vmatpush.msra.mxu0 %v6425
        %9149 = vmatpush.msra.mxu0 %v6424
        %9150 = vmatpush.msra.mxu0 %v6423
        %9151 = vmatpush.msra.mxu0 %v6422
        %9152 = vmatpush.msra.mxu0 %v6421
        %9153 = vmatpush.msra.mxu0 %v6420
        %9154 = vmatpush.msra.mxu0 %v6419
        %9155 = vmatpush.msra.mxu0 %v6418
        %9156 = vmatpush.msra.mxu0 %v6417
        %9157 = vmatpush.msra.mxu0 %v6416
        %9158 = vmatpush.msra.mxu0 %v6415
        %9159 = vmatmul.f32.gmra.mxu0 %v6949
        %v9160 = vpop.f32.mrf.mxu0
        %v9161 = vadd.f32 %v9141, %v9160
        %9162 = vdwg.mxu0
        %9163 = vmatpush.msra.mxu0 %v6446
        %9164 = vmatpush.msra.mxu0 %v6445
        %9165 = vmatpush.msra.mxu0 %v6444
        %9166 = vmatpush.msra.mxu0 %v6443
        %9167 = vmatpush.msra.mxu0 %v6442
        %9168 = vmatpush.msra.mxu0 %v6441
        %9169 = vmatpush.msra.mxu0 %v6440
        %9170 = vmatpush.msra.mxu0 %v6439
        %9171 = vmatpush.msra.mxu0 %v6438
        %9172 = vmatpush.msra.mxu0 %v6437
        %9173 = vmatpush.msra.mxu0 %v6436
        %9174 = vmatpush.msra.mxu0 %v6435
        %9175 = vmatpush.msra.mxu0 %v6434
        %9176 = vmatpush.msra.mxu0 %v6433
        %9177 = vmatpush.msra.mxu0 %v6432
        %9178 = vmatpush.msra.mxu0 %v6431
        %9179 = vmatmul.f32.gmra.mxu0 %v6950
        %v9180 = vpop.f32.mrf.mxu0
        %v9181 = vadd.f32 %v9161, %v9180
        %9182 = vdwg.mxu0
        %9183 = vmatpush.msra.mxu0 %v6462
        %9184 = vmatpush.msra.mxu0 %v6461
        %9185 = vmatpush.msra.mxu0 %v6460
        %9186 = vmatpush.msra.mxu0 %v6459
        %9187 = vmatpush.msra.mxu0 %v6458
        %9188 = vmatpush.msra.mxu0 %v6457
        %9189 = vmatpush.msra.mxu0 %v6456
        %9190 = vmatpush.msra.mxu0 %v6455
        %9191 = vmatpush.msra.mxu0 %v6454
        %9192 = vmatpush.msra.mxu0 %v6453
        %9193 = vmatpush.msra.mxu0 %v6452
        %9194 = vmatpush.msra.mxu0 %v6451
        %9195 = vmatpush.msra.mxu0 %v6450
        %9196 = vmatpush.msra.mxu0 %v6449
        %9197 = vmatpush.msra.mxu0 %v6448
        %9198 = vmatpush.msra.mxu0 %v6447
        %9199 = vmatmul.f32.gmra.mxu0 %v6951
        %v9200 = vpop.f32.mrf.mxu0
        %v9201 = vadd.f32 %v9181, %v9200
        %9202 = vdwg.mxu0
        %9203 = vmatpush.msra.mxu0 %v6478
        %9204 = vmatpush.msra.mxu0 %v6477
        %9205 = vmatpush.msra.mxu0 %v6476
        %9206 = vmatpush.msra.mxu0 %v6475
        %9207 = vmatpush.msra.mxu0 %v6474
        %9208 = vmatpush.msra.mxu0 %v6473
        %9209 = vmatpush.msra.mxu0 %v6472
        %9210 = vmatpush.msra.mxu0 %v6471
        %9211 = vmatpush.msra.mxu0 %v6470
        %9212 = vmatpush.msra.mxu0 %v6469
        %9213 = vmatpush.msra.mxu0 %v6468
        %9214 = vmatpush.msra.mxu0 %v6467
        %9215 = vmatpush.msra.mxu0 %v6466
        %9216 = vmatpush.msra.mxu0 %v6465
        %9217 = vmatpush.msra.mxu0 %v6464
        %9218 = vmatpush.msra.mxu0 %v6463
        %9219 = vmatmul.f32.gmra.mxu0 %v6952
        %v9220 = vpop.f32.mrf.mxu0
        %v9221 = vadd.f32 %v9201, %v9220
        %9222 = vdwg.mxu0
        %9223 = vmatpush.msra.mxu0 %v6494
        %9224 = vmatpush.msra.mxu0 %v6493
        %9225 = vmatpush.msra.mxu0 %v6492
        %9226 = vmatpush.msra.mxu0 %v6491
        %9227 = vmatpush.msra.mxu0 %v6490
        %9228 = vmatpush.msra.mxu0 %v6489
        %9229 = vmatpush.msra.mxu0 %v6488
        %9230 = vmatpush.msra.mxu0 %v6487
        %9231 = vmatpush.msra.mxu0 %v6486
        %9232 = vmatpush.msra.mxu0 %v6485
        %9233 = vmatpush.msra.mxu0 %v6484
        %9234 = vmatpush.msra.mxu0 %v6483
        %9235 = vmatpush.msra.mxu0 %v6482
        %9236 = vmatpush.msra.mxu0 %v6481
        %9237 = vmatpush.msra.mxu0 %v6480
        %9238 = vmatpush.msra.mxu0 %v6479
        %9239 = vmatmul.f32.gmra.mxu0 %v6953
        %v9240 = vpop.f32.mrf.mxu0
        %v9241 = vadd.f32 %v9221, %v9240
        %9242 = vdwg.mxu0
        %9243 = vmatpush.msra.mxu0 %v6510
        %9244 = vmatpush.msra.mxu0 %v6509
        %9245 = vmatpush.msra.mxu0 %v6508
        %9246 = vmatpush.msra.mxu0 %v6507
        %9247 = vmatpush.msra.mxu0 %v6506
        %9248 = vmatpush.msra.mxu0 %v6505
        %9249 = vmatpush.msra.mxu0 %v6504
        %9250 = vmatpush.msra.mxu0 %v6503
        %9251 = vmatpush.msra.mxu0 %v6502
        %9252 = vmatpush.msra.mxu0 %v6501
        %9253 = vmatpush.msra.mxu0 %v6500
        %9254 = vmatpush.msra.mxu0 %v6499
        %9255 = vmatpush.msra.mxu0 %v6498
        %9256 = vmatpush.msra.mxu0 %v6497
        %9257 = vmatpush.msra.mxu0 %v6496
        %9258 = vmatpush.msra.mxu0 %v6495
        %9259 = vmatmul.f32.gmra.mxu0 %v6954
        %v9260 = vpop.f32.mrf.mxu0
        %v9261 = vadd.f32 %v9241, %v9260
        %9262 = vdwg.mxu0
        %9263 = vmatpush.msra.mxu0 %v6526
        %9264 = vmatpush.msra.mxu0 %v6525
        %9265 = vmatpush.msra.mxu0 %v6524
        %9266 = vmatpush.msra.mxu0 %v6523
        %9267 = vmatpush.msra.mxu0 %v6522
        %9268 = vmatpush.msra.mxu0 %v6521
        %9269 = vmatpush.msra.mxu0 %v6520
        %9270 = vmatpush.msra.mxu0 %v6519
        %9271 = vmatpush.msra.mxu0 %v6518
        %9272 = vmatpush.msra.mxu0 %v6517
        %9273 = vmatpush.msra.mxu0 %v6516
        %9274 = vmatpush.msra.mxu0 %v6515
        %9275 = vmatpush.msra.mxu0 %v6514
        %9276 = vmatpush.msra.mxu0 %v6513
        %9277 = vmatpush.msra.mxu0 %v6512
        %9278 = vmatpush.msra.mxu0 %v6511
        %9279 = vmatmul.f32.gmra.mxu0 %v6955
        %v9280 = vpop.f32.mrf.mxu0
        %v9281 = vadd.f32 %v9261, %v9280
        %9282 = vdwg.mxu0
        %9283 = vmatpush.msra.mxu0 %v6542
        %9284 = vmatpush.msra.mxu0 %v6541
        %9285 = vmatpush.msra.mxu0 %v6540
        %9286 = vmatpush.msra.mxu0 %v6539
        %9287 = vmatpush.msra.mxu0 %v6538
        %9288 = vmatpush.msra.mxu0 %v6537
        %9289 = vmatpush.msra.mxu0 %v6536
        %9290 = vmatpush.msra.mxu0 %v6535
        %9291 = vmatpush.msra.mxu0 %v6534
        %9292 = vmatpush.msra.mxu0 %v6533
        %9293 = vmatpush.msra.mxu0 %v6532
        %9294 = vmatpush.msra.mxu0 %v6531
        %9295 = vmatpush.msra.mxu0 %v6530
        %9296 = vmatpush.msra.mxu0 %v6529
        %9297 = vmatpush.msra.mxu0 %v6528
        %9298 = vmatpush.msra.mxu0 %v6527
        %9299 = vmatmul.f32.gmra.mxu0 %v6956
        %v9300 = vpop.f32.mrf.mxu0
        %v9301 = vadd.f32 %v9281, %v9300
        %9302 = vdwg.mxu0
        %9303 = vmatpush.msra.mxu0 %v6558
        %9304 = vmatpush.msra.mxu0 %v6557
        %9305 = vmatpush.msra.mxu0 %v6556
        %9306 = vmatpush.msra.mxu0 %v6555
        %9307 = vmatpush.msra.mxu0 %v6554
        %9308 = vmatpush.msra.mxu0 %v6553
        %9309 = vmatpush.msra.mxu0 %v6552
        %9310 = vmatpush.msra.mxu0 %v6551
        %9311 = vmatpush.msra.mxu0 %v6550
        %9312 = vmatpush.msra.mxu0 %v6549
        %9313 = vmatpush.msra.mxu0 %v6548
        %9314 = vmatpush.msra.mxu0 %v6547
        %9315 = vmatpush.msra.mxu0 %v6546
        %9316 = vmatpush.msra.mxu0 %v6545
        %9317 = vmatpush.msra.mxu0 %v6544
        %9318 = vmatpush.msra.mxu0 %v6543
        %9319 = vmatmul.f32.gmra.mxu0 %v6957
        %v9320 = vpop.f32.mrf.mxu0
        %v9321 = vadd.f32 %v9301, %v9320
        %9322 = vdwg.mxu0
        %9323 = vmatpush.msra.mxu0 %v6574
        %9324 = vmatpush.msra.mxu0 %v6573
        %9325 = vmatpush.msra.mxu0 %v6572
        %9326 = vmatpush.msra.mxu0 %v6571
        %9327 = vmatpush.msra.mxu0 %v6570
        %9328 = vmatpush.msra.mxu0 %v6569
        %9329 = vmatpush.msra.mxu0 %v6568
        %9330 = vmatpush.msra.mxu0 %v6567
        %9331 = vmatpush.msra.mxu0 %v6566
        %9332 = vmatpush.msra.mxu0 %v6565
        %9333 = vmatpush.msra.mxu0 %v6564
        %9334 = vmatpush.msra.mxu0 %v6563
        %9335 = vmatpush.msra.mxu0 %v6562
        %9336 = vmatpush.msra.mxu0 %v6561
        %9337 = vmatpush.msra.mxu0 %v6560
        %9338 = vmatpush.msra.mxu0 %v6559
        %9339 = vmatmul.f32.gmra.mxu0 %v6958
        %v9340 = vpop.f32.mrf.mxu0
        %v9341 = vadd.f32 %v9321, %v9340
        %9342 = vdwg.mxu0
        %9343 = vmatpush.msra.mxu0 %v6590
        %9344 = vmatpush.msra.mxu0 %v6589
        %9345 = vmatpush.msra.mxu0 %v6588
        %9346 = vmatpush.msra.mxu0 %v6587
        %9347 = vmatpush.msra.mxu0 %v6586
        %9348 = vmatpush.msra.mxu0 %v6585
        %9349 = vmatpush.msra.mxu0 %v6584
        %9350 = vmatpush.msra.mxu0 %v6583
        %9351 = vmatpush.msra.mxu0 %v6582
        %9352 = vmatpush.msra.mxu0 %v6581
        %9353 = vmatpush.msra.mxu0 %v6580
        %9354 = vmatpush.msra.mxu0 %v6579
        %9355 = vmatpush.msra.mxu0 %v6578
        %9356 = vmatpush.msra.mxu0 %v6577
        %9357 = vmatpush.msra.mxu0 %v6576
        %9358 = vmatpush.msra.mxu0 %v6575
        %9359 = vmatmul.f32.gmra.mxu0 %v6959
        %v9360 = vpop.f32.mrf.mxu0
        %v9361 = vadd.f32 %v9341, %v9360
        %9362 = vdwg.mxu0
        %9363 = vmatpush.msra.mxu0 %v6606
        %9364 = vmatpush.msra.mxu0 %v6605
        %9365 = vmatpush.msra.mxu0 %v6604
        %9366 = vmatpush.msra.mxu0 %v6603
        %9367 = vmatpush.msra.mxu0 %v6602
        %9368 = vmatpush.msra.mxu0 %v6601
        %9369 = vmatpush.msra.mxu0 %v6600
        %9370 = vmatpush.msra.mxu0 %v6599
        %9371 = vmatpush.msra.mxu0 %v6598
        %9372 = vmatpush.msra.mxu0 %v6597
        %9373 = vmatpush.msra.mxu0 %v6596
        %9374 = vmatpush.msra.mxu0 %v6595
        %9375 = vmatpush.msra.mxu0 %v6594
        %9376 = vmatpush.msra.mxu0 %v6593
        %9377 = vmatpush.msra.mxu0 %v6592
        %9378 = vmatpush.msra.mxu0 %v6591
        %9379 = vmatmul.f32.gmra.mxu0 %v6960
        %v9380 = vpop.f32.mrf.mxu0
        %v9381 = vadd.f32 %v9361, %v9380
        %9382 = vdwg.mxu0
        %9383 = vmatpush.msra.mxu0 %v6622
        %9384 = vmatpush.msra.mxu0 %v6621
        %9385 = vmatpush.msra.mxu0 %v6620
        %9386 = vmatpush.msra.mxu0 %v6619
        %9387 = vmatpush.msra.mxu0 %v6618
        %9388 = vmatpush.msra.mxu0 %v6617
        %9389 = vmatpush.msra.mxu0 %v6616
        %9390 = vmatpush.msra.mxu0 %v6615
        %9391 = vmatpush.msra.mxu0 %v6614
        %9392 = vmatpush.msra.mxu0 %v6613
        %9393 = vmatpush.msra.mxu0 %v6612
        %9394 = vmatpush.msra.mxu0 %v6611
        %9395 = vmatpush.msra.mxu0 %v6610
        %9396 = vmatpush.msra.mxu0 %v6609
        %9397 = vmatpush.msra.mxu0 %v6608
        %9398 = vmatpush.msra.mxu0 %v6607
        %9399 = vmatmul.f32.gmra.mxu0 %v6961
        %v9400 = vpop.f32.mrf.mxu0
        %v9401 = vadd.f32 %v9381, %v9400
        %9402 = vdwg.mxu0
        %9403 = vmatpush.msra.mxu0 %v6638
        %9404 = vmatpush.msra.mxu0 %v6637
        %9405 = vmatpush.msra.mxu0 %v6636
        %9406 = vmatpush.msra.mxu0 %v6635
        %9407 = vmatpush.msra.mxu0 %v6634
        %9408 = vmatpush.msra.mxu0 %v6633
        %9409 = vmatpush.msra.mxu0 %v6632
        %9410 = vmatpush.msra.mxu0 %v6631
        %9411 = vmatpush.msra.mxu0 %v6630
        %9412 = vmatpush.msra.mxu0 %v6629
        %9413 = vmatpush.msra.mxu0 %v6628
        %9414 = vmatpush.msra.mxu0 %v6627
        %9415 = vmatpush.msra.mxu0 %v6626
        %9416 = vmatpush.msra.mxu0 %v6625
        %9417 = vmatpush.msra.mxu0 %v6624
        %9418 = vmatpush.msra.mxu0 %v6623
        %9419 = vmatmul.f32.gmra.mxu0 %v6962
        %v9420 = vpop.f32.mrf.mxu0
        %v9421 = vadd.f32 %v9401, %v9420
        %9422 = vdwg.mxu0
        %9423 = vmatpush.msra.mxu0 %v6654
        %9424 = vmatpush.msra.mxu0 %v6653
        %9425 = vmatpush.msra.mxu0 %v6652
        %9426 = vmatpush.msra.mxu0 %v6651
        %9427 = vmatpush.msra.mxu0 %v6650
        %9428 = vmatpush.msra.mxu0 %v6649
        %9429 = vmatpush.msra.mxu0 %v6648
        %9430 = vmatpush.msra.mxu0 %v6647
        %9431 = vmatpush.msra.mxu0 %v6646
        %9432 = vmatpush.msra.mxu0 %v6645
        %9433 = vmatpush.msra.mxu0 %v6644
        %9434 = vmatpush.msra.mxu0 %v6643
        %9435 = vmatpush.msra.mxu0 %v6642
        %9436 = vmatpush.msra.mxu0 %v6641
        %9437 = vmatpush.msra.mxu0 %v6640
        %9438 = vmatpush.msra.mxu0 %v6639
        %9439 = vmatmul.f32.gmra.mxu0 %v6963
        %v9440 = vpop.f32.mrf.mxu0
        %v9441 = vadd.f32 %v9421, %v9440
        %9442 = vdwg.mxu0
        %9443 = vmatpush.msra.mxu0 %v6670
        %9444 = vmatpush.msra.mxu0 %v6669
        %9445 = vmatpush.msra.mxu0 %v6668
        %9446 = vmatpush.msra.mxu0 %v6667
        %9447 = vmatpush.msra.mxu0 %v6666
        %9448 = vmatpush.msra.mxu0 %v6665
        %9449 = vmatpush.msra.mxu0 %v6664
        %9450 = vmatpush.msra.mxu0 %v6663
        %9451 = vmatpush.msra.mxu0 %v6662
        %9452 = vmatpush.msra.mxu0 %v6661
        %9453 = vmatpush.msra.mxu0 %v6660
        %9454 = vmatpush.msra.mxu0 %v6659
        %9455 = vmatpush.msra.mxu0 %v6658
        %9456 = vmatpush.msra.mxu0 %v6657
        %9457 = vmatpush.msra.mxu0 %v6656
        %9458 = vmatpush.msra.mxu0 %v6655
        %9459 = vmatmul.f32.gmra.mxu0 %v6964
        %v9460 = vpop.f32.mrf.mxu0
        %v9461 = vadd.f32 %v9441, %v9460
        %9462 = vdwg.mxu0
        %9463 = vmatpush.msra.mxu0 %v6686
        %9464 = vmatpush.msra.mxu0 %v6685
        %9465 = vmatpush.msra.mxu0 %v6684
        %9466 = vmatpush.msra.mxu0 %v6683
        %9467 = vmatpush.msra.mxu0 %v6682
        %9468 = vmatpush.msra.mxu0 %v6681
        %9469 = vmatpush.msra.mxu0 %v6680
        %9470 = vmatpush.msra.mxu0 %v6679
        %9471 = vmatpush.msra.mxu0 %v6678
        %9472 = vmatpush.msra.mxu0 %v6677
        %9473 = vmatpush.msra.mxu0 %v6676
        %9474 = vmatpush.msra.mxu0 %v6675
        %9475 = vmatpush.msra.mxu0 %v6674
        %9476 = vmatpush.msra.mxu0 %v6673
        %9477 = vmatpush.msra.mxu0 %v6672
        %9478 = vmatpush.msra.mxu0 %v6671
        %9479 = vmatmul.f32.gmra.mxu0 %v6965
        %v9480 = vpop.f32.mrf.mxu0
        %v9481 = vadd.f32 %v9461, %v9480
        %9482 = vdwg.mxu0
        %9483 = vmatpush.msra.mxu0 %v6702
        %9484 = vmatpush.msra.mxu0 %v6701
        %9485 = vmatpush.msra.mxu0 %v6700
        %9486 = vmatpush.msra.mxu0 %v6699
        %9487 = vmatpush.msra.mxu0 %v6698
        %9488 = vmatpush.msra.mxu0 %v6697
        %9489 = vmatpush.msra.mxu0 %v6696
        %9490 = vmatpush.msra.mxu0 %v6695
        %9491 = vmatpush.msra.mxu0 %v6694
        %9492 = vmatpush.msra.mxu0 %v6693
        %9493 = vmatpush.msra.mxu0 %v6692
        %9494 = vmatpush.msra.mxu0 %v6691
        %9495 = vmatpush.msra.mxu0 %v6690
        %9496 = vmatpush.msra.mxu0 %v6689
        %9497 = vmatpush.msra.mxu0 %v6688
        %9498 = vmatpush.msra.mxu0 %v6687
        %9499 = vmatmul.f32.gmra.mxu0 %v6966
        %v9500 = vpop.f32.mrf.mxu0
        %v9501 = vadd.f32 %v9481, %v9500
        %9502 = vdwg.mxu0
        %9503 = vmatpush.msra.mxu0 %v6718
        %9504 = vmatpush.msra.mxu0 %v6717
        %9505 = vmatpush.msra.mxu0 %v6716
        %9506 = vmatpush.msra.mxu0 %v6715
        %9507 = vmatpush.msra.mxu0 %v6714
        %9508 = vmatpush.msra.mxu0 %v6713
        %9509 = vmatpush.msra.mxu0 %v6712
        %9510 = vmatpush.msra.mxu0 %v6711
        %9511 = vmatpush.msra.mxu0 %v6710
        %9512 = vmatpush.msra.mxu0 %v6709
        %9513 = vmatpush.msra.mxu0 %v6708
        %9514 = vmatpush.msra.mxu0 %v6707
        %9515 = vmatpush.msra.mxu0 %v6706
        %9516 = vmatpush.msra.mxu0 %v6705
        %9517 = vmatpush.msra.mxu0 %v6704
        %9518 = vmatpush.msra.mxu0 %v6703
        %9519 = vmatmul.f32.gmra.mxu0 %v6967
        %v9520 = vpop.f32.mrf.mxu0
        %v9521 = vadd.f32 %v9501, %v9520
        %9522 = vdwg.mxu0
        %9523 = vmatpush.msra.mxu0 %v6734
        %9524 = vmatpush.msra.mxu0 %v6733
        %9525 = vmatpush.msra.mxu0 %v6732
        %9526 = vmatpush.msra.mxu0 %v6731
        %9527 = vmatpush.msra.mxu0 %v6730
        %9528 = vmatpush.msra.mxu0 %v6729
        %9529 = vmatpush.msra.mxu0 %v6728
        %9530 = vmatpush.msra.mxu0 %v6727
        %9531 = vmatpush.msra.mxu0 %v6726
        %9532 = vmatpush.msra.mxu0 %v6725
        %9533 = vmatpush.msra.mxu0 %v6724
        %9534 = vmatpush.msra.mxu0 %v6723
        %9535 = vmatpush.msra.mxu0 %v6722
        %9536 = vmatpush.msra.mxu0 %v6721
        %9537 = vmatpush.msra.mxu0 %v6720
        %9538 = vmatpush.msra.mxu0 %v6719
        %9539 = vmatmul.f32.gmra.mxu0 %v6968
        %v9540 = vpop.f32.mrf.mxu0
        %v9541 = vadd.f32 %v9521, %v9540
        %9542 = vdwg.mxu0
        %9543 = vmatpush.msra.mxu0 %v6750
        %9544 = vmatpush.msra.mxu0 %v6749
        %9545 = vmatpush.msra.mxu0 %v6748
        %9546 = vmatpush.msra.mxu0 %v6747
        %9547 = vmatpush.msra.mxu0 %v6746
        %9548 = vmatpush.msra.mxu0 %v6745
        %9549 = vmatpush.msra.mxu0 %v6744
        %9550 = vmatpush.msra.mxu0 %v6743
        %9551 = vmatpush.msra.mxu0 %v6742
        %9552 = vmatpush.msra.mxu0 %v6741
        %9553 = vmatpush.msra.mxu0 %v6740
        %9554 = vmatpush.msra.mxu0 %v6739
        %9555 = vmatpush.msra.mxu0 %v6738
        %9556 = vmatpush.msra.mxu0 %v6737
        %9557 = vmatpush.msra.mxu0 %v6736
        %9558 = vmatpush.msra.mxu0 %v6735
        %9559 = vmatmul.f32.gmra.mxu0 %v6969
        %v9560 = vpop.f32.mrf.mxu0
        %v9561 = vadd.f32 %v9541, %v9560
        %9562 = vdwg.mxu0
        %9563 = vmatpush.msra.mxu0 %v6766
        %9564 = vmatpush.msra.mxu0 %v6765
        %9565 = vmatpush.msra.mxu0 %v6764
        %9566 = vmatpush.msra.mxu0 %v6763
        %9567 = vmatpush.msra.mxu0 %v6762
        %9568 = vmatpush.msra.mxu0 %v6761
        %9569 = vmatpush.msra.mxu0 %v6760
        %9570 = vmatpush.msra.mxu0 %v6759
        %9571 = vmatpush.msra.mxu0 %v6758
        %9572 = vmatpush.msra.mxu0 %v6757
        %9573 = vmatpush.msra.mxu0 %v6756
        %9574 = vmatpush.msra.mxu0 %v6755
        %9575 = vmatpush.msra.mxu0 %v6754
        %9576 = vmatpush.msra.mxu0 %v6753
        %9577 = vmatpush.msra.mxu0 %v6752
        %9578 = vmatpush.msra.mxu0 %v6751
        %9579 = vmatmul.f32.gmra.mxu0 %v6970
        %v9580 = vpop.f32.mrf.mxu0
        %v9581 = vadd.f32 %v9561, %v9580
        %9582 = vdwg.mxu0
        %9583 = vmatpush.msra.mxu0 %v6782
        %9584 = vmatpush.msra.mxu0 %v6781
        %9585 = vmatpush.msra.mxu0 %v6780
        %9586 = vmatpush.msra.mxu0 %v6779
        %9587 = vmatpush.msra.mxu0 %v6778
        %9588 = vmatpush.msra.mxu0 %v6777
        %9589 = vmatpush.msra.mxu0 %v6776
        %9590 = vmatpush.msra.mxu0 %v6775
        %9591 = vmatpush.msra.mxu0 %v6774
        %9592 = vmatpush.msra.mxu0 %v6773
        %9593 = vmatpush.msra.mxu0 %v6772
        %9594 = vmatpush.msra.mxu0 %v6771
        %9595 = vmatpush.msra.mxu0 %v6770
        %9596 = vmatpush.msra.mxu0 %v6769
        %9597 = vmatpush.msra.mxu0 %v6768
        %9598 = vmatpush.msra.mxu0 %v6767
        %9599 = vmatmul.f32.gmra.mxu0 %v6971
        %v9600 = vpop.f32.mrf.mxu0
        %v9601 = vadd.f32 %v9581, %v9600
        %9602 = vdwg.mxu0
        %9603 = vmatpush.msra.mxu0 %v6798
        %9604 = vmatpush.msra.mxu0 %v6797
        %9605 = vmatpush.msra.mxu0 %v6796
        %9606 = vmatpush.msra.mxu0 %v6795
        %9607 = vmatpush.msra.mxu0 %v6794
        %9608 = vmatpush.msra.mxu0 %v6793
        %9609 = vmatpush.msra.mxu0 %v6792
        %9610 = vmatpush.msra.mxu0 %v6791
        %9611 = vmatpush.msra.mxu0 %v6790
        %9612 = vmatpush.msra.mxu0 %v6789
        %9613 = vmatpush.msra.mxu0 %v6788
        %9614 = vmatpush.msra.mxu0 %v6787
        %9615 = vmatpush.msra.mxu0 %v6786
        %9616 = vmatpush.msra.mxu0 %v6785
        %9617 = vmatpush.msra.mxu0 %v6784
        %9618 = vmatpush.msra.mxu0 %v6783
        %9619 = vmatmul.f32.gmra.mxu0 %v6972
        %v9620 = vpop.f32.mrf.mxu0
        %v9621 = vadd.f32 %v9601, %v9620
        %9622 = vdwg.mxu0
        %9623 = vmatpush.msra.mxu0 %v6814
        %9624 = vmatpush.msra.mxu0 %v6813
        %9625 = vmatpush.msra.mxu0 %v6812
        %9626 = vmatpush.msra.mxu0 %v6811
        %9627 = vmatpush.msra.mxu0 %v6810
        %9628 = vmatpush.msra.mxu0 %v6809
        %9629 = vmatpush.msra.mxu0 %v6808
        %9630 = vmatpush.msra.mxu0 %v6807
        %9631 = vmatpush.msra.mxu0 %v6806
        %9632 = vmatpush.msra.mxu0 %v6805
        %9633 = vmatpush.msra.mxu0 %v6804
        %9634 = vmatpush.msra.mxu0 %v6803
        %9635 = vmatpush.msra.mxu0 %v6802
        %9636 = vmatpush.msra.mxu0 %v6801
        %9637 = vmatpush.msra.mxu0 %v6800
        %9638 = vmatpush.msra.mxu0 %v6799
        %9639 = vmatmul.f32.gmra.mxu0 %v6973
        %v9640 = vpop.f32.mrf.mxu0
        %v9641 = vadd.f32 %v9621, %v9640
        %9642 = vdwg.mxu0
        %9643 = vmatpush.msra.mxu0 %v6830
        %9644 = vmatpush.msra.mxu0 %v6829
        %9645 = vmatpush.msra.mxu0 %v6828
        %9646 = vmatpush.msra.mxu0 %v6827
        %9647 = vmatpush.msra.mxu0 %v6826
        %9648 = vmatpush.msra.mxu0 %v6825
        %9649 = vmatpush.msra.mxu0 %v6824
        %9650 = vmatpush.msra.mxu0 %v6823
        %9651 = vmatpush.msra.mxu0 %v6822
        %9652 = vmatpush.msra.mxu0 %v6821
        %9653 = vmatpush.msra.mxu0 %v6820
        %9654 = vmatpush.msra.mxu0 %v6819
        %9655 = vmatpush.msra.mxu0 %v6818
        %9656 = vmatpush.msra.mxu0 %v6817
        %9657 = vmatpush.msra.mxu0 %v6816
        %9658 = vmatpush.msra.mxu0 %v6815
        %9659 = vmatmul.f32.gmra.mxu0 %v6974
        %v9660 = vpop.f32.mrf.mxu0
        %v9661 = vadd.f32 %v9641, %v9660
        %9662 = vdwg.mxu0
        %v9663 = vmul.f32 %v538, 0.996
        %9664 = vmatpush.msra.mxu0 0.0
        %9665 = vmatpush.msra.mxu0 0.0
        %9666 = vmatpush.msra.mxu0 0.0
        %9667 = vmatpush.msra.mxu0 0.0
        %9668 = vmatpush.msra.mxu0 0.0
        %9669 = vmatpush.msra.mxu0 0.0
        %9670 = vmatpush.msra.mxu0 0.0
        %9671 = vmatpush.msra.mxu0 0.0
        %9672 = vmatpush.msra.mxu0 %v4782
        %9673 = vmatpush.msra.mxu0 %v4781
        %9674 = vmatpush.msra.mxu0 %v4780
        %9675 = vmatpush.msra.mxu0 %v4779
        %9676 = vmatpush.msra.mxu0 %v4778
        %9677 = vmatpush.msra.mxu0 %v4777
        %9678 = vmatpush.msra.mxu0 %v4776
        %9679 = vmatpush.msra.mxu0 %v4775
        %9680 = vmatmul.f32.gmra.mxu0 %v1726
        %v9681 = vpop.f32.mrf.mxu0
        %v9682 = vadd.f32 %v9661, %v9681
        %9683 = vdwg.mxu0
        %v9684 = vld [vmem:[%s5] sm:$0x1]
        %v9685 = vmul.f32 %v565, %v9684
        %v9686 = vadd.f32 %v9682, %v9685
        %v9687 = vmul.f32 %v9686, 0.004
        %v9688 = vadd.f32 %v9663, %v9687
        %vm9689 = vcmask 516096
        %9690 = vst.msk [vmem:[#allocation6] sm:$0x1] %vm9689, %v9688
        %p9691 = scmp.lt.s32.totalorder %s29, 3
        %s9692 = scalar_select %p9691, %s29, 3
        %s9693 = scalar_lea.vmem %s12, %s9692
        // Predicated region
        $region73: #{mynet_rollout.1} parent=67 // pred_check
          %p9694 = pneg %p304
        $region74: #{mynet_rollout.1} parent=67 // pred_check_branch
          %9696 = sbr.rel (%p9694) target = $region76
        $region75: #{mynet_rollout.1} parent=67 // pred_region
          _
        $region76: #{mynet_rollout.1} parent=67 // pred_fallthru
          _
        // Predicated region
        $region77: #{mynet_rollout.1} parent=67 // pred_check
          %p9697 = pneg %p325
        $region78: #{mynet_rollout.1} parent=67 // pred_check_branch
          %9699 = sbr.rel (%p9697) target = $region80
        $region79: #{mynet_rollout.1} parent=67 // pred_region
          %9701 = vsyncadd [#allocation3], 0
          %s9703 = sshll.u32 [#allocation2], 4
          %s9704 = int_to_ptr.vmem [resolvable:$true] %s9703
          %s9705 = sshll.u32 %s13, 4
          %s9706 = int_to_ptr.hbm [resolvable:$true] %s9705
          %9708 = dma.vmem_to_hbm [thread:$0]  %s9704, 16, %s9706, [#allocation3]
        $region80: #{mynet_rollout.1} parent=67 // pred_fallthru
          _
        // Predicated region
        $region81: #{mynet_rollout.1} parent=67 // pred_check
          %p9709 = pneg %p346
        $region82: #{mynet_rollout.1} parent=67 // pred_check_branch
          %9711 = sbr.rel (%p9709) target = $region84
        $region83: #{mynet_rollout.1} parent=67 // pred_region
          %9713 = vsyncadd [#allocation5], 0
          %s9714 = sshll.u32 [#allocation4], 4
          %s9715 = int_to_ptr.vmem [resolvable:$true] %s9714
          %s9716 = sshll.u32 %s14, 4
          %s9717 = int_to_ptr.hbm [resolvable:$true] %s9716
          %9722 = dma.vmem_to_hbm [thread:$0]  %s9715, 2048, %s9717, [#allocation5], 128, 128, 8
        $region84: #{mynet_rollout.1} parent=67 // pred_fallthru
          _
        // Predicated region
        $region85: #{mynet_rollout.1} parent=67 // pred_check
          %p9723 = pneg %p367
        $region86: #{mynet_rollout.1} parent=67 // pred_check_branch
          %9725 = sbr.rel (%p9723) target = $region88
        $region87: #{mynet_rollout.1} parent=67 // pred_region
          %9727 = vsyncadd [#allocation5], 0
          %s9729 = sshll.u32 [#allocation6], 4
          %s9730 = int_to_ptr.vmem [resolvable:$true] %s9729
          %s9731 = sshll.u32 %s15, 4
          %s9732 = int_to_ptr.hbm [resolvable:$true] %s9731
          %9734 = dma.vmem_to_hbm [thread:$0]  %s9730, 16, %s9732, [#allocation5]
        $region88: #{mynet_rollout.1} parent=67 // pred_fallthru
          _
        // Predicated region
        $region89: #{mynet_rollout.1} parent=67 // pred_check
          %p9735 = pneg %p325
        $region90: #{mynet_rollout.1} parent=67 // pred_check_branch
          %9737 = sbr.rel (%p9735) target = $region92
        $region91: #{mynet_rollout.1} parent=67 // pred_region
          %9739 = dma.done [#allocation3], 16
        $region92: #{mynet_rollout.1} parent=67 // pred_fallthru
          _
        // Predicated region
        $region93: #{mynet_rollout.1} parent=67 // pred_check
          %p9740 = pneg %p346
        $region94: #{mynet_rollout.1} parent=67 // pred_check_branch
          %9742 = sbr.rel (%p9740) target = $region96
        $region95: #{mynet_rollout.1} parent=67 // pred_region
          %9744 = dma.done [#allocation5], 2048
        $region96: #{mynet_rollout.1} parent=67 // pred_fallthru
          _
        // Predicated region
        $region97: #{mynet_rollout.1} parent=67 // pred_check
          %p9745 = pneg %p367
        $region98: #{mynet_rollout.1} parent=67 // pred_check_branch
          %9747 = sbr.rel (%p9745) target = $region100
        $region99: #{mynet_rollout.1} parent=67 // pred_region
          %9749 = dma.done [#allocation5], 16
        $region100: #{mynet_rollout.1} parent=67 // pred_fallthru
          _
      $region68: #{mynet_rollout.1} parent=5 // pred_fallthru
        _
      %p9750 = scmp.le.s32.totalorder 2, %s24
      // Predicated region
      $region101: #{mynet_rollout.1} parent=5 // pred_check
        %p9751 = pneg %p9750
      $region102: #{mynet_rollout.1} parent=5 // pred_check_branch
        %9753 = sbr.rel (%p9751) target = $region104
      $region103: #{mynet_rollout.1} parent=5 // pred_region
        %s9754 = ssub.s32 %s24, 2
        // Predicated region
        $region105: #{mynet_rollout.1} parent=103 // pred_check
          %p9755 = pneg %p310
        $region106: #{mynet_rollout.1} parent=103 // pred_check_branch
          %9757 = sbr.rel (%p9755) target = $region108
        $region107: #{mynet_rollout.1} parent=103 // pred_region
          %p9758 = scmp.lt.s32.totalorder %s30, 3
          %s9759 = scalar_select %p9758, %s30, 3
          %s9760 = scalar_lea.vmem %s12, %s9759
        $region108: #{mynet_rollout.1} parent=103 // pred_fallthru
          _
      $region104: #{mynet_rollout.1} parent=5 // pred_fallthru
        _
    $region6: #{mynet_rollout.1} parent=1 // loop_footer
      %s28 = sadd.s32 1, %s24
    $region7: #{mynet_rollout.1} parent=1 // loop_footer_branch
      %23 = sbr.rel target = $region3
    $region8: #{mynet_rollout.1} parent=1 // loop_exit
      _
    %9761 = vsyncpa [#allocation3], 1
    %s9762 = scalar_lea.sflag [#allocation3], 1
    %9763 = vsyncpa %s9762, 1
    %9764 = vsyncpa [#allocation5], 1

</llo_original>
